<compile_context>
chip_gen: v5e
topology: v5e:2x2
jax: 0.10.0
libtpu: 0.0.40
codegen_flags: <defaults>
</compile_context>

<pallas_src>
import functools

import numpy as np
import jax
import jax.numpy as jnp
from jax.experimental import pallas as pl
from jax.experimental.pallas import tpu as pltpu

K = 7        # Conv1d kernel size used throughout DELayer._get_mlp()
STRIDE = 2   # Conv1d stride


# ----------------------- parameter setup (plain numpy glue) -----------------------

def prepare_params(torch_params, l2):
    """PyTorch-shaped DELayer weights -> compact kernel weights.

    Conv weights become (K*Cin, Cout) im2col matrices (row = k*Cin + ic).  The
    first Linear gets its input features permuted from PyTorch's channel-major
    Flatten order (c*L2 + l) to the kernel's position-major order (l*C3 + c).
    Matmul weights are bfloat16; biases are float32 row vectors; the last
    Linear (64 -> 1) is kept as a float32 row for a VPU/lane-reduce dot.
    """
    w1, b1, w2, b2, w3, b3, fw1, fb1, fw2, fb2, fw3, fb3 = [
        np.asarray(a, np.float32) for a in torch_params]
    c1, c2, c3 = w1.shape[0], w2.shape[0], w3.shape[0]

    W1 = np.transpose(w1, (2, 1, 0)).reshape(K * w1.shape[1], c1)   # (7, 30)
    W2 = np.transpose(w2, (2, 1, 0)).reshape(K * w2.shape[1], c2)   # (210, 30)
    W3 = np.transpose(w3, (2, 1, 0)).reshape(K * w3.shape[1], c3)   # (210, 10)

    perm = np.array([c * l2 + l for l in range(l2) for c in range(c3)])
    FW1 = fw1.T[perm]                                               # (l2*c3, 128)
    FW2 = fw2.T                                                     # (128, 64)
    FW3_row = fw3                                                   # (1, 64) - VPU row

    bf16 = lambda a: jnp.asarray(a, jnp.bfloat16)
    row = lambda a: jnp.asarray(a[None, :], jnp.float32)
    return (bf16(W1), row(b1), bf16(W2), row(b2), bf16(W3), row(b3),
            bf16(FW1), row(fb1), bf16(FW2), row(fb2),
            jnp.asarray(FW3_row, jnp.float32), row(fb3))


# ----------------------------------- Pallas kernel ------------------------------------

def _de_layer_kernel(xcol_ref, xf_ref,
                     w1_ref, b1_ref, w2_ref, b2_ref, w3_ref, b3_ref,
                     fw1_ref, c1_ref, fw2_ref, c2_ref, fw3_ref, c3_ref,
                     out_ref, *, B, C, L0p, L1, L2, C1, C2, C3):
    # B here is the *block* batch size (one grid step).
    N = B * C
    Dp = xf_ref.shape[1]
    H1 = fw1_ref.shape[1]

    # ---- conv1: stride-2 im2col patches were built on the XLA side (Cin=1) ----
    a1 = jnp.dot(xcol_ref[...], w1_ref[...], preferred_element_type=jnp.float32)
    a1 = jnp.maximum(a1 + b1_ref[...], 0.0).astype(jnp.bfloat16)    # (N*L0p, C1)
    # TODO(synk): on v6e/v7x the bias+ReLU above could stay in bf16 (native bf16
    # VALU); kept in f32 here so the same kernel is also efficient on v5e.

    # ---- conv2: accumulate over the K kernel taps (no lane concat/reshape) ----
    a1p = a1.reshape(N, L0p // 2, 2, C1)       # leading-dim split + parity views
    even1 = a1p[:, :, 0, :]                    # act[:, 2m,   :]
    odd1 = a1p[:, :, 1, :]                     # act[:, 2m+1, :]
    acc2 = jnp.zeros((N * L1, C2), jnp.float32)
    for k in range(K):
        src = even1 if k % 2 == 0 else odd1
        j = k // 2
        sl = src[:, j:j + L1, :].reshape(N * L1, C1)   # leading-dim merge (free)
        acc2 = acc2 + jnp.dot(sl, w2_ref[k * C1:(k + 1) * C1, :],
                              preferred_element_type=jnp.float32)
    a2 = jnp.maximum(acc2 + b2_ref[...], 0.0).astype(jnp.bfloat16)  # (N*L1, C2)

    # ---- conv3 fused with fc1: per position l, conv3 -> ReLU -> fc1 slab ----
    a2p = a2.reshape(N, L1 // 2, 2, C2)
    even2 = a2p[:, :, 0, :]
    odd2 = a2p[:, :, 1, :]
    acc1 = jnp.zeros((N, H1), jnp.float32)     # fc1 accumulator, f32
    for l in range(L2):
        acc3 = jnp.zeros((N, C3), jnp.float32)
        for k in range(K):
            src = even2 if k % 2 == 0 else odd2
            j = l + k // 2                     # spatial position 2l + k
            acc3 = acc3 + jnp.dot(src[:, j, :], w3_ref[k * C2:(k + 1) * C2, :],
                                  preferred_element_type=jnp.float32)
        a3_l = jnp.maximum(acc3 + b3_ref[...], 0.0).astype(jnp.bfloat16)
        acc1 = acc1 + jnp.dot(a3_l, fw1_ref[l * C3:(l + 1) * C3, :],
                              preferred_element_type=jnp.float32)

    h1 = jnp.maximum(acc1 + c1_ref[...], 0.0).astype(jnp.bfloat16)  # (N, 128)
    h2 = jnp.maximum(jnp.dot(h1, fw2_ref[...],
                             preferred_element_type=jnp.float32)
                     + c2_ref[...], 0.0)                            # (N, 64) f32

    # fc3 (64 -> 1) as a VPU multiply + lane reduce instead of a 1-lane MXU pass.
    s = jnp.maximum(jnp.sum(h2 * fw3_ref[...], axis=-1, keepdims=True)
                    + c3_ref[...], 0.0)                             # (N, 1) score

    # ---- channel softmax + weighted channel sum (sum_channels=True) ----
    # Rows are channel-fastest (n = b*C + c): only leading-dim reshapes and
    # per-channel slices are needed; the channel loop is unrolled (C is tiny;
    # for large C switch to a lane-major (B, C) view with axis=-1 reductions).
    # Dropout branch of the original forward is dead code (`self.train() == 1`
    # is always False), so no dropout is applied.
    s3 = s.reshape(B, C, 1)
    sc = [s3[:, c, :] for c in range(C)]       # each (B, 1)
    m = sc[0]
    for c in range(1, C):
        m = jnp.maximum(m, sc[c])
    ec = [jnp.exp(v - m) for v in sc]
    z = ec[0]
    for c in range(1, C):
        z = z + ec[c]
    inv_z = pl.reciprocal(z, approx=False)     # exact; off the critical path

    x3 = xf_ref[...].reshape(B, C, Dp)
    out = (ec[0] * inv_z) * x3[:, 0, :]
    for c in range(1, C):
        out = out + (ec[c] * inv_z) * x3[:, c, :]
    out_ref[...] = out                         # (B, Dp) lane-dense store


def de_layer_forward(x, kernel_params, *, max_rows_per_block=1024):
    """x: (B, C, D) float32 -> (B, 1, D) float32 (sum_channels=True)."""
    B, C, D = x.shape
    L0 = (D - K) // STRIDE + 1
    L1 = (L0 - K) // STRIDE + 1
    L2 = (L1 - K) // STRIDE + 1
    L0p = L0 + (L0 % 2)            # even length for the in-kernel parity split;
                                   # the extra conv1 position is never read
    C1 = kernel_params[0].shape[1]
    C2 = kernel_params[2].shape[1]
    C3 = kernel_params[4].shape[1]
    Dp = 128 * pl.cdiv(D, 128)     # lane-dense signal / output width

    assert L0p % 2 == 0 and L1 % 2 == 0
    assert (K - 1) // 2 + L1 <= L0p // 2 and (K - 1) // 2 + L2 <= L1 // 2
    assert STRIDE * (L0p - 1) + K <= Dp

    # Batch block: ~max_rows_per_block (b,c) rows per grid step (sized for
    # v7x's 64 MiB VMEM; also fine on v5e/v6e).  Bb is a multiple of 8 whenever
    # the batch is split, so every blocked second-minor dim stays 8-aligned.
    target_bb = max(8, (max_rows_per_block // C) // 8 * 8)
    if B <= target_bb:
        Bb, Bpad = B, B
    else:
        Bb = target_bb
        Bpad = Bb * pl.cdiv(B, Bb)

    if Bpad > B:
        x = jnp.pad(x, ((0, Bpad - B), (0, 0), (0, 0)))
    Np = Bpad * C
    NB = Bb * C

    xf = jnp.pad(x.reshape(Np, D).astype(jnp.float32), ((0, 0), (0, Dp - D)))
    # Stride-2 im2col of the raw (single-channel) input, done on the XLA side
    # and pre-cast to bf16 (halves the dominant input DMA):
    # xcol[n*L0p + l, k] = x[n, 2*l + k]  (reads past D hit the zero padding).
    idx = STRIDE * np.arange(L0p)[:, None] + np.arange(K)[None, :]
    xcol = xf[:, idx].astype(jnp.bfloat16).reshape(Np * L0p, K)

    kernel = functools.partial(_de_layer_kernel, B=Bb, C=C, L0p=L0p, L1=L1,
                               L2=L2, C1=C1, C2=C2, C3=C3)

    const_spec = lambda p: pl.BlockSpec(p.shape, lambda i: (0, 0))
    in_specs = ([pl.BlockSpec((NB * L0p, K), lambda i: (i, 0)),   # conv1 patches
                 pl.BlockSpec((NB, Dp), lambda i: (i, 0))]        # raw signal
                + [const_spec(p) for p in kernel_params])         # resident weights
    out_specs = pl.BlockSpec((Bb, Dp), lambda i: (i, 0))

    out = pl.pallas_call(
        kernel,
        grid=(Bpad // Bb,),
        in_specs=in_specs,
        out_specs=out_specs,
        out_shape=jax.ShapeDtypeStruct((Bpad, Dp), jnp.float32),
        compiler_params=pltpu.CompilerParams(
            dimension_semantics=("parallel",),      # megacore sharding on v7x
            vmem_limit_bytes=32 * 1024 * 1024),
    )(xcol, xf, *kernel_params)
    return out[:B, None, :D]


# -------------------------------- numpy reference --------------------------------------

def _relu(a):
    return np.maximum(a, 0.0)


def _conv1d_np(inp, w, b, stride=STRIDE):
    B_, cin, L = inp.shape
    cout, _, k = w.shape
    lout = (L - k) // stride + 1
    out = np.zeros((B_, cout, lout), np.float32)
    for l in range(lout):
        seg = inp[:, :, l * stride:l * stride + k]
        out[:, :, l] = np.einsum('bik,oik->bo', seg, w) + b
    return out


def reference_forward(x_np, tp):
    w1, b1, w2, b2, w3, b3, fw1, fb1, fw2, fb2, fw3, fb3 = tp
    B, C, D = x_np.shape
    outs = []
    for c in range(C):
        fm = x_np[:, c:c + 1, :]
        h = _relu(_conv1d_np(fm, w1, b1))
        h = _relu(_conv1d_np(h, w2, b2))
        h = _relu(_conv1d_np(h, w3, b3))
        h = h.reshape(B, -1)
        h = _relu(h @ fw1.T + fb1)
        h = _relu(h @ fw2.T + fb2)
        h = _relu(h @ fw3.T + fb3)
        outs.append(h)
    merge = np.concatenate(outs, axis=-1)                     # (B, C)
    ex = np.exp(merge - merge.max(axis=1, keepdims=True))
    w = ex / ex.sum(axis=1, keepdims=True)
    refined = x_np * w[:, :, None]
    return refined.sum(axis=1, keepdims=True)                 # (B, 1, D)


# --------------------------------------- main -----------------------------------------

if __name__ == "__main__":
    B, C, D = 2, 4, 63          # batch=2, input_channels=4, input_dim=63
    key = jax.random.PRNGKey(0)
    ks = jax.random.split(key, 14)

    def init(k, shape, fan_in):
        return np.asarray(jax.random.normal(k, shape, jnp.float32)) / np.sqrt(fan_in)

    # PyTorch-shaped parameters of DELayer._get_mlp()
    L0 = (D - K) // STRIDE + 1
    L1 = (L0 - K) // STRIDE + 1
    L2 = (L1 - K) // STRIDE + 1
    flat = 10 * L2

    w1 = init(ks[0], (30, 1, K), 7);      b1 = init(ks[1], (30,), 7)
    w2 = init(ks[2], (30, 30, K), 210);   b2 = init(ks[3], (30,), 210)
    w3 = init(ks[4], (10, 30, K), 210);   b3 = init(ks[5], (10,), 210)
    fw1 = init(ks[6], (128, flat), flat); fb1 = init(ks[7], (128,), flat)
    fw2 = init(ks[8], (64, 128), 128);    fb2 = init(ks[9], (64,), 128)
    fw3 = init(ks[10], (1, 64), 64);      fb3 = init(ks[11], (1,), 64)
    torch_params = (w1, b1, w2, b2, w3, b3, fw1, fb1, fw2, fb2, fw3, fb3)

    # Compact bf16/f32 kernel-side parameters.
    kernel_params = prepare_params(torch_params, L2)

    # Small single-block case (grid = (1,)).
    x = jax.random.normal(ks[12], (B, C, D), jnp.float32)
    out = jax.jit(de_layer_forward)(x, kernel_params)
    out = jax.block_until_ready(out)
    ref = reference_forward(np.asarray(x, np.float32), torch_params)
    np.testing.assert_allclose(np.asarray(out), ref, rtol=5e-2, atol=5e-2)

    # Multi-block case exercising the batch grid + padding path (grid = (3,)).
    B2 = 20
    x2 = jax.random.normal(ks[13], (B2, C, D), jnp.float32)
    fwd_blocked = jax.jit(functools.partial(de_layer_forward, max_rows_per_block=32))
    out2 = jax.block_until_ready(fwd_blocked(x2, kernel_params))
    ref2 = reference_forward(np.asarray(x2, np.float32), torch_params)
    np.testing.assert_allclose(np.asarray(out2), ref2, rtol=5e-2, atol=5e-2)

    print("KERNEL_OK")
</pallas_src>

<mosaic_0001>
module attributes {stable_mosaic.version = 11 : i64} {
  func.func @_de_layer_kernel(%arg0: i32, %arg1: memref<240x7xbf16, #tpu.memory_space<vmem>>, %arg2: memref<8x128xf32, #tpu.memory_space<vmem>>, %arg3: memref<7x30xbf16, #tpu.memory_space<vmem>>, %arg4: memref<1x30xf32, #tpu.memory_space<vmem>>, %arg5: memref<210x30xbf16, #tpu.memory_space<vmem>>, %arg6: memref<1x30xf32, #tpu.memory_space<vmem>>, %arg7: memref<210x10xbf16, #tpu.memory_space<vmem>>, %arg8: memref<1x10xf32, #tpu.memory_space<vmem>>, %arg9: memref<30x128xbf16, #tpu.memory_space<vmem>>, %arg10: memref<1x128xf32, #tpu.memory_space<vmem>>, %arg11: memref<128x64xbf16, #tpu.memory_space<vmem>>, %arg12: memref<1x64xf32, #tpu.memory_space<vmem>>, %arg13: memref<1x64xf32, #tpu.memory_space<vmem>>, %arg14: memref<1x1xf32, #tpu.memory_space<vmem>>, %arg15: memref<2x128xf32, #tpu.memory_space<vmem>>) attributes {dimension_semantics = [#tpu.dimension_semantics<parallel>], iteration_bounds = array<i64: 1>, scalar_prefetch = 0 : i64, scratch_operands = 0 : i64, tpu.core_type = #tpu.core_type<tc>, window_params = [{transform_indices = @transform_0, window_bounds = array<i64: 240, 7>}, {transform_indices = @transform_1, window_bounds = array<i64: 8, 128>}, {pipeline_mode = #tpu.pipeline_mode<synchronous>, transform_indices = @transform_2, window_bounds = array<i64: 7, 30>}, {pipeline_mode = #tpu.pipeline_mode<synchronous>, transform_indices = @transform_3, window_bounds = array<i64: 1, 30>}, {pipeline_mode = #tpu.pipeline_mode<synchronous>, transform_indices = @transform_4, window_bounds = array<i64: 210, 30>}, {pipeline_mode = #tpu.pipeline_mode<synchronous>, transform_indices = @transform_5, window_bounds = array<i64: 1, 30>}, {pipeline_mode = #tpu.pipeline_mode<synchronous>, transform_indices = @transform_6, window_bounds = array<i64: 210, 10>}, {pipeline_mode = #tpu.pipeline_mode<synchronous>, transform_indices = @transform_7, window_bounds = array<i64: 1, 10>}, {pipeline_mode = #tpu.pipeline_mode<synchronous>, transform_indices = @transform_8, window_bounds = array<i64: 30, 128>}, {pipeline_mode = #tpu.pipeline_mode<synchronous>, transform_indices = @transform_9, window_bounds = array<i64: 1, 128>}, {pipeline_mode = #tpu.pipeline_mode<synchronous>, transform_indices = @transform_10, window_bounds = array<i64: 128, 64>}, {pipeline_mode = #tpu.pipeline_mode<synchronous>, transform_indices = @transform_11, window_bounds = array<i64: 1, 64>}, {pipeline_mode = #tpu.pipeline_mode<synchronous>, transform_indices = @transform_12, window_bounds = array<i64: 1, 64>}, {pipeline_mode = #tpu.pipeline_mode<synchronous>, transform_indices = @transform_13, window_bounds = array<i64: 1, 1>}, {transform_indices = @transform_14, window_bounds = array<i64: 2, 128>}]} {
    %c0 = arith.constant 0 : index
    %c0_0 = arith.constant 0 : index
    %0 = vector.load %arg1[%c0, %c0_0] : memref<240x7xbf16, #tpu.memory_space<vmem>>, vector<240x7xbf16>
    %c0_1 = arith.constant 0 : index
    %c0_2 = arith.constant 0 : index
    %1 = vector.load %arg3[%c0_1, %c0_2] : memref<7x30xbf16, #tpu.memory_space<vmem>>, vector<7x30xbf16>
    %cst = arith.constant dense<0.000000e+00> : vector<240x30xf32>
    %2 = tpu.matmul %0, %1, %cst {dimension_numbers = #tpu.dot_dimension_numbers<[1], [0], [0], [1], [0, 0, 1, 1], [], []>} : vector<240x7xbf16>, vector<7x30xbf16>, vector<240x30xf32> -> vector<240x30xf32>
    %c0_3 = arith.constant 0 : index
    %c0_4 = arith.constant 0 : index
    %3 = vector.load %arg4[%c0_3, %c0_4] : memref<1x30xf32, #tpu.memory_space<vmem>>, vector<1x30xf32>
    %4 = vector.broadcast %3 : vector<1x30xf32> to vector<240x30xf32>
    %5 = arith.addf %2, %4 : vector<240x30xf32>
    %cst_5 = arith.constant 0.000000e+00 : f32
    %6 = vector.broadcast %cst_5 : f32 to vector<240x30xf32>
    %7 = arith.maximumf %5, %6 : vector<240x30xf32>
    %8 = arith.truncf %7 : vector<240x30xf32> to vector<240x30xbf16>
    %9 = vector.shape_cast %8 : vector<240x30xbf16> to vector<8x15x2x30xbf16>
    %10 = vector.extract_strided_slice %9 {offsets = [0, 0, 0, 0], sizes = [8, 15, 1, 30], strides = [1, 1, 1, 1]} : vector<8x15x2x30xbf16> to vector<8x15x1x30xbf16>
    %11 = vector.shape_cast %10 : vector<8x15x1x30xbf16> to vector<8x15x30xbf16>
    %12 = vector.extract_strided_slice %9 {offsets = [0, 0, 1, 0], sizes = [8, 15, 1, 30], strides = [1, 1, 1, 1]} : vector<8x15x2x30xbf16> to vector<8x15x1x30xbf16>
    %13 = vector.shape_cast %12 : vector<8x15x1x30xbf16> to vector<8x15x30xbf16>
    %cst_6 = arith.constant 0.000000e+00 : f32
    %14 = vector.broadcast %cst_6 : f32 to vector<96x30xf32>
    %15 = vector.extract_strided_slice %11 {offsets = [0, 0, 0], sizes = [8, 12, 30], strides = [1, 1, 1]} : vector<8x15x30xbf16> to vector<8x12x30xbf16>
    %16 = vector.shape_cast %15 : vector<8x12x30xbf16> to vector<96x30xbf16>
    %c0_7 = arith.constant 0 : index
    %c0_8 = arith.constant 0 : index
    %17 = vector.load %arg5[%c0_7, %c0_8] : memref<210x30xbf16, #tpu.memory_space<vmem>>, vector<30x30xbf16>
    %cst_9 = arith.constant dense<0.000000e+00> : vector<96x30xf32>
    %18 = tpu.matmul %16, %17, %cst_9 {dimension_numbers = #tpu.dot_dimension_numbers<[1], [0], [0], [1], [0, 0, 1, 1], [], []>} : vector<96x30xbf16>, vector<30x30xbf16>, vector<96x30xf32> -> vector<96x30xf32>
    %19 = arith.addf %14, %18 : vector<96x30xf32>
    %20 = vector.extract_strided_slice %13 {offsets = [0, 0, 0], sizes = [8, 12, 30], strides = [1, 1, 1]} : vector<8x15x30xbf16> to vector<8x12x30xbf16>
    %21 = vector.shape_cast %20 : vector<8x12x30xbf16> to vector<96x30xbf16>
    %c30 = arith.constant 30 : index
    %c0_10 = arith.constant 0 : index
    %22 = vector.load %arg5[%c30, %c0_10] : memref<210x30xbf16, #tpu.memory_space<vmem>>, vector<30x30xbf16>
    %cst_11 = arith.constant dense<0.000000e+00> : vector<96x30xf32>
    %23 = tpu.matmul %21, %22, %cst_11 {dimension_numbers = #tpu.dot_dimension_numbers<[1], [0], [0], [1], [0, 0, 1, 1], [], []>} : vector<96x30xbf16>, vector<30x30xbf16>, vector<96x30xf32> -> vector<96x30xf32>
    %24 = arith.addf %19, %23 : vector<96x30xf32>
    %25 = vector.extract_strided_slice %11 {offsets = [0, 1, 0], sizes = [8, 12, 30], strides = [1, 1, 1]} : vector<8x15x30xbf16> to vector<8x12x30xbf16>
    %26 = vector.shape_cast %25 : vector<8x12x30xbf16> to vector<96x30xbf16>
    %c60 = arith.constant 60 : index
    %c0_12 = arith.constant 0 : index
    %27 = vector.load %arg5[%c60, %c0_12] : memref<210x30xbf16, #tpu.memory_space<vmem>>, vector<30x30xbf16>
    %cst_13 = arith.constant dense<0.000000e+00> : vector<96x30xf32>
    %28 = tpu.matmul %26, %27, %cst_13 {dimension_numbers = #tpu.dot_dimension_numbers<[1], [0], [0], [1], [0, 0, 1, 1], [], []>} : vector<96x30xbf16>, vector<30x30xbf16>, vector<96x30xf32> -> vector<96x30xf32>
    %29 = arith.addf %24, %28 : vector<96x30xf32>
    %30 = vector.extract_strided_slice %13 {offsets = [0, 1, 0], sizes = [8, 12, 30], strides = [1, 1, 1]} : vector<8x15x30xbf16> to vector<8x12x30xbf16>
    %31 = vector.shape_cast %30 : vector<8x12x30xbf16> to vector<96x30xbf16>
    %c90 = arith.constant 90 : index
    %c0_14 = arith.constant 0 : index
    %32 = vector.load %arg5[%c90, %c0_14] : memref<210x30xbf16, #tpu.memory_space<vmem>>, vector<30x30xbf16>
    %cst_15 = arith.constant dense<0.000000e+00> : vector<96x30xf32>
    %33 = tpu.matmul %31, %32, %cst_15 {dimension_numbers = #tpu.dot_dimension_numbers<[1], [0], [0], [1], [0, 0, 1, 1], [], []>} : vector<96x30xbf16>, vector<30x30xbf16>, vector<96x30xf32> -> vector<96x30xf32>
    %34 = arith.addf %29, %33 : vector<96x30xf32>
    %35 = vector.extract_strided_slice %11 {offsets = [0, 2, 0], sizes = [8, 12, 30], strides = [1, 1, 1]} : vector<8x15x30xbf16> to vector<8x12x30xbf16>
    %36 = vector.shape_cast %35 : vector<8x12x30xbf16> to vector<96x30xbf16>
    %c120 = arith.constant 120 : index
    %c0_16 = arith.constant 0 : index
    %37 = vector.load %arg5[%c120, %c0_16] : memref<210x30xbf16, #tpu.memory_space<vmem>>, vector<30x30xbf16>
    %cst_17 = arith.constant dense<0.000000e+00> : vector<96x30xf32>
    %38 = tpu.matmul %36, %37, %cst_17 {dimension_numbers = #tpu.dot_dimension_numbers<[1], [0], [0], [1], [0, 0, 1, 1], [], []>} : vector<96x30xbf16>, vector<30x30xbf16>, vector<96x30xf32> -> vector<96x30xf32>
    %39 = arith.addf %34, %38 : vector<96x30xf32>
    %40 = vector.extract_strided_slice %13 {offsets = [0, 2, 0], sizes = [8, 12, 30], strides = [1, 1, 1]} : vector<8x15x30xbf16> to vector<8x12x30xbf16>
    %41 = vector.shape_cast %40 : vector<8x12x30xbf16> to vector<96x30xbf16>
    %c150 = arith.constant 150 : index
    %c0_18 = arith.constant 0 : index
    %42 = vector.load %arg5[%c150, %c0_18] : memref<210x30xbf16, #tpu.memory_space<vmem>>, vector<30x30xbf16>
    %cst_19 = arith.constant dense<0.000000e+00> : vector<96x30xf32>
    %43 = tpu.matmul %41, %42, %cst_19 {dimension_numbers = #tpu.dot_dimension_numbers<[1], [0], [0], [1], [0, 0, 1, 1], [], []>} : vector<96x30xbf16>, vector<30x30xbf16>, vector<96x30xf32> -> vector<96x30xf32>
    %44 = arith.addf %39, %43 : vector<96x30xf32>
    %45 = vector.extract_strided_slice %11 {offsets = [0, 3, 0], sizes = [8, 12, 30], strides = [1, 1, 1]} : vector<8x15x30xbf16> to vector<8x12x30xbf16>
    %46 = vector.shape_cast %45 : vector<8x12x30xbf16> to vector<96x30xbf16>
    %c180 = arith.constant 180 : index
    %c0_20 = arith.constant 0 : index
    %47 = vector.load %arg5[%c180, %c0_20] : memref<210x30xbf16, #tpu.memory_space<vmem>>, vector<30x30xbf16>
    %cst_21 = arith.constant dense<0.000000e+00> : vector<96x30xf32>
    %48 = tpu.matmul %46, %47, %cst_21 {dimension_numbers = #tpu.dot_dimension_numbers<[1], [0], [0], [1], [0, 0, 1, 1], [], []>} : vector<96x30xbf16>, vector<30x30xbf16>, vector<96x30xf32> -> vector<96x30xf32>
    %49 = arith.addf %44, %48 : vector<96x30xf32>
    %c0_22 = arith.constant 0 : index
    %c0_23 = arith.constant 0 : index
    %50 = vector.load %arg6[%c0_22, %c0_23] : memref<1x30xf32, #tpu.memory_space<vmem>>, vector<1x30xf32>
    %51 = vector.broadcast %50 : vector<1x30xf32> to vector<96x30xf32>
    %52 = arith.addf %49, %51 : vector<96x30xf32>
    %cst_24 = arith.constant 0.000000e+00 : f32
    %53 = vector.broadcast %cst_24 : f32 to vector<96x30xf32>
    %54 = arith.maximumf %52, %53 : vector<96x30xf32>
    %55 = arith.truncf %54 : vector<96x30xf32> to vector<96x30xbf16>
    %56 = vector.shape_cast %55 : vector<96x30xbf16> to vector<8x6x2x30xbf16>
    %57 = vector.extract_strided_slice %56 {offsets = [0, 0, 0, 0], sizes = [8, 6, 1, 30], strides = [1, 1, 1, 1]} : vector<8x6x2x30xbf16> to vector<8x6x1x30xbf16>
    %58 = vector.shape_cast %57 : vector<8x6x1x30xbf16> to vector<8x6x30xbf16>
    %59 = vector.extract_strided_slice %56 {offsets = [0, 0, 1, 0], sizes = [8, 6, 1, 30], strides = [1, 1, 1, 1]} : vector<8x6x2x30xbf16> to vector<8x6x1x30xbf16>
    %60 = vector.shape_cast %59 : vector<8x6x1x30xbf16> to vector<8x6x30xbf16>
    %cst_25 = arith.constant 0.000000e+00 : f32
    %61 = vector.broadcast %cst_25 : f32 to vector<8x128xf32>
    %cst_26 = arith.constant 0.000000e+00 : f32
    %62 = vector.broadcast %cst_26 : f32 to vector<8x10xf32>
    %63 = vector.extract_strided_slice %58 {offsets = [0, 0, 0], sizes = [8, 1, 30], strides = [1, 1, 1]} : vector<8x6x30xbf16> to vector<8x1x30xbf16>
    %64 = vector.shape_cast %63 : vector<8x1x30xbf16> to vector<8x30xbf16>
    %c0_27 = arith.constant 0 : index
    %c0_28 = arith.constant 0 : index
    %65 = vector.load %arg7[%c0_27, %c0_28] : memref<210x10xbf16, #tpu.memory_space<vmem>>, vector<30x10xbf16>
    %cst_29 = arith.constant dense<0.000000e+00> : vector<8x10xf32>
    %66 = tpu.matmul %64, %65, %cst_29 {dimension_numbers = #tpu.dot_dimension_numbers<[1], [0], [0], [1], [0, 0, 1, 1], [], []>} : vector<8x30xbf16>, vector<30x10xbf16>, vector<8x10xf32> -> vector<8x10xf32>
    %67 = arith.addf %62, %66 : vector<8x10xf32>
    %68 = vector.extract_strided_slice %60 {offsets = [0, 0, 0], sizes = [8, 1, 30], strides = [1, 1, 1]} : vector<8x6x30xbf16> to vector<8x1x30xbf16>
    %69 = vector.shape_cast %68 : vector<8x1x30xbf16> to vector<8x30xbf16>
    %c30_30 = arith.constant 30 : index
    %c0_31 = arith.constant 0 : index
    %70 = vector.load %arg7[%c30_30, %c0_31] : memref<210x10xbf16, #tpu.memory_space<vmem>>, vector<30x10xbf16>
    %cst_32 = arith.constant dense<0.000000e+00> : vector<8x10xf32>
    %71 = tpu.matmul %69, %70, %cst_32 {dimension_numbers = #tpu.dot_dimension_numbers<[1], [0], [0], [1], [0, 0, 1, 1], [], []>} : vector<8x30xbf16>, vector<30x10xbf16>, vector<8x10xf32> -> vector<8x10xf32>
    %72 = arith.addf %67, %71 : vector<8x10xf32>
    %73 = vector.extract_strided_slice %58 {offsets = [0, 1, 0], sizes = [8, 1, 30], strides = [1, 1, 1]} : vector<8x6x30xbf16> to vector<8x1x30xbf16>
    %74 = vector.shape_cast %73 : vector<8x1x30xbf16> to vector<8x30xbf16>
    %c60_33 = arith.constant 60 : index
    %c0_34 = arith.constant 0 : index
    %75 = vector.load %arg7[%c60_33, %c0_34] : memref<210x10xbf16, #tpu.memory_space<vmem>>, vector<30x10xbf16>
    %cst_35 = arith.constant dense<0.000000e+00> : vector<8x10xf32>
    %76 = tpu.matmul %74, %75, %cst_35 {dimension_numbers = #tpu.dot_dimension_numbers<[1], [0], [0], [1], [0, 0, 1, 1], [], []>} : vector<8x30xbf16>, vector<30x10xbf16>, vector<8x10xf32> -> vector<8x10xf32>
    %77 = arith.addf %72, %76 : vector<8x10xf32>
    %78 = vector.extract_strided_slice %60 {offsets = [0, 1, 0], sizes = [8, 1, 30], strides = [1, 1, 1]} : vector<8x6x30xbf16> to vector<8x1x30xbf16>
    %79 = vector.shape_cast %78 : vector<8x1x30xbf16> to vector<8x30xbf16>
    %c90_36 = arith.constant 90 : index
    %c0_37 = arith.constant 0 : index
    %80 = vector.load %arg7[%c90_36, %c0_37] : memref<210x10xbf16, #tpu.memory_space<vmem>>, vector<30x10xbf16>
    %cst_38 = arith.constant dense<0.000000e+00> : vector<8x10xf32>
    %81 = tpu.matmul %79, %80, %cst_38 {dimension_numbers = #tpu.dot_dimension_numbers<[1], [0], [0], [1], [0, 0, 1, 1], [], []>} : vector<8x30xbf16>, vector<30x10xbf16>, vector<8x10xf32> -> vector<8x10xf32>
    %82 = arith.addf %77, %81 : vector<8x10xf32>
    %83 = vector.extract_strided_slice %58 {offsets = [0, 2, 0], sizes = [8, 1, 30], strides = [1, 1, 1]} : vector<8x6x30xbf16> to vector<8x1x30xbf16>
    %84 = vector.shape_cast %83 : vector<8x1x30xbf16> to vector<8x30xbf16>
    %c120_39 = arith.constant 120 : index
    %c0_40 = arith.constant 0 : index
    %85 = vector.load %arg7[%c120_39, %c0_40] : memref<210x10xbf16, #tpu.memory_space<vmem>>, vector<30x10xbf16>
    %cst_41 = arith.constant dense<0.000000e+00> : vector<8x10xf32>
    %86 = tpu.matmul %84, %85, %cst_41 {dimension_numbers = #tpu.dot_dimension_numbers<[1], [0], [0], [1], [0, 0, 1, 1], [], []>} : vector<8x30xbf16>, vector<30x10xbf16>, vector<8x10xf32> -> vector<8x10xf32>
    %87 = arith.addf %82, %86 : vector<8x10xf32>
    %88 = vector.extract_strided_slice %60 {offsets = [0, 2, 0], sizes = [8, 1, 30], strides = [1, 1, 1]} : vector<8x6x30xbf16> to vector<8x1x30xbf16>
    %89 = vector.shape_cast %88 : vector<8x1x30xbf16> to vector<8x30xbf16>
    %c150_42 = arith.constant 150 : index
    %c0_43 = arith.constant 0 : index
    %90 = vector.load %arg7[%c150_42, %c0_43] : memref<210x10xbf16, #tpu.memory_space<vmem>>, vector<30x10xbf16>
    %cst_44 = arith.constant dense<0.000000e+00> : vector<8x10xf32>
    %91 = tpu.matmul %89, %90, %cst_44 {dimension_numbers = #tpu.dot_dimension_numbers<[1], [0], [0], [1], [0, 0, 1, 1], [], []>} : vector<8x30xbf16>, vector<30x10xbf16>, vector<8x10xf32> -> vector<8x10xf32>
    %92 = arith.addf %87, %91 : vector<8x10xf32>
    %93 = vector.extract_strided_slice %58 {offsets = [0, 3, 0], sizes = [8, 1, 30], strides = [1, 1, 1]} : vector<8x6x30xbf16> to vector<8x1x30xbf16>
    %94 = vector.shape_cast %93 : vector<8x1x30xbf16> to vector<8x30xbf16>
    %c180_45 = arith.constant 180 : index
    %c0_46 = arith.constant 0 : index
    %95 = vector.load %arg7[%c180_45, %c0_46] : memref<210x10xbf16, #tpu.memory_space<vmem>>, vector<30x10xbf16>
    %cst_47 = arith.constant dense<0.000000e+00> : vector<8x10xf32>
    %96 = tpu.matmul %94, %95, %cst_47 {dimension_numbers = #tpu.dot_dimension_numbers<[1], [0], [0], [1], [0, 0, 1, 1], [], []>} : vector<8x30xbf16>, vector<30x10xbf16>, vector<8x10xf32> -> vector<8x10xf32>
    %97 = arith.addf %92, %96 : vector<8x10xf32>
    %c0_48 = arith.constant 0 : index
    %c0_49 = arith.constant 0 : index
    %98 = vector.load %arg8[%c0_48, %c0_49] : memref<1x10xf32, #tpu.memory_space<vmem>>, vector<1x10xf32>
    %99 = vector.broadcast %98 : vector<1x10xf32> to vector<8x10xf32>
    %100 = arith.addf %97, %99 : vector<8x10xf32>
    %cst_50 = arith.constant 0.000000e+00 : f32
    %101 = vector.broadcast %cst_50 : f32 to vector<8x10xf32>
    %102 = arith.maximumf %100, %101 : vector<8x10xf32>
    %103 = arith.truncf %102 : vector<8x10xf32> to vector<8x10xbf16>
    %c0_51 = arith.constant 0 : index
    %c0_52 = arith.constant 0 : index
    %104 = vector.load %arg9[%c0_51, %c0_52] : memref<30x128xbf16, #tpu.memory_space<vmem>>, vector<10x128xbf16>
    %cst_53 = arith.constant dense<0.000000e+00> : vector<8x128xf32>
    %105 = tpu.matmul %103, %104, %cst_53 {dimension_numbers = #tpu.dot_dimension_numbers<[1], [0], [0], [1], [0, 0, 1, 1], [], []>} : vector<8x10xbf16>, vector<10x128xbf16>, vector<8x128xf32> -> vector<8x128xf32>
    %106 = arith.addf %61, %105 : vector<8x128xf32>
    %cst_54 = arith.constant 0.000000e+00 : f32
    %107 = vector.broadcast %cst_54 : f32 to vector<8x10xf32>
    %108 = vector.extract_strided_slice %58 {offsets = [0, 1, 0], sizes = [8, 1, 30], strides = [1, 1, 1]} : vector<8x6x30xbf16> to vector<8x1x30xbf16>
    %109 = vector.shape_cast %108 : vector<8x1x30xbf16> to vector<8x30xbf16>
    %c0_55 = arith.constant 0 : index
    %c0_56 = arith.constant 0 : index
    %110 = vector.load %arg7[%c0_55, %c0_56] : memref<210x10xbf16, #tpu.memory_space<vmem>>, vector<30x10xbf16>
    %cst_57 = arith.constant dense<0.000000e+00> : vector<8x10xf32>
    %111 = tpu.matmul %109, %110, %cst_57 {dimension_numbers = #tpu.dot_dimension_numbers<[1], [0], [0], [1], [0, 0, 1, 1], [], []>} : vector<8x30xbf16>, vector<30x10xbf16>, vector<8x10xf32> -> vector<8x10xf32>
    %112 = arith.addf %107, %111 : vector<8x10xf32>
    %113 = vector.extract_strided_slice %60 {offsets = [0, 1, 0], sizes = [8, 1, 30], strides = [1, 1, 1]} : vector<8x6x30xbf16> to vector<8x1x30xbf16>
    %114 = vector.shape_cast %113 : vector<8x1x30xbf16> to vector<8x30xbf16>
    %c30_58 = arith.constant 30 : index
    %c0_59 = arith.constant 0 : index
    %115 = vector.load %arg7[%c30_58, %c0_59] : memref<210x10xbf16, #tpu.memory_space<vmem>>, vector<30x10xbf16>
    %cst_60 = arith.constant dense<0.000000e+00> : vector<8x10xf32>
    %116 = tpu.matmul %114, %115, %cst_60 {dimension_numbers = #tpu.dot_dimension_numbers<[1], [0], [0], [1], [0, 0, 1, 1], [], []>} : vector<8x30xbf16>, vector<30x10xbf16>, vector<8x10xf32> -> vector<8x10xf32>
    %117 = arith.addf %112, %116 : vector<8x10xf32>
    %118 = vector.extract_strided_slice %58 {offsets = [0, 2, 0], sizes = [8, 1, 30], strides = [1, 1, 1]} : vector<8x6x30xbf16> to vector<8x1x30xbf16>
    %119 = vector.shape_cast %118 : vector<8x1x30xbf16> to vector<8x30xbf16>
    %c60_61 = arith.constant 60 : index
    %c0_62 = arith.constant 0 : index
    %120 = vector.load %arg7[%c60_61, %c0_62] : memref<210x10xbf16, #tpu.memory_space<vmem>>, vector<30x10xbf16>
    %cst_63 = arith.constant dense<0.000000e+00> : vector<8x10xf32>
    %121 = tpu.matmul %119, %120, %cst_63 {dimension_numbers = #tpu.dot_dimension_numbers<[1], [0], [0], [1], [0, 0, 1, 1], [], []>} : vector<8x30xbf16>, vector<30x10xbf16>, vector<8x10xf32> -> vector<8x10xf32>
    %122 = arith.addf %117, %121 : vector<8x10xf32>
    %123 = vector.extract_strided_slice %60 {offsets = [0, 2, 0], sizes = [8, 1, 30], strides = [1, 1, 1]} : vector<8x6x30xbf16> to vector<8x1x30xbf16>
    %124 = vector.shape_cast %123 : vector<8x1x30xbf16> to vector<8x30xbf16>
    %c90_64 = arith.constant 90 : index
    %c0_65 = arith.constant 0 : index
    %125 = vector.load %arg7[%c90_64, %c0_65] : memref<210x10xbf16, #tpu.memory_space<vmem>>, vector<30x10xbf16>
    %cst_66 = arith.constant dense<0.000000e+00> : vector<8x10xf32>
    %126 = tpu.matmul %124, %125, %cst_66 {dimension_numbers = #tpu.dot_dimension_numbers<[1], [0], [0], [1], [0, 0, 1, 1], [], []>} : vector<8x30xbf16>, vector<30x10xbf16>, vector<8x10xf32> -> vector<8x10xf32>
    %127 = arith.addf %122, %126 : vector<8x10xf32>
    %128 = vector.extract_strided_slice %58 {offsets = [0, 3, 0], sizes = [8, 1, 30], strides = [1, 1, 1]} : vector<8x6x30xbf16> to vector<8x1x30xbf16>
    %129 = vector.shape_cast %128 : vector<8x1x30xbf16> to vector<8x30xbf16>
    %c120_67 = arith.constant 120 : index
    %c0_68 = arith.constant 0 : index
    %130 = vector.load %arg7[%c120_67, %c0_68] : memref<210x10xbf16, #tpu.memory_space<vmem>>, vector<30x10xbf16>
    %cst_69 = arith.constant dense<0.000000e+00> : vector<8x10xf32>
    %131 = tpu.matmul %129, %130, %cst_69 {dimension_numbers = #tpu.dot_dimension_numbers<[1], [0], [0], [1], [0, 0, 1, 1], [], []>} : vector<8x30xbf16>, vector<30x10xbf16>, vector<8x10xf32> -> vector<8x10xf32>
    %132 = arith.addf %127, %131 : vector<8x10xf32>
    %133 = vector.extract_strided_slice %60 {offsets = [0, 3, 0], sizes = [8, 1, 30], strides = [1, 1, 1]} : vector<8x6x30xbf16> to vector<8x1x30xbf16>
    %134 = vector.shape_cast %133 : vector<8x1x30xbf16> to vector<8x30xbf16>
    %c150_70 = arith.constant 150 : index
    %c0_71 = arith.constant 0 : index
    %135 = vector.load %arg7[%c150_70, %c0_71] : memref<210x10xbf16, #tpu.memory_space<vmem>>, vector<30x10xbf16>
    %cst_72 = arith.constant dense<0.000000e+00> : vector<8x10xf32>
    %136 = tpu.matmul %134, %135, %cst_72 {dimension_numbers = #tpu.dot_dimension_numbers<[1], [0], [0], [1], [0, 0, 1, 1], [], []>} : vector<8x30xbf16>, vector<30x10xbf16>, vector<8x10xf32> -> vector<8x10xf32>
    %137 = arith.addf %132, %136 : vector<8x10xf32>
    %138 = vector.extract_strided_slice %58 {offsets = [0, 4, 0], sizes = [8, 1, 30], strides = [1, 1, 1]} : vector<8x6x30xbf16> to vector<8x1x30xbf16>
    %139 = vector.shape_cast %138 : vector<8x1x30xbf16> to vector<8x30xbf16>
    %c180_73 = arith.constant 180 : index
    %c0_74 = arith.constant 0 : index
    %140 = vector.load %arg7[%c180_73, %c0_74] : memref<210x10xbf16, #tpu.memory_space<vmem>>, vector<30x10xbf16>
    %cst_75 = arith.constant dense<0.000000e+00> : vector<8x10xf32>
    %141 = tpu.matmul %139, %140, %cst_75 {dimension_numbers = #tpu.dot_dimension_numbers<[1], [0], [0], [1], [0, 0, 1, 1], [], []>} : vector<8x30xbf16>, vector<30x10xbf16>, vector<8x10xf32> -> vector<8x10xf32>
    %142 = arith.addf %137, %141 : vector<8x10xf32>
    %c0_76 = arith.constant 0 : index
    %c0_77 = arith.constant 0 : index
    %143 = vector.load %arg8[%c0_76, %c0_77] : memref<1x10xf32, #tpu.memory_space<vmem>>, vector<1x10xf32>
    %144 = vector.broadcast %143 : vector<1x10xf32> to vector<8x10xf32>
    %145 = arith.addf %142, %144 : vector<8x10xf32>
    %cst_78 = arith.constant 0.000000e+00 : f32
    %146 = vector.broadcast %cst_78 : f32 to vector<8x10xf32>
    %147 = arith.maximumf %145, %146 : vector<8x10xf32>
    %148 = arith.truncf %147 : vector<8x10xf32> to vector<8x10xbf16>
    %c10 = arith.constant 10 : index
    %c0_79 = arith.constant 0 : index
    %149 = vector.load %arg9[%c10, %c0_79] : memref<30x128xbf16, #tpu.memory_space<vmem>>, vector<10x128xbf16>
    %cst_80 = arith.constant dense<0.000000e+00> : vector<8x128xf32>
    %150 = tpu.matmul %148, %149, %cst_80 {dimension_numbers = #tpu.dot_dimension_numbers<[1], [0], [0], [1], [0, 0, 1, 1], [], []>} : vector<8x10xbf16>, vector<10x128xbf16>, vector<8x128xf32> -> vector<8x128xf32>
    %151 = arith.addf %106, %150 : vector<8x128xf32>
    %cst_81 = arith.constant 0.000000e+00 : f32
    %152 = vector.broadcast %cst_81 : f32 to vector<8x10xf32>
    %153 = vector.extract_strided_slice %58 {offsets = [0, 2, 0], sizes = [8, 1, 30], strides = [1, 1, 1]} : vector<8x6x30xbf16> to vector<8x1x30xbf16>
    %154 = vector.shape_cast %153 : vector<8x1x30xbf16> to vector<8x30xbf16>
    %c0_82 = arith.constant 0 : index
    %c0_83 = arith.constant 0 : index
    %155 = vector.load %arg7[%c0_82, %c0_83] : memref<210x10xbf16, #tpu.memory_space<vmem>>, vector<30x10xbf16>
    %cst_84 = arith.constant dense<0.000000e+00> : vector<8x10xf32>
    %156 = tpu.matmul %154, %155, %cst_84 {dimension_numbers = #tpu.dot_dimension_numbers<[1], [0], [0], [1], [0, 0, 1, 1], [], []>} : vector<8x30xbf16>, vector<30x10xbf16>, vector<8x10xf32> -> vector<8x10xf32>
    %157 = arith.addf %152, %156 : vector<8x10xf32>
    %158 = vector.extract_strided_slice %60 {offsets = [0, 2, 0], sizes = [8, 1, 30], strides = [1, 1, 1]} : vector<8x6x30xbf16> to vector<8x1x30xbf16>
    %159 = vector.shape_cast %158 : vector<8x1x30xbf16> to vector<8x30xbf16>
    %c30_85 = arith.constant 30 : index
    %c0_86 = arith.constant 0 : index
    %160 = vector.load %arg7[%c30_85, %c0_86] : memref<210x10xbf16, #tpu.memory_space<vmem>>, vector<30x10xbf16>
    %cst_87 = arith.constant dense<0.000000e+00> : vector<8x10xf32>
    %161 = tpu.matmul %159, %160, %cst_87 {dimension_numbers = #tpu.dot_dimension_numbers<[1], [0], [0], [1], [0, 0, 1, 1], [], []>} : vector<8x30xbf16>, vector<30x10xbf16>, vector<8x10xf32> -> vector<8x10xf32>
    %162 = arith.addf %157, %161 : vector<8x10xf32>
    %163 = vector.extract_strided_slice %58 {offsets = [0, 3, 0], sizes = [8, 1, 30], strides = [1, 1, 1]} : vector<8x6x30xbf16> to vector<8x1x30xbf16>
    %164 = vector.shape_cast %163 : vector<8x1x30xbf16> to vector<8x30xbf16>
    %c60_88 = arith.constant 60 : index
    %c0_89 = arith.constant 0 : index
    %165 = vector.load %arg7[%c60_88, %c0_89] : memref<210x10xbf16, #tpu.memory_space<vmem>>, vector<30x10xbf16>
    %cst_90 = arith.constant dense<0.000000e+00> : vector<8x10xf32>
    %166 = tpu.matmul %164, %165, %cst_90 {dimension_numbers = #tpu.dot_dimension_numbers<[1], [0], [0], [1], [0, 0, 1, 1], [], []>} : vector<8x30xbf16>, vector<30x10xbf16>, vector<8x10xf32> -> vector<8x10xf32>
    %167 = arith.addf %162, %166 : vector<8x10xf32>
    %168 = vector.extract_strided_slice %60 {offsets = [0, 3, 0], sizes = [8, 1, 30], strides = [1, 1, 1]} : vector<8x6x30xbf16> to vector<8x1x30xbf16>
    %169 = vector.shape_cast %168 : vector<8x1x30xbf16> to vector<8x30xbf16>
    %c90_91 = arith.constant 90 : index
    %c0_92 = arith.constant 0 : index
    %170 = vector.load %arg7[%c90_91, %c0_92] : memref<210x10xbf16, #tpu.memory_space<vmem>>, vector<30x10xbf16>
    %cst_93 = arith.constant dense<0.000000e+00> : vector<8x10xf32>
    %171 = tpu.matmul %169, %170, %cst_93 {dimension_numbers = #tpu.dot_dimension_numbers<[1], [0], [0], [1], [0, 0, 1, 1], [], []>} : vector<8x30xbf16>, vector<30x10xbf16>, vector<8x10xf32> -> vector<8x10xf32>
    %172 = arith.addf %167, %171 : vector<8x10xf32>
    %173 = vector.extract_strided_slice %58 {offsets = [0, 4, 0], sizes = [8, 1, 30], strides = [1, 1, 1]} : vector<8x6x30xbf16> to vector<8x1x30xbf16>
    %174 = vector.shape_cast %173 : vector<8x1x30xbf16> to vector<8x30xbf16>
    %c120_94 = arith.constant 120 : index
    %c0_95 = arith.constant 0 : index
    %175 = vector.load %arg7[%c120_94, %c0_95] : memref<210x10xbf16, #tpu.memory_space<vmem>>, vector<30x10xbf16>
    %cst_96 = arith.constant dense<0.000000e+00> : vector<8x10xf32>
    %176 = tpu.matmul %174, %175, %cst_96 {dimension_numbers = #tpu.dot_dimension_numbers<[1], [0], [0], [1], [0, 0, 1, 1], [], []>} : vector<8x30xbf16>, vector<30x10xbf16>, vector<8x10xf32> -> vector<8x10xf32>
    %177 = arith.addf %172, %176 : vector<8x10xf32>
    %178 = vector.extract_strided_slice %60 {offsets = [0, 4, 0], sizes = [8, 1, 30], strides = [1, 1, 1]} : vector<8x6x30xbf16> to vector<8x1x30xbf16>
    %179 = vector.shape_cast %178 : vector<8x1x30xbf16> to vector<8x30xbf16>
    %c150_97 = arith.constant 150 : index
    %c0_98 = arith.constant 0 : index
    %180 = vector.load %arg7[%c150_97, %c0_98] : memref<210x10xbf16, #tpu.memory_space<vmem>>, vector<30x10xbf16>
    %cst_99 = arith.constant dense<0.000000e+00> : vector<8x10xf32>
    %181 = tpu.matmul %179, %180, %cst_99 {dimension_numbers = #tpu.dot_dimension_numbers<[1], [0], [0], [1], [0, 0, 1, 1], [], []>} : vector<8x30xbf16>, vector<30x10xbf16>, vector<8x10xf32> -> vector<8x10xf32>
    %182 = arith.addf %177, %181 : vector<8x10xf32>
    %183 = vector.extract_strided_slice %58 {offsets = [0, 5, 0], sizes = [8, 1, 30], strides = [1, 1, 1]} : vector<8x6x30xbf16> to vector<8x1x30xbf16>
    %184 = vector.shape_cast %183 : vector<8x1x30xbf16> to vector<8x30xbf16>
    %c180_100 = arith.constant 180 : index
    %c0_101 = arith.constant 0 : index
    %185 = vector.load %arg7[%c180_100, %c0_101] : memref<210x10xbf16, #tpu.memory_space<vmem>>, vector<30x10xbf16>
    %cst_102 = arith.constant dense<0.000000e+00> : vector<8x10xf32>
    %186 = tpu.matmul %184, %185, %cst_102 {dimension_numbers = #tpu.dot_dimension_numbers<[1], [0], [0], [1], [0, 0, 1, 1], [], []>} : vector<8x30xbf16>, vector<30x10xbf16>, vector<8x10xf32> -> vector<8x10xf32>
    %187 = arith.addf %182, %186 : vector<8x10xf32>
    %c0_103 = arith.constant 0 : index
    %c0_104 = arith.constant 0 : index
    %188 = vector.load %arg8[%c0_103, %c0_104] : memref<1x10xf32, #tpu.memory_space<vmem>>, vector<1x10xf32>
    %189 = vector.broadcast %188 : vector<1x10xf32> to vector<8x10xf32>
    %190 = arith.addf %187, %189 : vector<8x10xf32>
    %cst_105 = arith.constant 0.000000e+00 : f32
    %191 = vector.broadcast %cst_105 : f32 to vector<8x10xf32>
    %192 = arith.maximumf %190, %191 : vector<8x10xf32>
    %193 = arith.truncf %192 : vector<8x10xf32> to vector<8x10xbf16>
    %c20 = arith.constant 20 : index
    %c0_106 = arith.constant 0 : index
    %194 = vector.load %arg9[%c20, %c0_106] : memref<30x128xbf16, #tpu.memory_space<vmem>>, vector<10x128xbf16>
    %cst_107 = arith.constant dense<0.000000e+00> : vector<8x128xf32>
    %195 = tpu.matmul %193, %194, %cst_107 {dimension_numbers = #tpu.dot_dimension_numbers<[1], [0], [0], [1], [0, 0, 1, 1], [], []>} : vector<8x10xbf16>, vector<10x128xbf16>, vector<8x128xf32> -> vector<8x128xf32>
    %196 = arith.addf %151, %195 : vector<8x128xf32>
    %c0_108 = arith.constant 0 : index
    %c0_109 = arith.constant 0 : index
    %197 = vector.load %arg10[%c0_108, %c0_109] : memref<1x128xf32, #tpu.memory_space<vmem>>, vector<1x128xf32>
    %198 = vector.broadcast %197 : vector<1x128xf32> to vector<8x128xf32>
    %199 = arith.addf %196, %198 : vector<8x128xf32>
    %cst_110 = arith.constant 0.000000e+00 : f32
    %200 = vector.broadcast %cst_110 : f32 to vector<8x128xf32>
    %201 = arith.maximumf %199, %200 : vector<8x128xf32>
    %202 = arith.truncf %201 : vector<8x128xf32> to vector<8x128xbf16>
    %c0_111 = arith.constant 0 : index
    %c0_112 = arith.constant 0 : index
    %203 = vector.load %arg11[%c0_111, %c0_112] : memref<128x64xbf16, #tpu.memory_space<vmem>>, vector<128x64xbf16>
    %cst_113 = arith.constant dense<0.000000e+00> : vector<8x64xf32>
    %204 = tpu.matmul %202, %203, %cst_113 {dimension_numbers = #tpu.dot_dimension_numbers<[1], [0], [0], [1], [0, 0, 1, 1], [], []>} : vector<8x128xbf16>, vector<128x64xbf16>, vector<8x64xf32> -> vector<8x64xf32>
    %c0_114 = arith.constant 0 : index
    %c0_115 = arith.constant 0 : index
    %205 = vector.load %arg12[%c0_114, %c0_115] : memref<1x64xf32, #tpu.memory_space<vmem>>, vector<1x64xf32>
    %206 = vector.broadcast %205 : vector<1x64xf32> to vector<8x64xf32>
    %207 = arith.addf %204, %206 : vector<8x64xf32>
    %cst_116 = arith.constant 0.000000e+00 : f32
    %208 = vector.broadcast %cst_116 : f32 to vector<8x64xf32>
    %209 = arith.maximumf %207, %208 : vector<8x64xf32>
    %c0_117 = arith.constant 0 : index
    %c0_118 = arith.constant 0 : index
    %210 = vector.load %arg13[%c0_117, %c0_118] : memref<1x64xf32, #tpu.memory_space<vmem>>, vector<1x64xf32>
    %211 = vector.broadcast %210 : vector<1x64xf32> to vector<8x64xf32>
    %212 = arith.mulf %209, %211 : vector<8x64xf32>
    %cst_119 = arith.constant dense<0.000000e+00> : vector<8xf32>
    %213 = vector.multi_reduction <add>, %212, %cst_119 [1] : vector<8x64xf32> to vector<8xf32>
    %214 = vector.shape_cast %213 : vector<8xf32> to vector<8x1xf32>
    %c0_120 = arith.constant 0 : index
    %c0_121 = arith.constant 0 : index
    %215 = vector.load %arg14[%c0_120, %c0_121] : memref<1x1xf32, #tpu.memory_space<vmem>>, vector<1x1xf32>
    %216 = vector.broadcast %215 : vector<1x1xf32> to vector<8x1xf32>
    %217 = arith.addf %214, %216 : vector<8x1xf32>
    %cst_122 = arith.constant 0.000000e+00 : f32
    %218 = vector.broadcast %cst_122 : f32 to vector<8x1xf32>
    %219 = arith.maximumf %217, %218 : vector<8x1xf32>
    %220 = vector.shape_cast %219 : vector<8x1xf32> to vector<2x4x1xf32>
    %221 = vector.extract_strided_slice %220 {offsets = [0, 0, 0], sizes = [2, 1, 1], strides = [1, 1, 1]} : vector<2x4x1xf32> to vector<2x1x1xf32>
    %222 = vector.shape_cast %221 : vector<2x1x1xf32> to vector<2x1xf32>
    %223 = vector.extract_strided_slice %220 {offsets = [0, 1, 0], sizes = [2, 1, 1], strides = [1, 1, 1]} : vector<2x4x1xf32> to vector<2x1x1xf32>
    %224 = vector.shape_cast %223 : vector<2x1x1xf32> to vector<2x1xf32>
    %225 = vector.extract_strided_slice %220 {offsets = [0, 2, 0], sizes = [2, 1, 1], strides = [1, 1, 1]} : vector<2x4x1xf32> to vector<2x1x1xf32>
    %226 = vector.shape_cast %225 : vector<2x1x1xf32> to vector<2x1xf32>
    %227 = vector.extract_strided_slice %220 {offsets = [0, 3, 0], sizes = [2, 1, 1], strides = [1, 1, 1]} : vector<2x4x1xf32> to vector<2x1x1xf32>
    %228 = vector.shape_cast %227 : vector<2x1x1xf32> to vector<2x1xf32>
    %229 = arith.maximumf %222, %224 : vector<2x1xf32>
    %230 = arith.maximumf %229, %226 : vector<2x1xf32>
    %231 = arith.maximumf %230, %228 : vector<2x1xf32>
    %232 = arith.subf %222, %231 : vector<2x1xf32>
    %233 = math.exp %232 : vector<2x1xf32>
    %234 = arith.subf %224, %231 : vector<2x1xf32>
    %235 = math.exp %234 : vector<2x1xf32>
    %236 = arith.subf %226, %231 : vector<2x1xf32>
    %237 = math.exp %236 : vector<2x1xf32>
    %238 = arith.subf %228, %231 : vector<2x1xf32>
    %239 = math.exp %238 : vector<2x1xf32>
    %240 = arith.addf %233, %235 : vector<2x1xf32>
    %241 = arith.addf %240, %237 : vector<2x1xf32>
    %242 = arith.addf %241, %239 : vector<2x1xf32>
    %243 = tpu.reciprocal %242 : vector<2x1xf32> -> vector<2x1xf32>
    %c0_123 = arith.constant 0 : index
    %c0_124 = arith.constant 0 : index
    %244 = vector.load %arg2[%c0_123, %c0_124] : memref<8x128xf32, #tpu.memory_space<vmem>>, vector<8x128xf32>
    %245 = vector.shape_cast %244 : vector<8x128xf32> to vector<2x4x128xf32>
    %246 = arith.mulf %233, %243 : vector<2x1xf32>
    %247 = vector.extract_strided_slice %245 {offsets = [0, 0, 0], sizes = [2, 1, 128], strides = [1, 1, 1]} : vector<2x4x128xf32> to vector<2x1x128xf32>
    %248 = vector.shape_cast %247 : vector<2x1x128xf32> to vector<2x128xf32>
    %249 = vector.broadcast %246 : vector<2x1xf32> to vector<2x128xf32>
    %250 = arith.mulf %249, %248 : vector<2x128xf32>
    %251 = arith.mulf %235, %243 : vector<2x1xf32>
    %252 = vector.extract_strided_slice %245 {offsets = [0, 1, 0], sizes = [2, 1, 128], strides = [1, 1, 1]} : vector<2x4x128xf32> to vector<2x1x128xf32>
    %253 = vector.shape_cast %252 : vector<2x1x128xf32> to vector<2x128xf32>
    %254 = vector.broadcast %251 : vector<2x1xf32> to vector<2x128xf32>
    %255 = arith.mulf %254, %253 : vector<2x128xf32>
    %256 = arith.addf %250, %255 : vector<2x128xf32>
    %257 = arith.mulf %237, %243 : vector<2x1xf32>
    %258 = vector.extract_strided_slice %245 {offsets = [0, 2, 0], sizes = [2, 1, 128], strides = [1, 1, 1]} : vector<2x4x128xf32> to vector<2x1x128xf32>
    %259 = vector.shape_cast %258 : vector<2x1x128xf32> to vector<2x128xf32>
    %260 = vector.broadcast %257 : vector<2x1xf32> to vector<2x128xf32>
    %261 = arith.mulf %260, %259 : vector<2x128xf32>
    %262 = arith.addf %256, %261 : vector<2x128xf32>
    %263 = arith.mulf %239, %243 : vector<2x1xf32>
    %264 = vector.extract_strided_slice %245 {offsets = [0, 3, 0], sizes = [2, 1, 128], strides = [1, 1, 1]} : vector<2x4x128xf32> to vector<2x1x128xf32>
    %265 = vector.shape_cast %264 : vector<2x1x128xf32> to vector<2x128xf32>
    %266 = vector.broadcast %263 : vector<2x1xf32> to vector<2x128xf32>
    %267 = arith.mulf %266, %265 : vector<2x128xf32>
    %268 = arith.addf %262, %267 : vector<2x128xf32>
    %c0_125 = arith.constant 0 : index
    %c0_126 = arith.constant 0 : index
    %269 = vector.load %arg15[%c0_125, %c0_126] : memref<2x128xf32, #tpu.memory_space<vmem>>, vector<2x128xf32>
    tpu.vector_store %arg15[%c0_125, %c0_126], %268 {strides = array<i32>} : memref<2x128xf32, #tpu.memory_space<vmem>>, vector<2x128xf32>,
    return
  }
  func.func @transform_0(%arg0: i32) -> (i32, i32) {
    %c0_i32 = arith.constant 0 : i32
    %c0_i32_0 = arith.constant 0 : i32
    return %arg0, %c0_i32 : i32, i32
  }
  func.func @transform_1(%arg0: i32) -> (i32, i32) {
    %c0_i32 = arith.constant 0 : i32
    %c0_i32_0 = arith.constant 0 : i32
    return %arg0, %c0_i32 : i32, i32
  }
  func.func @transform_2(%arg0: i32) -> (i32, i32) {
    %c0_i32 = arith.constant 0 : i32
    %c0_i32_0 = arith.constant 0 : i32
    %c0_i32_1 = arith.constant 0 : i32
    return %c0_i32, %c0_i32_0 : i32, i32
  }
  func.func @transform_3(%arg0: i32) -> (i32, i32) {
    %c0_i32 = arith.constant 0 : i32
    %c0_i32_0 = arith.constant 0 : i32
    %c0_i32_1 = arith.constant 0 : i32
    return %c0_i32, %c0_i32_0 : i32, i32
  }
  func.func @transform_4(%arg0: i32) -> (i32, i32) {
    %c0_i32 = arith.constant 0 : i32
    %c0_i32_0 = arith.constant 0 : i32
    %c0_i32_1 = arith.constant 0 : i32
    return %c0_i32, %c0_i32_0 : i32, i32
  }
  func.func @transform_5(%arg0: i32) -> (i32, i32) {
    %c0_i32 = arith.constant 0 : i32
    %c0_i32_0 = arith.constant 0 : i32
    %c0_i32_1 = arith.constant 0 : i32
    return %c0_i32, %c0_i32_0 : i32, i32
  }
  func.func @transform_6(%arg0: i32) -> (i32, i32) {
    %c0_i32 = arith.constant 0 : i32
    %c0_i32_0 = arith.constant 0 : i32
    %c0_i32_1 = arith.constant 0 : i32
    return %c0_i32, %c0_i32_0 : i32, i32
  }
  func.func @transform_7(%arg0: i32) -> (i32, i32) {
    %c0_i32 = arith.constant 0 : i32
    %c0_i32_0 = arith.constant 0 : i32
    %c0_i32_1 = arith.constant 0 : i32
    return %c0_i32, %c0_i32_0 : i32, i32
  }
  func.func @transform_8(%arg0: i32) -> (i32, i32) {
    %c0_i32 = arith.constant 0 : i32
    %c0_i32_0 = arith.constant 0 : i32
    %c0_i32_1 = arith.constant 0 : i32
    return %c0_i32, %c0_i32_0 : i32, i32
  }
  func.func @transform_9(%arg0: i32) -> (i32, i32) {
    %c0_i32 = arith.constant 0 : i32
    %c0_i32_0 = arith.constant 0 : i32
    %c0_i32_1 = arith.constant 0 : i32
    return %c0_i32, %c0_i32_0 : i32, i32
  }
  func.func @transform_10(%arg0: i32) -> (i32, i32) {
    %c0_i32 = arith.constant 0 : i32
    %c0_i32_0 = arith.constant 0 : i32
    %c0_i32_1 = arith.constant 0 : i32
    return %c0_i32, %c0_i32_0 : i32, i32
  }
  func.func @transform_11(%arg0: i32) -> (i32, i32) {
    %c0_i32 = arith.constant 0 : i32
    %c0_i32_0 = arith.constant 0 : i32
    %c0_i32_1 = arith.constant 0 : i32
    return %c0_i32, %c0_i32_0 : i32, i32
  }
  func.func @transform_12(%arg0: i32) -> (i32, i32) {
    %c0_i32 = arith.constant 0 : i32
    %c0_i32_0 = arith.constant 0 : i32
    %c0_i32_1 = arith.constant 0 : i32
    return %c0_i32, %c0_i32_0 : i32, i32
  }
  func.func @transform_13(%arg0: i32) -> (i32, i32) {
    %c0_i32 = arith.constant 0 : i32
    %c0_i32_0 = arith.constant 0 : i32
    %c0_i32_1 = arith.constant 0 : i32
    return %c0_i32, %c0_i32_0 : i32, i32
  }
  func.func @transform_14(%arg0: i32) -> (i32, i32) {
    %c0_i32 = arith.constant 0 : i32
    %c0_i32_0 = arith.constant 0 : i32
    return %arg0, %c0_i32 : i32, i32
  }
}

</mosaic_0001>

<llo_original>
// kernel: de_layer_forward.1
$region0: #{de_layer_forward.1}
  #allocation0 [shape = 'u32[]', space=smem, size = 0x4, offset = 0x4, fixed_abs, tag = 'smem constant byte address 0x4 - core index']
  #allocation1 [shape = 'u32[72,128]{1,0:T(1,128)}', space=vmem, size = 0x9000, scoped, tag = 'internal scratch']
  #allocation2 [shape = 'f32[1,1]{1,0:T(1,128)S(1)}', space=vmem, size = 0x200, scoped, tag = 'scoped memory for de_layer_forward.1']
  %s0 = inlined_call_operand.vmem [shape: bf16[240,7], index: 0, kind: input, shape index: {}]
  %s1 = inlined_call_operand.vmem [shape: f32[8,128], index: 1, kind: input, shape index: {}]
  %s2 = inlined_call_operand.vmem [shape: bf16[7,30], index: 2, kind: input, shape index: {}]
  %s3 = inlined_call_operand.vmem [shape: f32[1,30], index: 3, kind: input, shape index: {}]
  %s4 = inlined_call_operand.vmem [shape: bf16[210,30], index: 4, kind: input, shape index: {}]
  %s5 = inlined_call_operand.vmem [shape: f32[1,30], index: 5, kind: input, shape index: {}]
  %s6 = inlined_call_operand.vmem [shape: bf16[210,10], index: 6, kind: input, shape index: {}]
  %s7 = inlined_call_operand.vmem [shape: f32[1,10], index: 7, kind: input, shape index: {}]
  %s8 = inlined_call_operand.vmem [shape: bf16[30,128], index: 8, kind: input, shape index: {}]
  %s9 = inlined_call_operand.vmem [shape: f32[1,128], index: 9, kind: input, shape index: {}]
  %s10 = inlined_call_operand.vmem [shape: bf16[128,64], index: 10, kind: input, shape index: {}]
  %s11 = inlined_call_operand.vmem [shape: f32[1,64], index: 11, kind: input, shape index: {}]
  %s12 = inlined_call_operand.vmem [shape: f32[1,64], index: 12, kind: input, shape index: {}]
  %s13 = inlined_call_operand.<no memory space> [shape: f32[1,1], index: 13, kind: input, shape index: {}]
  %s14 = inlined_call_operand.hbm [shape: f32[2,128], index: 14, kind: output, shape index: {}]
  %s15 = sld [smem:[#allocation0]]
  $region66: #{de_layer_forward.1} parent=0
    _
  %s17 = ssub.s32 1, %s15
  %s18 = scalar_select 0, %s17, %s15
  %v19 = vstv %s13
  %20 = vst [vmem:[#allocation2] sm:$0x1] %v19
  $region1: #{de_layer_forward.1} parent=0
    #allocation3 [shape = 'u8[1024]{0}', space=vmem, size = 0x400, scoped, tag = 'output window, operand 0, single buffered']
    #allocation4 [shape = 's32[1]{0}', space=sflag, size = 0x4, scoped, tag = 'scoped memory for de_layer_forward.1']
    %21 = vsyncpa [#allocation4], 0
    // Predicated region
    $region2: #{de_layer_forward.1} parent=1 // pred_check
      _
    $region3: #{de_layer_forward.1} parent=1 // pred_check_branch
      %23 = sbr.rel (0) target = $region5
    $region4: #{de_layer_forward.1} parent=1 // pred_region
      _
    $region5: #{de_layer_forward.1} parent=1 // pred_fallthru
      _
    // Predicated region
    $region6: #{de_layer_forward.1} parent=1 // pred_check
      _
    $region7: #{de_layer_forward.1} parent=1 // pred_check_branch
      %25 = sbr.rel (0) target = $region9
    $region8: #{de_layer_forward.1} parent=1 // pred_region
      _
    $region9: #{de_layer_forward.1} parent=1 // pred_fallthru
      _
    // Predicated region
    $region10: #{de_layer_forward.1} parent=1 // pred_check
      _
    $region11: #{de_layer_forward.1} parent=1 // pred_check_branch
      %27 = sbr.rel (0) target = $region13
    $region12: #{de_layer_forward.1} parent=1 // pred_region
      _
    $region13: #{de_layer_forward.1} parent=1 // pred_fallthru
      _
    // Predicated region
    $region14: #{de_layer_forward.1} parent=1 // pred_check
      _
    $region15: #{de_layer_forward.1} parent=1 // pred_check_branch
      %29 = sbr.rel (0) target = $region17
    $region16: #{de_layer_forward.1} parent=1 // pred_region
      _
    $region17: #{de_layer_forward.1} parent=1 // pred_fallthru
      _
    // Predicated region
    $region18: #{de_layer_forward.1} parent=1 // pred_check
      _
    $region19: #{de_layer_forward.1} parent=1 // pred_check_branch
      %31 = sbr.rel (0) target = $region21
    $region20: #{de_layer_forward.1} parent=1 // pred_region
      _
    $region21: #{de_layer_forward.1} parent=1 // pred_fallthru
      _
    // Predicated region
    $region22: #{de_layer_forward.1} parent=1 // pred_check
      _
    $region23: #{de_layer_forward.1} parent=1 // pred_check_branch
      %33 = sbr.rel (0) target = $region25
    $region24: #{de_layer_forward.1} parent=1 // pred_region
      _
    $region25: #{de_layer_forward.1} parent=1 // pred_fallthru
      _
    // Predicated region
    $region26: #{de_layer_forward.1} parent=1 // pred_check
      _
    $region27: #{de_layer_forward.1} parent=1 // pred_check_branch
      %35 = sbr.rel (0) target = $region29
    $region28: #{de_layer_forward.1} parent=1 // pred_region
      _
    $region29: #{de_layer_forward.1} parent=1 // pred_fallthru
      _
    // Predicated region
    $region30: #{de_layer_forward.1} parent=1 // pred_check
      _
    $region31: #{de_layer_forward.1} parent=1 // pred_check_branch
      %37 = sbr.rel (0) target = $region33
    $region32: #{de_layer_forward.1} parent=1 // pred_region
      _
    $region33: #{de_layer_forward.1} parent=1 // pred_fallthru
      _
    // Predicated region
    $region34: #{de_layer_forward.1} parent=1 // pred_check
      _
    $region35: #{de_layer_forward.1} parent=1 // pred_check_branch
      %39 = sbr.rel (0) target = $region37
    $region36: #{de_layer_forward.1} parent=1 // pred_region
      _
    $region37: #{de_layer_forward.1} parent=1 // pred_fallthru
      _
    // Predicated region
    $region38: #{de_layer_forward.1} parent=1 // pred_check
      _
    $region39: #{de_layer_forward.1} parent=1 // pred_check_branch
      %41 = sbr.rel (0) target = $region41
    $region40: #{de_layer_forward.1} parent=1 // pred_region
      _
    $region41: #{de_layer_forward.1} parent=1 // pred_fallthru
      _
    // Predicated region
    $region42: #{de_layer_forward.1} parent=1 // pred_check
      _
    $region43: #{de_layer_forward.1} parent=1 // pred_check_branch
      %43 = sbr.rel (0) target = $region45
    $region44: #{de_layer_forward.1} parent=1 // pred_region
      _
    $region45: #{de_layer_forward.1} parent=1 // pred_fallthru
      _
    // Predicated region
    $region46: #{de_layer_forward.1} parent=1 // pred_check
      _
    $region47: #{de_layer_forward.1} parent=1 // pred_check_branch
      %45 = sbr.rel (0) target = $region49
    $region48: #{de_layer_forward.1} parent=1 // pred_region
      _
    $region49: #{de_layer_forward.1} parent=1 // pred_fallthru
      _
    // Predicated region
    $region50: #{de_layer_forward.1} parent=1 // pred_check
      _
    $region51: #{de_layer_forward.1} parent=1 // pred_check_branch
      %47 = sbr.rel (0) target = $region53
    $region52: #{de_layer_forward.1} parent=1 // pred_region
      _
    $region53: #{de_layer_forward.1} parent=1 // pred_fallthru
      _
    // Predicated region
    $region54: #{de_layer_forward.1} parent=1 // pred_check
      _
    $region55: #{de_layer_forward.1} parent=1 // pred_check_branch
      %49 = sbr.rel (0) target = $region57
    $region56: #{de_layer_forward.1} parent=1 // pred_region
      _
    $region57: #{de_layer_forward.1} parent=1 // pred_fallthru
      _
    %v51 = vld [vmem:[%s0] sm:$0xf]
    %v52 = vld [vmem:[%s0 + $0x4] sm:$0xf]
    %v53 = vld [vmem:[%s0 + $0x8] sm:$0xf]
    %v54 = vld [vmem:[%s0 + $0xc] sm:$0xf]
    %v55 = vld [vmem:[%s0 + $0x10] sm:$0xf]
    %v56 = vld [vmem:[%s0 + $0x14] sm:$0xf]
    %v57 = vld [vmem:[%s0 + $0x18] sm:$0xf]
    %v58 = vld [vmem:[%s0 + $0x1c] sm:$0xf]
    %v59 = vld [vmem:[%s0 + $0x20] sm:$0xf]
    %v60 = vld [vmem:[%s0 + $0x24] sm:$0xf]
    %v61 = vld [vmem:[%s0 + $0x28] sm:$0xf]
    %v62 = vld [vmem:[%s0 + $0x2c] sm:$0xf]
    %v63 = vld [vmem:[%s0 + $0x30] sm:$0xf]
    %v64 = vld [vmem:[%s0 + $0x34] sm:$0xf]
    %v65 = vld [vmem:[%s0 + $0x38] sm:$0xf]
    %v66 = vld [vmem:[%s0 + $0x3c] sm:$0xf]
    %v67 = vld [vmem:[%s0 + $0x40] sm:$0xf]
    %v68 = vld [vmem:[%s0 + $0x44] sm:$0xf]
    %v69 = vld [vmem:[%s0 + $0x48] sm:$0xf]
    %v70 = vld [vmem:[%s0 + $0x4c] sm:$0xf]
    %v71 = vld [vmem:[%s0 + $0x50] sm:$0xf]
    %v72 = vld [vmem:[%s0 + $0x54] sm:$0xf]
    %v73 = vld [vmem:[%s0 + $0x58] sm:$0xf]
    %v74 = vld [vmem:[%s0 + $0x5c] sm:$0xf]
    %v75 = vld [vmem:[%s0 + $0x60] sm:$0xf]
    %v76 = vld [vmem:[%s0 + $0x64] sm:$0xf]
    %v77 = vld [vmem:[%s0 + $0x68] sm:$0xf]
    %v78 = vld [vmem:[%s0 + $0x6c] sm:$0xf]
    %v79 = vld [vmem:[%s0 + $0x70] sm:$0xf]
    %v80 = vld [vmem:[%s0 + $0x74] sm:$0xf]
    %v81 = vld [vmem:[%s2] sm:$0xf]
    %v82 = vld [vmem:[%s3] sm:$0x1]
    %v84 = vperm.slane %v82, 0
    %v116 = vunpack.c.l.b16 %v51
    %v117 = vunpack.c.l.b16 %v52
    %v118 = vunpack.c.l.b16 %v53
    %v119 = vunpack.c.l.b16 %v54
    %v120 = vunpack.c.l.b16 %v55
    %v121 = vunpack.c.l.b16 %v56
    %v122 = vunpack.c.l.b16 %v57
    %v123 = vunpack.c.l.b16 %v58
    %v124 = vunpack.c.l.b16 %v59
    %v125 = vunpack.c.l.b16 %v60
    %v126 = vunpack.c.l.b16 %v61
    %v127 = vunpack.c.l.b16 %v62
    %v128 = vunpack.c.l.b16 %v63
    %v129 = vunpack.c.l.b16 %v64
    %v130 = vunpack.c.l.b16 %v65
    %v131 = vunpack.c.l.b16 %v66
    %v132 = vunpack.c.l.b16 %v67
    %v133 = vunpack.c.l.b16 %v68
    %v134 = vunpack.c.l.b16 %v69
    %v135 = vunpack.c.l.b16 %v70
    %v136 = vunpack.c.l.b16 %v71
    %v137 = vunpack.c.l.b16 %v72
    %v138 = vunpack.c.l.b16 %v73
    %v139 = vunpack.c.l.b16 %v74
    %v140 = vunpack.c.l.b16 %v75
    %v141 = vunpack.c.l.b16 %v76
    %v142 = vunpack.c.l.b16 %v77
    %v143 = vunpack.c.l.b16 %v78
    %v144 = vunpack.c.l.b16 %v79
    %v145 = vunpack.c.l.b16 %v80
    %v146 = vpack.c.b16 %v117, %v116
    %v147 = vpack.c.b16 %v119, %v118
    %v148 = vpack.c.b16 %v121, %v120
    %v149 = vpack.c.b16 %v123, %v122
    %v150 = vpack.c.b16 %v125, %v124
    %v151 = vpack.c.b16 %v127, %v126
    %v152 = vpack.c.b16 %v129, %v128
    %v153 = vpack.c.b16 %v131, %v130
    %v154 = vpack.c.b16 %v133, %v132
    %v155 = vpack.c.b16 %v135, %v134
    %v156 = vpack.c.b16 %v137, %v136
    %v157 = vpack.c.b16 %v139, %v138
    %v158 = vpack.c.b16 %v141, %v140
    %v159 = vpack.c.b16 %v143, %v142
    %v160 = vpack.c.b16 %v145, %v144
    %vm161 = vcmask 56320
    %v163 = vsel %vm161, %v146, 0
    %v166 = vsel %vm161, %v147, 0
    %v169 = vsel %vm161, %v148, 0
    %v172 = vsel %vm161, %v149, 0
    %v175 = vsel %vm161, %v150, 0
    %v178 = vsel %vm161, %v151, 0
    %v181 = vsel %vm161, %v152, 0
    %v184 = vsel %vm161, %v153, 0
    %v187 = vsel %vm161, %v154, 0
    %v190 = vsel %vm161, %v155, 0
    %v193 = vsel %vm161, %v156, 0
    %v196 = vsel %vm161, %v157, 0
    %v199 = vsel %vm161, %v158, 0
    %v202 = vsel %vm161, %v159, 0
    %v205 = vsel %vm161, %v160, 0
    %vm207 = vcmask 1042432
    %vm208 = vcmask 1043456
    %v209 = vsel %vm207, 4294967295, 65535
    %v210 = vsel %vm208, %v209, 0
    %v212 = vand.u32 %v81, %v210
    %214 = vmatpush.bf16.msra.mxu0 0
    %215 = vmatpush.bf16.msra.mxu0 0
    %216 = vmatpush.bf16.msra.mxu0 0
    %217 = vmatpush.bf16.msra.mxu0 0
    %218 = vmatpush.bf16.msra.mxu0 0
    %219 = vmatpush.bf16.msra.mxu0 0
    %220 = vmatpush.bf16.msra.mxu0 0
    %221 = vmatpush.bf16.msra.mxu0 %v212
    %222 = vmatmul.bf16.gmra.mxu0 %v163
    %v223 = vpop.f32.mrf.mxu0
    %v224 = vadd.f32 %v84, %v223
    %v225 = vpop.f32.mrf.mxu0
    %v226 = vadd.f32 %v84, %v225
    %227 = vmatmul.bf16.gmra.mxu0 %v166
    %v228 = vpop.f32.mrf.mxu0
    %v229 = vadd.f32 %v84, %v228
    %v230 = vpop.f32.mrf.mxu0
    %v231 = vadd.f32 %v84, %v230
    %232 = vmatmul.bf16.gmra.mxu0 %v169
    %v233 = vpop.f32.mrf.mxu0
    %v234 = vadd.f32 %v84, %v233
    %v235 = vpop.f32.mrf.mxu0
    %v236 = vadd.f32 %v84, %v235
    %237 = vmatmul.bf16.gmra.mxu0 %v172
    %v238 = vpop.f32.mrf.mxu0
    %v239 = vadd.f32 %v84, %v238
    %v240 = vpop.f32.mrf.mxu0
    %v241 = vadd.f32 %v84, %v240
    %242 = vmatmul.bf16.gmra.mxu0 %v175
    %v243 = vpop.f32.mrf.mxu0
    %v244 = vadd.f32 %v84, %v243
    %v245 = vpop.f32.mrf.mxu0
    %v246 = vadd.f32 %v84, %v245
    %247 = vmatmul.bf16.gmra.mxu0 %v178
    %v248 = vpop.f32.mrf.mxu0
    %v249 = vadd.f32 %v84, %v248
    %v250 = vpop.f32.mrf.mxu0
    %v251 = vadd.f32 %v84, %v250
    %252 = vmatmul.bf16.gmra.mxu0 %v181
    %v253 = vpop.f32.mrf.mxu0
    %v254 = vadd.f32 %v84, %v253
    %v255 = vpop.f32.mrf.mxu0
    %v256 = vadd.f32 %v84, %v255
    %257 = vmatmul.bf16.gmra.mxu0 %v184
    %v258 = vpop.f32.mrf.mxu0
    %v259 = vadd.f32 %v84, %v258
    %v260 = vpop.f32.mrf.mxu0
    %v261 = vadd.f32 %v84, %v260
    %262 = vmatmul.bf16.gmra.mxu0 %v187
    %v263 = vpop.f32.mrf.mxu0
    %v264 = vadd.f32 %v84, %v263
    %v265 = vpop.f32.mrf.mxu0
    %v266 = vadd.f32 %v84, %v265
    %267 = vmatmul.bf16.gmra.mxu0 %v190
    %v268 = vpop.f32.mrf.mxu0
    %v269 = vadd.f32 %v84, %v268
    %v270 = vpop.f32.mrf.mxu0
    %v271 = vadd.f32 %v84, %v270
    %272 = vmatmul.bf16.gmra.mxu0 %v193
    %v273 = vpop.f32.mrf.mxu0
    %v274 = vadd.f32 %v84, %v273
    %v275 = vpop.f32.mrf.mxu0
    %v276 = vadd.f32 %v84, %v275
    %277 = vmatmul.bf16.gmra.mxu0 %v196
    %v278 = vpop.f32.mrf.mxu0
    %v279 = vadd.f32 %v84, %v278
    %v280 = vpop.f32.mrf.mxu0
    %v281 = vadd.f32 %v84, %v280
    %282 = vmatmul.bf16.gmra.mxu0 %v199
    %v283 = vpop.f32.mrf.mxu0
    %v284 = vadd.f32 %v84, %v283
    %v285 = vpop.f32.mrf.mxu0
    %v286 = vadd.f32 %v84, %v285
    %287 = vmatmul.bf16.gmra.mxu0 %v202
    %v288 = vpop.f32.mrf.mxu0
    %v289 = vadd.f32 %v84, %v288
    %v290 = vpop.f32.mrf.mxu0
    %v291 = vadd.f32 %v84, %v290
    %292 = vmatmul.bf16.gmra.mxu0 %v205
    %v293 = vpop.f32.mrf.mxu0
    %v294 = vadd.f32 %v84, %v293
    %v295 = vpop.f32.mrf.mxu0
    %v296 = vadd.f32 %v84, %v295
    %297 = vdwg.mxu0
    %v298 = vmax.f32 %v224, 0.0
    %v299 = vmax.f32 %v226, 0.0
    %v300 = vmax.f32 %v229, 0.0
    %v301 = vmax.f32 %v231, 0.0
    %v302 = vmax.f32 %v234, 0.0
    %v303 = vmax.f32 %v236, 0.0
    %v304 = vmax.f32 %v239, 0.0
    %v305 = vmax.f32 %v241, 0.0
    %v306 = vmax.f32 %v244, 0.0
    %v307 = vmax.f32 %v246, 0.0
    %v308 = vmax.f32 %v249, 0.0
    %v309 = vmax.f32 %v251, 0.0
    %v310 = vmax.f32 %v254, 0.0
    %v311 = vmax.f32 %v256, 0.0
    %v312 = vmax.f32 %v259, 0.0
    %v313 = vmax.f32 %v261, 0.0
    %v314 = vmax.f32 %v264, 0.0
    %v315 = vmax.f32 %v266, 0.0
    %v316 = vmax.f32 %v269, 0.0
    %v317 = vmax.f32 %v271, 0.0
    %v318 = vmax.f32 %v274, 0.0
    %v319 = vmax.f32 %v276, 0.0
    %v320 = vmax.f32 %v279, 0.0
    %v321 = vmax.f32 %v281, 0.0
    %v322 = vmax.f32 %v284, 0.0
    %v323 = vmax.f32 %v286, 0.0
    %v324 = vmax.f32 %v289, 0.0
    %v325 = vmax.f32 %v291, 0.0
    %v326 = vmax.f32 %v294, 0.0
    %v327 = vmax.f32 %v296, 0.0
    %v328 = vpack.c.bf16 %v298, %v298
    %v329 = vpack.c.bf16 %v299, %v299
    %v330 = vpack.c.bf16 %v300, %v300
    %v331 = vpack.c.bf16 %v301, %v301
    %v332 = vpack.c.bf16 %v302, %v302
    %v333 = vpack.c.bf16 %v303, %v303
    %v334 = vpack.c.bf16 %v304, %v304
    %v335 = vpack.c.bf16 %v305, %v305
    %v336 = vpack.c.bf16 %v306, %v306
    %v337 = vpack.c.bf16 %v307, %v307
    %v338 = vpack.c.bf16 %v308, %v308
    %v339 = vpack.c.bf16 %v309, %v309
    %v340 = vpack.c.bf16 %v310, %v310
    %v341 = vpack.c.bf16 %v311, %v311
    %v342 = vpack.c.bf16 %v312, %v312
    %v343 = vpack.c.bf16 %v313, %v313
    %v344 = vpack.c.bf16 %v314, %v314
    %v345 = vpack.c.bf16 %v315, %v315
    %v346 = vpack.c.bf16 %v316, %v316
    %v347 = vpack.c.bf16 %v317, %v317
    %v348 = vpack.c.bf16 %v318, %v318
    %v349 = vpack.c.bf16 %v319, %v319
    %v350 = vpack.c.bf16 %v320, %v320
    %v351 = vpack.c.bf16 %v321, %v321
    %v352 = vpack.c.bf16 %v322, %v322
    %v353 = vpack.c.bf16 %v323, %v323
    %v354 = vpack.c.bf16 %v324, %v324
    %v355 = vpack.c.bf16 %v325, %v325
    %v356 = vpack.c.bf16 %v326, %v326
    %v357 = vpack.c.bf16 %v327, %v327
    %v388 = vrot.slane %v328, 3
    %v389 = vrot.slane %v329, 3
    %v390 = vrot.slane %v330, 3
    %v391 = vrot.slane %v331, 3
    %v392 = vrot.slane %v332, 3
    %v393 = vrot.slane %v333, 3
    %v394 = vrot.slane %v334, 3
    %v395 = vrot.slane %v335, 3
    %v396 = vrot.slane %v336, 3
    %v397 = vrot.slane %v337, 3
    %v398 = vrot.slane %v338, 3
    %v399 = vrot.slane %v339, 3
    %v400 = vrot.slane %v340, 3
    %v401 = vrot.slane %v341, 3
    %v402 = vrot.slane %v342, 3
    %v403 = vrot.slane %v343, 3
    %v404 = vrot.slane %v344, 3
    %v405 = vrot.slane %v345, 3
    %v406 = vrot.slane %v346, 3
    %v407 = vrot.slane %v347, 3
    %v408 = vrot.slane %v348, 3
    %v409 = vrot.slane %v349, 3
    %v410 = vrot.slane %v350, 3
    %v411 = vrot.slane %v351, 3
    %v412 = vrot.slane %v352, 3
    %v413 = vrot.slane %v353, 3
    %v414 = vrot.slane %v354, 3
    %v415 = vrot.slane %v355, 3
    %v416 = vrot.slane %v356, 3
    %v417 = vrot.slane %v357, 3
    %vm418 = vcmask 1040384
    %v421 = vsel %vm418, %v328, %v388
    %vm422 = vcmask 1041409
    %v423 = vsel %vm422, %v328, %v388
    %v425 = vrot.slane %v423, 1
    %vm426 = vcmask 1042434
    %v427 = vsel %vm426, %v328, %v388
    %v429 = vrot.slane %v427, 2
    %vm430 = vcmask 1043459
    %v431 = vsel %vm430, %v328, %v388
    %v433 = vrot.slane %v431, 3
    %v436 = vsel %vm418, %v329, %v389
    %v437 = vsel %vm422, %v329, %v389
    %v439 = vrot.slane %v437, 1
    %v440 = vsel %vm426, %v329, %v389
    %v442 = vrot.slane %v440, 2
    %v443 = vsel %vm430, %v329, %v389
    %v445 = vrot.slane %v443, 3
    %v448 = vsel %vm418, %v330, %v390
    %v449 = vsel %vm422, %v330, %v390
    %v451 = vrot.slane %v449, 1
    %v452 = vsel %vm426, %v330, %v390
    %v454 = vrot.slane %v452, 2
    %v455 = vsel %vm430, %v330, %v390
    %v457 = vrot.slane %v455, 3
    %v460 = vsel %vm418, %v331, %v391
    %v461 = vsel %vm422, %v331, %v391
    %v463 = vrot.slane %v461, 1
    %v464 = vsel %vm426, %v331, %v391
    %v466 = vrot.slane %v464, 2
    %v467 = vsel %vm430, %v331, %v391
    %v469 = vrot.slane %v467, 3
    %v472 = vsel %vm418, %v332, %v392
    %v473 = vsel %vm422, %v332, %v392
    %v475 = vrot.slane %v473, 1
    %v476 = vsel %vm426, %v332, %v392
    %v478 = vrot.slane %v476, 2
    %v479 = vsel %vm430, %v332, %v392
    %v481 = vrot.slane %v479, 3
    %v484 = vsel %vm418, %v333, %v393
    %v485 = vsel %vm422, %v333, %v393
    %v487 = vrot.slane %v485, 1
    %v488 = vsel %vm426, %v333, %v393
    %v490 = vrot.slane %v488, 2
    %v491 = vsel %vm430, %v333, %v393
    %v493 = vrot.slane %v491, 3
    %v496 = vsel %vm418, %v334, %v394
    %v497 = vsel %vm422, %v334, %v394
    %v499 = vrot.slane %v497, 1
    %v500 = vsel %vm426, %v334, %v394
    %v502 = vrot.slane %v500, 2
    %v503 = vsel %vm430, %v334, %v394
    %v505 = vrot.slane %v503, 3
    %v508 = vsel %vm418, %v335, %v395
    %v509 = vsel %vm422, %v335, %v395
    %v511 = vrot.slane %v509, 1
    %v512 = vsel %vm426, %v335, %v395
    %v514 = vrot.slane %v512, 2
    %v515 = vsel %vm430, %v335, %v395
    %v517 = vrot.slane %v515, 3
    %v520 = vsel %vm418, %v336, %v396
    %v521 = vsel %vm422, %v336, %v396
    %v523 = vrot.slane %v521, 1
    %v524 = vsel %vm426, %v336, %v396
    %v526 = vrot.slane %v524, 2
    %v527 = vsel %vm430, %v336, %v396
    %v529 = vrot.slane %v527, 3
    %v532 = vsel %vm418, %v337, %v397
    %v533 = vsel %vm422, %v337, %v397
    %v535 = vrot.slane %v533, 1
    %v536 = vsel %vm426, %v337, %v397
    %v538 = vrot.slane %v536, 2
    %v539 = vsel %vm430, %v337, %v397
    %v541 = vrot.slane %v539, 3
    %v544 = vsel %vm418, %v338, %v398
    %v545 = vsel %vm422, %v338, %v398
    %v547 = vrot.slane %v545, 1
    %v548 = vsel %vm426, %v338, %v398
    %v550 = vrot.slane %v548, 2
    %v551 = vsel %vm430, %v338, %v398
    %v553 = vrot.slane %v551, 3
    %v556 = vsel %vm418, %v339, %v399
    %v557 = vsel %vm422, %v339, %v399
    %v559 = vrot.slane %v557, 1
    %v560 = vsel %vm426, %v339, %v399
    %v562 = vrot.slane %v560, 2
    %v563 = vsel %vm430, %v339, %v399
    %v565 = vrot.slane %v563, 3
    %v568 = vsel %vm418, %v340, %v400
    %v569 = vsel %vm422, %v340, %v400
    %v571 = vrot.slane %v569, 1
    %v572 = vsel %vm426, %v340, %v400
    %v574 = vrot.slane %v572, 2
    %v575 = vsel %vm430, %v340, %v400
    %v577 = vrot.slane %v575, 3
    %v580 = vsel %vm418, %v341, %v401
    %v581 = vsel %vm422, %v341, %v401
    %v583 = vrot.slane %v581, 1
    %v584 = vsel %vm426, %v341, %v401
    %v586 = vrot.slane %v584, 2
    %v587 = vsel %vm430, %v341, %v401
    %v589 = vrot.slane %v587, 3
    %v592 = vsel %vm418, %v342, %v402
    %v593 = vsel %vm422, %v342, %v402
    %v595 = vrot.slane %v593, 1
    %v596 = vsel %vm426, %v342, %v402
    %v598 = vrot.slane %v596, 2
    %v599 = vsel %vm430, %v342, %v402
    %v601 = vrot.slane %v599, 3
    %v604 = vsel %vm418, %v343, %v403
    %v605 = vsel %vm422, %v343, %v403
    %v607 = vrot.slane %v605, 1
    %v608 = vsel %vm426, %v343, %v403
    %v610 = vrot.slane %v608, 2
    %v611 = vsel %vm430, %v343, %v403
    %v613 = vrot.slane %v611, 3
    %v616 = vsel %vm418, %v344, %v404
    %v617 = vsel %vm422, %v344, %v404
    %v619 = vrot.slane %v617, 1
    %v620 = vsel %vm426, %v344, %v404
    %v622 = vrot.slane %v620, 2
    %v623 = vsel %vm430, %v344, %v404
    %v625 = vrot.slane %v623, 3
    %v628 = vsel %vm418, %v345, %v405
    %v629 = vsel %vm422, %v345, %v405
    %v631 = vrot.slane %v629, 1
    %v632 = vsel %vm426, %v345, %v405
    %v634 = vrot.slane %v632, 2
    %v635 = vsel %vm430, %v345, %v405
    %v637 = vrot.slane %v635, 3
    %v640 = vsel %vm418, %v346, %v406
    %v641 = vsel %vm422, %v346, %v406
    %v643 = vrot.slane %v641, 1
    %v644 = vsel %vm426, %v346, %v406
    %v646 = vrot.slane %v644, 2
    %v647 = vsel %vm430, %v346, %v406
    %v649 = vrot.slane %v647, 3
    %v652 = vsel %vm418, %v347, %v407
    %v653 = vsel %vm422, %v347, %v407
    %v655 = vrot.slane %v653, 1
    %v656 = vsel %vm426, %v347, %v407
    %v658 = vrot.slane %v656, 2
    %v659 = vsel %vm430, %v347, %v407
    %v661 = vrot.slane %v659, 3
    %v664 = vsel %vm418, %v348, %v408
    %v665 = vsel %vm422, %v348, %v408
    %v667 = vrot.slane %v665, 1
    %v668 = vsel %vm426, %v348, %v408
    %v670 = vrot.slane %v668, 2
    %v671 = vsel %vm430, %v348, %v408
    %v673 = vrot.slane %v671, 3
    %v676 = vsel %vm418, %v349, %v409
    %v677 = vsel %vm422, %v349, %v409
    %v679 = vrot.slane %v677, 1
    %v680 = vsel %vm426, %v349, %v409
    %v682 = vrot.slane %v680, 2
    %v683 = vsel %vm430, %v349, %v409
    %v685 = vrot.slane %v683, 3
    %v688 = vsel %vm418, %v350, %v410
    %v689 = vsel %vm422, %v350, %v410
    %v691 = vrot.slane %v689, 1
    %v692 = vsel %vm426, %v350, %v410
    %v694 = vrot.slane %v692, 2
    %v695 = vsel %vm430, %v350, %v410
    %v697 = vrot.slane %v695, 3
    %v700 = vsel %vm418, %v351, %v411
    %v701 = vsel %vm422, %v351, %v411
    %v703 = vrot.slane %v701, 1
    %v704 = vsel %vm426, %v351, %v411
    %v706 = vrot.slane %v704, 2
    %v707 = vsel %vm430, %v351, %v411
    %v709 = vrot.slane %v707, 3
    %v712 = vsel %vm418, %v352, %v412
    %v713 = vsel %vm422, %v352, %v412
    %v715 = vrot.slane %v713, 1
    %v716 = vsel %vm426, %v352, %v412
    %v718 = vrot.slane %v716, 2
    %v719 = vsel %vm430, %v352, %v412
    %v721 = vrot.slane %v719, 3
    %v724 = vsel %vm418, %v353, %v413
    %v725 = vsel %vm422, %v353, %v413
    %v727 = vrot.slane %v725, 1
    %v728 = vsel %vm426, %v353, %v413
    %v730 = vrot.slane %v728, 2
    %v731 = vsel %vm430, %v353, %v413
    %v733 = vrot.slane %v731, 3
    %v736 = vsel %vm418, %v354, %v414
    %v737 = vsel %vm422, %v354, %v414
    %v739 = vrot.slane %v737, 1
    %v740 = vsel %vm426, %v354, %v414
    %v742 = vrot.slane %v740, 2
    %v743 = vsel %vm430, %v354, %v414
    %v745 = vrot.slane %v743, 3
    %v748 = vsel %vm418, %v355, %v415
    %v749 = vsel %vm422, %v355, %v415
    %v751 = vrot.slane %v749, 1
    %v752 = vsel %vm426, %v355, %v415
    %v754 = vrot.slane %v752, 2
    %v755 = vsel %vm430, %v355, %v415
    %v757 = vrot.slane %v755, 3
    %v760 = vsel %vm418, %v356, %v416
    %v761 = vsel %vm422, %v356, %v416
    %v763 = vrot.slane %v761, 1
    %v764 = vsel %vm426, %v356, %v416
    %v766 = vrot.slane %v764, 2
    %v767 = vsel %vm430, %v356, %v416
    %v769 = vrot.slane %v767, 3
    %v772 = vsel %vm418, %v357, %v417
    %v773 = vsel %vm422, %v357, %v417
    %v775 = vrot.slane %v773, 1
    %v776 = vsel %vm426, %v357, %v417
    %v778 = vrot.slane %v776, 2
    %v779 = vsel %vm430, %v357, %v417
    %v781 = vrot.slane %v779, 3
    %v782 = vld [vmem:[%s4] sm:$0xf]
    %v783 = vld [vmem:[%s4 + $0x4] sm:$0xf]
    %v784 = vld [vmem:[%s4 + $0x8] sm:$0xf]
    %v785 = vld [vmem:[%s4 + $0xc] sm:$0x7]
    %v786 = vld [vmem:[%s4 + $0xc] sm:$0x8]
    %v787 = vld [vmem:[%s4 + $0x10] sm:$0xf]
    %v788 = vld [vmem:[%s4 + $0x14] sm:$0xf]
    %v789 = vld [vmem:[%s4 + $0x18] sm:$0xf]
    %v790 = vld [vmem:[%s4 + $0x1c] sm:$0x3]
    %791 = vst [vmem:[#allocation1] ss:$9 sm:$0xff] %v421
    %v792 = vld [vmem:[#allocation1] sm:$0xff]
    %795 = vst [vmem:[#allocation1] ss:$9 sm:$0xff] %v425
    %v796 = vld [vmem:[#allocation1] sm:$0xff]
    %799 = vst [vmem:[#allocation1] ss:$9 sm:$0xff] %v429
    %v800 = vld [vmem:[#allocation1] sm:$0xff]
    %803 = vst [vmem:[#allocation1] ss:$9 sm:$0xff] %v433
    %v804 = vld [vmem:[#allocation1] sm:$0xff]
    %806 = vst [vmem:[#allocation1] ss:$9 sm:$0xff] %v436
    %v807 = vld [vmem:[#allocation1] sm:$0xff]
    %810 = vst [vmem:[#allocation1] ss:$9 sm:$0xff] %v439
    %v811 = vld [vmem:[#allocation1] sm:$0xff]
    %814 = vst [vmem:[#allocation1] ss:$9 sm:$0xff] %v442
    %v815 = vld [vmem:[#allocation1] sm:$0xff]
    %818 = vst [vmem:[#allocation1] ss:$9 sm:$0xff] %v445
    %v819 = vld [vmem:[#allocation1] sm:$0xff]
    %821 = vst [vmem:[#allocation1] ss:$9 sm:$0xff] %v448
    %v822 = vld [vmem:[#allocation1] sm:$0xff]
    %825 = vst [vmem:[#allocation1] ss:$9 sm:$0xff] %v451
    %v826 = vld [vmem:[#allocation1] sm:$0xff]
    %829 = vst [vmem:[#allocation1] ss:$9 sm:$0xff] %v454
    %v830 = vld [vmem:[#allocation1] sm:$0xff]
    %833 = vst [vmem:[#allocation1] ss:$9 sm:$0xff] %v457
    %v834 = vld [vmem:[#allocation1] sm:$0xff]
    %837 = vst [vmem:[#allocation1] ss:$9 sm:$0xff] %v469
    %v838 = vld [vmem:[#allocation1] sm:$0xff]
    %840 = vst [vmem:[#allocation1] ss:$9 sm:$0xff] %v472
    %v841 = vld [vmem:[#allocation1] sm:$0xff]
    %844 = vst [vmem:[#allocation1] ss:$9 sm:$0xff] %v475
    %v845 = vld [vmem:[#allocation1] sm:$0xff]
    %848 = vst [vmem:[#allocation1] ss:$9 sm:$0xff] %v478
    %v849 = vld [vmem:[#allocation1] sm:$0xff]
    %852 = vst [vmem:[#allocation1] ss:$9 sm:$0xff] %v481
    %v853 = vld [vmem:[#allocation1] sm:$0xff]
    %855 = vst [vmem:[#allocation1] ss:$9 sm:$0xff] %v484
    %v856 = vld [vmem:[#allocation1] sm:$0xff]
    %859 = vst [vmem:[#allocation1] ss:$9 sm:$0xff] %v487
    %v860 = vld [vmem:[#allocation1] sm:$0xff]
    %863 = vst [vmem:[#allocation1] ss:$9 sm:$0xff] %v490
    %v864 = vld [vmem:[#allocation1] sm:$0xff]
    %867 = vst [vmem:[#allocation1] ss:$9 sm:$0xff] %v493
    %v868 = vld [vmem:[#allocation1] sm:$0xff]
    %870 = vst [vmem:[#allocation1] ss:$9 sm:$0xff] %v496
    %v871 = vld [vmem:[#allocation1] sm:$0xff]
    %874 = vst [vmem:[#allocation1] ss:$9 sm:$0xff] %v499
    %v875 = vld [vmem:[#allocation1] sm:$0xff]
    %878 = vst [vmem:[#allocation1] ss:$9 sm:$0xff] %v502
    %v879 = vld [vmem:[#allocation1] sm:$0xff]
    %882 = vst [vmem:[#allocation1] ss:$9 sm:$0xff] %v514
    %v883 = vld [vmem:[#allocation1] sm:$0xff]
    %886 = vst [vmem:[#allocation1] ss:$9 sm:$0xff] %v517
    %v887 = vld [vmem:[#allocation1] sm:$0xff]
    %889 = vst [vmem:[#allocation1] ss:$9 sm:$0xff] %v520
    %v890 = vld [vmem:[#allocation1] sm:$0xff]
    %893 = vst [vmem:[#allocation1] ss:$9 sm:$0xff] %v523
    %v894 = vld [vmem:[#allocation1] sm:$0xff]
    %897 = vst [vmem:[#allocation1] ss:$9 sm:$0xff] %v526
    %v898 = vld [vmem:[#allocation1] sm:$0xff]
    %901 = vst [vmem:[#allocation1] ss:$9 sm:$0xff] %v529
    %v902 = vld [vmem:[#allocation1] sm:$0xff]
    %904 = vst [vmem:[#allocation1] ss:$9 sm:$0xff] %v532
    %v905 = vld [vmem:[#allocation1] sm:$0xff]
    %908 = vst [vmem:[#allocation1] ss:$9 sm:$0xff] %v535
    %v909 = vld [vmem:[#allocation1] sm:$0xff]
    %912 = vst [vmem:[#allocation1] ss:$9 sm:$0xff] %v538
    %v913 = vld [vmem:[#allocation1] sm:$0xff]
    %916 = vst [vmem:[#allocation1] ss:$9 sm:$0xff] %v541
    %v917 = vld [vmem:[#allocation1] sm:$0xff]
    %919 = vst [vmem:[#allocation1] ss:$9 sm:$0xff] %v544
    %v920 = vld [vmem:[#allocation1] sm:$0xff]
    %923 = vst [vmem:[#allocation1] ss:$9 sm:$0xff] %v547
    %v924 = vld [vmem:[#allocation1] sm:$0xff]
    %927 = vst [vmem:[#allocation1] ss:$9 sm:$0xff] %v559
    %v928 = vld [vmem:[#allocation1] sm:$0xff]
    %931 = vst [vmem:[#allocation1] ss:$9 sm:$0xff] %v562
    %v932 = vld [vmem:[#allocation1] sm:$0xff]
    %935 = vst [vmem:[#allocation1] ss:$9 sm:$0xff] %v565
    %v936 = vld [vmem:[#allocation1] sm:$0xff]
    %938 = vst [vmem:[#allocation1] ss:$9 sm:$0xff] %v568
    %v939 = vld [vmem:[#allocation1] sm:$0xff]
    %942 = vst [vmem:[#allocation1] ss:$9 sm:$0xff] %v571
    %v943 = vld [vmem:[#allocation1] sm:$0xff]
    %946 = vst [vmem:[#allocation1] ss:$9 sm:$0xff] %v574
    %v947 = vld [vmem:[#allocation1] sm:$0xff]
    %950 = vst [vmem:[#allocation1] ss:$9 sm:$0xff] %v577
    %v951 = vld [vmem:[#allocation1] sm:$0xff]
    %953 = vst [vmem:[#allocation1] ss:$9 sm:$0xff] %v580
    %v954 = vld [vmem:[#allocation1] sm:$0xff]
    %957 = vst [vmem:[#allocation1] ss:$9 sm:$0xff] %v583
    %v958 = vld [vmem:[#allocation1] sm:$0xff]
    %961 = vst [vmem:[#allocation1] ss:$9 sm:$0xff] %v586
    %v962 = vld [vmem:[#allocation1] sm:$0xff]
    %965 = vst [vmem:[#allocation1] ss:$9 sm:$0xff] %v589
    %v966 = vld [vmem:[#allocation1] sm:$0xff]
    %968 = vst [vmem:[#allocation1] ss:$9 sm:$0xff] %v592
    %v969 = vld [vmem:[#allocation1] sm:$0xff]
    %971 = vst [vmem:[#allocation1] ss:$9 sm:$0xff] %v604
    %v972 = vld [vmem:[#allocation1] sm:$0xff]
    %975 = vst [vmem:[#allocation1] ss:$9 sm:$0xff] %v607
    %v976 = vld [vmem:[#allocation1] sm:$0xff]
    %979 = vst [vmem:[#allocation1] ss:$9 sm:$0xff] %v610
    %v980 = vld [vmem:[#allocation1] sm:$0xff]
    %983 = vst [vmem:[#allocation1] ss:$9 sm:$0xff] %v613
    %v984 = vld [vmem:[#allocation1] sm:$0xff]
    %986 = vst [vmem:[#allocation1] ss:$9 sm:$0xff] %v616
    %v987 = vld [vmem:[#allocation1] sm:$0xff]
    %990 = vst [vmem:[#allocation1] ss:$9 sm:$0xff] %v619
    %v991 = vld [vmem:[#allocation1] sm:$0xff]
    %994 = vst [vmem:[#allocation1] ss:$9 sm:$0xff] %v622
    %v995 = vld [vmem:[#allocation1] sm:$0xff]
    %998 = vst [vmem:[#allocation1] ss:$9 sm:$0xff] %v625
    %v999 = vld [vmem:[#allocation1] sm:$0xff]
    %1001 = vst [vmem:[#allocation1] ss:$9 sm:$0xff] %v628
    %v1002 = vld [vmem:[#allocation1] sm:$0xff]
    %1005 = vst [vmem:[#allocation1] ss:$9 sm:$0xff] %v631
    %v1006 = vld [vmem:[#allocation1] sm:$0xff]
    %1009 = vst [vmem:[#allocation1] ss:$9 sm:$0xff] %v634
    %v1010 = vld [vmem:[#allocation1] sm:$0xff]
    %1013 = vst [vmem:[#allocation1] ss:$9 sm:$0xff] %v637
    %v1014 = vld [vmem:[#allocation1] sm:$0xff]
    %1017 = vst [vmem:[#allocation1] ss:$9 sm:$0xff] %v649
    %v1018 = vld [vmem:[#allocation1] sm:$0xff]
    %1020 = vst [vmem:[#allocation1] ss:$9 sm:$0xff] %v652
    %v1021 = vld [vmem:[#allocation1] sm:$0xff]
    %1024 = vst [vmem:[#allocation1] ss:$9 sm:$0xff] %v655
    %v1025 = vld [vmem:[#allocation1] sm:$0xff]
    %1028 = vst [vmem:[#allocation1] ss:$9 sm:$0xff] %v658
    %v1029 = vld [vmem:[#allocation1] sm:$0xff]
    %1032 = vst [vmem:[#allocation1] ss:$9 sm:$0xff] %v661
    %v1033 = vld [vmem:[#allocation1] sm:$0xff]
    %1035 = vst [vmem:[#allocation1] ss:$9 sm:$0xff] %v664
    %v1036 = vld [vmem:[#allocation1] sm:$0xff]
    %1039 = vst [vmem:[#allocation1] ss:$9 sm:$0xff] %v667
    %v1040 = vld [vmem:[#allocation1] sm:$0xff]
    %1043 = vst [vmem:[#allocation1] ss:$9 sm:$0xff] %v670
    %v1044 = vld [vmem:[#allocation1] sm:$0xff]
    %1047 = vst [vmem:[#allocation1] ss:$9 sm:$0xff] %v673
    %v1048 = vld [vmem:[#allocation1] sm:$0xff]
    %1050 = vst [vmem:[#allocation1] ss:$9 sm:$0xff] %v676
    %v1051 = vld [vmem:[#allocation1] sm:$0xff]
    %1054 = vst [vmem:[#allocation1] ss:$9 sm:$0xff] %v679
    %v1055 = vld [vmem:[#allocation1] sm:$0xff]
    %1058 = vst [vmem:[#allocation1] ss:$9 sm:$0xff] %v682
    %v1059 = vld [vmem:[#allocation1] sm:$0xff]
    %1062 = vst [vmem:[#allocation1] ss:$9 sm:$0xff] %v694
    %v1063 = vld [vmem:[#allocation1] sm:$0xff]
    %1066 = vst [vmem:[#allocation1] ss:$9 sm:$0xff] %v697
    %v1067 = vld [vmem:[#allocation1] sm:$0xff]
    %1069 = vst [vmem:[#allocation1] ss:$9 sm:$0xff] %v700
    %v1070 = vld [vmem:[#allocation1] sm:$0xff]
    %1073 = vst [vmem:[#allocation1] ss:$9 sm:$0xff] %v703
    %v1074 = vld [vmem:[#allocation1] sm:$0xff]
    %1077 = vst [vmem:[#allocation1] ss:$9 sm:$0xff] %v706
    %v1078 = vld [vmem:[#allocation1] sm:$0xff]
    %1081 = vst [vmem:[#allocation1] ss:$9 sm:$0xff] %v709
    %v1082 = vld [vmem:[#allocation1] sm:$0xff]
    %1084 = vst [vmem:[#allocation1] ss:$9 sm:$0xff] %v712
    %v1085 = vld [vmem:[#allocation1] sm:$0xff]
    %1088 = vst [vmem:[#allocation1] ss:$9 sm:$0xff] %v715
    %v1089 = vld [vmem:[#allocation1] sm:$0xff]
    %1092 = vst [vmem:[#allocation1] ss:$9 sm:$0xff] %v718
    %v1093 = vld [vmem:[#allocation1] sm:$0xff]
    %1096 = vst [vmem:[#allocation1] ss:$9 sm:$0xff] %v721
    %v1097 = vld [vmem:[#allocation1] sm:$0xff]
    %1099 = vst [vmem:[#allocation1] ss:$9 sm:$0xff] %v724
    %v1100 = vld [vmem:[#allocation1] sm:$0xff]
    %1103 = vst [vmem:[#allocation1] ss:$9 sm:$0xff] %v727
    %v1104 = vld [vmem:[#allocation1] sm:$0xff]
    %1107 = vst [vmem:[#allocation1] ss:$9 sm:$0xff] %v739
    %v1108 = vld [vmem:[#allocation1] sm:$0xff]
    %1111 = vst [vmem:[#allocation1] ss:$9 sm:$0xff] %v742
    %v1112 = vld [vmem:[#allocation1] sm:$0xff]
    %1115 = vst [vmem:[#allocation1] ss:$9 sm:$0xff] %v745
    %v1116 = vld [vmem:[#allocation1] sm:$0xff]
    %1118 = vst [vmem:[#allocation1] ss:$9 sm:$0xff] %v748
    %v1119 = vld [vmem:[#allocation1] sm:$0xff]
    %1122 = vst [vmem:[#allocation1] ss:$9 sm:$0xff] %v751
    %v1123 = vld [vmem:[#allocation1] sm:$0xff]
    %1126 = vst [vmem:[#allocation1] ss:$9 sm:$0xff] %v754
    %v1127 = vld [vmem:[#allocation1] sm:$0xff]
    %1130 = vst [vmem:[#allocation1] ss:$9 sm:$0xff] %v757
    %v1131 = vld [vmem:[#allocation1] sm:$0xff]
    %1133 = vst [vmem:[#allocation1] ss:$9 sm:$0xff] %v760
    %v1134 = vld [vmem:[#allocation1] sm:$0xff]
    %1137 = vst [vmem:[#allocation1] ss:$9 sm:$0xff] %v763
    %v1138 = vld [vmem:[#allocation1] sm:$0xff]
    %1141 = vst [vmem:[#allocation1] ss:$9 sm:$0xff] %v766
    %v1142 = vld [vmem:[#allocation1] sm:$0xff]
    %1145 = vst [vmem:[#allocation1] ss:$9 sm:$0xff] %v769
    %v1146 = vld [vmem:[#allocation1] sm:$0xff]
    %1148 = vst [vmem:[#allocation1] ss:$9 sm:$0xff] %v772
    %v1149 = vld [vmem:[#allocation1] sm:$0xff]
    %v1151 = vunpack.c.l.b16 %v792
    %v1152 = vunpack.c.l.b16 %v796
    %v1153 = vunpack.c.l.b16 %v800
    %v1154 = vunpack.c.l.b16 %v804
    %v1155 = vunpack.c.l.b16 %v807
    %v1156 = vunpack.c.l.b16 %v811
    %v1157 = vunpack.c.l.b16 %v815
    %v1158 = vunpack.c.l.b16 %v819
    %v1159 = vunpack.c.l.b16 %v822
    %v1160 = vunpack.c.l.b16 %v826
    %v1161 = vunpack.c.l.b16 %v830
    %v1162 = vunpack.c.l.b16 %v834
    %v1163 = vunpack.c.l.b16 %v838
    %v1164 = vunpack.c.l.b16 %v841
    %v1165 = vunpack.c.l.b16 %v845
    %v1166 = vunpack.c.l.b16 %v849
    %v1167 = vunpack.c.l.b16 %v853
    %v1168 = vunpack.c.l.b16 %v856
    %v1169 = vunpack.c.l.b16 %v860
    %v1170 = vunpack.c.l.b16 %v864
    %v1171 = vunpack.c.l.b16 %v868
    %v1172 = vunpack.c.l.b16 %v871
    %v1173 = vunpack.c.l.b16 %v875
    %v1174 = vunpack.c.l.b16 %v879
    %v1175 = vunpack.c.l.b16 %v883
    %v1176 = vunpack.c.l.b16 %v887
    %v1177 = vunpack.c.l.b16 %v890
    %v1178 = vunpack.c.l.b16 %v894
    %v1179 = vunpack.c.l.b16 %v898
    %v1180 = vunpack.c.l.b16 %v902
    %v1181 = vunpack.c.l.b16 %v905
    %v1182 = vunpack.c.l.b16 %v909
    %v1183 = vunpack.c.l.b16 %v913
    %v1184 = vunpack.c.l.b16 %v917
    %v1185 = vunpack.c.l.b16 %v920
    %v1186 = vunpack.c.l.b16 %v924
    %v1187 = vunpack.c.l.b16 %v928
    %v1188 = vunpack.c.l.b16 %v932
    %v1189 = vunpack.c.l.b16 %v936
    %v1190 = vunpack.c.l.b16 %v939
    %v1191 = vunpack.c.l.b16 %v943
    %v1192 = vunpack.c.l.b16 %v947
    %v1193 = vunpack.c.l.b16 %v951
    %v1194 = vunpack.c.l.b16 %v954
    %v1195 = vunpack.c.l.b16 %v958
    %v1196 = vunpack.c.l.b16 %v962
    %v1197 = vunpack.c.l.b16 %v966
    %v1198 = vunpack.c.l.b16 %v969
    %v1199 = vunpack.c.l.b16 %v972
    %v1200 = vunpack.c.l.b16 %v976
    %v1201 = vunpack.c.l.b16 %v980
    %v1202 = vunpack.c.l.b16 %v984
    %v1203 = vunpack.c.l.b16 %v987
    %v1204 = vunpack.c.l.b16 %v991
    %v1205 = vunpack.c.l.b16 %v995
    %v1206 = vunpack.c.l.b16 %v999
    %v1207 = vunpack.c.l.b16 %v1002
    %v1208 = vunpack.c.l.b16 %v1006
    %v1209 = vunpack.c.l.b16 %v1010
    %v1210 = vunpack.c.l.b16 %v1014
    %v1211 = vunpack.c.l.b16 %v1018
    %v1212 = vunpack.c.l.b16 %v1021
    %v1213 = vunpack.c.l.b16 %v1025
    %v1214 = vunpack.c.l.b16 %v1029
    %v1215 = vunpack.c.l.b16 %v1033
    %v1216 = vunpack.c.l.b16 %v1036
    %v1217 = vunpack.c.l.b16 %v1040
    %v1218 = vunpack.c.l.b16 %v1044
    %v1219 = vunpack.c.l.b16 %v1048
    %v1220 = vunpack.c.l.b16 %v1051
    %v1221 = vunpack.c.l.b16 %v1055
    %v1222 = vunpack.c.l.b16 %v1059
    %v1223 = vunpack.c.l.b16 %v1063
    %v1224 = vunpack.c.l.b16 %v1067
    %v1225 = vunpack.c.l.b16 %v1070
    %v1226 = vunpack.c.l.b16 %v1074
    %v1227 = vunpack.c.l.b16 %v1078
    %v1228 = vunpack.c.l.b16 %v1082
    %v1229 = vunpack.c.l.b16 %v1085
    %v1230 = vunpack.c.l.b16 %v1089
    %v1231 = vunpack.c.l.b16 %v1093
    %v1232 = vunpack.c.l.b16 %v1097
    %v1233 = vunpack.c.l.b16 %v1100
    %v1234 = vunpack.c.l.b16 %v1104
    %v1235 = vunpack.c.l.b16 %v1108
    %v1236 = vunpack.c.l.b16 %v1112
    %v1237 = vunpack.c.l.b16 %v1116
    %v1238 = vunpack.c.l.b16 %v1119
    %v1239 = vunpack.c.l.b16 %v1123
    %v1240 = vunpack.c.l.b16 %v1127
    %v1241 = vunpack.c.l.b16 %v1131
    %v1242 = vunpack.c.l.b16 %v1134
    %v1243 = vunpack.c.l.b16 %v1138
    %v1244 = vunpack.c.l.b16 %v1142
    %v1245 = vunpack.c.l.b16 %v1146
    %v1246 = vunpack.c.l.b16 %v1149
    %v1247 = vrot.slane %v1151, 1
    %v1248 = vsel %vm422, %v1152, %v1247
    %v1249 = vrot.slane %v1153, 7
    %v1250 = vsel %vm426, %v1249, %v1248
    %v1251 = vrot.slane %v1154, 6
    %v1252 = vsel %vm430, %v1251, %v1250
    %v1253 = vrot.slane %v1155, 5
    %vm1254 = vcmask 1044484
    %v1255 = vsel %vm1254, %v1253, %v1252
    %v1256 = vrot.slane %v1156, 4
    %vm1257 = vcmask 1045509
    %v1258 = vsel %vm1257, %v1256, %v1255
    %v1259 = vrot.slane %v1157, 3
    %vm1260 = vcmask 1046534
    %v1261 = vsel %vm1260, %v1259, %v1258
    %v1262 = vrot.slane %v1158, 2
    %vm1263 = vcmask 1047559
    %v1264 = vsel %vm1263, %v1262, %v1261
    %v1265 = vrot.slane %v1159, 1
    %v1266 = vsel %vm422, %v1160, %v1265
    %v1267 = vrot.slane %v1161, 7
    %v1268 = vsel %vm426, %v1267, %v1266
    %v1269 = vrot.slane %v1162, 6
    %v1270 = vsel %vm430, %v1269, %v1268
    %v1271 = vrot.slane %v1163, 5
    %v1272 = vsel %vm1254, %v1271, %v1270
    %v1273 = vrot.slane %v1164, 4
    %v1274 = vsel %vm1257, %v1273, %v1272
    %v1275 = vrot.slane %v1165, 3
    %v1276 = vsel %vm1260, %v1275, %v1274
    %v1277 = vrot.slane %v1166, 2
    %v1278 = vsel %vm1263, %v1277, %v1276
    %v1279 = vrot.slane %v1167, 1
    %v1280 = vsel %vm422, %v1168, %v1279
    %v1281 = vrot.slane %v1169, 7
    %v1282 = vsel %vm426, %v1281, %v1280
    %v1283 = vrot.slane %v1170, 6
    %v1284 = vsel %vm430, %v1283, %v1282
    %v1285 = vrot.slane %v1171, 5
    %v1286 = vsel %vm1254, %v1285, %v1284
    %v1287 = vrot.slane %v1172, 4
    %v1288 = vsel %vm1257, %v1287, %v1286
    %v1289 = vrot.slane %v1173, 3
    %v1290 = vsel %vm1260, %v1289, %v1288
    %v1291 = vrot.slane %v1174, 2
    %v1292 = vsel %vm1263, %v1291, %v1290
    %v1293 = vrot.slane %v1175, 1
    %v1294 = vsel %vm422, %v1176, %v1293
    %v1295 = vrot.slane %v1177, 7
    %v1296 = vsel %vm426, %v1295, %v1294
    %v1297 = vrot.slane %v1178, 6
    %v1298 = vsel %vm430, %v1297, %v1296
    %v1299 = vrot.slane %v1179, 5
    %v1300 = vsel %vm1254, %v1299, %v1298
    %v1301 = vrot.slane %v1180, 4
    %v1302 = vsel %vm1257, %v1301, %v1300
    %v1303 = vrot.slane %v1181, 3
    %v1304 = vsel %vm1260, %v1303, %v1302
    %v1305 = vrot.slane %v1182, 2
    %v1306 = vsel %vm1263, %v1305, %v1304
    %v1307 = vrot.slane %v1183, 1
    %v1308 = vsel %vm422, %v1184, %v1307
    %v1309 = vrot.slane %v1185, 7
    %v1310 = vsel %vm426, %v1309, %v1308
    %v1311 = vrot.slane %v1186, 6
    %v1312 = vsel %vm430, %v1311, %v1310
    %v1313 = vrot.slane %v1187, 5
    %v1314 = vsel %vm1254, %v1313, %v1312
    %v1315 = vrot.slane %v1188, 4
    %v1316 = vsel %vm1257, %v1315, %v1314
    %v1317 = vrot.slane %v1189, 3
    %v1318 = vsel %vm1260, %v1317, %v1316
    %v1319 = vrot.slane %v1190, 2
    %v1320 = vsel %vm1263, %v1319, %v1318
    %v1321 = vrot.slane %v1191, 1
    %v1322 = vsel %vm422, %v1192, %v1321
    %v1323 = vrot.slane %v1193, 7
    %v1324 = vsel %vm426, %v1323, %v1322
    %v1325 = vrot.slane %v1194, 6
    %v1326 = vsel %vm430, %v1325, %v1324
    %v1327 = vrot.slane %v1195, 5
    %v1328 = vsel %vm1254, %v1327, %v1326
    %v1329 = vrot.slane %v1196, 4
    %v1330 = vsel %vm1257, %v1329, %v1328
    %v1331 = vrot.slane %v1197, 3
    %v1332 = vsel %vm1260, %v1331, %v1330
    %v1333 = vrot.slane %v1198, 2
    %v1334 = vsel %vm1263, %v1333, %v1332
    %v1335 = vrot.slane %v1199, 1
    %v1336 = vsel %vm422, %v1200, %v1335
    %v1337 = vrot.slane %v1201, 7
    %v1338 = vsel %vm426, %v1337, %v1336
    %v1339 = vrot.slane %v1202, 6
    %v1340 = vsel %vm430, %v1339, %v1338
    %v1341 = vrot.slane %v1203, 5
    %v1342 = vsel %vm1254, %v1341, %v1340
    %v1343 = vrot.slane %v1204, 4
    %v1344 = vsel %vm1257, %v1343, %v1342
    %v1345 = vrot.slane %v1205, 3
    %v1346 = vsel %vm1260, %v1345, %v1344
    %v1347 = vrot.slane %v1206, 2
    %v1348 = vsel %vm1263, %v1347, %v1346
    %v1349 = vrot.slane %v1207, 1
    %v1350 = vsel %vm422, %v1208, %v1349
    %v1351 = vrot.slane %v1209, 7
    %v1352 = vsel %vm426, %v1351, %v1350
    %v1353 = vrot.slane %v1210, 6
    %v1354 = vsel %vm430, %v1353, %v1352
    %v1355 = vrot.slane %v1211, 5
    %v1356 = vsel %vm1254, %v1355, %v1354
    %v1357 = vrot.slane %v1212, 4
    %v1358 = vsel %vm1257, %v1357, %v1356
    %v1359 = vrot.slane %v1213, 3
    %v1360 = vsel %vm1260, %v1359, %v1358
    %v1361 = vrot.slane %v1214, 2
    %v1362 = vsel %vm1263, %v1361, %v1360
    %v1363 = vrot.slane %v1215, 1
    %v1364 = vsel %vm422, %v1216, %v1363
    %v1365 = vrot.slane %v1217, 7
    %v1366 = vsel %vm426, %v1365, %v1364
    %v1367 = vrot.slane %v1218, 6
    %v1368 = vsel %vm430, %v1367, %v1366
    %v1369 = vrot.slane %v1219, 5
    %v1370 = vsel %vm1254, %v1369, %v1368
    %v1371 = vrot.slane %v1220, 4
    %v1372 = vsel %vm1257, %v1371, %v1370
    %v1373 = vrot.slane %v1221, 3
    %v1374 = vsel %vm1260, %v1373, %v1372
    %v1375 = vrot.slane %v1222, 2
    %v1376 = vsel %vm1263, %v1375, %v1374
    %v1377 = vrot.slane %v1223, 1
    %v1378 = vsel %vm422, %v1224, %v1377
    %v1379 = vrot.slane %v1225, 7
    %v1380 = vsel %vm426, %v1379, %v1378
    %v1381 = vrot.slane %v1226, 6
    %v1382 = vsel %vm430, %v1381, %v1380
    %v1383 = vrot.slane %v1227, 5
    %v1384 = vsel %vm1254, %v1383, %v1382
    %v1385 = vrot.slane %v1228, 4
    %v1386 = vsel %vm1257, %v1385, %v1384
    %v1387 = vrot.slane %v1229, 3
    %v1388 = vsel %vm1260, %v1387, %v1386
    %v1389 = vrot.slane %v1230, 2
    %v1390 = vsel %vm1263, %v1389, %v1388
    %v1391 = vrot.slane %v1231, 1
    %v1392 = vsel %vm422, %v1232, %v1391
    %v1393 = vrot.slane %v1233, 7
    %v1394 = vsel %vm426, %v1393, %v1392
    %v1395 = vrot.slane %v1234, 6
    %v1396 = vsel %vm430, %v1395, %v1394
    %v1397 = vrot.slane %v1235, 5
    %v1398 = vsel %vm1254, %v1397, %v1396
    %v1399 = vrot.slane %v1236, 4
    %v1400 = vsel %vm1257, %v1399, %v1398
    %v1401 = vrot.slane %v1237, 3
    %v1402 = vsel %vm1260, %v1401, %v1400
    %v1403 = vrot.slane %v1238, 2
    %v1404 = vsel %vm1263, %v1403, %v1402
    %v1405 = vrot.slane %v1239, 1
    %v1406 = vsel %vm422, %v1240, %v1405
    %v1407 = vrot.slane %v1241, 7
    %v1408 = vsel %vm426, %v1407, %v1406
    %v1409 = vrot.slane %v1242, 6
    %v1410 = vsel %vm430, %v1409, %v1408
    %v1411 = vrot.slane %v1243, 5
    %v1412 = vsel %vm1254, %v1411, %v1410
    %v1413 = vrot.slane %v1244, 4
    %v1414 = vsel %vm1257, %v1413, %v1412
    %v1415 = vrot.slane %v1245, 3
    %v1416 = vsel %vm1260, %v1415, %v1414
    %v1417 = vrot.slane %v1246, 2
    %v1418 = vsel %vm1263, %v1417, %v1416
    %v1419 = vpack.c.b16 %v1278, %v1264
    %v1420 = vpack.c.b16 %v1306, %v1292
    %v1421 = vpack.c.b16 %v1334, %v1320
    %v1422 = vpack.c.b16 %v1362, %v1348
    %v1423 = vpack.c.b16 %v1390, %v1376
    %v1424 = vpack.c.b16 %v1418, %v1404
    %v1430 = vunpack.c.l.b16 %v786
    %v1431 = vunpack.c.l.b16 %v787
    %v1432 = vunpack.c.l.b16 %v788
    %v1433 = vunpack.c.l.b16 %v789
    %v1434 = vunpack.c.l.b16 %v790
    %v1435 = vpack.c.b16 %v1431, %v1430
    %v1436 = vpack.c.b16 %v1433, %v1432
    %v1437 = vpack.c.b16 %v1434, %v1434
    %vm1438 = vcmask 1044480
    %v1439 = vrot.slane %v1435, 3
    %v1440 = vrot.slane %v1436, 3
    %v1441 = vsel %vm1438, %v1439, %v1440
    %v1442 = vrot.slane %v1437, 3
    %v1443 = vsel %vm1438, %v1440, %v1442
    %vm1445 = vcmask 244736
    %v1447 = vsel %vm1445, %v1419, 0
    %v1450 = vsel %vm1445, %v1420, 0
    %v1453 = vsel %vm1445, %v1421, 0
    %v1456 = vsel %vm1445, %v1422, 0
    %v1459 = vsel %vm1445, %v1423, 0
    %v1462 = vsel %vm1445, %v1424, 0
    %vm1464 = vcmask 1046528
    %v1466 = vsel %vm1464, %v1443, 0
    %1468 = vmatpush.bf16.msra.mxu0 0
    %1469 = vmatpush.bf16.msra.mxu0 0
    %1470 = vmatpush.bf16.msra.mxu0 0
    %1471 = vmatpush.bf16.msra.mxu0 0
    %1472 = vmatpush.bf16.msra.mxu0 0
    %1473 = vmatpush.bf16.msra.mxu0 0
    %1474 = vmatpush.bf16.msra.mxu0 %v1466
    %1475 = vmatpush.bf16.msra.mxu0 %v1441
    %1476 = vmatmul.bf16.gmra.mxu0 %v1447
    %v1477 = vpop.f32.mrf.mxu0
    %v1478 = vadd.f32 0.0, %v1477
    %v1479 = vpop.f32.mrf.mxu0
    %v1480 = vadd.f32 0.0, %v1479
    %1481 = vmatmul.bf16.gmra.mxu0 %v1450
    %v1482 = vpop.f32.mrf.mxu0
    %v1483 = vadd.f32 0.0, %v1482
    %v1484 = vpop.f32.mrf.mxu0
    %v1485 = vadd.f32 0.0, %v1484
    %1486 = vmatmul.bf16.gmra.mxu0 %v1453
    %v1487 = vpop.f32.mrf.mxu0
    %v1488 = vadd.f32 0.0, %v1487
    %v1489 = vpop.f32.mrf.mxu0
    %v1490 = vadd.f32 0.0, %v1489
    %1491 = vmatmul.bf16.gmra.mxu0 %v1456
    %v1492 = vpop.f32.mrf.mxu0
    %v1493 = vadd.f32 0.0, %v1492
    %v1494 = vpop.f32.mrf.mxu0
    %v1495 = vadd.f32 0.0, %v1494
    %1496 = vmatmul.bf16.gmra.mxu0 %v1459
    %v1497 = vpop.f32.mrf.mxu0
    %v1498 = vadd.f32 0.0, %v1497
    %v1499 = vpop.f32.mrf.mxu0
    %v1500 = vadd.f32 0.0, %v1499
    %1501 = vmatmul.bf16.gmra.mxu0 %v1462
    %v1502 = vpop.f32.mrf.mxu0
    %v1503 = vadd.f32 0.0, %v1502
    %v1504 = vpop.f32.mrf.mxu0
    %v1505 = vadd.f32 0.0, %v1504
    %1506 = vdwg.mxu0
    %1507 = vst [vmem:[#allocation1] ss:$9 sm:$0xff] %v421
    %v1508 = vld [vmem:[#allocation1] sm:$0xff]
    %1510 = vst [vmem:[#allocation1] ss:$9 sm:$0xff] %v425
    %v1511 = vld [vmem:[#allocation1] sm:$0xff]
    %1513 = vst [vmem:[#allocation1] ss:$9 sm:$0xff] %v429
    %v1514 = vld [vmem:[#allocation1] sm:$0xff]
    %1516 = vst [vmem:[#allocation1] ss:$9 sm:$0xff] %v433
    %v1517 = vld [vmem:[#allocation1] sm:$0xff]
    %1519 = vst [vmem:[#allocation1] ss:$9 sm:$0xff] %v436
    %v1520 = vld [vmem:[#allocation1] sm:$0xff]
    %1522 = vst [vmem:[#allocation1] ss:$9 sm:$0xff] %v439
    %v1523 = vld [vmem:[#allocation1] sm:$0xff]
    %1525 = vst [vmem:[#allocation1] ss:$9 sm:$0xff] %v442
    %v1526 = vld [vmem:[#allocation1] sm:$0xff]
    %1528 = vst [vmem:[#allocation1] ss:$9 sm:$0xff] %v445
    %v1529 = vld [vmem:[#allocation1] sm:$0xff]
    %1531 = vst [vmem:[#allocation1] ss:$9 sm:$0xff] %v448
    %v1532 = vld [vmem:[#allocation1] sm:$0xff]
    %1534 = vst [vmem:[#allocation1] ss:$9 sm:$0xff] %v451
    %v1535 = vld [vmem:[#allocation1] sm:$0xff]
    %1537 = vst [vmem:[#allocation1] ss:$9 sm:$0xff] %v454
    %v1538 = vld [vmem:[#allocation1] sm:$0xff]
    %1540 = vst [vmem:[#allocation1] ss:$9 sm:$0xff] %v457
    %v1541 = vld [vmem:[#allocation1] sm:$0xff]
    %1543 = vst [vmem:[#allocation1] ss:$9 sm:$0xff] %v469
    %v1544 = vld [vmem:[#allocation1] sm:$0xff]
    %1546 = vst [vmem:[#allocation1] ss:$9 sm:$0xff] %v472
    %v1547 = vld [vmem:[#allocation1] sm:$0xff]
    %1549 = vst [vmem:[#allocation1] ss:$9 sm:$0xff] %v475
    %v1550 = vld [vmem:[#allocation1] sm:$0xff]
    %1552 = vst [vmem:[#allocation1] ss:$9 sm:$0xff] %v478
    %v1553 = vld [vmem:[#allocation1] sm:$0xff]
    %1555 = vst [vmem:[#allocation1] ss:$9 sm:$0xff] %v481
    %v1556 = vld [vmem:[#allocation1] sm:$0xff]
    %1558 = vst [vmem:[#allocation1] ss:$9 sm:$0xff] %v484
    %v1559 = vld [vmem:[#allocation1] sm:$0xff]
    %1561 = vst [vmem:[#allocation1] ss:$9 sm:$0xff] %v487
    %v1562 = vld [vmem:[#allocation1] sm:$0xff]
    %1564 = vst [vmem:[#allocation1] ss:$9 sm:$0xff] %v490
    %v1565 = vld [vmem:[#allocation1] sm:$0xff]
    %1567 = vst [vmem:[#allocation1] ss:$9 sm:$0xff] %v493
    %v1568 = vld [vmem:[#allocation1] sm:$0xff]
    %1570 = vst [vmem:[#allocation1] ss:$9 sm:$0xff] %v496
    %v1571 = vld [vmem:[#allocation1] sm:$0xff]
    %1573 = vst [vmem:[#allocation1] ss:$9 sm:$0xff] %v499
    %v1574 = vld [vmem:[#allocation1] sm:$0xff]
    %1576 = vst [vmem:[#allocation1] ss:$9 sm:$0xff] %v502
    %v1577 = vld [vmem:[#allocation1] sm:$0xff]
    %1579 = vst [vmem:[#allocation1] ss:$9 sm:$0xff] %v514
    %v1580 = vld [vmem:[#allocation1] sm:$0xff]
    %1582 = vst [vmem:[#allocation1] ss:$9 sm:$0xff] %v517
    %v1583 = vld [vmem:[#allocation1] sm:$0xff]
    %1585 = vst [vmem:[#allocation1] ss:$9 sm:$0xff] %v520
    %v1586 = vld [vmem:[#allocation1] sm:$0xff]
    %1588 = vst [vmem:[#allocation1] ss:$9 sm:$0xff] %v523
    %v1589 = vld [vmem:[#allocation1] sm:$0xff]
    %1591 = vst [vmem:[#allocation1] ss:$9 sm:$0xff] %v526
    %v1592 = vld [vmem:[#allocation1] sm:$0xff]
    %1594 = vst [vmem:[#allocation1] ss:$9 sm:$0xff] %v529
    %v1595 = vld [vmem:[#allocation1] sm:$0xff]
    %1597 = vst [vmem:[#allocation1] ss:$9 sm:$0xff] %v532
    %v1598 = vld [vmem:[#allocation1] sm:$0xff]
    %1600 = vst [vmem:[#allocation1] ss:$9 sm:$0xff] %v535
    %v1601 = vld [vmem:[#allocation1] sm:$0xff]
    %1603 = vst [vmem:[#allocation1] ss:$9 sm:$0xff] %v538
    %v1604 = vld [vmem:[#allocation1] sm:$0xff]
    %1606 = vst [vmem:[#allocation1] ss:$9 sm:$0xff] %v541
    %v1607 = vld [vmem:[#allocation1] sm:$0xff]
    %1609 = vst [vmem:[#allocation1] ss:$9 sm:$0xff] %v544
    %v1610 = vld [vmem:[#allocation1] sm:$0xff]
    %1612 = vst [vmem:[#allocation1] ss:$9 sm:$0xff] %v547
    %v1613 = vld [vmem:[#allocation1] sm:$0xff]
    %1615 = vst [vmem:[#allocation1] ss:$9 sm:$0xff] %v559
    %v1616 = vld [vmem:[#allocation1] sm:$0xff]
    %1618 = vst [vmem:[#allocation1] ss:$9 sm:$0xff] %v562
    %v1619 = vld [vmem:[#allocation1] sm:$0xff]
    %1621 = vst [vmem:[#allocation1] ss:$9 sm:$0xff] %v565
    %v1622 = vld [vmem:[#allocation1] sm:$0xff]
    %1624 = vst [vmem:[#allocation1] ss:$9 sm:$0xff] %v568
    %v1625 = vld [vmem:[#allocation1] sm:$0xff]
    %1627 = vst [vmem:[#allocation1] ss:$9 sm:$0xff] %v571
    %v1628 = vld [vmem:[#allocation1] sm:$0xff]
    %1630 = vst [vmem:[#allocation1] ss:$9 sm:$0xff] %v574
    %v1631 = vld [vmem:[#allocation1] sm:$0xff]
    %1633 = vst [vmem:[#allocation1] ss:$9 sm:$0xff] %v577
    %v1634 = vld [vmem:[#allocation1] sm:$0xff]
    %1636 = vst [vmem:[#allocation1] ss:$9 sm:$0xff] %v580
    %v1637 = vld [vmem:[#allocation1] sm:$0xff]
    %1639 = vst [vmem:[#allocation1] ss:$9 sm:$0xff] %v583
    %v1640 = vld [vmem:[#allocation1] sm:$0xff]
    %1642 = vst [vmem:[#allocation1] ss:$9 sm:$0xff] %v586
    %v1643 = vld [vmem:[#allocation1] sm:$0xff]
    %1645 = vst [vmem:[#allocation1] ss:$9 sm:$0xff] %v589
    %v1646 = vld [vmem:[#allocation1] sm:$0xff]
    %1648 = vst [vmem:[#allocation1] ss:$9 sm:$0xff] %v592
    %v1649 = vld [vmem:[#allocation1] sm:$0xff]
    %1651 = vst [vmem:[#allocation1] ss:$9 sm:$0xff] %v604
    %v1652 = vld [vmem:[#allocation1] sm:$0xff]
    %1654 = vst [vmem:[#allocation1] ss:$9 sm:$0xff] %v607
    %v1655 = vld [vmem:[#allocation1] sm:$0xff]
    %1657 = vst [vmem:[#allocation1] ss:$9 sm:$0xff] %v610
    %v1658 = vld [vmem:[#allocation1] sm:$0xff]
    %1660 = vst [vmem:[#allocation1] ss:$9 sm:$0xff] %v613
    %v1661 = vld [vmem:[#allocation1] sm:$0xff]
    %1663 = vst [vmem:[#allocation1] ss:$9 sm:$0xff] %v616
    %v1664 = vld [vmem:[#allocation1] sm:$0xff]
    %1666 = vst [vmem:[#allocation1] ss:$9 sm:$0xff] %v619
    %v1667 = vld [vmem:[#allocation1] sm:$0xff]
    %1669 = vst [vmem:[#allocation1] ss:$9 sm:$0xff] %v622
    %v1670 = vld [vmem:[#allocation1] sm:$0xff]
    %1672 = vst [vmem:[#allocation1] ss:$9 sm:$0xff] %v625
    %v1673 = vld [vmem:[#allocation1] sm:$0xff]
    %1675 = vst [vmem:[#allocation1] ss:$9 sm:$0xff] %v628
    %v1676 = vld [vmem:[#allocation1] sm:$0xff]
    %1678 = vst [vmem:[#allocation1] ss:$9 sm:$0xff] %v631
    %v1679 = vld [vmem:[#allocation1] sm:$0xff]
    %1681 = vst [vmem:[#allocation1] ss:$9 sm:$0xff] %v634
    %v1682 = vld [vmem:[#allocation1] sm:$0xff]
    %1684 = vst [vmem:[#allocation1] ss:$9 sm:$0xff] %v637
    %v1685 = vld [vmem:[#allocation1] sm:$0xff]
    %1687 = vst [vmem:[#allocation1] ss:$9 sm:$0xff] %v649
    %v1688 = vld [vmem:[#allocation1] sm:$0xff]
    %1690 = vst [vmem:[#allocation1] ss:$9 sm:$0xff] %v652
    %v1691 = vld [vmem:[#allocation1] sm:$0xff]
    %1693 = vst [vmem:[#allocation1] ss:$9 sm:$0xff] %v655
    %v1694 = vld [vmem:[#allocation1] sm:$0xff]
    %1696 = vst [vmem:[#allocation1] ss:$9 sm:$0xff] %v658
    %v1697 = vld [vmem:[#allocation1] sm:$0xff]
    %1699 = vst [vmem:[#allocation1] ss:$9 sm:$0xff] %v661
    %v1700 = vld [vmem:[#allocation1] sm:$0xff]
    %1702 = vst [vmem:[#allocation1] ss:$9 sm:$0xff] %v664
    %v1703 = vld [vmem:[#allocation1] sm:$0xff]
    %1705 = vst [vmem:[#allocation1] ss:$9 sm:$0xff] %v667
    %v1706 = vld [vmem:[#allocation1] sm:$0xff]
    %1708 = vst [vmem:[#allocation1] ss:$9 sm:$0xff] %v670
    %v1709 = vld [vmem:[#allocation1] sm:$0xff]
    %1711 = vst [vmem:[#allocation1] ss:$9 sm:$0xff] %v673
    %v1712 = vld [vmem:[#allocation1] sm:$0xff]
    %1714 = vst [vmem:[#allocation1] ss:$9 sm:$0xff] %v676
    %v1715 = vld [vmem:[#allocation1] sm:$0xff]
    %1717 = vst [vmem:[#allocation1] ss:$9 sm:$0xff] %v679
    %v1718 = vld [vmem:[#allocation1] sm:$0xff]
    %1720 = vst [vmem:[#allocation1] ss:$9 sm:$0xff] %v682
    %v1721 = vld [vmem:[#allocation1] sm:$0xff]
    %1723 = vst [vmem:[#allocation1] ss:$9 sm:$0xff] %v694
    %v1724 = vld [vmem:[#allocation1] sm:$0xff]
    %1726 = vst [vmem:[#allocation1] ss:$9 sm:$0xff] %v697
    %v1727 = vld [vmem:[#allocation1] sm:$0xff]
    %1729 = vst [vmem:[#allocation1] ss:$9 sm:$0xff] %v700
    %v1730 = vld [vmem:[#allocation1] sm:$0xff]
    %1732 = vst [vmem:[#allocation1] ss:$9 sm:$0xff] %v703
    %v1733 = vld [vmem:[#allocation1] sm:$0xff]
    %1735 = vst [vmem:[#allocation1] ss:$9 sm:$0xff] %v706
    %v1736 = vld [vmem:[#allocation1] sm:$0xff]
    %1738 = vst [vmem:[#allocation1] ss:$9 sm:$0xff] %v709
    %v1739 = vld [vmem:[#allocation1] sm:$0xff]
    %1741 = vst [vmem:[#allocation1] ss:$9 sm:$0xff] %v712
    %v1742 = vld [vmem:[#allocation1] sm:$0xff]
    %1744 = vst [vmem:[#allocation1] ss:$9 sm:$0xff] %v715
    %v1745 = vld [vmem:[#allocation1] sm:$0xff]
    %1747 = vst [vmem:[#allocation1] ss:$9 sm:$0xff] %v718
    %v1748 = vld [vmem:[#allocation1] sm:$0xff]
    %1750 = vst [vmem:[#allocation1] ss:$9 sm:$0xff] %v721
    %v1751 = vld [vmem:[#allocation1] sm:$0xff]
    %1753 = vst [vmem:[#allocation1] ss:$9 sm:$0xff] %v724
    %v1754 = vld [vmem:[#allocation1] sm:$0xff]
    %1756 = vst [vmem:[#allocation1] ss:$9 sm:$0xff] %v727
    %v1757 = vld [vmem:[#allocation1] sm:$0xff]
    %1759 = vst [vmem:[#allocation1] ss:$9 sm:$0xff] %v739
    %v1760 = vld [vmem:[#allocation1] sm:$0xff]
    %1762 = vst [vmem:[#allocation1] ss:$9 sm:$0xff] %v742
    %v1763 = vld [vmem:[#allocation1] sm:$0xff]
    %1765 = vst [vmem:[#allocation1] ss:$9 sm:$0xff] %v745
    %v1766 = vld [vmem:[#allocation1] sm:$0xff]
    %1768 = vst [vmem:[#allocation1] ss:$9 sm:$0xff] %v748
    %v1769 = vld [vmem:[#allocation1] sm:$0xff]
    %1771 = vst [vmem:[#allocation1] ss:$9 sm:$0xff] %v751
    %v1772 = vld [vmem:[#allocation1] sm:$0xff]
    %1774 = vst [vmem:[#allocation1] ss:$9 sm:$0xff] %v754
    %v1775 = vld [vmem:[#allocation1] sm:$0xff]
    %1777 = vst [vmem:[#allocation1] ss:$9 sm:$0xff] %v757
    %v1778 = vld [vmem:[#allocation1] sm:$0xff]
    %1780 = vst [vmem:[#allocation1] ss:$9 sm:$0xff] %v760
    %v1781 = vld [vmem:[#allocation1] sm:$0xff]
    %1783 = vst [vmem:[#allocation1] ss:$9 sm:$0xff] %v763
    %v1784 = vld [vmem:[#allocation1] sm:$0xff]
    %1786 = vst [vmem:[#allocation1] ss:$9 sm:$0xff] %v766
    %v1787 = vld [vmem:[#allocation1] sm:$0xff]
    %1789 = vst [vmem:[#allocation1] ss:$9 sm:$0xff] %v769
    %v1790 = vld [vmem:[#allocation1] sm:$0xff]
    %1792 = vst [vmem:[#allocation1] ss:$9 sm:$0xff] %v772
    %v1793 = vld [vmem:[#allocation1] sm:$0xff]
    %v1795 = vunpack.c.l.b16 %v1508
    %v1796 = vunpack.c.l.b16 %v1511
    %v1797 = vunpack.c.l.b16 %v1514
    %v1798 = vunpack.c.l.b16 %v1517
    %v1799 = vunpack.c.l.b16 %v1520
    %v1800 = vunpack.c.l.b16 %v1523
    %v1801 = vunpack.c.l.b16 %v1526
    %v1802 = vunpack.c.l.b16 %v1529
    %v1803 = vunpack.c.l.b16 %v1532
    %v1804 = vunpack.c.l.b16 %v1535
    %v1805 = vunpack.c.l.b16 %v1538
    %v1806 = vunpack.c.l.b16 %v1541
    %v1807 = vunpack.c.l.b16 %v1544
    %v1808 = vunpack.c.l.b16 %v1547
    %v1809 = vunpack.c.l.b16 %v1550
    %v1810 = vunpack.c.l.b16 %v1553
    %v1811 = vunpack.c.l.b16 %v1556
    %v1812 = vunpack.c.l.b16 %v1559
    %v1813 = vunpack.c.l.b16 %v1562
    %v1814 = vunpack.c.l.b16 %v1565
    %v1815 = vunpack.c.l.b16 %v1568
    %v1816 = vunpack.c.l.b16 %v1571
    %v1817 = vunpack.c.l.b16 %v1574
    %v1818 = vunpack.c.l.b16 %v1577
    %v1819 = vunpack.c.l.b16 %v1580
    %v1820 = vunpack.c.l.b16 %v1583
    %v1821 = vunpack.c.l.b16 %v1586
    %v1822 = vunpack.c.l.b16 %v1589
    %v1823 = vunpack.c.l.b16 %v1592
    %v1824 = vunpack.c.l.b16 %v1595
    %v1825 = vunpack.c.l.b16 %v1598
    %v1826 = vunpack.c.l.b16 %v1601
    %v1827 = vunpack.c.l.b16 %v1604
    %v1828 = vunpack.c.l.b16 %v1607
    %v1829 = vunpack.c.l.b16 %v1610
    %v1830 = vunpack.c.l.b16 %v1613
    %v1831 = vunpack.c.l.b16 %v1616
    %v1832 = vunpack.c.l.b16 %v1619
    %v1833 = vunpack.c.l.b16 %v1622
    %v1834 = vunpack.c.l.b16 %v1625
    %v1835 = vunpack.c.l.b16 %v1628
    %v1836 = vunpack.c.l.b16 %v1631
    %v1837 = vunpack.c.l.b16 %v1634
    %v1838 = vunpack.c.l.b16 %v1637
    %v1839 = vunpack.c.l.b16 %v1640
    %v1840 = vunpack.c.l.b16 %v1643
    %v1841 = vunpack.c.l.b16 %v1646
    %v1842 = vunpack.c.l.b16 %v1649
    %v1843 = vunpack.c.l.b16 %v1652
    %v1844 = vunpack.c.l.b16 %v1655
    %v1845 = vunpack.c.l.b16 %v1658
    %v1846 = vunpack.c.l.b16 %v1661
    %v1847 = vunpack.c.l.b16 %v1664
    %v1848 = vunpack.c.l.b16 %v1667
    %v1849 = vunpack.c.l.b16 %v1670
    %v1850 = vunpack.c.l.b16 %v1673
    %v1851 = vunpack.c.l.b16 %v1676
    %v1852 = vunpack.c.l.b16 %v1679
    %v1853 = vunpack.c.l.b16 %v1682
    %v1854 = vunpack.c.l.b16 %v1685
    %v1855 = vunpack.c.l.b16 %v1688
    %v1856 = vunpack.c.l.b16 %v1691
    %v1857 = vunpack.c.l.b16 %v1694
    %v1858 = vunpack.c.l.b16 %v1697
    %v1859 = vunpack.c.l.b16 %v1700
    %v1860 = vunpack.c.l.b16 %v1703
    %v1861 = vunpack.c.l.b16 %v1706
    %v1862 = vunpack.c.l.b16 %v1709
    %v1863 = vunpack.c.l.b16 %v1712
    %v1864 = vunpack.c.l.b16 %v1715
    %v1865 = vunpack.c.l.b16 %v1718
    %v1866 = vunpack.c.l.b16 %v1721
    %v1867 = vunpack.c.l.b16 %v1724
    %v1868 = vunpack.c.l.b16 %v1727
    %v1869 = vunpack.c.l.b16 %v1730
    %v1870 = vunpack.c.l.b16 %v1733
    %v1871 = vunpack.c.l.b16 %v1736
    %v1872 = vunpack.c.l.b16 %v1739
    %v1873 = vunpack.c.l.b16 %v1742
    %v1874 = vunpack.c.l.b16 %v1745
    %v1875 = vunpack.c.l.b16 %v1748
    %v1876 = vunpack.c.l.b16 %v1751
    %v1877 = vunpack.c.l.b16 %v1754
    %v1878 = vunpack.c.l.b16 %v1757
    %v1879 = vunpack.c.l.b16 %v1760
    %v1880 = vunpack.c.l.b16 %v1763
    %v1881 = vunpack.c.l.b16 %v1766
    %v1882 = vunpack.c.l.b16 %v1769
    %v1883 = vunpack.c.l.b16 %v1772
    %v1884 = vunpack.c.l.b16 %v1775
    %v1885 = vunpack.c.l.b16 %v1778
    %v1886 = vunpack.c.l.b16 %v1781
    %v1887 = vunpack.c.l.b16 %v1784
    %v1888 = vunpack.c.l.b16 %v1787
    %v1889 = vunpack.c.l.b16 %v1790
    %v1890 = vunpack.c.l.b16 %v1793
    %v1891 = vrot.slane %v1796, 7
    %v1892 = vsel %vm422, %v1891, %v1795
    %v1893 = vrot.slane %v1797, 6
    %v1894 = vsel %vm426, %v1893, %v1892
    %v1895 = vrot.slane %v1798, 5
    %v1896 = vsel %vm430, %v1895, %v1894
    %v1897 = vrot.slane %v1799, 4
    %v1898 = vsel %vm1254, %v1897, %v1896
    %v1899 = vrot.slane %v1800, 3
    %v1900 = vsel %vm1257, %v1899, %v1898
    %v1901 = vrot.slane %v1801, 2
    %v1902 = vsel %vm1260, %v1901, %v1900
    %v1903 = vrot.slane %v1802, 1
    %v1904 = vsel %vm1263, %v1903, %v1902
    %v1905 = vrot.slane %v1804, 7
    %v1906 = vsel %vm422, %v1905, %v1803
    %v1907 = vrot.slane %v1805, 6
    %v1908 = vsel %vm426, %v1907, %v1906
    %v1909 = vrot.slane %v1806, 5
    %v1910 = vsel %vm430, %v1909, %v1908
    %v1911 = vrot.slane %v1807, 4
    %v1912 = vsel %vm1254, %v1911, %v1910
    %v1913 = vrot.slane %v1808, 3
    %v1914 = vsel %vm1257, %v1913, %v1912
    %v1915 = vrot.slane %v1809, 2
    %v1916 = vsel %vm1260, %v1915, %v1914
    %v1917 = vrot.slane %v1810, 1
    %v1918 = vsel %vm1263, %v1917, %v1916
    %v1919 = vrot.slane %v1812, 7
    %v1920 = vsel %vm422, %v1919, %v1811
    %v1921 = vrot.slane %v1813, 6
    %v1922 = vsel %vm426, %v1921, %v1920
    %v1923 = vrot.slane %v1814, 5
    %v1924 = vsel %vm430, %v1923, %v1922
    %v1925 = vrot.slane %v1815, 4
    %v1926 = vsel %vm1254, %v1925, %v1924
    %v1927 = vrot.slane %v1816, 3
    %v1928 = vsel %vm1257, %v1927, %v1926
    %v1929 = vrot.slane %v1817, 2
    %v1930 = vsel %vm1260, %v1929, %v1928
    %v1931 = vrot.slane %v1818, 1
    %v1932 = vsel %vm1263, %v1931, %v1930
    %v1933 = vrot.slane %v1820, 7
    %v1934 = vsel %vm422, %v1933, %v1819
    %v1935 = vrot.slane %v1821, 6
    %v1936 = vsel %vm426, %v1935, %v1934
    %v1937 = vrot.slane %v1822, 5
    %v1938 = vsel %vm430, %v1937, %v1936
    %v1939 = vrot.slane %v1823, 4
    %v1940 = vsel %vm1254, %v1939, %v1938
    %v1941 = vrot.slane %v1824, 3
    %v1942 = vsel %vm1257, %v1941, %v1940
    %v1943 = vrot.slane %v1825, 2
    %v1944 = vsel %vm1260, %v1943, %v1942
    %v1945 = vrot.slane %v1826, 1
    %v1946 = vsel %vm1263, %v1945, %v1944
    %v1947 = vrot.slane %v1828, 7
    %v1948 = vsel %vm422, %v1947, %v1827
    %v1949 = vrot.slane %v1829, 6
    %v1950 = vsel %vm426, %v1949, %v1948
    %v1951 = vrot.slane %v1830, 5
    %v1952 = vsel %vm430, %v1951, %v1950
    %v1953 = vrot.slane %v1831, 4
    %v1954 = vsel %vm1254, %v1953, %v1952
    %v1955 = vrot.slane %v1832, 3
    %v1956 = vsel %vm1257, %v1955, %v1954
    %v1957 = vrot.slane %v1833, 2
    %v1958 = vsel %vm1260, %v1957, %v1956
    %v1959 = vrot.slane %v1834, 1
    %v1960 = vsel %vm1263, %v1959, %v1958
    %v1961 = vrot.slane %v1836, 7
    %v1962 = vsel %vm422, %v1961, %v1835
    %v1963 = vrot.slane %v1837, 6
    %v1964 = vsel %vm426, %v1963, %v1962
    %v1965 = vrot.slane %v1838, 5
    %v1966 = vsel %vm430, %v1965, %v1964
    %v1967 = vrot.slane %v1839, 4
    %v1968 = vsel %vm1254, %v1967, %v1966
    %v1969 = vrot.slane %v1840, 3
    %v1970 = vsel %vm1257, %v1969, %v1968
    %v1971 = vrot.slane %v1841, 2
    %v1972 = vsel %vm1260, %v1971, %v1970
    %v1973 = vrot.slane %v1842, 1
    %v1974 = vsel %vm1263, %v1973, %v1972
    %v1975 = vrot.slane %v1844, 7
    %v1976 = vsel %vm422, %v1975, %v1843
    %v1977 = vrot.slane %v1845, 6
    %v1978 = vsel %vm426, %v1977, %v1976
    %v1979 = vrot.slane %v1846, 5
    %v1980 = vsel %vm430, %v1979, %v1978
    %v1981 = vrot.slane %v1847, 4
    %v1982 = vsel %vm1254, %v1981, %v1980
    %v1983 = vrot.slane %v1848, 3
    %v1984 = vsel %vm1257, %v1983, %v1982
    %v1985 = vrot.slane %v1849, 2
    %v1986 = vsel %vm1260, %v1985, %v1984
    %v1987 = vrot.slane %v1850, 1
    %v1988 = vsel %vm1263, %v1987, %v1986
    %v1989 = vrot.slane %v1852, 7
    %v1990 = vsel %vm422, %v1989, %v1851
    %v1991 = vrot.slane %v1853, 6
    %v1992 = vsel %vm426, %v1991, %v1990
    %v1993 = vrot.slane %v1854, 5
    %v1994 = vsel %vm430, %v1993, %v1992
    %v1995 = vrot.slane %v1855, 4
    %v1996 = vsel %vm1254, %v1995, %v1994
    %v1997 = vrot.slane %v1856, 3
    %v1998 = vsel %vm1257, %v1997, %v1996
    %v1999 = vrot.slane %v1857, 2
    %v2000 = vsel %vm1260, %v1999, %v1998
    %v2001 = vrot.slane %v1858, 1
    %v2002 = vsel %vm1263, %v2001, %v2000
    %v2003 = vrot.slane %v1860, 7
    %v2004 = vsel %vm422, %v2003, %v1859
    %v2005 = vrot.slane %v1861, 6
    %v2006 = vsel %vm426, %v2005, %v2004
    %v2007 = vrot.slane %v1862, 5
    %v2008 = vsel %vm430, %v2007, %v2006
    %v2009 = vrot.slane %v1863, 4
    %v2010 = vsel %vm1254, %v2009, %v2008
    %v2011 = vrot.slane %v1864, 3
    %v2012 = vsel %vm1257, %v2011, %v2010
    %v2013 = vrot.slane %v1865, 2
    %v2014 = vsel %vm1260, %v2013, %v2012
    %v2015 = vrot.slane %v1866, 1
    %v2016 = vsel %vm1263, %v2015, %v2014
    %v2017 = vrot.slane %v1868, 7
    %v2018 = vsel %vm422, %v2017, %v1867
    %v2019 = vrot.slane %v1869, 6
    %v2020 = vsel %vm426, %v2019, %v2018
    %v2021 = vrot.slane %v1870, 5
    %v2022 = vsel %vm430, %v2021, %v2020
    %v2023 = vrot.slane %v1871, 4
    %v2024 = vsel %vm1254, %v2023, %v2022
    %v2025 = vrot.slane %v1872, 3
    %v2026 = vsel %vm1257, %v2025, %v2024
    %v2027 = vrot.slane %v1873, 2
    %v2028 = vsel %vm1260, %v2027, %v2026
    %v2029 = vrot.slane %v1874, 1
    %v2030 = vsel %vm1263, %v2029, %v2028
    %v2031 = vrot.slane %v1876, 7
    %v2032 = vsel %vm422, %v2031, %v1875
    %v2033 = vrot.slane %v1877, 6
    %v2034 = vsel %vm426, %v2033, %v2032
    %v2035 = vrot.slane %v1878, 5
    %v2036 = vsel %vm430, %v2035, %v2034
    %v2037 = vrot.slane %v1879, 4
    %v2038 = vsel %vm1254, %v2037, %v2036
    %v2039 = vrot.slane %v1880, 3
    %v2040 = vsel %vm1257, %v2039, %v2038
    %v2041 = vrot.slane %v1881, 2
    %v2042 = vsel %vm1260, %v2041, %v2040
    %v2043 = vrot.slane %v1882, 1
    %v2044 = vsel %vm1263, %v2043, %v2042
    %v2045 = vrot.slane %v1884, 7
    %v2046 = vsel %vm422, %v2045, %v1883
    %v2047 = vrot.slane %v1885, 6
    %v2048 = vsel %vm426, %v2047, %v2046
    %v2049 = vrot.slane %v1886, 5
    %v2050 = vsel %vm430, %v2049, %v2048
    %v2051 = vrot.slane %v1887, 4
    %v2052 = vsel %vm1254, %v2051, %v2050
    %v2053 = vrot.slane %v1888, 3
    %v2054 = vsel %vm1257, %v2053, %v2052
    %v2055 = vrot.slane %v1889, 2
    %v2056 = vsel %vm1260, %v2055, %v2054
    %v2057 = vrot.slane %v1890, 1
    %v2058 = vsel %vm1263, %v2057, %v2056
    %v2059 = vpack.c.b16 %v1918, %v1904
    %v2060 = vpack.c.b16 %v1946, %v1932
    %v2061 = vpack.c.b16 %v1974, %v1960
    %v2062 = vpack.c.b16 %v2002, %v1988
    %v2063 = vpack.c.b16 %v2030, %v2016
    %v2064 = vpack.c.b16 %v2058, %v2044
    %v2069 = vunpack.c.l.b16 %v782
    %v2070 = vunpack.c.l.b16 %v783
    %v2071 = vunpack.c.l.b16 %v784
    %v2072 = vunpack.c.l.b16 %v785
    %v2073 = vpack.c.b16 %v2070, %v2069
    %v2074 = vpack.c.b16 %v2072, %v2071
    %v2077 = vsel %vm1445, %v2059, 0
    %v2080 = vsel %vm1445, %v2060, 0
    %v2083 = vsel %vm1445, %v2061, 0
    %v2086 = vsel %vm1445, %v2062, 0
    %v2089 = vsel %vm1445, %v2063, 0
    %v2092 = vsel %vm1445, %v2064, 0
    %v2095 = vsel %vm1464, %v2074, 0
    %2097 = vmatpush.bf16.msra.mxu0 0
    %2098 = vmatpush.bf16.msra.mxu0 0
    %2099 = vmatpush.bf16.msra.mxu0 0
    %2100 = vmatpush.bf16.msra.mxu0 0
    %2101 = vmatpush.bf16.msra.mxu0 0
    %2102 = vmatpush.bf16.msra.mxu0 0
    %2103 = vmatpush.bf16.msra.mxu0 %v2095
    %2104 = vmatpush.bf16.msra.mxu0 %v2073
    %2105 = vmatmul.bf16.gmra.mxu0 %v2077
    %v2106 = vpop.f32.mrf.mxu0
    %v2107 = vadd.f32 %v1478, %v2106
    %v2108 = vpop.f32.mrf.mxu0
    %v2109 = vadd.f32 %v1480, %v2108
    %2110 = vmatmul.bf16.gmra.mxu0 %v2080
    %v2111 = vpop.f32.mrf.mxu0
    %v2112 = vadd.f32 %v1483, %v2111
    %v2113 = vpop.f32.mrf.mxu0
    %v2114 = vadd.f32 %v1485, %v2113
    %2115 = vmatmul.bf16.gmra.mxu0 %v2083
    %v2116 = vpop.f32.mrf.mxu0
    %v2117 = vadd.f32 %v1488, %v2116
    %v2118 = vpop.f32.mrf.mxu0
    %v2119 = vadd.f32 %v1490, %v2118
    %2120 = vmatmul.bf16.gmra.mxu0 %v2086
    %v2121 = vpop.f32.mrf.mxu0
    %v2122 = vadd.f32 %v1493, %v2121
    %v2123 = vpop.f32.mrf.mxu0
    %v2124 = vadd.f32 %v1495, %v2123
    %2125 = vmatmul.bf16.gmra.mxu0 %v2089
    %v2126 = vpop.f32.mrf.mxu0
    %v2127 = vadd.f32 %v1498, %v2126
    %v2128 = vpop.f32.mrf.mxu0
    %v2129 = vadd.f32 %v1500, %v2128
    %2130 = vmatmul.bf16.gmra.mxu0 %v2092
    %v2131 = vpop.f32.mrf.mxu0
    %v2132 = vadd.f32 %v1503, %v2131
    %v2133 = vpop.f32.mrf.mxu0
    %v2134 = vadd.f32 %v1505, %v2133
    %2135 = vdwg.mxu0
    %v2136 = vld [vmem:[%s4 + $0x1c] sm:$0xc]
    %v2137 = vld [vmem:[%s4 + $0x20] sm:$0xf]
    %v2138 = vld [vmem:[%s4 + $0x24] sm:$0xf]
    %v2139 = vld [vmem:[%s4 + $0x28] sm:$0xf]
    %v2140 = vld [vmem:[%s4 + $0x2c] sm:$0x1]
    %2141 = vst [vmem:[#allocation1] ss:$9 sm:$0xff] %v425
    %v2142 = vld [vmem:[#allocation1] sm:$0xff]
    %2144 = vst [vmem:[#allocation1] ss:$9 sm:$0xff] %v429
    %v2145 = vld [vmem:[#allocation1] sm:$0xff]
    %2147 = vst [vmem:[#allocation1] ss:$9 sm:$0xff] %v433
    %v2148 = vld [vmem:[#allocation1] sm:$0xff]
    %2150 = vst [vmem:[#allocation1] ss:$9 sm:$0xff] %v436
    %v2151 = vld [vmem:[#allocation1] sm:$0xff]
    %2153 = vst [vmem:[#allocation1] ss:$9 sm:$0xff] %v439
    %v2154 = vld [vmem:[#allocation1] sm:$0xff]
    %2156 = vst [vmem:[#allocation1] ss:$9 sm:$0xff] %v442
    %v2157 = vld [vmem:[#allocation1] sm:$0xff]
    %2159 = vst [vmem:[#allocation1] ss:$9 sm:$0xff] %v445
    %v2160 = vld [vmem:[#allocation1] sm:$0xff]
    %2162 = vst [vmem:[#allocation1] ss:$9 sm:$0xff] %v448
    %v2163 = vld [vmem:[#allocation1] sm:$0xff]
    %2165 = vst [vmem:[#allocation1] ss:$9 sm:$0xff] %v451
    %v2166 = vld [vmem:[#allocation1] sm:$0xff]
    %2168 = vst [vmem:[#allocation1] ss:$9 sm:$0xff] %v454
    %v2169 = vld [vmem:[#allocation1] sm:$0xff]
    %2171 = vst [vmem:[#allocation1] ss:$9 sm:$0xff] %v457
    %v2172 = vld [vmem:[#allocation1] sm:$0xff]
    %2174 = vst [vmem:[#allocation1] ss:$9 sm:$0xff] %v460
    %v2175 = vld [vmem:[#allocation1] sm:$0xff]
    %2177 = vst [vmem:[#allocation1] ss:$9 sm:$0xff] %v472
    %v2178 = vld [vmem:[#allocation1] sm:$0xff]
    %2180 = vst [vmem:[#allocation1] ss:$9 sm:$0xff] %v475
    %v2181 = vld [vmem:[#allocation1] sm:$0xff]
    %2183 = vst [vmem:[#allocation1] ss:$9 sm:$0xff] %v478
    %v2184 = vld [vmem:[#allocation1] sm:$0xff]
    %2186 = vst [vmem:[#allocation1] ss:$9 sm:$0xff] %v481
    %v2187 = vld [vmem:[#allocation1] sm:$0xff]
    %2189 = vst [vmem:[#allocation1] ss:$9 sm:$0xff] %v484
    %v2190 = vld [vmem:[#allocation1] sm:$0xff]
    %2192 = vst [vmem:[#allocation1] ss:$9 sm:$0xff] %v487
    %v2193 = vld [vmem:[#allocation1] sm:$0xff]
    %2195 = vst [vmem:[#allocation1] ss:$9 sm:$0xff] %v490
    %v2196 = vld [vmem:[#allocation1] sm:$0xff]
    %2198 = vst [vmem:[#allocation1] ss:$9 sm:$0xff] %v493
    %v2199 = vld [vmem:[#allocation1] sm:$0xff]
    %2201 = vst [vmem:[#allocation1] ss:$9 sm:$0xff] %v496
    %v2202 = vld [vmem:[#allocation1] sm:$0xff]
    %2204 = vst [vmem:[#allocation1] ss:$9 sm:$0xff] %v499
    %v2205 = vld [vmem:[#allocation1] sm:$0xff]
    %2207 = vst [vmem:[#allocation1] ss:$9 sm:$0xff] %v502
    %v2208 = vld [vmem:[#allocation1] sm:$0xff]
    %2211 = vst [vmem:[#allocation1] ss:$9 sm:$0xff] %v505
    %v2212 = vld [vmem:[#allocation1] sm:$0xff]
    %2214 = vst [vmem:[#allocation1] ss:$9 sm:$0xff] %v517
    %v2215 = vld [vmem:[#allocation1] sm:$0xff]
    %2217 = vst [vmem:[#allocation1] ss:$9 sm:$0xff] %v520
    %v2218 = vld [vmem:[#allocation1] sm:$0xff]
    %2220 = vst [vmem:[#allocation1] ss:$9 sm:$0xff] %v523
    %v2221 = vld [vmem:[#allocation1] sm:$0xff]
    %2223 = vst [vmem:[#allocation1] ss:$9 sm:$0xff] %v526
    %v2224 = vld [vmem:[#allocation1] sm:$0xff]
    %2226 = vst [vmem:[#allocation1] ss:$9 sm:$0xff] %v529
    %v2227 = vld [vmem:[#allocation1] sm:$0xff]
    %2229 = vst [vmem:[#allocation1] ss:$9 sm:$0xff] %v532
    %v2230 = vld [vmem:[#allocation1] sm:$0xff]
    %2232 = vst [vmem:[#allocation1] ss:$9 sm:$0xff] %v535
    %v2233 = vld [vmem:[#allocation1] sm:$0xff]
    %2235 = vst [vmem:[#allocation1] ss:$9 sm:$0xff] %v538
    %v2236 = vld [vmem:[#allocation1] sm:$0xff]
    %2238 = vst [vmem:[#allocation1] ss:$9 sm:$0xff] %v541
    %v2239 = vld [vmem:[#allocation1] sm:$0xff]
    %2241 = vst [vmem:[#allocation1] ss:$9 sm:$0xff] %v544
    %v2242 = vld [vmem:[#allocation1] sm:$0xff]
    %2244 = vst [vmem:[#allocation1] ss:$9 sm:$0xff] %v547
    %v2245 = vld [vmem:[#allocation1] sm:$0xff]
    %2248 = vst [vmem:[#allocation1] ss:$9 sm:$0xff] %v550
    %v2249 = vld [vmem:[#allocation1] sm:$0xff]
    %2251 = vst [vmem:[#allocation1] ss:$9 sm:$0xff] %v562
    %v2252 = vld [vmem:[#allocation1] sm:$0xff]
    %2254 = vst [vmem:[#allocation1] ss:$9 sm:$0xff] %v565
    %v2255 = vld [vmem:[#allocation1] sm:$0xff]
    %2257 = vst [vmem:[#allocation1] ss:$9 sm:$0xff] %v568
    %v2258 = vld [vmem:[#allocation1] sm:$0xff]
    %2260 = vst [vmem:[#allocation1] ss:$9 sm:$0xff] %v571
    %v2261 = vld [vmem:[#allocation1] sm:$0xff]
    %2263 = vst [vmem:[#allocation1] ss:$9 sm:$0xff] %v574
    %v2264 = vld [vmem:[#allocation1] sm:$0xff]
    %2266 = vst [vmem:[#allocation1] ss:$9 sm:$0xff] %v577
    %v2267 = vld [vmem:[#allocation1] sm:$0xff]
    %2269 = vst [vmem:[#allocation1] ss:$9 sm:$0xff] %v580
    %v2270 = vld [vmem:[#allocation1] sm:$0xff]
    %2272 = vst [vmem:[#allocation1] ss:$9 sm:$0xff] %v583
    %v2273 = vld [vmem:[#allocation1] sm:$0xff]
    %2275 = vst [vmem:[#allocation1] ss:$9 sm:$0xff] %v586
    %v2276 = vld [vmem:[#allocation1] sm:$0xff]
    %2278 = vst [vmem:[#allocation1] ss:$9 sm:$0xff] %v589
    %v2279 = vld [vmem:[#allocation1] sm:$0xff]
    %2281 = vst [vmem:[#allocation1] ss:$9 sm:$0xff] %v592
    %v2282 = vld [vmem:[#allocation1] sm:$0xff]
    %2285 = vst [vmem:[#allocation1] ss:$9 sm:$0xff] %v595
    %v2286 = vld [vmem:[#allocation1] sm:$0xff]
    %2288 = vst [vmem:[#allocation1] ss:$9 sm:$0xff] %v607
    %v2289 = vld [vmem:[#allocation1] sm:$0xff]
    %2291 = vst [vmem:[#allocation1] ss:$9 sm:$0xff] %v610
    %v2292 = vld [vmem:[#allocation1] sm:$0xff]
    %2294 = vst [vmem:[#allocation1] ss:$9 sm:$0xff] %v613
    %v2295 = vld [vmem:[#allocation1] sm:$0xff]
    %2297 = vst [vmem:[#allocation1] ss:$9 sm:$0xff] %v616
    %v2298 = vld [vmem:[#allocation1] sm:$0xff]
    %2300 = vst [vmem:[#allocation1] ss:$9 sm:$0xff] %v619
    %v2301 = vld [vmem:[#allocation1] sm:$0xff]
    %2303 = vst [vmem:[#allocation1] ss:$9 sm:$0xff] %v622
    %v2304 = vld [vmem:[#allocation1] sm:$0xff]
    %2306 = vst [vmem:[#allocation1] ss:$9 sm:$0xff] %v625
    %v2307 = vld [vmem:[#allocation1] sm:$0xff]
    %2309 = vst [vmem:[#allocation1] ss:$9 sm:$0xff] %v628
    %v2310 = vld [vmem:[#allocation1] sm:$0xff]
    %2312 = vst [vmem:[#allocation1] ss:$9 sm:$0xff] %v631
    %v2313 = vld [vmem:[#allocation1] sm:$0xff]
    %2315 = vst [vmem:[#allocation1] ss:$9 sm:$0xff] %v634
    %v2316 = vld [vmem:[#allocation1] sm:$0xff]
    %2318 = vst [vmem:[#allocation1] ss:$9 sm:$0xff] %v637
    %v2319 = vld [vmem:[#allocation1] sm:$0xff]
    %2321 = vst [vmem:[#allocation1] ss:$9 sm:$0xff] %v640
    %v2322 = vld [vmem:[#allocation1] sm:$0xff]
    %2324 = vst [vmem:[#allocation1] ss:$9 sm:$0xff] %v652
    %v2325 = vld [vmem:[#allocation1] sm:$0xff]
    %2327 = vst [vmem:[#allocation1] ss:$9 sm:$0xff] %v655
    %v2328 = vld [vmem:[#allocation1] sm:$0xff]
    %2330 = vst [vmem:[#allocation1] ss:$9 sm:$0xff] %v658
    %v2331 = vld [vmem:[#allocation1] sm:$0xff]
    %2333 = vst [vmem:[#allocation1] ss:$9 sm:$0xff] %v661
    %v2334 = vld [vmem:[#allocation1] sm:$0xff]
    %2336 = vst [vmem:[#allocation1] ss:$9 sm:$0xff] %v664
    %v2337 = vld [vmem:[#allocation1] sm:$0xff]
    %2339 = vst [vmem:[#allocation1] ss:$9 sm:$0xff] %v667
    %v2340 = vld [vmem:[#allocation1] sm:$0xff]
    %2342 = vst [vmem:[#allocation1] ss:$9 sm:$0xff] %v670
    %v2343 = vld [vmem:[#allocation1] sm:$0xff]
    %2345 = vst [vmem:[#allocation1] ss:$9 sm:$0xff] %v673
    %v2346 = vld [vmem:[#allocation1] sm:$0xff]
    %2348 = vst [vmem:[#allocation1] ss:$9 sm:$0xff] %v676
    %v2349 = vld [vmem:[#allocation1] sm:$0xff]
    %2351 = vst [vmem:[#allocation1] ss:$9 sm:$0xff] %v679
    %v2352 = vld [vmem:[#allocation1] sm:$0xff]
    %2354 = vst [vmem:[#allocation1] ss:$9 sm:$0xff] %v682
    %v2355 = vld [vmem:[#allocation1] sm:$0xff]
    %2358 = vst [vmem:[#allocation1] ss:$9 sm:$0xff] %v685
    %v2359 = vld [vmem:[#allocation1] sm:$0xff]
    %2361 = vst [vmem:[#allocation1] ss:$9 sm:$0xff] %v697
    %v2362 = vld [vmem:[#allocation1] sm:$0xff]
    %2364 = vst [vmem:[#allocation1] ss:$9 sm:$0xff] %v700
    %v2365 = vld [vmem:[#allocation1] sm:$0xff]
    %2367 = vst [vmem:[#allocation1] ss:$9 sm:$0xff] %v703
    %v2368 = vld [vmem:[#allocation1] sm:$0xff]
    %2370 = vst [vmem:[#allocation1] ss:$9 sm:$0xff] %v706
    %v2371 = vld [vmem:[#allocation1] sm:$0xff]
    %2373 = vst [vmem:[#allocation1] ss:$9 sm:$0xff] %v709
    %v2374 = vld [vmem:[#allocation1] sm:$0xff]
    %2376 = vst [vmem:[#allocation1] ss:$9 sm:$0xff] %v712
    %v2377 = vld [vmem:[#allocation1] sm:$0xff]
    %2379 = vst [vmem:[#allocation1] ss:$9 sm:$0xff] %v715
    %v2380 = vld [vmem:[#allocation1] sm:$0xff]
    %2382 = vst [vmem:[#allocation1] ss:$9 sm:$0xff] %v718
    %v2383 = vld [vmem:[#allocation1] sm:$0xff]
    %2385 = vst [vmem:[#allocation1] ss:$9 sm:$0xff] %v721
    %v2386 = vld [vmem:[#allocation1] sm:$0xff]
    %2388 = vst [vmem:[#allocation1] ss:$9 sm:$0xff] %v724
    %v2389 = vld [vmem:[#allocation1] sm:$0xff]
    %2391 = vst [vmem:[#allocation1] ss:$9 sm:$0xff] %v727
    %v2392 = vld [vmem:[#allocation1] sm:$0xff]
    %2395 = vst [vmem:[#allocation1] ss:$9 sm:$0xff] %v730
    %v2396 = vld [vmem:[#allocation1] sm:$0xff]
    %2398 = vst [vmem:[#allocation1] ss:$9 sm:$0xff] %v742
    %v2399 = vld [vmem:[#allocation1] sm:$0xff]
    %2401 = vst [vmem:[#allocation1] ss:$9 sm:$0xff] %v745
    %v2402 = vld [vmem:[#allocation1] sm:$0xff]
    %2404 = vst [vmem:[#allocation1] ss:$9 sm:$0xff] %v748
    %v2405 = vld [vmem:[#allocation1] sm:$0xff]
    %2407 = vst [vmem:[#allocation1] ss:$9 sm:$0xff] %v751
    %v2408 = vld [vmem:[#allocation1] sm:$0xff]
    %2410 = vst [vmem:[#allocation1] ss:$9 sm:$0xff] %v754
    %v2411 = vld [vmem:[#allocation1] sm:$0xff]
    %2413 = vst [vmem:[#allocation1] ss:$9 sm:$0xff] %v757
    %v2414 = vld [vmem:[#allocation1] sm:$0xff]
    %2416 = vst [vmem:[#allocation1] ss:$9 sm:$0xff] %v760
    %v2417 = vld [vmem:[#allocation1] sm:$0xff]
    %2419 = vst [vmem:[#allocation1] ss:$9 sm:$0xff] %v763
    %v2420 = vld [vmem:[#allocation1] sm:$0xff]
    %2422 = vst [vmem:[#allocation1] ss:$9 sm:$0xff] %v766
    %v2423 = vld [vmem:[#allocation1] sm:$0xff]
    %2425 = vst [vmem:[#allocation1] ss:$9 sm:$0xff] %v769
    %v2426 = vld [vmem:[#allocation1] sm:$0xff]
    %2428 = vst [vmem:[#allocation1] ss:$9 sm:$0xff] %v772
    %v2429 = vld [vmem:[#allocation1] sm:$0xff]
    %2432 = vst [vmem:[#allocation1] ss:$9 sm:$0xff] %v775
    %v2433 = vld [vmem:[#allocation1] sm:$0xff]
    %v2435 = vunpack.c.l.b16 %v2142
    %v2436 = vunpack.c.l.b16 %v2145
    %v2437 = vunpack.c.l.b16 %v2148
    %v2438 = vunpack.c.l.b16 %v2151
    %v2439 = vunpack.c.l.b16 %v2154
    %v2440 = vunpack.c.l.b16 %v2157
    %v2441 = vunpack.c.l.b16 %v2160
    %v2442 = vunpack.c.l.b16 %v2163
    %v2443 = vunpack.c.l.b16 %v2166
    %v2444 = vunpack.c.l.b16 %v2169
    %v2445 = vunpack.c.l.b16 %v2172
    %v2446 = vunpack.c.l.b16 %v2175
    %v2447 = vunpack.c.l.b16 %v2178
    %v2448 = vunpack.c.l.b16 %v2181
    %v2449 = vunpack.c.l.b16 %v2184
    %v2450 = vunpack.c.l.b16 %v2187
    %v2451 = vunpack.c.l.b16 %v2190
    %v2452 = vunpack.c.l.b16 %v2193
    %v2453 = vunpack.c.l.b16 %v2196
    %v2454 = vunpack.c.l.b16 %v2199
    %v2455 = vunpack.c.l.b16 %v2202
    %v2456 = vunpack.c.l.b16 %v2205
    %v2457 = vunpack.c.l.b16 %v2208
    %v2458 = vunpack.c.l.b16 %v2212
    %v2459 = vunpack.c.l.b16 %v2215
    %v2460 = vunpack.c.l.b16 %v2218
    %v2461 = vunpack.c.l.b16 %v2221
    %v2462 = vunpack.c.l.b16 %v2224
    %v2463 = vunpack.c.l.b16 %v2227
    %v2464 = vunpack.c.l.b16 %v2230
    %v2465 = vunpack.c.l.b16 %v2233
    %v2466 = vunpack.c.l.b16 %v2236
    %v2467 = vunpack.c.l.b16 %v2239
    %v2468 = vunpack.c.l.b16 %v2242
    %v2469 = vunpack.c.l.b16 %v2245
    %v2470 = vunpack.c.l.b16 %v2249
    %v2471 = vunpack.c.l.b16 %v2252
    %v2472 = vunpack.c.l.b16 %v2255
    %v2473 = vunpack.c.l.b16 %v2258
    %v2474 = vunpack.c.l.b16 %v2261
    %v2475 = vunpack.c.l.b16 %v2264
    %v2476 = vunpack.c.l.b16 %v2267
    %v2477 = vunpack.c.l.b16 %v2270
    %v2478 = vunpack.c.l.b16 %v2273
    %v2479 = vunpack.c.l.b16 %v2276
    %v2480 = vunpack.c.l.b16 %v2279
    %v2481 = vunpack.c.l.b16 %v2282
    %v2482 = vunpack.c.l.b16 %v2286
    %v2483 = vunpack.c.l.b16 %v2289
    %v2484 = vunpack.c.l.b16 %v2292
    %v2485 = vunpack.c.l.b16 %v2295
    %v2486 = vunpack.c.l.b16 %v2298
    %v2487 = vunpack.c.l.b16 %v2301
    %v2488 = vunpack.c.l.b16 %v2304
    %v2489 = vunpack.c.l.b16 %v2307
    %v2490 = vunpack.c.l.b16 %v2310
    %v2491 = vunpack.c.l.b16 %v2313
    %v2492 = vunpack.c.l.b16 %v2316
    %v2493 = vunpack.c.l.b16 %v2319
    %v2494 = vunpack.c.l.b16 %v2322
    %v2495 = vunpack.c.l.b16 %v2325
    %v2496 = vunpack.c.l.b16 %v2328
    %v2497 = vunpack.c.l.b16 %v2331
    %v2498 = vunpack.c.l.b16 %v2334
    %v2499 = vunpack.c.l.b16 %v2337
    %v2500 = vunpack.c.l.b16 %v2340
    %v2501 = vunpack.c.l.b16 %v2343
    %v2502 = vunpack.c.l.b16 %v2346
    %v2503 = vunpack.c.l.b16 %v2349
    %v2504 = vunpack.c.l.b16 %v2352
    %v2505 = vunpack.c.l.b16 %v2355
    %v2506 = vunpack.c.l.b16 %v2359
    %v2507 = vunpack.c.l.b16 %v2362
    %v2508 = vunpack.c.l.b16 %v2365
    %v2509 = vunpack.c.l.b16 %v2368
    %v2510 = vunpack.c.l.b16 %v2371
    %v2511 = vunpack.c.l.b16 %v2374
    %v2512 = vunpack.c.l.b16 %v2377
    %v2513 = vunpack.c.l.b16 %v2380
    %v2514 = vunpack.c.l.b16 %v2383
    %v2515 = vunpack.c.l.b16 %v2386
    %v2516 = vunpack.c.l.b16 %v2389
    %v2517 = vunpack.c.l.b16 %v2392
    %v2518 = vunpack.c.l.b16 %v2396
    %v2519 = vunpack.c.l.b16 %v2399
    %v2520 = vunpack.c.l.b16 %v2402
    %v2521 = vunpack.c.l.b16 %v2405
    %v2522 = vunpack.c.l.b16 %v2408
    %v2523 = vunpack.c.l.b16 %v2411
    %v2524 = vunpack.c.l.b16 %v2414
    %v2525 = vunpack.c.l.b16 %v2417
    %v2526 = vunpack.c.l.b16 %v2420
    %v2527 = vunpack.c.l.b16 %v2423
    %v2528 = vunpack.c.l.b16 %v2426
    %v2529 = vunpack.c.l.b16 %v2429
    %v2530 = vunpack.c.l.b16 %v2433
    %v2531 = vrot.slane %v2436, 7
    %v2532 = vsel %vm422, %v2531, %v2435
    %v2533 = vrot.slane %v2437, 6
    %v2534 = vsel %vm426, %v2533, %v2532
    %v2535 = vrot.slane %v2438, 5
    %v2536 = vsel %vm430, %v2535, %v2534
    %v2537 = vrot.slane %v2439, 4
    %v2538 = vsel %vm1254, %v2537, %v2536
    %v2539 = vrot.slane %v2440, 3
    %v2540 = vsel %vm1257, %v2539, %v2538
    %v2541 = vrot.slane %v2441, 2
    %v2542 = vsel %vm1260, %v2541, %v2540
    %v2543 = vrot.slane %v2442, 1
    %v2544 = vsel %vm1263, %v2543, %v2542
    %v2545 = vrot.slane %v2444, 7
    %v2546 = vsel %vm422, %v2545, %v2443
    %v2547 = vrot.slane %v2445, 6
    %v2548 = vsel %vm426, %v2547, %v2546
    %v2549 = vrot.slane %v2446, 5
    %v2550 = vsel %vm430, %v2549, %v2548
    %v2551 = vrot.slane %v2447, 4
    %v2552 = vsel %vm1254, %v2551, %v2550
    %v2553 = vrot.slane %v2448, 3
    %v2554 = vsel %vm1257, %v2553, %v2552
    %v2555 = vrot.slane %v2449, 2
    %v2556 = vsel %vm1260, %v2555, %v2554
    %v2557 = vrot.slane %v2450, 1
    %v2558 = vsel %vm1263, %v2557, %v2556
    %v2559 = vrot.slane %v2452, 7
    %v2560 = vsel %vm422, %v2559, %v2451
    %v2561 = vrot.slane %v2453, 6
    %v2562 = vsel %vm426, %v2561, %v2560
    %v2563 = vrot.slane %v2454, 5
    %v2564 = vsel %vm430, %v2563, %v2562
    %v2565 = vrot.slane %v2455, 4
    %v2566 = vsel %vm1254, %v2565, %v2564
    %v2567 = vrot.slane %v2456, 3
    %v2568 = vsel %vm1257, %v2567, %v2566
    %v2569 = vrot.slane %v2457, 2
    %v2570 = vsel %vm1260, %v2569, %v2568
    %v2571 = vrot.slane %v2458, 1
    %v2572 = vsel %vm1263, %v2571, %v2570
    %v2573 = vrot.slane %v2460, 7
    %v2574 = vsel %vm422, %v2573, %v2459
    %v2575 = vrot.slane %v2461, 6
    %v2576 = vsel %vm426, %v2575, %v2574
    %v2577 = vrot.slane %v2462, 5
    %v2578 = vsel %vm430, %v2577, %v2576
    %v2579 = vrot.slane %v2463, 4
    %v2580 = vsel %vm1254, %v2579, %v2578
    %v2581 = vrot.slane %v2464, 3
    %v2582 = vsel %vm1257, %v2581, %v2580
    %v2583 = vrot.slane %v2465, 2
    %v2584 = vsel %vm1260, %v2583, %v2582
    %v2585 = vrot.slane %v2466, 1
    %v2586 = vsel %vm1263, %v2585, %v2584
    %v2587 = vrot.slane %v2468, 7
    %v2588 = vsel %vm422, %v2587, %v2467
    %v2589 = vrot.slane %v2469, 6
    %v2590 = vsel %vm426, %v2589, %v2588
    %v2591 = vrot.slane %v2470, 5
    %v2592 = vsel %vm430, %v2591, %v2590
    %v2593 = vrot.slane %v2471, 4
    %v2594 = vsel %vm1254, %v2593, %v2592
    %v2595 = vrot.slane %v2472, 3
    %v2596 = vsel %vm1257, %v2595, %v2594
    %v2597 = vrot.slane %v2473, 2
    %v2598 = vsel %vm1260, %v2597, %v2596
    %v2599 = vrot.slane %v2474, 1
    %v2600 = vsel %vm1263, %v2599, %v2598
    %v2601 = vrot.slane %v2476, 7
    %v2602 = vsel %vm422, %v2601, %v2475
    %v2603 = vrot.slane %v2477, 6
    %v2604 = vsel %vm426, %v2603, %v2602
    %v2605 = vrot.slane %v2478, 5
    %v2606 = vsel %vm430, %v2605, %v2604
    %v2607 = vrot.slane %v2479, 4
    %v2608 = vsel %vm1254, %v2607, %v2606
    %v2609 = vrot.slane %v2480, 3
    %v2610 = vsel %vm1257, %v2609, %v2608
    %v2611 = vrot.slane %v2481, 2
    %v2612 = vsel %vm1260, %v2611, %v2610
    %v2613 = vrot.slane %v2482, 1
    %v2614 = vsel %vm1263, %v2613, %v2612
    %v2615 = vrot.slane %v2484, 7
    %v2616 = vsel %vm422, %v2615, %v2483
    %v2617 = vrot.slane %v2485, 6
    %v2618 = vsel %vm426, %v2617, %v2616
    %v2619 = vrot.slane %v2486, 5
    %v2620 = vsel %vm430, %v2619, %v2618
    %v2621 = vrot.slane %v2487, 4
    %v2622 = vsel %vm1254, %v2621, %v2620
    %v2623 = vrot.slane %v2488, 3
    %v2624 = vsel %vm1257, %v2623, %v2622
    %v2625 = vrot.slane %v2489, 2
    %v2626 = vsel %vm1260, %v2625, %v2624
    %v2627 = vrot.slane %v2490, 1
    %v2628 = vsel %vm1263, %v2627, %v2626
    %v2629 = vrot.slane %v2492, 7
    %v2630 = vsel %vm422, %v2629, %v2491
    %v2631 = vrot.slane %v2493, 6
    %v2632 = vsel %vm426, %v2631, %v2630
    %v2633 = vrot.slane %v2494, 5
    %v2634 = vsel %vm430, %v2633, %v2632
    %v2635 = vrot.slane %v2495, 4
    %v2636 = vsel %vm1254, %v2635, %v2634
    %v2637 = vrot.slane %v2496, 3
    %v2638 = vsel %vm1257, %v2637, %v2636
    %v2639 = vrot.slane %v2497, 2
    %v2640 = vsel %vm1260, %v2639, %v2638
    %v2641 = vrot.slane %v2498, 1
    %v2642 = vsel %vm1263, %v2641, %v2640
    %v2643 = vrot.slane %v2500, 7
    %v2644 = vsel %vm422, %v2643, %v2499
    %v2645 = vrot.slane %v2501, 6
    %v2646 = vsel %vm426, %v2645, %v2644
    %v2647 = vrot.slane %v2502, 5
    %v2648 = vsel %vm430, %v2647, %v2646
    %v2649 = vrot.slane %v2503, 4
    %v2650 = vsel %vm1254, %v2649, %v2648
    %v2651 = vrot.slane %v2504, 3
    %v2652 = vsel %vm1257, %v2651, %v2650
    %v2653 = vrot.slane %v2505, 2
    %v2654 = vsel %vm1260, %v2653, %v2652
    %v2655 = vrot.slane %v2506, 1
    %v2656 = vsel %vm1263, %v2655, %v2654
    %v2657 = vrot.slane %v2508, 7
    %v2658 = vsel %vm422, %v2657, %v2507
    %v2659 = vrot.slane %v2509, 6
    %v2660 = vsel %vm426, %v2659, %v2658
    %v2661 = vrot.slane %v2510, 5
    %v2662 = vsel %vm430, %v2661, %v2660
    %v2663 = vrot.slane %v2511, 4
    %v2664 = vsel %vm1254, %v2663, %v2662
    %v2665 = vrot.slane %v2512, 3
    %v2666 = vsel %vm1257, %v2665, %v2664
    %v2667 = vrot.slane %v2513, 2
    %v2668 = vsel %vm1260, %v2667, %v2666
    %v2669 = vrot.slane %v2514, 1
    %v2670 = vsel %vm1263, %v2669, %v2668
    %v2671 = vrot.slane %v2516, 7
    %v2672 = vsel %vm422, %v2671, %v2515
    %v2673 = vrot.slane %v2517, 6
    %v2674 = vsel %vm426, %v2673, %v2672
    %v2675 = vrot.slane %v2518, 5
    %v2676 = vsel %vm430, %v2675, %v2674
    %v2677 = vrot.slane %v2519, 4
    %v2678 = vsel %vm1254, %v2677, %v2676
    %v2679 = vrot.slane %v2520, 3
    %v2680 = vsel %vm1257, %v2679, %v2678
    %v2681 = vrot.slane %v2521, 2
    %v2682 = vsel %vm1260, %v2681, %v2680
    %v2683 = vrot.slane %v2522, 1
    %v2684 = vsel %vm1263, %v2683, %v2682
    %v2685 = vrot.slane %v2524, 7
    %v2686 = vsel %vm422, %v2685, %v2523
    %v2687 = vrot.slane %v2525, 6
    %v2688 = vsel %vm426, %v2687, %v2686
    %v2689 = vrot.slane %v2526, 5
    %v2690 = vsel %vm430, %v2689, %v2688
    %v2691 = vrot.slane %v2527, 4
    %v2692 = vsel %vm1254, %v2691, %v2690
    %v2693 = vrot.slane %v2528, 3
    %v2694 = vsel %vm1257, %v2693, %v2692
    %v2695 = vrot.slane %v2529, 2
    %v2696 = vsel %vm1260, %v2695, %v2694
    %v2697 = vrot.slane %v2530, 1
    %v2698 = vsel %vm1263, %v2697, %v2696
    %v2699 = vpack.c.b16 %v2558, %v2544
    %v2700 = vpack.c.b16 %v2586, %v2572
    %v2701 = vpack.c.b16 %v2614, %v2600
    %v2702 = vpack.c.b16 %v2642, %v2628
    %v2703 = vpack.c.b16 %v2670, %v2656
    %v2704 = vpack.c.b16 %v2698, %v2684
    %v2710 = vunpack.c.l.b16 %v2136
    %v2711 = vunpack.c.l.b16 %v2137
    %v2712 = vunpack.c.l.b16 %v2138
    %v2713 = vunpack.c.l.b16 %v2139
    %v2714 = vunpack.c.l.b16 %v2140
    %v2715 = vpack.c.b16 %v2711, %v2710
    %v2716 = vpack.c.b16 %v2713, %v2712
    %v2717 = vpack.c.b16 %v2714, %v2714
    %vm2718 = vcmask 1045504
    %v2719 = vrot.slane %v2715, 2
    %v2720 = vrot.slane %v2716, 2
    %v2721 = vsel %vm2718, %v2719, %v2720
    %v2722 = vrot.slane %v2717, 2
    %v2723 = vsel %vm2718, %v2720, %v2722
    %v2726 = vsel %vm1445, %v2699, 0
    %v2729 = vsel %vm1445, %v2700, 0
    %v2732 = vsel %vm1445, %v2701, 0
    %v2735 = vsel %vm1445, %v2702, 0
    %v2738 = vsel %vm1445, %v2703, 0
    %v2741 = vsel %vm1445, %v2704, 0
    %v2744 = vsel %vm1464, %v2723, 0
    %2746 = vmatpush.bf16.msra.mxu0 0
    %2747 = vmatpush.bf16.msra.mxu0 0
    %2748 = vmatpush.bf16.msra.mxu0 0
    %2749 = vmatpush.bf16.msra.mxu0 0
    %2750 = vmatpush.bf16.msra.mxu0 0
    %2751 = vmatpush.bf16.msra.mxu0 0
    %2752 = vmatpush.bf16.msra.mxu0 %v2744
    %2753 = vmatpush.bf16.msra.mxu0 %v2721
    %2754 = vmatmul.bf16.gmra.mxu0 %v2726
    %v2755 = vpop.f32.mrf.mxu0
    %v2756 = vadd.f32 0.0, %v2755
    %v2757 = vpop.f32.mrf.mxu0
    %v2758 = vadd.f32 0.0, %v2757
    %2759 = vmatmul.bf16.gmra.mxu0 %v2729
    %v2760 = vpop.f32.mrf.mxu0
    %v2761 = vadd.f32 0.0, %v2760
    %v2762 = vpop.f32.mrf.mxu0
    %v2763 = vadd.f32 0.0, %v2762
    %2764 = vmatmul.bf16.gmra.mxu0 %v2732
    %v2765 = vpop.f32.mrf.mxu0
    %v2766 = vadd.f32 0.0, %v2765
    %v2767 = vpop.f32.mrf.mxu0
    %v2768 = vadd.f32 0.0, %v2767
    %2769 = vmatmul.bf16.gmra.mxu0 %v2735
    %v2770 = vpop.f32.mrf.mxu0
    %v2771 = vadd.f32 0.0, %v2770
    %v2772 = vpop.f32.mrf.mxu0
    %v2773 = vadd.f32 0.0, %v2772
    %2774 = vmatmul.bf16.gmra.mxu0 %v2738
    %v2775 = vpop.f32.mrf.mxu0
    %v2776 = vadd.f32 0.0, %v2775
    %v2777 = vpop.f32.mrf.mxu0
    %v2778 = vadd.f32 0.0, %v2777
    %2779 = vmatmul.bf16.gmra.mxu0 %v2741
    %v2780 = vpop.f32.mrf.mxu0
    %v2781 = vadd.f32 0.0, %v2780
    %v2782 = vpop.f32.mrf.mxu0
    %v2783 = vadd.f32 0.0, %v2782
    %2784 = vdwg.mxu0
    %v2785 = vadd.f32 %v2107, %v2756
    %v2786 = vadd.f32 %v2109, %v2758
    %v2787 = vadd.f32 %v2112, %v2761
    %v2788 = vadd.f32 %v2114, %v2763
    %v2789 = vadd.f32 %v2117, %v2766
    %v2790 = vadd.f32 %v2119, %v2768
    %v2791 = vadd.f32 %v2122, %v2771
    %v2792 = vadd.f32 %v2124, %v2773
    %v2793 = vadd.f32 %v2127, %v2776
    %v2794 = vadd.f32 %v2129, %v2778
    %v2795 = vadd.f32 %v2132, %v2781
    %v2796 = vadd.f32 %v2134, %v2783
    %v2797 = vld [vmem:[%s4 + $0x2c] sm:$0xe]
    %v2798 = vld [vmem:[%s4 + $0x30] sm:$0xf]
    %v2799 = vld [vmem:[%s4 + $0x34] sm:$0xf]
    %v2800 = vld [vmem:[%s4 + $0x38] sm:$0xf]
    %2801 = vst [vmem:[#allocation1] ss:$9 sm:$0xff] %v425
    %v2802 = vld [vmem:[#allocation1] sm:$0xff]
    %2804 = vst [vmem:[#allocation1] ss:$9 sm:$0xff] %v429
    %v2805 = vld [vmem:[#allocation1] sm:$0xff]
    %2807 = vst [vmem:[#allocation1] ss:$9 sm:$0xff] %v433
    %v2808 = vld [vmem:[#allocation1] sm:$0xff]
    %2810 = vst [vmem:[#allocation1] ss:$9 sm:$0xff] %v436
    %v2811 = vld [vmem:[#allocation1] sm:$0xff]
    %2813 = vst [vmem:[#allocation1] ss:$9 sm:$0xff] %v439
    %v2814 = vld [vmem:[#allocation1] sm:$0xff]
    %2816 = vst [vmem:[#allocation1] ss:$9 sm:$0xff] %v442
    %v2817 = vld [vmem:[#allocation1] sm:$0xff]
    %2819 = vst [vmem:[#allocation1] ss:$9 sm:$0xff] %v445
    %v2820 = vld [vmem:[#allocation1] sm:$0xff]
    %2822 = vst [vmem:[#allocation1] ss:$9 sm:$0xff] %v448
    %v2823 = vld [vmem:[#allocation1] sm:$0xff]
    %2825 = vst [vmem:[#allocation1] ss:$9 sm:$0xff] %v451
    %v2826 = vld [vmem:[#allocation1] sm:$0xff]
    %2828 = vst [vmem:[#allocation1] ss:$9 sm:$0xff] %v454
    %v2829 = vld [vmem:[#allocation1] sm:$0xff]
    %2831 = vst [vmem:[#allocation1] ss:$9 sm:$0xff] %v457
    %v2832 = vld [vmem:[#allocation1] sm:$0xff]
    %2834 = vst [vmem:[#allocation1] ss:$9 sm:$0xff] %v460
    %v2835 = vld [vmem:[#allocation1] sm:$0xff]
    %2837 = vst [vmem:[#allocation1] ss:$9 sm:$0xff] %v472
    %v2838 = vld [vmem:[#allocation1] sm:$0xff]
    %2840 = vst [vmem:[#allocation1] ss:$9 sm:$0xff] %v475
    %v2841 = vld [vmem:[#allocation1] sm:$0xff]
    %2843 = vst [vmem:[#allocation1] ss:$9 sm:$0xff] %v478
    %v2844 = vld [vmem:[#allocation1] sm:$0xff]
    %2846 = vst [vmem:[#allocation1] ss:$9 sm:$0xff] %v481
    %v2847 = vld [vmem:[#allocation1] sm:$0xff]
    %2849 = vst [vmem:[#allocation1] ss:$9 sm:$0xff] %v484
    %v2850 = vld [vmem:[#allocation1] sm:$0xff]
    %2852 = vst [vmem:[#allocation1] ss:$9 sm:$0xff] %v487
    %v2853 = vld [vmem:[#allocation1] sm:$0xff]
    %2855 = vst [vmem:[#allocation1] ss:$9 sm:$0xff] %v490
    %v2856 = vld [vmem:[#allocation1] sm:$0xff]
    %2858 = vst [vmem:[#allocation1] ss:$9 sm:$0xff] %v493
    %v2859 = vld [vmem:[#allocation1] sm:$0xff]
    %2861 = vst [vmem:[#allocation1] ss:$9 sm:$0xff] %v496
    %v2862 = vld [vmem:[#allocation1] sm:$0xff]
    %2864 = vst [vmem:[#allocation1] ss:$9 sm:$0xff] %v499
    %v2865 = vld [vmem:[#allocation1] sm:$0xff]
    %2867 = vst [vmem:[#allocation1] ss:$9 sm:$0xff] %v502
    %v2868 = vld [vmem:[#allocation1] sm:$0xff]
    %2870 = vst [vmem:[#allocation1] ss:$9 sm:$0xff] %v505
    %v2871 = vld [vmem:[#allocation1] sm:$0xff]
    %2873 = vst [vmem:[#allocation1] ss:$9 sm:$0xff] %v517
    %v2874 = vld [vmem:[#allocation1] sm:$0xff]
    %2876 = vst [vmem:[#allocation1] ss:$9 sm:$0xff] %v520
    %v2877 = vld [vmem:[#allocation1] sm:$0xff]
    %2879 = vst [vmem:[#allocation1] ss:$9 sm:$0xff] %v523
    %v2880 = vld [vmem:[#allocation1] sm:$0xff]
    %2882 = vst [vmem:[#allocation1] ss:$9 sm:$0xff] %v526
    %v2883 = vld [vmem:[#allocation1] sm:$0xff]
    %2885 = vst [vmem:[#allocation1] ss:$9 sm:$0xff] %v529
    %v2886 = vld [vmem:[#allocation1] sm:$0xff]
    %2888 = vst [vmem:[#allocation1] ss:$9 sm:$0xff] %v532
    %v2889 = vld [vmem:[#allocation1] sm:$0xff]
    %2891 = vst [vmem:[#allocation1] ss:$9 sm:$0xff] %v535
    %v2892 = vld [vmem:[#allocation1] sm:$0xff]
    %2894 = vst [vmem:[#allocation1] ss:$9 sm:$0xff] %v538
    %v2895 = vld [vmem:[#allocation1] sm:$0xff]
    %2897 = vst [vmem:[#allocation1] ss:$9 sm:$0xff] %v541
    %v2898 = vld [vmem:[#allocation1] sm:$0xff]
    %2900 = vst [vmem:[#allocation1] ss:$9 sm:$0xff] %v544
    %v2901 = vld [vmem:[#allocation1] sm:$0xff]
    %2903 = vst [vmem:[#allocation1] ss:$9 sm:$0xff] %v547
    %v2904 = vld [vmem:[#allocation1] sm:$0xff]
    %2906 = vst [vmem:[#allocation1] ss:$9 sm:$0xff] %v550
    %v2907 = vld [vmem:[#allocation1] sm:$0xff]
    %2909 = vst [vmem:[#allocation1] ss:$9 sm:$0xff] %v562
    %v2910 = vld [vmem:[#allocation1] sm:$0xff]
    %2912 = vst [vmem:[#allocation1] ss:$9 sm:$0xff] %v565
    %v2913 = vld [vmem:[#allocation1] sm:$0xff]
    %2915 = vst [vmem:[#allocation1] ss:$9 sm:$0xff] %v568
    %v2916 = vld [vmem:[#allocation1] sm:$0xff]
    %2918 = vst [vmem:[#allocation1] ss:$9 sm:$0xff] %v571
    %v2919 = vld [vmem:[#allocation1] sm:$0xff]
    %2921 = vst [vmem:[#allocation1] ss:$9 sm:$0xff] %v574
    %v2922 = vld [vmem:[#allocation1] sm:$0xff]
    %2924 = vst [vmem:[#allocation1] ss:$9 sm:$0xff] %v577
    %v2925 = vld [vmem:[#allocation1] sm:$0xff]
    %2927 = vst [vmem:[#allocation1] ss:$9 sm:$0xff] %v580
    %v2928 = vld [vmem:[#allocation1] sm:$0xff]
    %2930 = vst [vmem:[#allocation1] ss:$9 sm:$0xff] %v583
    %v2931 = vld [vmem:[#allocation1] sm:$0xff]
    %2933 = vst [vmem:[#allocation1] ss:$9 sm:$0xff] %v586
    %v2934 = vld [vmem:[#allocation1] sm:$0xff]
    %2936 = vst [vmem:[#allocation1] ss:$9 sm:$0xff] %v589
    %v2937 = vld [vmem:[#allocation1] sm:$0xff]
    %2939 = vst [vmem:[#allocation1] ss:$9 sm:$0xff] %v592
    %v2940 = vld [vmem:[#allocation1] sm:$0xff]
    %2942 = vst [vmem:[#allocation1] ss:$9 sm:$0xff] %v595
    %v2943 = vld [vmem:[#allocation1] sm:$0xff]
    %2945 = vst [vmem:[#allocation1] ss:$9 sm:$0xff] %v607
    %v2946 = vld [vmem:[#allocation1] sm:$0xff]
    %2948 = vst [vmem:[#allocation1] ss:$9 sm:$0xff] %v610
    %v2949 = vld [vmem:[#allocation1] sm:$0xff]
    %2951 = vst [vmem:[#allocation1] ss:$9 sm:$0xff] %v613
    %v2952 = vld [vmem:[#allocation1] sm:$0xff]
    %2954 = vst [vmem:[#allocation1] ss:$9 sm:$0xff] %v616
    %v2955 = vld [vmem:[#allocation1] sm:$0xff]
    %2957 = vst [vmem:[#allocation1] ss:$9 sm:$0xff] %v619
    %v2958 = vld [vmem:[#allocation1] sm:$0xff]
    %2960 = vst [vmem:[#allocation1] ss:$9 sm:$0xff] %v622
    %v2961 = vld [vmem:[#allocation1] sm:$0xff]
    %2963 = vst [vmem:[#allocation1] ss:$9 sm:$0xff] %v625
    %v2964 = vld [vmem:[#allocation1] sm:$0xff]
    %2966 = vst [vmem:[#allocation1] ss:$9 sm:$0xff] %v628
    %v2967 = vld [vmem:[#allocation1] sm:$0xff]
    %2969 = vst [vmem:[#allocation1] ss:$9 sm:$0xff] %v631
    %v2970 = vld [vmem:[#allocation1] sm:$0xff]
    %2972 = vst [vmem:[#allocation1] ss:$9 sm:$0xff] %v634
    %v2973 = vld [vmem:[#allocation1] sm:$0xff]
    %2975 = vst [vmem:[#allocation1] ss:$9 sm:$0xff] %v637
    %v2976 = vld [vmem:[#allocation1] sm:$0xff]
    %2978 = vst [vmem:[#allocation1] ss:$9 sm:$0xff] %v640
    %v2979 = vld [vmem:[#allocation1] sm:$0xff]
    %2981 = vst [vmem:[#allocation1] ss:$9 sm:$0xff] %v652
    %v2982 = vld [vmem:[#allocation1] sm:$0xff]
    %2984 = vst [vmem:[#allocation1] ss:$9 sm:$0xff] %v655
    %v2985 = vld [vmem:[#allocation1] sm:$0xff]
    %2987 = vst [vmem:[#allocation1] ss:$9 sm:$0xff] %v658
    %v2988 = vld [vmem:[#allocation1] sm:$0xff]
    %2990 = vst [vmem:[#allocation1] ss:$9 sm:$0xff] %v661
    %v2991 = vld [vmem:[#allocation1] sm:$0xff]
    %2993 = vst [vmem:[#allocation1] ss:$9 sm:$0xff] %v664
    %v2994 = vld [vmem:[#allocation1] sm:$0xff]
    %2996 = vst [vmem:[#allocation1] ss:$9 sm:$0xff] %v667
    %v2997 = vld [vmem:[#allocation1] sm:$0xff]
    %2999 = vst [vmem:[#allocation1] ss:$9 sm:$0xff] %v670
    %v3000 = vld [vmem:[#allocation1] sm:$0xff]
    %3002 = vst [vmem:[#allocation1] ss:$9 sm:$0xff] %v673
    %v3003 = vld [vmem:[#allocation1] sm:$0xff]
    %3005 = vst [vmem:[#allocation1] ss:$9 sm:$0xff] %v676
    %v3006 = vld [vmem:[#allocation1] sm:$0xff]
    %3008 = vst [vmem:[#allocation1] ss:$9 sm:$0xff] %v679
    %v3009 = vld [vmem:[#allocation1] sm:$0xff]
    %3011 = vst [vmem:[#allocation1] ss:$9 sm:$0xff] %v682
    %v3012 = vld [vmem:[#allocation1] sm:$0xff]
    %3014 = vst [vmem:[#allocation1] ss:$9 sm:$0xff] %v685
    %v3015 = vld [vmem:[#allocation1] sm:$0xff]
    %3017 = vst [vmem:[#allocation1] ss:$9 sm:$0xff] %v697
    %v3018 = vld [vmem:[#allocation1] sm:$0xff]
    %3020 = vst [vmem:[#allocation1] ss:$9 sm:$0xff] %v700
    %v3021 = vld [vmem:[#allocation1] sm:$0xff]
    %3023 = vst [vmem:[#allocation1] ss:$9 sm:$0xff] %v703
    %v3024 = vld [vmem:[#allocation1] sm:$0xff]
    %3026 = vst [vmem:[#allocation1] ss:$9 sm:$0xff] %v706
    %v3027 = vld [vmem:[#allocation1] sm:$0xff]
    %3029 = vst [vmem:[#allocation1] ss:$9 sm:$0xff] %v709
    %v3030 = vld [vmem:[#allocation1] sm:$0xff]
    %3032 = vst [vmem:[#allocation1] ss:$9 sm:$0xff] %v712
    %v3033 = vld [vmem:[#allocation1] sm:$0xff]
    %3035 = vst [vmem:[#allocation1] ss:$9 sm:$0xff] %v715
    %v3036 = vld [vmem:[#allocation1] sm:$0xff]
    %3038 = vst [vmem:[#allocation1] ss:$9 sm:$0xff] %v718
    %v3039 = vld [vmem:[#allocation1] sm:$0xff]
    %3041 = vst [vmem:[#allocation1] ss:$9 sm:$0xff] %v721
    %v3042 = vld [vmem:[#allocation1] sm:$0xff]
    %3044 = vst [vmem:[#allocation1] ss:$9 sm:$0xff] %v724
    %v3045 = vld [vmem:[#allocation1] sm:$0xff]
    %3047 = vst [vmem:[#allocation1] ss:$9 sm:$0xff] %v727
    %v3048 = vld [vmem:[#allocation1] sm:$0xff]
    %3050 = vst [vmem:[#allocation1] ss:$9 sm:$0xff] %v730
    %v3051 = vld [vmem:[#allocation1] sm:$0xff]
    %3053 = vst [vmem:[#allocation1] ss:$9 sm:$0xff] %v742
    %v3054 = vld [vmem:[#allocation1] sm:$0xff]
    %3056 = vst [vmem:[#allocation1] ss:$9 sm:$0xff] %v745
    %v3057 = vld [vmem:[#allocation1] sm:$0xff]
    %3059 = vst [vmem:[#allocation1] ss:$9 sm:$0xff] %v748
    %v3060 = vld [vmem:[#allocation1] sm:$0xff]
    %3062 = vst [vmem:[#allocation1] ss:$9 sm:$0xff] %v751
    %v3063 = vld [vmem:[#allocation1] sm:$0xff]
    %3065 = vst [vmem:[#allocation1] ss:$9 sm:$0xff] %v754
    %v3066 = vld [vmem:[#allocation1] sm:$0xff]
    %3068 = vst [vmem:[#allocation1] ss:$9 sm:$0xff] %v757
    %v3069 = vld [vmem:[#allocation1] sm:$0xff]
    %3071 = vst [vmem:[#allocation1] ss:$9 sm:$0xff] %v760
    %v3072 = vld [vmem:[#allocation1] sm:$0xff]
    %3074 = vst [vmem:[#allocation1] ss:$9 sm:$0xff] %v763
    %v3075 = vld [vmem:[#allocation1] sm:$0xff]
    %3077 = vst [vmem:[#allocation1] ss:$9 sm:$0xff] %v766
    %v3078 = vld [vmem:[#allocation1] sm:$0xff]
    %3080 = vst [vmem:[#allocation1] ss:$9 sm:$0xff] %v769
    %v3081 = vld [vmem:[#allocation1] sm:$0xff]
    %3083 = vst [vmem:[#allocation1] ss:$9 sm:$0xff] %v772
    %v3084 = vld [vmem:[#allocation1] sm:$0xff]
    %3086 = vst [vmem:[#allocation1] ss:$9 sm:$0xff] %v775
    %v3087 = vld [vmem:[#allocation1] sm:$0xff]
    %v3089 = vunpack.c.l.b16 %v2802
    %v3090 = vunpack.c.l.b16 %v2805
    %v3091 = vunpack.c.l.b16 %v2808
    %v3092 = vunpack.c.l.b16 %v2811
    %v3093 = vunpack.c.l.b16 %v2814
    %v3094 = vunpack.c.l.b16 %v2817
    %v3095 = vunpack.c.l.b16 %v2820
    %v3096 = vunpack.c.l.b16 %v2823
    %v3097 = vunpack.c.l.b16 %v2826
    %v3098 = vunpack.c.l.b16 %v2829
    %v3099 = vunpack.c.l.b16 %v2832
    %v3100 = vunpack.c.l.b16 %v2835
    %v3101 = vunpack.c.l.b16 %v2838
    %v3102 = vunpack.c.l.b16 %v2841
    %v3103 = vunpack.c.l.b16 %v2844
    %v3104 = vunpack.c.l.b16 %v2847
    %v3105 = vunpack.c.l.b16 %v2850
    %v3106 = vunpack.c.l.b16 %v2853
    %v3107 = vunpack.c.l.b16 %v2856
    %v3108 = vunpack.c.l.b16 %v2859
    %v3109 = vunpack.c.l.b16 %v2862
    %v3110 = vunpack.c.l.b16 %v2865
    %v3111 = vunpack.c.l.b16 %v2868
    %v3112 = vunpack.c.l.b16 %v2871
    %v3113 = vunpack.c.l.b16 %v2874
    %v3114 = vunpack.c.l.b16 %v2877
    %v3115 = vunpack.c.l.b16 %v2880
    %v3116 = vunpack.c.l.b16 %v2883
    %v3117 = vunpack.c.l.b16 %v2886
    %v3118 = vunpack.c.l.b16 %v2889
    %v3119 = vunpack.c.l.b16 %v2892
    %v3120 = vunpack.c.l.b16 %v2895
    %v3121 = vunpack.c.l.b16 %v2898
    %v3122 = vunpack.c.l.b16 %v2901
    %v3123 = vunpack.c.l.b16 %v2904
    %v3124 = vunpack.c.l.b16 %v2907
    %v3125 = vunpack.c.l.b16 %v2910
    %v3126 = vunpack.c.l.b16 %v2913
    %v3127 = vunpack.c.l.b16 %v2916
    %v3128 = vunpack.c.l.b16 %v2919
    %v3129 = vunpack.c.l.b16 %v2922
    %v3130 = vunpack.c.l.b16 %v2925
    %v3131 = vunpack.c.l.b16 %v2928
    %v3132 = vunpack.c.l.b16 %v2931
    %v3133 = vunpack.c.l.b16 %v2934
    %v3134 = vunpack.c.l.b16 %v2937
    %v3135 = vunpack.c.l.b16 %v2940
    %v3136 = vunpack.c.l.b16 %v2943
    %v3137 = vunpack.c.l.b16 %v2946
    %v3138 = vunpack.c.l.b16 %v2949
    %v3139 = vunpack.c.l.b16 %v2952
    %v3140 = vunpack.c.l.b16 %v2955
    %v3141 = vunpack.c.l.b16 %v2958
    %v3142 = vunpack.c.l.b16 %v2961
    %v3143 = vunpack.c.l.b16 %v2964
    %v3144 = vunpack.c.l.b16 %v2967
    %v3145 = vunpack.c.l.b16 %v2970
    %v3146 = vunpack.c.l.b16 %v2973
    %v3147 = vunpack.c.l.b16 %v2976
    %v3148 = vunpack.c.l.b16 %v2979
    %v3149 = vunpack.c.l.b16 %v2982
    %v3150 = vunpack.c.l.b16 %v2985
    %v3151 = vunpack.c.l.b16 %v2988
    %v3152 = vunpack.c.l.b16 %v2991
    %v3153 = vunpack.c.l.b16 %v2994
    %v3154 = vunpack.c.l.b16 %v2997
    %v3155 = vunpack.c.l.b16 %v3000
    %v3156 = vunpack.c.l.b16 %v3003
    %v3157 = vunpack.c.l.b16 %v3006
    %v3158 = vunpack.c.l.b16 %v3009
    %v3159 = vunpack.c.l.b16 %v3012
    %v3160 = vunpack.c.l.b16 %v3015
    %v3161 = vunpack.c.l.b16 %v3018
    %v3162 = vunpack.c.l.b16 %v3021
    %v3163 = vunpack.c.l.b16 %v3024
    %v3164 = vunpack.c.l.b16 %v3027
    %v3165 = vunpack.c.l.b16 %v3030
    %v3166 = vunpack.c.l.b16 %v3033
    %v3167 = vunpack.c.l.b16 %v3036
    %v3168 = vunpack.c.l.b16 %v3039
    %v3169 = vunpack.c.l.b16 %v3042
    %v3170 = vunpack.c.l.b16 %v3045
    %v3171 = vunpack.c.l.b16 %v3048
    %v3172 = vunpack.c.l.b16 %v3051
    %v3173 = vunpack.c.l.b16 %v3054
    %v3174 = vunpack.c.l.b16 %v3057
    %v3175 = vunpack.c.l.b16 %v3060
    %v3176 = vunpack.c.l.b16 %v3063
    %v3177 = vunpack.c.l.b16 %v3066
    %v3178 = vunpack.c.l.b16 %v3069
    %v3179 = vunpack.c.l.b16 %v3072
    %v3180 = vunpack.c.l.b16 %v3075
    %v3181 = vunpack.c.l.b16 %v3078
    %v3182 = vunpack.c.l.b16 %v3081
    %v3183 = vunpack.c.l.b16 %v3084
    %v3184 = vunpack.c.l.b16 %v3087
    %v3185 = vrot.slane %v3089, 1
    %v3186 = vsel %vm422, %v3090, %v3185
    %v3187 = vrot.slane %v3091, 7
    %v3188 = vsel %vm426, %v3187, %v3186
    %v3189 = vrot.slane %v3092, 6
    %v3190 = vsel %vm430, %v3189, %v3188
    %v3191 = vrot.slane %v3093, 5
    %v3192 = vsel %vm1254, %v3191, %v3190
    %v3193 = vrot.slane %v3094, 4
    %v3194 = vsel %vm1257, %v3193, %v3192
    %v3195 = vrot.slane %v3095, 3
    %v3196 = vsel %vm1260, %v3195, %v3194
    %v3197 = vrot.slane %v3096, 2
    %v3198 = vsel %vm1263, %v3197, %v3196
    %v3199 = vrot.slane %v3097, 1
    %v3200 = vsel %vm422, %v3098, %v3199
    %v3201 = vrot.slane %v3099, 7
    %v3202 = vsel %vm426, %v3201, %v3200
    %v3203 = vrot.slane %v3100, 6
    %v3204 = vsel %vm430, %v3203, %v3202
    %v3205 = vrot.slane %v3101, 5
    %v3206 = vsel %vm1254, %v3205, %v3204
    %v3207 = vrot.slane %v3102, 4
    %v3208 = vsel %vm1257, %v3207, %v3206
    %v3209 = vrot.slane %v3103, 3
    %v3210 = vsel %vm1260, %v3209, %v3208
    %v3211 = vrot.slane %v3104, 2
    %v3212 = vsel %vm1263, %v3211, %v3210
    %v3213 = vrot.slane %v3105, 1
    %v3214 = vsel %vm422, %v3106, %v3213
    %v3215 = vrot.slane %v3107, 7
    %v3216 = vsel %vm426, %v3215, %v3214
    %v3217 = vrot.slane %v3108, 6
    %v3218 = vsel %vm430, %v3217, %v3216
    %v3219 = vrot.slane %v3109, 5
    %v3220 = vsel %vm1254, %v3219, %v3218
    %v3221 = vrot.slane %v3110, 4
    %v3222 = vsel %vm1257, %v3221, %v3220
    %v3223 = vrot.slane %v3111, 3
    %v3224 = vsel %vm1260, %v3223, %v3222
    %v3225 = vrot.slane %v3112, 2
    %v3226 = vsel %vm1263, %v3225, %v3224
    %v3227 = vrot.slane %v3113, 1
    %v3228 = vsel %vm422, %v3114, %v3227
    %v3229 = vrot.slane %v3115, 7
    %v3230 = vsel %vm426, %v3229, %v3228
    %v3231 = vrot.slane %v3116, 6
    %v3232 = vsel %vm430, %v3231, %v3230
    %v3233 = vrot.slane %v3117, 5
    %v3234 = vsel %vm1254, %v3233, %v3232
    %v3235 = vrot.slane %v3118, 4
    %v3236 = vsel %vm1257, %v3235, %v3234
    %v3237 = vrot.slane %v3119, 3
    %v3238 = vsel %vm1260, %v3237, %v3236
    %v3239 = vrot.slane %v3120, 2
    %v3240 = vsel %vm1263, %v3239, %v3238
    %v3241 = vrot.slane %v3121, 1
    %v3242 = vsel %vm422, %v3122, %v3241
    %v3243 = vrot.slane %v3123, 7
    %v3244 = vsel %vm426, %v3243, %v3242
    %v3245 = vrot.slane %v3124, 6
    %v3246 = vsel %vm430, %v3245, %v3244
    %v3247 = vrot.slane %v3125, 5
    %v3248 = vsel %vm1254, %v3247, %v3246
    %v3249 = vrot.slane %v3126, 4
    %v3250 = vsel %vm1257, %v3249, %v3248
    %v3251 = vrot.slane %v3127, 3
    %v3252 = vsel %vm1260, %v3251, %v3250
    %v3253 = vrot.slane %v3128, 2
    %v3254 = vsel %vm1263, %v3253, %v3252
    %v3255 = vrot.slane %v3129, 1
    %v3256 = vsel %vm422, %v3130, %v3255
    %v3257 = vrot.slane %v3131, 7
    %v3258 = vsel %vm426, %v3257, %v3256
    %v3259 = vrot.slane %v3132, 6
    %v3260 = vsel %vm430, %v3259, %v3258
    %v3261 = vrot.slane %v3133, 5
    %v3262 = vsel %vm1254, %v3261, %v3260
    %v3263 = vrot.slane %v3134, 4
    %v3264 = vsel %vm1257, %v3263, %v3262
    %v3265 = vrot.slane %v3135, 3
    %v3266 = vsel %vm1260, %v3265, %v3264
    %v3267 = vrot.slane %v3136, 2
    %v3268 = vsel %vm1263, %v3267, %v3266
    %v3269 = vrot.slane %v3137, 1
    %v3270 = vsel %vm422, %v3138, %v3269
    %v3271 = vrot.slane %v3139, 7
    %v3272 = vsel %vm426, %v3271, %v3270
    %v3273 = vrot.slane %v3140, 6
    %v3274 = vsel %vm430, %v3273, %v3272
    %v3275 = vrot.slane %v3141, 5
    %v3276 = vsel %vm1254, %v3275, %v3274
    %v3277 = vrot.slane %v3142, 4
    %v3278 = vsel %vm1257, %v3277, %v3276
    %v3279 = vrot.slane %v3143, 3
    %v3280 = vsel %vm1260, %v3279, %v3278
    %v3281 = vrot.slane %v3144, 2
    %v3282 = vsel %vm1263, %v3281, %v3280
    %v3283 = vrot.slane %v3145, 1
    %v3284 = vsel %vm422, %v3146, %v3283
    %v3285 = vrot.slane %v3147, 7
    %v3286 = vsel %vm426, %v3285, %v3284
    %v3287 = vrot.slane %v3148, 6
    %v3288 = vsel %vm430, %v3287, %v3286
    %v3289 = vrot.slane %v3149, 5
    %v3290 = vsel %vm1254, %v3289, %v3288
    %v3291 = vrot.slane %v3150, 4
    %v3292 = vsel %vm1257, %v3291, %v3290
    %v3293 = vrot.slane %v3151, 3
    %v3294 = vsel %vm1260, %v3293, %v3292
    %v3295 = vrot.slane %v3152, 2
    %v3296 = vsel %vm1263, %v3295, %v3294
    %v3297 = vrot.slane %v3153, 1
    %v3298 = vsel %vm422, %v3154, %v3297
    %v3299 = vrot.slane %v3155, 7
    %v3300 = vsel %vm426, %v3299, %v3298
    %v3301 = vrot.slane %v3156, 6
    %v3302 = vsel %vm430, %v3301, %v3300
    %v3303 = vrot.slane %v3157, 5
    %v3304 = vsel %vm1254, %v3303, %v3302
    %v3305 = vrot.slane %v3158, 4
    %v3306 = vsel %vm1257, %v3305, %v3304
    %v3307 = vrot.slane %v3159, 3
    %v3308 = vsel %vm1260, %v3307, %v3306
    %v3309 = vrot.slane %v3160, 2
    %v3310 = vsel %vm1263, %v3309, %v3308
    %v3311 = vrot.slane %v3161, 1
    %v3312 = vsel %vm422, %v3162, %v3311
    %v3313 = vrot.slane %v3163, 7
    %v3314 = vsel %vm426, %v3313, %v3312
    %v3315 = vrot.slane %v3164, 6
    %v3316 = vsel %vm430, %v3315, %v3314
    %v3317 = vrot.slane %v3165, 5
    %v3318 = vsel %vm1254, %v3317, %v3316
    %v3319 = vrot.slane %v3166, 4
    %v3320 = vsel %vm1257, %v3319, %v3318
    %v3321 = vrot.slane %v3167, 3
    %v3322 = vsel %vm1260, %v3321, %v3320
    %v3323 = vrot.slane %v3168, 2
    %v3324 = vsel %vm1263, %v3323, %v3322
    %v3325 = vrot.slane %v3169, 1
    %v3326 = vsel %vm422, %v3170, %v3325
    %v3327 = vrot.slane %v3171, 7
    %v3328 = vsel %vm426, %v3327, %v3326
    %v3329 = vrot.slane %v3172, 6
    %v3330 = vsel %vm430, %v3329, %v3328
    %v3331 = vrot.slane %v3173, 5
    %v3332 = vsel %vm1254, %v3331, %v3330
    %v3333 = vrot.slane %v3174, 4
    %v3334 = vsel %vm1257, %v3333, %v3332
    %v3335 = vrot.slane %v3175, 3
    %v3336 = vsel %vm1260, %v3335, %v3334
    %v3337 = vrot.slane %v3176, 2
    %v3338 = vsel %vm1263, %v3337, %v3336
    %v3339 = vrot.slane %v3177, 1
    %v3340 = vsel %vm422, %v3178, %v3339
    %v3341 = vrot.slane %v3179, 7
    %v3342 = vsel %vm426, %v3341, %v3340
    %v3343 = vrot.slane %v3180, 6
    %v3344 = vsel %vm430, %v3343, %v3342
    %v3345 = vrot.slane %v3181, 5
    %v3346 = vsel %vm1254, %v3345, %v3344
    %v3347 = vrot.slane %v3182, 4
    %v3348 = vsel %vm1257, %v3347, %v3346
    %v3349 = vrot.slane %v3183, 3
    %v3350 = vsel %vm1260, %v3349, %v3348
    %v3351 = vrot.slane %v3184, 2
    %v3352 = vsel %vm1263, %v3351, %v3350
    %v3353 = vpack.c.b16 %v3212, %v3198
    %v3354 = vpack.c.b16 %v3240, %v3226
    %v3355 = vpack.c.b16 %v3268, %v3254
    %v3356 = vpack.c.b16 %v3296, %v3282
    %v3357 = vpack.c.b16 %v3324, %v3310
    %v3358 = vpack.c.b16 %v3352, %v3338
    %v3363 = vunpack.c.l.b16 %v2797
    %v3364 = vunpack.c.l.b16 %v2798
    %v3365 = vunpack.c.l.b16 %v2799
    %v3366 = vunpack.c.l.b16 %v2800
    %v3367 = vpack.c.b16 %v3364, %v3363
    %v3368 = vpack.c.b16 %v3366, %v3365
    %vm3369 = vcmask 1046528
    %v3370 = vrot.slane %v3367, 1
    %v3371 = vrot.slane %v3368, 1
    %v3372 = vsel %vm3369, %v3370, %v3371
    %v3375 = vsel %vm1445, %v3353, 0
    %v3378 = vsel %vm1445, %v3354, 0
    %v3381 = vsel %vm1445, %v3355, 0
    %v3384 = vsel %vm1445, %v3356, 0
    %v3387 = vsel %vm1445, %v3357, 0
    %v3390 = vsel %vm1445, %v3358, 0
    %v3393 = vsel %vm1464, %v3371, 0
    %3395 = vmatpush.bf16.msra.mxu0 0
    %3396 = vmatpush.bf16.msra.mxu0 0
    %3397 = vmatpush.bf16.msra.mxu0 0
    %3398 = vmatpush.bf16.msra.mxu0 0
    %3399 = vmatpush.bf16.msra.mxu0 0
    %3400 = vmatpush.bf16.msra.mxu0 0
    %3401 = vmatpush.bf16.msra.mxu0 %v3393
    %3402 = vmatpush.bf16.msra.mxu0 %v3372
    %3403 = vmatmul.bf16.gmra.mxu0 %v3375
    %v3404 = vpop.f32.mrf.mxu0
    %v3405 = vadd.f32 0.0, %v3404
    %v3406 = vpop.f32.mrf.mxu0
    %v3407 = vadd.f32 0.0, %v3406
    %3408 = vmatmul.bf16.gmra.mxu0 %v3378
    %v3409 = vpop.f32.mrf.mxu0
    %v3410 = vadd.f32 0.0, %v3409
    %v3411 = vpop.f32.mrf.mxu0
    %v3412 = vadd.f32 0.0, %v3411
    %3413 = vmatmul.bf16.gmra.mxu0 %v3381
    %v3414 = vpop.f32.mrf.mxu0
    %v3415 = vadd.f32 0.0, %v3414
    %v3416 = vpop.f32.mrf.mxu0
    %v3417 = vadd.f32 0.0, %v3416
    %3418 = vmatmul.bf16.gmra.mxu0 %v3384
    %v3419 = vpop.f32.mrf.mxu0
    %v3420 = vadd.f32 0.0, %v3419
    %v3421 = vpop.f32.mrf.mxu0
    %v3422 = vadd.f32 0.0, %v3421
    %3423 = vmatmul.bf16.gmra.mxu0 %v3387
    %v3424 = vpop.f32.mrf.mxu0
    %v3425 = vadd.f32 0.0, %v3424
    %v3426 = vpop.f32.mrf.mxu0
    %v3427 = vadd.f32 0.0, %v3426
    %3428 = vmatmul.bf16.gmra.mxu0 %v3390
    %v3429 = vpop.f32.mrf.mxu0
    %v3430 = vadd.f32 0.0, %v3429
    %v3431 = vpop.f32.mrf.mxu0
    %v3432 = vadd.f32 0.0, %v3431
    %3433 = vdwg.mxu0
    %v3434 = vadd.f32 %v2785, %v3405
    %v3435 = vadd.f32 %v2786, %v3407
    %v3436 = vadd.f32 %v2787, %v3410
    %v3437 = vadd.f32 %v2788, %v3412
    %v3438 = vadd.f32 %v2789, %v3415
    %v3439 = vadd.f32 %v2790, %v3417
    %v3440 = vadd.f32 %v2791, %v3420
    %v3441 = vadd.f32 %v2792, %v3422
    %v3442 = vadd.f32 %v2793, %v3425
    %v3443 = vadd.f32 %v2794, %v3427
    %v3444 = vadd.f32 %v2795, %v3430
    %v3445 = vadd.f32 %v2796, %v3432
    %v3446 = vld [vmem:[%s4 + $0x3c] sm:$0xf]
    %v3447 = vld [vmem:[%s4 + $0x40] sm:$0xf]
    %v3448 = vld [vmem:[%s4 + $0x44] sm:$0xf]
    %v3449 = vld [vmem:[%s4 + $0x48] sm:$0x7]
    %3450 = vst [vmem:[#allocation1] ss:$9 sm:$0xff] %v429
    %v3451 = vld [vmem:[#allocation1] sm:$0xff]
    %3453 = vst [vmem:[#allocation1] ss:$9 sm:$0xff] %v433
    %v3454 = vld [vmem:[#allocation1] sm:$0xff]
    %3456 = vst [vmem:[#allocation1] ss:$9 sm:$0xff] %v436
    %v3457 = vld [vmem:[#allocation1] sm:$0xff]
    %3459 = vst [vmem:[#allocation1] ss:$9 sm:$0xff] %v439
    %v3460 = vld [vmem:[#allocation1] sm:$0xff]
    %3462 = vst [vmem:[#allocation1] ss:$9 sm:$0xff] %v442
    %v3463 = vld [vmem:[#allocation1] sm:$0xff]
    %3465 = vst [vmem:[#allocation1] ss:$9 sm:$0xff] %v445
    %v3466 = vld [vmem:[#allocation1] sm:$0xff]
    %3468 = vst [vmem:[#allocation1] ss:$9 sm:$0xff] %v448
    %v3469 = vld [vmem:[#allocation1] sm:$0xff]
    %3471 = vst [vmem:[#allocation1] ss:$9 sm:$0xff] %v451
    %v3472 = vld [vmem:[#allocation1] sm:$0xff]
    %3474 = vst [vmem:[#allocation1] ss:$9 sm:$0xff] %v454
    %v3475 = vld [vmem:[#allocation1] sm:$0xff]
    %3477 = vst [vmem:[#allocation1] ss:$9 sm:$0xff] %v457
    %v3478 = vld [vmem:[#allocation1] sm:$0xff]
    %3480 = vst [vmem:[#allocation1] ss:$9 sm:$0xff] %v460
    %v3481 = vld [vmem:[#allocation1] sm:$0xff]
    %3484 = vst [vmem:[#allocation1] ss:$9 sm:$0xff] %v463
    %v3485 = vld [vmem:[#allocation1] sm:$0xff]
    %3487 = vst [vmem:[#allocation1] ss:$9 sm:$0xff] %v475
    %v3488 = vld [vmem:[#allocation1] sm:$0xff]
    %3490 = vst [vmem:[#allocation1] ss:$9 sm:$0xff] %v478
    %v3491 = vld [vmem:[#allocation1] sm:$0xff]
    %3493 = vst [vmem:[#allocation1] ss:$9 sm:$0xff] %v481
    %v3494 = vld [vmem:[#allocation1] sm:$0xff]
    %3496 = vst [vmem:[#allocation1] ss:$9 sm:$0xff] %v484
    %v3497 = vld [vmem:[#allocation1] sm:$0xff]
    %3499 = vst [vmem:[#allocation1] ss:$9 sm:$0xff] %v487
    %v3500 = vld [vmem:[#allocation1] sm:$0xff]
    %3502 = vst [vmem:[#allocation1] ss:$9 sm:$0xff] %v490
    %v3503 = vld [vmem:[#allocation1] sm:$0xff]
    %3505 = vst [vmem:[#allocation1] ss:$9 sm:$0xff] %v493
    %v3506 = vld [vmem:[#allocation1] sm:$0xff]
    %3508 = vst [vmem:[#allocation1] ss:$9 sm:$0xff] %v496
    %v3509 = vld [vmem:[#allocation1] sm:$0xff]
    %3511 = vst [vmem:[#allocation1] ss:$9 sm:$0xff] %v499
    %v3512 = vld [vmem:[#allocation1] sm:$0xff]
    %3514 = vst [vmem:[#allocation1] ss:$9 sm:$0xff] %v502
    %v3515 = vld [vmem:[#allocation1] sm:$0xff]
    %3517 = vst [vmem:[#allocation1] ss:$9 sm:$0xff] %v505
    %v3518 = vld [vmem:[#allocation1] sm:$0xff]
    %3520 = vst [vmem:[#allocation1] ss:$9 sm:$0xff] %v508
    %v3521 = vld [vmem:[#allocation1] sm:$0xff]
    %3523 = vst [vmem:[#allocation1] ss:$9 sm:$0xff] %v520
    %v3524 = vld [vmem:[#allocation1] sm:$0xff]
    %3526 = vst [vmem:[#allocation1] ss:$9 sm:$0xff] %v523
    %v3527 = vld [vmem:[#allocation1] sm:$0xff]
    %3529 = vst [vmem:[#allocation1] ss:$9 sm:$0xff] %v526
    %v3530 = vld [vmem:[#allocation1] sm:$0xff]
    %3532 = vst [vmem:[#allocation1] ss:$9 sm:$0xff] %v529
    %v3533 = vld [vmem:[#allocation1] sm:$0xff]
    %3535 = vst [vmem:[#allocation1] ss:$9 sm:$0xff] %v532
    %v3536 = vld [vmem:[#allocation1] sm:$0xff]
    %3538 = vst [vmem:[#allocation1] ss:$9 sm:$0xff] %v535
    %v3539 = vld [vmem:[#allocation1] sm:$0xff]
    %3541 = vst [vmem:[#allocation1] ss:$9 sm:$0xff] %v538
    %v3542 = vld [vmem:[#allocation1] sm:$0xff]
    %3544 = vst [vmem:[#allocation1] ss:$9 sm:$0xff] %v541
    %v3545 = vld [vmem:[#allocation1] sm:$0xff]
    %3547 = vst [vmem:[#allocation1] ss:$9 sm:$0xff] %v544
    %v3548 = vld [vmem:[#allocation1] sm:$0xff]
    %3550 = vst [vmem:[#allocation1] ss:$9 sm:$0xff] %v547
    %v3551 = vld [vmem:[#allocation1] sm:$0xff]
    %3553 = vst [vmem:[#allocation1] ss:$9 sm:$0xff] %v550
    %v3554 = vld [vmem:[#allocation1] sm:$0xff]
    %3557 = vst [vmem:[#allocation1] ss:$9 sm:$0xff] %v553
    %v3558 = vld [vmem:[#allocation1] sm:$0xff]
    %3560 = vst [vmem:[#allocation1] ss:$9 sm:$0xff] %v565
    %v3561 = vld [vmem:[#allocation1] sm:$0xff]
    %3563 = vst [vmem:[#allocation1] ss:$9 sm:$0xff] %v568
    %v3564 = vld [vmem:[#allocation1] sm:$0xff]
    %3566 = vst [vmem:[#allocation1] ss:$9 sm:$0xff] %v571
    %v3567 = vld [vmem:[#allocation1] sm:$0xff]
    %3569 = vst [vmem:[#allocation1] ss:$9 sm:$0xff] %v574
    %v3570 = vld [vmem:[#allocation1] sm:$0xff]
    %3572 = vst [vmem:[#allocation1] ss:$9 sm:$0xff] %v577
    %v3573 = vld [vmem:[#allocation1] sm:$0xff]
    %3575 = vst [vmem:[#allocation1] ss:$9 sm:$0xff] %v580
    %v3576 = vld [vmem:[#allocation1] sm:$0xff]
    %3578 = vst [vmem:[#allocation1] ss:$9 sm:$0xff] %v583
    %v3579 = vld [vmem:[#allocation1] sm:$0xff]
    %3581 = vst [vmem:[#allocation1] ss:$9 sm:$0xff] %v586
    %v3582 = vld [vmem:[#allocation1] sm:$0xff]
    %3584 = vst [vmem:[#allocation1] ss:$9 sm:$0xff] %v589
    %v3585 = vld [vmem:[#allocation1] sm:$0xff]
    %3587 = vst [vmem:[#allocation1] ss:$9 sm:$0xff] %v592
    %v3588 = vld [vmem:[#allocation1] sm:$0xff]
    %3590 = vst [vmem:[#allocation1] ss:$9 sm:$0xff] %v595
    %v3591 = vld [vmem:[#allocation1] sm:$0xff]
    %3594 = vst [vmem:[#allocation1] ss:$9 sm:$0xff] %v598
    %v3595 = vld [vmem:[#allocation1] sm:$0xff]
    %3597 = vst [vmem:[#allocation1] ss:$9 sm:$0xff] %v610
    %v3598 = vld [vmem:[#allocation1] sm:$0xff]
    %3600 = vst [vmem:[#allocation1] ss:$9 sm:$0xff] %v613
    %v3601 = vld [vmem:[#allocation1] sm:$0xff]
    %3603 = vst [vmem:[#allocation1] ss:$9 sm:$0xff] %v616
    %v3604 = vld [vmem:[#allocation1] sm:$0xff]
    %3606 = vst [vmem:[#allocation1] ss:$9 sm:$0xff] %v619
    %v3607 = vld [vmem:[#allocation1] sm:$0xff]
    %3609 = vst [vmem:[#allocation1] ss:$9 sm:$0xff] %v622
    %v3610 = vld [vmem:[#allocation1] sm:$0xff]
    %3612 = vst [vmem:[#allocation1] ss:$9 sm:$0xff] %v625
    %v3613 = vld [vmem:[#allocation1] sm:$0xff]
    %3615 = vst [vmem:[#allocation1] ss:$9 sm:$0xff] %v628
    %v3616 = vld [vmem:[#allocation1] sm:$0xff]
    %3618 = vst [vmem:[#allocation1] ss:$9 sm:$0xff] %v631
    %v3619 = vld [vmem:[#allocation1] sm:$0xff]
    %3621 = vst [vmem:[#allocation1] ss:$9 sm:$0xff] %v634
    %v3622 = vld [vmem:[#allocation1] sm:$0xff]
    %3624 = vst [vmem:[#allocation1] ss:$9 sm:$0xff] %v637
    %v3625 = vld [vmem:[#allocation1] sm:$0xff]
    %3627 = vst [vmem:[#allocation1] ss:$9 sm:$0xff] %v640
    %v3628 = vld [vmem:[#allocation1] sm:$0xff]
    %3631 = vst [vmem:[#allocation1] ss:$9 sm:$0xff] %v643
    %v3632 = vld [vmem:[#allocation1] sm:$0xff]
    %3634 = vst [vmem:[#allocation1] ss:$9 sm:$0xff] %v655
    %v3635 = vld [vmem:[#allocation1] sm:$0xff]
    %3637 = vst [vmem:[#allocation1] ss:$9 sm:$0xff] %v658
    %v3638 = vld [vmem:[#allocation1] sm:$0xff]
    %3640 = vst [vmem:[#allocation1] ss:$9 sm:$0xff] %v661
    %v3641 = vld [vmem:[#allocation1] sm:$0xff]
    %3643 = vst [vmem:[#allocation1] ss:$9 sm:$0xff] %v664
    %v3644 = vld [vmem:[#allocation1] sm:$0xff]
    %3646 = vst [vmem:[#allocation1] ss:$9 sm:$0xff] %v667
    %v3647 = vld [vmem:[#allocation1] sm:$0xff]
    %3649 = vst [vmem:[#allocation1] ss:$9 sm:$0xff] %v670
    %v3650 = vld [vmem:[#allocation1] sm:$0xff]
    %3652 = vst [vmem:[#allocation1] ss:$9 sm:$0xff] %v673
    %v3653 = vld [vmem:[#allocation1] sm:$0xff]
    %3655 = vst [vmem:[#allocation1] ss:$9 sm:$0xff] %v676
    %v3656 = vld [vmem:[#allocation1] sm:$0xff]
    %3658 = vst [vmem:[#allocation1] ss:$9 sm:$0xff] %v679
    %v3659 = vld [vmem:[#allocation1] sm:$0xff]
    %3661 = vst [vmem:[#allocation1] ss:$9 sm:$0xff] %v682
    %v3662 = vld [vmem:[#allocation1] sm:$0xff]
    %3664 = vst [vmem:[#allocation1] ss:$9 sm:$0xff] %v685
    %v3665 = vld [vmem:[#allocation1] sm:$0xff]
    %3667 = vst [vmem:[#allocation1] ss:$9 sm:$0xff] %v688
    %v3668 = vld [vmem:[#allocation1] sm:$0xff]
    %3670 = vst [vmem:[#allocation1] ss:$9 sm:$0xff] %v700
    %v3671 = vld [vmem:[#allocation1] sm:$0xff]
    %3673 = vst [vmem:[#allocation1] ss:$9 sm:$0xff] %v703
    %v3674 = vld [vmem:[#allocation1] sm:$0xff]
    %3676 = vst [vmem:[#allocation1] ss:$9 sm:$0xff] %v706
    %v3677 = vld [vmem:[#allocation1] sm:$0xff]
    %3679 = vst [vmem:[#allocation1] ss:$9 sm:$0xff] %v709
    %v3680 = vld [vmem:[#allocation1] sm:$0xff]
    %3682 = vst [vmem:[#allocation1] ss:$9 sm:$0xff] %v712
    %v3683 = vld [vmem:[#allocation1] sm:$0xff]
    %3685 = vst [vmem:[#allocation1] ss:$9 sm:$0xff] %v715
    %v3686 = vld [vmem:[#allocation1] sm:$0xff]
    %3688 = vst [vmem:[#allocation1] ss:$9 sm:$0xff] %v718
    %v3689 = vld [vmem:[#allocation1] sm:$0xff]
    %3691 = vst [vmem:[#allocation1] ss:$9 sm:$0xff] %v721
    %v3692 = vld [vmem:[#allocation1] sm:$0xff]
    %3694 = vst [vmem:[#allocation1] ss:$9 sm:$0xff] %v724
    %v3695 = vld [vmem:[#allocation1] sm:$0xff]
    %3697 = vst [vmem:[#allocation1] ss:$9 sm:$0xff] %v727
    %v3698 = vld [vmem:[#allocation1] sm:$0xff]
    %3700 = vst [vmem:[#allocation1] ss:$9 sm:$0xff] %v730
    %v3701 = vld [vmem:[#allocation1] sm:$0xff]
    %3704 = vst [vmem:[#allocation1] ss:$9 sm:$0xff] %v733
    %v3705 = vld [vmem:[#allocation1] sm:$0xff]
    %3707 = vst [vmem:[#allocation1] ss:$9 sm:$0xff] %v745
    %v3708 = vld [vmem:[#allocation1] sm:$0xff]
    %3710 = vst [vmem:[#allocation1] ss:$9 sm:$0xff] %v748
    %v3711 = vld [vmem:[#allocation1] sm:$0xff]
    %3713 = vst [vmem:[#allocation1] ss:$9 sm:$0xff] %v751
    %v3714 = vld [vmem:[#allocation1] sm:$0xff]
    %3716 = vst [vmem:[#allocation1] ss:$9 sm:$0xff] %v754
    %v3717 = vld [vmem:[#allocation1] sm:$0xff]
    %3719 = vst [vmem:[#allocation1] ss:$9 sm:$0xff] %v757
    %v3720 = vld [vmem:[#allocation1] sm:$0xff]
    %3722 = vst [vmem:[#allocation1] ss:$9 sm:$0xff] %v760
    %v3723 = vld [vmem:[#allocation1] sm:$0xff]
    %3725 = vst [vmem:[#allocation1] ss:$9 sm:$0xff] %v763
    %v3726 = vld [vmem:[#allocation1] sm:$0xff]
    %3728 = vst [vmem:[#allocation1] ss:$9 sm:$0xff] %v766
    %v3729 = vld [vmem:[#allocation1] sm:$0xff]
    %3731 = vst [vmem:[#allocation1] ss:$9 sm:$0xff] %v769
    %v3732 = vld [vmem:[#allocation1] sm:$0xff]
    %3734 = vst [vmem:[#allocation1] ss:$9 sm:$0xff] %v772
    %v3735 = vld [vmem:[#allocation1] sm:$0xff]
    %3737 = vst [vmem:[#allocation1] ss:$9 sm:$0xff] %v775
    %v3738 = vld [vmem:[#allocation1] sm:$0xff]
    %3741 = vst [vmem:[#allocation1] ss:$9 sm:$0xff] %v778
    %v3742 = vld [vmem:[#allocation1] sm:$0xff]
    %v3744 = vunpack.c.l.b16 %v3451
    %v3745 = vunpack.c.l.b16 %v3454
    %v3746 = vunpack.c.l.b16 %v3457
    %v3747 = vunpack.c.l.b16 %v3460
    %v3748 = vunpack.c.l.b16 %v3463
    %v3749 = vunpack.c.l.b16 %v3466
    %v3750 = vunpack.c.l.b16 %v3469
    %v3751 = vunpack.c.l.b16 %v3472
    %v3752 = vunpack.c.l.b16 %v3475
    %v3753 = vunpack.c.l.b16 %v3478
    %v3754 = vunpack.c.l.b16 %v3481
    %v3755 = vunpack.c.l.b16 %v3485
    %v3756 = vunpack.c.l.b16 %v3488
    %v3757 = vunpack.c.l.b16 %v3491
    %v3758 = vunpack.c.l.b16 %v3494
    %v3759 = vunpack.c.l.b16 %v3497
    %v3760 = vunpack.c.l.b16 %v3500
    %v3761 = vunpack.c.l.b16 %v3503
    %v3762 = vunpack.c.l.b16 %v3506
    %v3763 = vunpack.c.l.b16 %v3509
    %v3764 = vunpack.c.l.b16 %v3512
    %v3765 = vunpack.c.l.b16 %v3515
    %v3766 = vunpack.c.l.b16 %v3518
    %v3767 = vunpack.c.l.b16 %v3521
    %v3768 = vunpack.c.l.b16 %v3524
    %v3769 = vunpack.c.l.b16 %v3527
    %v3770 = vunpack.c.l.b16 %v3530
    %v3771 = vunpack.c.l.b16 %v3533
    %v3772 = vunpack.c.l.b16 %v3536
    %v3773 = vunpack.c.l.b16 %v3539
    %v3774 = vunpack.c.l.b16 %v3542
    %v3775 = vunpack.c.l.b16 %v3545
    %v3776 = vunpack.c.l.b16 %v3548
    %v3777 = vunpack.c.l.b16 %v3551
    %v3778 = vunpack.c.l.b16 %v3554
    %v3779 = vunpack.c.l.b16 %v3558
    %v3780 = vunpack.c.l.b16 %v3561
    %v3781 = vunpack.c.l.b16 %v3564
    %v3782 = vunpack.c.l.b16 %v3567
    %v3783 = vunpack.c.l.b16 %v3570
    %v3784 = vunpack.c.l.b16 %v3573
    %v3785 = vunpack.c.l.b16 %v3576
    %v3786 = vunpack.c.l.b16 %v3579
    %v3787 = vunpack.c.l.b16 %v3582
    %v3788 = vunpack.c.l.b16 %v3585
    %v3789 = vunpack.c.l.b16 %v3588
    %v3790 = vunpack.c.l.b16 %v3591
    %v3791 = vunpack.c.l.b16 %v3595
    %v3792 = vunpack.c.l.b16 %v3598
    %v3793 = vunpack.c.l.b16 %v3601
    %v3794 = vunpack.c.l.b16 %v3604
    %v3795 = vunpack.c.l.b16 %v3607
    %v3796 = vunpack.c.l.b16 %v3610
    %v3797 = vunpack.c.l.b16 %v3613
    %v3798 = vunpack.c.l.b16 %v3616
    %v3799 = vunpack.c.l.b16 %v3619
    %v3800 = vunpack.c.l.b16 %v3622
    %v3801 = vunpack.c.l.b16 %v3625
    %v3802 = vunpack.c.l.b16 %v3628
    %v3803 = vunpack.c.l.b16 %v3632
    %v3804 = vunpack.c.l.b16 %v3635
    %v3805 = vunpack.c.l.b16 %v3638
    %v3806 = vunpack.c.l.b16 %v3641
    %v3807 = vunpack.c.l.b16 %v3644
    %v3808 = vunpack.c.l.b16 %v3647
    %v3809 = vunpack.c.l.b16 %v3650
    %v3810 = vunpack.c.l.b16 %v3653
    %v3811 = vunpack.c.l.b16 %v3656
    %v3812 = vunpack.c.l.b16 %v3659
    %v3813 = vunpack.c.l.b16 %v3662
    %v3814 = vunpack.c.l.b16 %v3665
    %v3815 = vunpack.c.l.b16 %v3668
    %v3816 = vunpack.c.l.b16 %v3671
    %v3817 = vunpack.c.l.b16 %v3674
    %v3818 = vunpack.c.l.b16 %v3677
    %v3819 = vunpack.c.l.b16 %v3680
    %v3820 = vunpack.c.l.b16 %v3683
    %v3821 = vunpack.c.l.b16 %v3686
    %v3822 = vunpack.c.l.b16 %v3689
    %v3823 = vunpack.c.l.b16 %v3692
    %v3824 = vunpack.c.l.b16 %v3695
    %v3825 = vunpack.c.l.b16 %v3698
    %v3826 = vunpack.c.l.b16 %v3701
    %v3827 = vunpack.c.l.b16 %v3705
    %v3828 = vunpack.c.l.b16 %v3708
    %v3829 = vunpack.c.l.b16 %v3711
    %v3830 = vunpack.c.l.b16 %v3714
    %v3831 = vunpack.c.l.b16 %v3717
    %v3832 = vunpack.c.l.b16 %v3720
    %v3833 = vunpack.c.l.b16 %v3723
    %v3834 = vunpack.c.l.b16 %v3726
    %v3835 = vunpack.c.l.b16 %v3729
    %v3836 = vunpack.c.l.b16 %v3732
    %v3837 = vunpack.c.l.b16 %v3735
    %v3838 = vunpack.c.l.b16 %v3738
    %v3839 = vunpack.c.l.b16 %v3742
    %v3840 = vrot.slane %v3745, 7
    %v3841 = vsel %vm422, %v3840, %v3744
    %v3842 = vrot.slane %v3746, 6
    %v3843 = vsel %vm426, %v3842, %v3841
    %v3844 = vrot.slane %v3747, 5
    %v3845 = vsel %vm430, %v3844, %v3843
    %v3846 = vrot.slane %v3748, 4
    %v3847 = vsel %vm1254, %v3846, %v3845
    %v3848 = vrot.slane %v3749, 3
    %v3849 = vsel %vm1257, %v3848, %v3847
    %v3850 = vrot.slane %v3750, 2
    %v3851 = vsel %vm1260, %v3850, %v3849
    %v3852 = vrot.slane %v3751, 1
    %v3853 = vsel %vm1263, %v3852, %v3851
    %v3854 = vrot.slane %v3753, 7
    %v3855 = vsel %vm422, %v3854, %v3752
    %v3856 = vrot.slane %v3754, 6
    %v3857 = vsel %vm426, %v3856, %v3855
    %v3858 = vrot.slane %v3755, 5
    %v3859 = vsel %vm430, %v3858, %v3857
    %v3860 = vrot.slane %v3756, 4
    %v3861 = vsel %vm1254, %v3860, %v3859
    %v3862 = vrot.slane %v3757, 3
    %v3863 = vsel %vm1257, %v3862, %v3861
    %v3864 = vrot.slane %v3758, 2
    %v3865 = vsel %vm1260, %v3864, %v3863
    %v3866 = vrot.slane %v3759, 1
    %v3867 = vsel %vm1263, %v3866, %v3865
    %v3868 = vrot.slane %v3761, 7
    %v3869 = vsel %vm422, %v3868, %v3760
    %v3870 = vrot.slane %v3762, 6
    %v3871 = vsel %vm426, %v3870, %v3869
    %v3872 = vrot.slane %v3763, 5
    %v3873 = vsel %vm430, %v3872, %v3871
    %v3874 = vrot.slane %v3764, 4
    %v3875 = vsel %vm1254, %v3874, %v3873
    %v3876 = vrot.slane %v3765, 3
    %v3877 = vsel %vm1257, %v3876, %v3875
    %v3878 = vrot.slane %v3766, 2
    %v3879 = vsel %vm1260, %v3878, %v3877
    %v3880 = vrot.slane %v3767, 1
    %v3881 = vsel %vm1263, %v3880, %v3879
    %v3882 = vrot.slane %v3769, 7
    %v3883 = vsel %vm422, %v3882, %v3768
    %v3884 = vrot.slane %v3770, 6
    %v3885 = vsel %vm426, %v3884, %v3883
    %v3886 = vrot.slane %v3771, 5
    %v3887 = vsel %vm430, %v3886, %v3885
    %v3888 = vrot.slane %v3772, 4
    %v3889 = vsel %vm1254, %v3888, %v3887
    %v3890 = vrot.slane %v3773, 3
    %v3891 = vsel %vm1257, %v3890, %v3889
    %v3892 = vrot.slane %v3774, 2
    %v3893 = vsel %vm1260, %v3892, %v3891
    %v3894 = vrot.slane %v3775, 1
    %v3895 = vsel %vm1263, %v3894, %v3893
    %v3896 = vrot.slane %v3777, 7
    %v3897 = vsel %vm422, %v3896, %v3776
    %v3898 = vrot.slane %v3778, 6
    %v3899 = vsel %vm426, %v3898, %v3897
    %v3900 = vrot.slane %v3779, 5
    %v3901 = vsel %vm430, %v3900, %v3899
    %v3902 = vrot.slane %v3780, 4
    %v3903 = vsel %vm1254, %v3902, %v3901
    %v3904 = vrot.slane %v3781, 3
    %v3905 = vsel %vm1257, %v3904, %v3903
    %v3906 = vrot.slane %v3782, 2
    %v3907 = vsel %vm1260, %v3906, %v3905
    %v3908 = vrot.slane %v3783, 1
    %v3909 = vsel %vm1263, %v3908, %v3907
    %v3910 = vrot.slane %v3785, 7
    %v3911 = vsel %vm422, %v3910, %v3784
    %v3912 = vrot.slane %v3786, 6
    %v3913 = vsel %vm426, %v3912, %v3911
    %v3914 = vrot.slane %v3787, 5
    %v3915 = vsel %vm430, %v3914, %v3913
    %v3916 = vrot.slane %v3788, 4
    %v3917 = vsel %vm1254, %v3916, %v3915
    %v3918 = vrot.slane %v3789, 3
    %v3919 = vsel %vm1257, %v3918, %v3917
    %v3920 = vrot.slane %v3790, 2
    %v3921 = vsel %vm1260, %v3920, %v3919
    %v3922 = vrot.slane %v3791, 1
    %v3923 = vsel %vm1263, %v3922, %v3921
    %v3924 = vrot.slane %v3793, 7
    %v3925 = vsel %vm422, %v3924, %v3792
    %v3926 = vrot.slane %v3794, 6
    %v3927 = vsel %vm426, %v3926, %v3925
    %v3928 = vrot.slane %v3795, 5
    %v3929 = vsel %vm430, %v3928, %v3927
    %v3930 = vrot.slane %v3796, 4
    %v3931 = vsel %vm1254, %v3930, %v3929
    %v3932 = vrot.slane %v3797, 3
    %v3933 = vsel %vm1257, %v3932, %v3931
    %v3934 = vrot.slane %v3798, 2
    %v3935 = vsel %vm1260, %v3934, %v3933
    %v3936 = vrot.slane %v3799, 1
    %v3937 = vsel %vm1263, %v3936, %v3935
    %v3938 = vrot.slane %v3801, 7
    %v3939 = vsel %vm422, %v3938, %v3800
    %v3940 = vrot.slane %v3802, 6
    %v3941 = vsel %vm426, %v3940, %v3939
    %v3942 = vrot.slane %v3803, 5
    %v3943 = vsel %vm430, %v3942, %v3941
    %v3944 = vrot.slane %v3804, 4
    %v3945 = vsel %vm1254, %v3944, %v3943
    %v3946 = vrot.slane %v3805, 3
    %v3947 = vsel %vm1257, %v3946, %v3945
    %v3948 = vrot.slane %v3806, 2
    %v3949 = vsel %vm1260, %v3948, %v3947
    %v3950 = vrot.slane %v3807, 1
    %v3951 = vsel %vm1263, %v3950, %v3949
    %v3952 = vrot.slane %v3809, 7
    %v3953 = vsel %vm422, %v3952, %v3808
    %v3954 = vrot.slane %v3810, 6
    %v3955 = vsel %vm426, %v3954, %v3953
    %v3956 = vrot.slane %v3811, 5
    %v3957 = vsel %vm430, %v3956, %v3955
    %v3958 = vrot.slane %v3812, 4
    %v3959 = vsel %vm1254, %v3958, %v3957
    %v3960 = vrot.slane %v3813, 3
    %v3961 = vsel %vm1257, %v3960, %v3959
    %v3962 = vrot.slane %v3814, 2
    %v3963 = vsel %vm1260, %v3962, %v3961
    %v3964 = vrot.slane %v3815, 1
    %v3965 = vsel %vm1263, %v3964, %v3963
    %v3966 = vrot.slane %v3817, 7
    %v3967 = vsel %vm422, %v3966, %v3816
    %v3968 = vrot.slane %v3818, 6
    %v3969 = vsel %vm426, %v3968, %v3967
    %v3970 = vrot.slane %v3819, 5
    %v3971 = vsel %vm430, %v3970, %v3969
    %v3972 = vrot.slane %v3820, 4
    %v3973 = vsel %vm1254, %v3972, %v3971
    %v3974 = vrot.slane %v3821, 3
    %v3975 = vsel %vm1257, %v3974, %v3973
    %v3976 = vrot.slane %v3822, 2
    %v3977 = vsel %vm1260, %v3976, %v3975
    %v3978 = vrot.slane %v3823, 1
    %v3979 = vsel %vm1263, %v3978, %v3977
    %v3980 = vrot.slane %v3825, 7
    %v3981 = vsel %vm422, %v3980, %v3824
    %v3982 = vrot.slane %v3826, 6
    %v3983 = vsel %vm426, %v3982, %v3981
    %v3984 = vrot.slane %v3827, 5
    %v3985 = vsel %vm430, %v3984, %v3983
    %v3986 = vrot.slane %v3828, 4
    %v3987 = vsel %vm1254, %v3986, %v3985
    %v3988 = vrot.slane %v3829, 3
    %v3989 = vsel %vm1257, %v3988, %v3987
    %v3990 = vrot.slane %v3830, 2
    %v3991 = vsel %vm1260, %v3990, %v3989
    %v3992 = vrot.slane %v3831, 1
    %v3993 = vsel %vm1263, %v3992, %v3991
    %v3994 = vrot.slane %v3833, 7
    %v3995 = vsel %vm422, %v3994, %v3832
    %v3996 = vrot.slane %v3834, 6
    %v3997 = vsel %vm426, %v3996, %v3995
    %v3998 = vrot.slane %v3835, 5
    %v3999 = vsel %vm430, %v3998, %v3997
    %v4000 = vrot.slane %v3836, 4
    %v4001 = vsel %vm1254, %v4000, %v3999
    %v4002 = vrot.slane %v3837, 3
    %v4003 = vsel %vm1257, %v4002, %v4001
    %v4004 = vrot.slane %v3838, 2
    %v4005 = vsel %vm1260, %v4004, %v4003
    %v4006 = vrot.slane %v3839, 1
    %v4007 = vsel %vm1263, %v4006, %v4005
    %v4008 = vpack.c.b16 %v3867, %v3853
    %v4009 = vpack.c.b16 %v3895, %v3881
    %v4010 = vpack.c.b16 %v3923, %v3909
    %v4011 = vpack.c.b16 %v3951, %v3937
    %v4012 = vpack.c.b16 %v3979, %v3965
    %v4013 = vpack.c.b16 %v4007, %v3993
    %v4018 = vunpack.c.l.b16 %v3446
    %v4019 = vunpack.c.l.b16 %v3447
    %v4020 = vunpack.c.l.b16 %v3448
    %v4021 = vunpack.c.l.b16 %v3449
    %v4022 = vpack.c.b16 %v4019, %v4018
    %v4023 = vpack.c.b16 %v4021, %v4020
    %v4026 = vsel %vm1445, %v4008, 0
    %v4029 = vsel %vm1445, %v4009, 0
    %v4032 = vsel %vm1445, %v4010, 0
    %v4035 = vsel %vm1445, %v4011, 0
    %v4038 = vsel %vm1445, %v4012, 0
    %v4041 = vsel %vm1445, %v4013, 0
    %v4044 = vsel %vm1464, %v4023, 0
    %4046 = vmatpush.bf16.msra.mxu0 0
    %4047 = vmatpush.bf16.msra.mxu0 0
    %4048 = vmatpush.bf16.msra.mxu0 0
    %4049 = vmatpush.bf16.msra.mxu0 0
    %4050 = vmatpush.bf16.msra.mxu0 0
    %4051 = vmatpush.bf16.msra.mxu0 0
    %4052 = vmatpush.bf16.msra.mxu0 %v4044
    %4053 = vmatpush.bf16.msra.mxu0 %v4022
    %4054 = vmatmul.bf16.gmra.mxu0 %v4026
    %v4055 = vpop.f32.mrf.mxu0
    %v4056 = vadd.f32 0.0, %v4055
    %v4057 = vpop.f32.mrf.mxu0
    %v4058 = vadd.f32 0.0, %v4057
    %4059 = vmatmul.bf16.gmra.mxu0 %v4029
    %v4060 = vpop.f32.mrf.mxu0
    %v4061 = vadd.f32 0.0, %v4060
    %v4062 = vpop.f32.mrf.mxu0
    %v4063 = vadd.f32 0.0, %v4062
    %4064 = vmatmul.bf16.gmra.mxu0 %v4032
    %v4065 = vpop.f32.mrf.mxu0
    %v4066 = vadd.f32 0.0, %v4065
    %v4067 = vpop.f32.mrf.mxu0
    %v4068 = vadd.f32 0.0, %v4067
    %4069 = vmatmul.bf16.gmra.mxu0 %v4035
    %v4070 = vpop.f32.mrf.mxu0
    %v4071 = vadd.f32 0.0, %v4070
    %v4072 = vpop.f32.mrf.mxu0
    %v4073 = vadd.f32 0.0, %v4072
    %4074 = vmatmul.bf16.gmra.mxu0 %v4038
    %v4075 = vpop.f32.mrf.mxu0
    %v4076 = vadd.f32 0.0, %v4075
    %v4077 = vpop.f32.mrf.mxu0
    %v4078 = vadd.f32 0.0, %v4077
    %4079 = vmatmul.bf16.gmra.mxu0 %v4041
    %v4080 = vpop.f32.mrf.mxu0
    %v4081 = vadd.f32 0.0, %v4080
    %v4082 = vpop.f32.mrf.mxu0
    %v4083 = vadd.f32 0.0, %v4082
    %4084 = vdwg.mxu0
    %v4085 = vadd.f32 %v3434, %v4056
    %v4086 = vadd.f32 %v3435, %v4058
    %v4087 = vadd.f32 %v3436, %v4061
    %v4088 = vadd.f32 %v3437, %v4063
    %v4089 = vadd.f32 %v3438, %v4066
    %v4090 = vadd.f32 %v3439, %v4068
    %v4091 = vadd.f32 %v3440, %v4071
    %v4092 = vadd.f32 %v3441, %v4073
    %v4093 = vadd.f32 %v3442, %v4076
    %v4094 = vadd.f32 %v3443, %v4078
    %v4095 = vadd.f32 %v3444, %v4081
    %v4096 = vadd.f32 %v3445, %v4083
    %v4097 = vld [vmem:[%s4 + $0x48] sm:$0x8]
    %v4098 = vld [vmem:[%s4 + $0x4c] sm:$0xf]
    %v4099 = vld [vmem:[%s4 + $0x50] sm:$0xf]
    %v4100 = vld [vmem:[%s4 + $0x54] sm:$0xf]
    %v4101 = vld [vmem:[%s4 + $0x58] sm:$0x3]
    %4102 = vst [vmem:[#allocation1] ss:$9 sm:$0xff] %v429
    %v4103 = vld [vmem:[#allocation1] sm:$0xff]
    %4105 = vst [vmem:[#allocation1] ss:$9 sm:$0xff] %v433
    %v4106 = vld [vmem:[#allocation1] sm:$0xff]
    %4108 = vst [vmem:[#allocation1] ss:$9 sm:$0xff] %v436
    %v4109 = vld [vmem:[#allocation1] sm:$0xff]
    %4111 = vst [vmem:[#allocation1] ss:$9 sm:$0xff] %v439
    %v4112 = vld [vmem:[#allocation1] sm:$0xff]
    %4114 = vst [vmem:[#allocation1] ss:$9 sm:$0xff] %v442
    %v4115 = vld [vmem:[#allocation1] sm:$0xff]
    %4117 = vst [vmem:[#allocation1] ss:$9 sm:$0xff] %v445
    %v4118 = vld [vmem:[#allocation1] sm:$0xff]
    %4120 = vst [vmem:[#allocation1] ss:$9 sm:$0xff] %v448
    %v4121 = vld [vmem:[#allocation1] sm:$0xff]
    %4123 = vst [vmem:[#allocation1] ss:$9 sm:$0xff] %v451
    %v4124 = vld [vmem:[#allocation1] sm:$0xff]
    %4126 = vst [vmem:[#allocation1] ss:$9 sm:$0xff] %v454
    %v4127 = vld [vmem:[#allocation1] sm:$0xff]
    %4129 = vst [vmem:[#allocation1] ss:$9 sm:$0xff] %v457
    %v4130 = vld [vmem:[#allocation1] sm:$0xff]
    %4132 = vst [vmem:[#allocation1] ss:$9 sm:$0xff] %v460
    %v4133 = vld [vmem:[#allocation1] sm:$0xff]
    %4135 = vst [vmem:[#allocation1] ss:$9 sm:$0xff] %v463
    %v4136 = vld [vmem:[#allocation1] sm:$0xff]
    %4138 = vst [vmem:[#allocation1] ss:$9 sm:$0xff] %v475
    %v4139 = vld [vmem:[#allocation1] sm:$0xff]
    %4141 = vst [vmem:[#allocation1] ss:$9 sm:$0xff] %v478
    %v4142 = vld [vmem:[#allocation1] sm:$0xff]
    %4144 = vst [vmem:[#allocation1] ss:$9 sm:$0xff] %v481
    %v4145 = vld [vmem:[#allocation1] sm:$0xff]
    %4147 = vst [vmem:[#allocation1] ss:$9 sm:$0xff] %v484
    %v4148 = vld [vmem:[#allocation1] sm:$0xff]
    %4150 = vst [vmem:[#allocation1] ss:$9 sm:$0xff] %v487
    %v4151 = vld [vmem:[#allocation1] sm:$0xff]
    %4153 = vst [vmem:[#allocation1] ss:$9 sm:$0xff] %v490
    %v4154 = vld [vmem:[#allocation1] sm:$0xff]
    %4156 = vst [vmem:[#allocation1] ss:$9 sm:$0xff] %v493
    %v4157 = vld [vmem:[#allocation1] sm:$0xff]
    %4159 = vst [vmem:[#allocation1] ss:$9 sm:$0xff] %v496
    %v4160 = vld [vmem:[#allocation1] sm:$0xff]
    %4162 = vst [vmem:[#allocation1] ss:$9 sm:$0xff] %v499
    %v4163 = vld [vmem:[#allocation1] sm:$0xff]
    %4165 = vst [vmem:[#allocation1] ss:$9 sm:$0xff] %v502
    %v4166 = vld [vmem:[#allocation1] sm:$0xff]
    %4168 = vst [vmem:[#allocation1] ss:$9 sm:$0xff] %v505
    %v4169 = vld [vmem:[#allocation1] sm:$0xff]
    %4171 = vst [vmem:[#allocation1] ss:$9 sm:$0xff] %v508
    %v4172 = vld [vmem:[#allocation1] sm:$0xff]
    %4174 = vst [vmem:[#allocation1] ss:$9 sm:$0xff] %v520
    %v4175 = vld [vmem:[#allocation1] sm:$0xff]
    %4177 = vst [vmem:[#allocation1] ss:$9 sm:$0xff] %v523
    %v4178 = vld [vmem:[#allocation1] sm:$0xff]
    %4180 = vst [vmem:[#allocation1] ss:$9 sm:$0xff] %v526
    %v4181 = vld [vmem:[#allocation1] sm:$0xff]
    %4183 = vst [vmem:[#allocation1] ss:$9 sm:$0xff] %v529
    %v4184 = vld [vmem:[#allocation1] sm:$0xff]
    %4186 = vst [vmem:[#allocation1] ss:$9 sm:$0xff] %v532
    %v4187 = vld [vmem:[#allocation1] sm:$0xff]
    %4189 = vst [vmem:[#allocation1] ss:$9 sm:$0xff] %v535
    %v4190 = vld [vmem:[#allocation1] sm:$0xff]
    %4192 = vst [vmem:[#allocation1] ss:$9 sm:$0xff] %v538
    %v4193 = vld [vmem:[#allocation1] sm:$0xff]
    %4195 = vst [vmem:[#allocation1] ss:$9 sm:$0xff] %v541
    %v4196 = vld [vmem:[#allocation1] sm:$0xff]
    %4198 = vst [vmem:[#allocation1] ss:$9 sm:$0xff] %v544
    %v4199 = vld [vmem:[#allocation1] sm:$0xff]
    %4201 = vst [vmem:[#allocation1] ss:$9 sm:$0xff] %v547
    %v4202 = vld [vmem:[#allocation1] sm:$0xff]
    %4204 = vst [vmem:[#allocation1] ss:$9 sm:$0xff] %v550
    %v4205 = vld [vmem:[#allocation1] sm:$0xff]
    %4207 = vst [vmem:[#allocation1] ss:$9 sm:$0xff] %v553
    %v4208 = vld [vmem:[#allocation1] sm:$0xff]
    %4210 = vst [vmem:[#allocation1] ss:$9 sm:$0xff] %v565
    %v4211 = vld [vmem:[#allocation1] sm:$0xff]
    %4213 = vst [vmem:[#allocation1] ss:$9 sm:$0xff] %v568
    %v4214 = vld [vmem:[#allocation1] sm:$0xff]
    %4216 = vst [vmem:[#allocation1] ss:$9 sm:$0xff] %v571
    %v4217 = vld [vmem:[#allocation1] sm:$0xff]
    %4219 = vst [vmem:[#allocation1] ss:$9 sm:$0xff] %v574
    %v4220 = vld [vmem:[#allocation1] sm:$0xff]
    %4222 = vst [vmem:[#allocation1] ss:$9 sm:$0xff] %v577
    %v4223 = vld [vmem:[#allocation1] sm:$0xff]
    %4225 = vst [vmem:[#allocation1] ss:$9 sm:$0xff] %v580
    %v4226 = vld [vmem:[#allocation1] sm:$0xff]
    %4228 = vst [vmem:[#allocation1] ss:$9 sm:$0xff] %v583
    %v4229 = vld [vmem:[#allocation1] sm:$0xff]
    %4231 = vst [vmem:[#allocation1] ss:$9 sm:$0xff] %v586
    %v4232 = vld [vmem:[#allocation1] sm:$0xff]
    %4234 = vst [vmem:[#allocation1] ss:$9 sm:$0xff] %v589
    %v4235 = vld [vmem:[#allocation1] sm:$0xff]
    %4237 = vst [vmem:[#allocation1] ss:$9 sm:$0xff] %v592
    %v4238 = vld [vmem:[#allocation1] sm:$0xff]
    %4240 = vst [vmem:[#allocation1] ss:$9 sm:$0xff] %v595
    %v4241 = vld [vmem:[#allocation1] sm:$0xff]
    %4243 = vst [vmem:[#allocation1] ss:$9 sm:$0xff] %v598
    %v4244 = vld [vmem:[#allocation1] sm:$0xff]
    %4246 = vst [vmem:[#allocation1] ss:$9 sm:$0xff] %v610
    %v4247 = vld [vmem:[#allocation1] sm:$0xff]
    %4249 = vst [vmem:[#allocation1] ss:$9 sm:$0xff] %v613
    %v4250 = vld [vmem:[#allocation1] sm:$0xff]
    %4252 = vst [vmem:[#allocation1] ss:$9 sm:$0xff] %v616
    %v4253 = vld [vmem:[#allocation1] sm:$0xff]
    %4255 = vst [vmem:[#allocation1] ss:$9 sm:$0xff] %v619
    %v4256 = vld [vmem:[#allocation1] sm:$0xff]
    %4258 = vst [vmem:[#allocation1] ss:$9 sm:$0xff] %v622
    %v4259 = vld [vmem:[#allocation1] sm:$0xff]
    %4261 = vst [vmem:[#allocation1] ss:$9 sm:$0xff] %v625
    %v4262 = vld [vmem:[#allocation1] sm:$0xff]
    %4264 = vst [vmem:[#allocation1] ss:$9 sm:$0xff] %v628
    %v4265 = vld [vmem:[#allocation1] sm:$0xff]
    %4267 = vst [vmem:[#allocation1] ss:$9 sm:$0xff] %v631
    %v4268 = vld [vmem:[#allocation1] sm:$0xff]
    %4270 = vst [vmem:[#allocation1] ss:$9 sm:$0xff] %v634
    %v4271 = vld [vmem:[#allocation1] sm:$0xff]
    %4273 = vst [vmem:[#allocation1] ss:$9 sm:$0xff] %v637
    %v4274 = vld [vmem:[#allocation1] sm:$0xff]
    %4276 = vst [vmem:[#allocation1] ss:$9 sm:$0xff] %v640
    %v4277 = vld [vmem:[#allocation1] sm:$0xff]
    %4279 = vst [vmem:[#allocation1] ss:$9 sm:$0xff] %v643
    %v4280 = vld [vmem:[#allocation1] sm:$0xff]
    %4282 = vst [vmem:[#allocation1] ss:$9 sm:$0xff] %v655
    %v4283 = vld [vmem:[#allocation1] sm:$0xff]
    %4285 = vst [vmem:[#allocation1] ss:$9 sm:$0xff] %v658
    %v4286 = vld [vmem:[#allocation1] sm:$0xff]
    %4288 = vst [vmem:[#allocation1] ss:$9 sm:$0xff] %v661
    %v4289 = vld [vmem:[#allocation1] sm:$0xff]
    %4291 = vst [vmem:[#allocation1] ss:$9 sm:$0xff] %v664
    %v4292 = vld [vmem:[#allocation1] sm:$0xff]
    %4294 = vst [vmem:[#allocation1] ss:$9 sm:$0xff] %v667
    %v4295 = vld [vmem:[#allocation1] sm:$0xff]
    %4297 = vst [vmem:[#allocation1] ss:$9 sm:$0xff] %v670
    %v4298 = vld [vmem:[#allocation1] sm:$0xff]
    %4300 = vst [vmem:[#allocation1] ss:$9 sm:$0xff] %v673
    %v4301 = vld [vmem:[#allocation1] sm:$0xff]
    %4303 = vst [vmem:[#allocation1] ss:$9 sm:$0xff] %v676
    %v4304 = vld [vmem:[#allocation1] sm:$0xff]
    %4306 = vst [vmem:[#allocation1] ss:$9 sm:$0xff] %v679
    %v4307 = vld [vmem:[#allocation1] sm:$0xff]
    %4309 = vst [vmem:[#allocation1] ss:$9 sm:$0xff] %v682
    %v4310 = vld [vmem:[#allocation1] sm:$0xff]
    %4312 = vst [vmem:[#allocation1] ss:$9 sm:$0xff] %v685
    %v4313 = vld [vmem:[#allocation1] sm:$0xff]
    %4315 = vst [vmem:[#allocation1] ss:$9 sm:$0xff] %v688
    %v4316 = vld [vmem:[#allocation1] sm:$0xff]
    %4318 = vst [vmem:[#allocation1] ss:$9 sm:$0xff] %v700
    %v4319 = vld [vmem:[#allocation1] sm:$0xff]
    %4321 = vst [vmem:[#allocation1] ss:$9 sm:$0xff] %v703
    %v4322 = vld [vmem:[#allocation1] sm:$0xff]
    %4324 = vst [vmem:[#allocation1] ss:$9 sm:$0xff] %v706
    %v4325 = vld [vmem:[#allocation1] sm:$0xff]
    %4327 = vst [vmem:[#allocation1] ss:$9 sm:$0xff] %v709
    %v4328 = vld [vmem:[#allocation1] sm:$0xff]
    %4330 = vst [vmem:[#allocation1] ss:$9 sm:$0xff] %v712
    %v4331 = vld [vmem:[#allocation1] sm:$0xff]
    %4333 = vst [vmem:[#allocation1] ss:$9 sm:$0xff] %v715
    %v4334 = vld [vmem:[#allocation1] sm:$0xff]
    %4336 = vst [vmem:[#allocation1] ss:$9 sm:$0xff] %v718
    %v4337 = vld [vmem:[#allocation1] sm:$0xff]
    %4339 = vst [vmem:[#allocation1] ss:$9 sm:$0xff] %v721
    %v4340 = vld [vmem:[#allocation1] sm:$0xff]
    %4342 = vst [vmem:[#allocation1] ss:$9 sm:$0xff] %v724
    %v4343 = vld [vmem:[#allocation1] sm:$0xff]
    %4345 = vst [vmem:[#allocation1] ss:$9 sm:$0xff] %v727
    %v4346 = vld [vmem:[#allocation1] sm:$0xff]
    %4348 = vst [vmem:[#allocation1] ss:$9 sm:$0xff] %v730
    %v4349 = vld [vmem:[#allocation1] sm:$0xff]
    %4351 = vst [vmem:[#allocation1] ss:$9 sm:$0xff] %v733
    %v4352 = vld [vmem:[#allocation1] sm:$0xff]
    %4354 = vst [vmem:[#allocation1] ss:$9 sm:$0xff] %v745
    %v4355 = vld [vmem:[#allocation1] sm:$0xff]
    %4357 = vst [vmem:[#allocation1] ss:$9 sm:$0xff] %v748
    %v4358 = vld [vmem:[#allocation1] sm:$0xff]
    %4360 = vst [vmem:[#allocation1] ss:$9 sm:$0xff] %v751
    %v4361 = vld [vmem:[#allocation1] sm:$0xff]
    %4363 = vst [vmem:[#allocation1] ss:$9 sm:$0xff] %v754
    %v4364 = vld [vmem:[#allocation1] sm:$0xff]
    %4366 = vst [vmem:[#allocation1] ss:$9 sm:$0xff] %v757
    %v4367 = vld [vmem:[#allocation1] sm:$0xff]
    %4369 = vst [vmem:[#allocation1] ss:$9 sm:$0xff] %v760
    %v4370 = vld [vmem:[#allocation1] sm:$0xff]
    %4372 = vst [vmem:[#allocation1] ss:$9 sm:$0xff] %v763
    %v4373 = vld [vmem:[#allocation1] sm:$0xff]
    %4375 = vst [vmem:[#allocation1] ss:$9 sm:$0xff] %v766
    %v4376 = vld [vmem:[#allocation1] sm:$0xff]
    %4378 = vst [vmem:[#allocation1] ss:$9 sm:$0xff] %v769
    %v4379 = vld [vmem:[#allocation1] sm:$0xff]
    %4381 = vst [vmem:[#allocation1] ss:$9 sm:$0xff] %v772
    %v4382 = vld [vmem:[#allocation1] sm:$0xff]
    %4384 = vst [vmem:[#allocation1] ss:$9 sm:$0xff] %v775
    %v4385 = vld [vmem:[#allocation1] sm:$0xff]
    %4387 = vst [vmem:[#allocation1] ss:$9 sm:$0xff] %v778
    %v4388 = vld [vmem:[#allocation1] sm:$0xff]
    %v4390 = vunpack.c.l.b16 %v4103
    %v4391 = vunpack.c.l.b16 %v4106
    %v4392 = vunpack.c.l.b16 %v4109
    %v4393 = vunpack.c.l.b16 %v4112
    %v4394 = vunpack.c.l.b16 %v4115
    %v4395 = vunpack.c.l.b16 %v4118
    %v4396 = vunpack.c.l.b16 %v4121
    %v4397 = vunpack.c.l.b16 %v4124
    %v4398 = vunpack.c.l.b16 %v4127
    %v4399 = vunpack.c.l.b16 %v4130
    %v4400 = vunpack.c.l.b16 %v4133
    %v4401 = vunpack.c.l.b16 %v4136
    %v4402 = vunpack.c.l.b16 %v4139
    %v4403 = vunpack.c.l.b16 %v4142
    %v4404 = vunpack.c.l.b16 %v4145
    %v4405 = vunpack.c.l.b16 %v4148
    %v4406 = vunpack.c.l.b16 %v4151
    %v4407 = vunpack.c.l.b16 %v4154
    %v4408 = vunpack.c.l.b16 %v4157
    %v4409 = vunpack.c.l.b16 %v4160
    %v4410 = vunpack.c.l.b16 %v4163
    %v4411 = vunpack.c.l.b16 %v4166
    %v4412 = vunpack.c.l.b16 %v4169
    %v4413 = vunpack.c.l.b16 %v4172
    %v4414 = vunpack.c.l.b16 %v4175
    %v4415 = vunpack.c.l.b16 %v4178
    %v4416 = vunpack.c.l.b16 %v4181
    %v4417 = vunpack.c.l.b16 %v4184
    %v4418 = vunpack.c.l.b16 %v4187
    %v4419 = vunpack.c.l.b16 %v4190
    %v4420 = vunpack.c.l.b16 %v4193
    %v4421 = vunpack.c.l.b16 %v4196
    %v4422 = vunpack.c.l.b16 %v4199
    %v4423 = vunpack.c.l.b16 %v4202
    %v4424 = vunpack.c.l.b16 %v4205
    %v4425 = vunpack.c.l.b16 %v4208
    %v4426 = vunpack.c.l.b16 %v4211
    %v4427 = vunpack.c.l.b16 %v4214
    %v4428 = vunpack.c.l.b16 %v4217
    %v4429 = vunpack.c.l.b16 %v4220
    %v4430 = vunpack.c.l.b16 %v4223
    %v4431 = vunpack.c.l.b16 %v4226
    %v4432 = vunpack.c.l.b16 %v4229
    %v4433 = vunpack.c.l.b16 %v4232
    %v4434 = vunpack.c.l.b16 %v4235
    %v4435 = vunpack.c.l.b16 %v4238
    %v4436 = vunpack.c.l.b16 %v4241
    %v4437 = vunpack.c.l.b16 %v4244
    %v4438 = vunpack.c.l.b16 %v4247
    %v4439 = vunpack.c.l.b16 %v4250
    %v4440 = vunpack.c.l.b16 %v4253
    %v4441 = vunpack.c.l.b16 %v4256
    %v4442 = vunpack.c.l.b16 %v4259
    %v4443 = vunpack.c.l.b16 %v4262
    %v4444 = vunpack.c.l.b16 %v4265
    %v4445 = vunpack.c.l.b16 %v4268
    %v4446 = vunpack.c.l.b16 %v4271
    %v4447 = vunpack.c.l.b16 %v4274
    %v4448 = vunpack.c.l.b16 %v4277
    %v4449 = vunpack.c.l.b16 %v4280
    %v4450 = vunpack.c.l.b16 %v4283
    %v4451 = vunpack.c.l.b16 %v4286
    %v4452 = vunpack.c.l.b16 %v4289
    %v4453 = vunpack.c.l.b16 %v4292
    %v4454 = vunpack.c.l.b16 %v4295
    %v4455 = vunpack.c.l.b16 %v4298
    %v4456 = vunpack.c.l.b16 %v4301
    %v4457 = vunpack.c.l.b16 %v4304
    %v4458 = vunpack.c.l.b16 %v4307
    %v4459 = vunpack.c.l.b16 %v4310
    %v4460 = vunpack.c.l.b16 %v4313
    %v4461 = vunpack.c.l.b16 %v4316
    %v4462 = vunpack.c.l.b16 %v4319
    %v4463 = vunpack.c.l.b16 %v4322
    %v4464 = vunpack.c.l.b16 %v4325
    %v4465 = vunpack.c.l.b16 %v4328
    %v4466 = vunpack.c.l.b16 %v4331
    %v4467 = vunpack.c.l.b16 %v4334
    %v4468 = vunpack.c.l.b16 %v4337
    %v4469 = vunpack.c.l.b16 %v4340
    %v4470 = vunpack.c.l.b16 %v4343
    %v4471 = vunpack.c.l.b16 %v4346
    %v4472 = vunpack.c.l.b16 %v4349
    %v4473 = vunpack.c.l.b16 %v4352
    %v4474 = vunpack.c.l.b16 %v4355
    %v4475 = vunpack.c.l.b16 %v4358
    %v4476 = vunpack.c.l.b16 %v4361
    %v4477 = vunpack.c.l.b16 %v4364
    %v4478 = vunpack.c.l.b16 %v4367
    %v4479 = vunpack.c.l.b16 %v4370
    %v4480 = vunpack.c.l.b16 %v4373
    %v4481 = vunpack.c.l.b16 %v4376
    %v4482 = vunpack.c.l.b16 %v4379
    %v4483 = vunpack.c.l.b16 %v4382
    %v4484 = vunpack.c.l.b16 %v4385
    %v4485 = vunpack.c.l.b16 %v4388
    %v4486 = vrot.slane %v4390, 1
    %v4487 = vsel %vm422, %v4391, %v4486
    %v4488 = vrot.slane %v4392, 7
    %v4489 = vsel %vm426, %v4488, %v4487
    %v4490 = vrot.slane %v4393, 6
    %v4491 = vsel %vm430, %v4490, %v4489
    %v4492 = vrot.slane %v4394, 5
    %v4493 = vsel %vm1254, %v4492, %v4491
    %v4494 = vrot.slane %v4395, 4
    %v4495 = vsel %vm1257, %v4494, %v4493
    %v4496 = vrot.slane %v4396, 3
    %v4497 = vsel %vm1260, %v4496, %v4495
    %v4498 = vrot.slane %v4397, 2
    %v4499 = vsel %vm1263, %v4498, %v4497
    %v4500 = vrot.slane %v4398, 1
    %v4501 = vsel %vm422, %v4399, %v4500
    %v4502 = vrot.slane %v4400, 7
    %v4503 = vsel %vm426, %v4502, %v4501
    %v4504 = vrot.slane %v4401, 6
    %v4505 = vsel %vm430, %v4504, %v4503
    %v4506 = vrot.slane %v4402, 5
    %v4507 = vsel %vm1254, %v4506, %v4505
    %v4508 = vrot.slane %v4403, 4
    %v4509 = vsel %vm1257, %v4508, %v4507
    %v4510 = vrot.slane %v4404, 3
    %v4511 = vsel %vm1260, %v4510, %v4509
    %v4512 = vrot.slane %v4405, 2
    %v4513 = vsel %vm1263, %v4512, %v4511
    %v4514 = vrot.slane %v4406, 1
    %v4515 = vsel %vm422, %v4407, %v4514
    %v4516 = vrot.slane %v4408, 7
    %v4517 = vsel %vm426, %v4516, %v4515
    %v4518 = vrot.slane %v4409, 6
    %v4519 = vsel %vm430, %v4518, %v4517
    %v4520 = vrot.slane %v4410, 5
    %v4521 = vsel %vm1254, %v4520, %v4519
    %v4522 = vrot.slane %v4411, 4
    %v4523 = vsel %vm1257, %v4522, %v4521
    %v4524 = vrot.slane %v4412, 3
    %v4525 = vsel %vm1260, %v4524, %v4523
    %v4526 = vrot.slane %v4413, 2
    %v4527 = vsel %vm1263, %v4526, %v4525
    %v4528 = vrot.slane %v4414, 1
    %v4529 = vsel %vm422, %v4415, %v4528
    %v4530 = vrot.slane %v4416, 7
    %v4531 = vsel %vm426, %v4530, %v4529
    %v4532 = vrot.slane %v4417, 6
    %v4533 = vsel %vm430, %v4532, %v4531
    %v4534 = vrot.slane %v4418, 5
    %v4535 = vsel %vm1254, %v4534, %v4533
    %v4536 = vrot.slane %v4419, 4
    %v4537 = vsel %vm1257, %v4536, %v4535
    %v4538 = vrot.slane %v4420, 3
    %v4539 = vsel %vm1260, %v4538, %v4537
    %v4540 = vrot.slane %v4421, 2
    %v4541 = vsel %vm1263, %v4540, %v4539
    %v4542 = vrot.slane %v4422, 1
    %v4543 = vsel %vm422, %v4423, %v4542
    %v4544 = vrot.slane %v4424, 7
    %v4545 = vsel %vm426, %v4544, %v4543
    %v4546 = vrot.slane %v4425, 6
    %v4547 = vsel %vm430, %v4546, %v4545
    %v4548 = vrot.slane %v4426, 5
    %v4549 = vsel %vm1254, %v4548, %v4547
    %v4550 = vrot.slane %v4427, 4
    %v4551 = vsel %vm1257, %v4550, %v4549
    %v4552 = vrot.slane %v4428, 3
    %v4553 = vsel %vm1260, %v4552, %v4551
    %v4554 = vrot.slane %v4429, 2
    %v4555 = vsel %vm1263, %v4554, %v4553
    %v4556 = vrot.slane %v4430, 1
    %v4557 = vsel %vm422, %v4431, %v4556
    %v4558 = vrot.slane %v4432, 7
    %v4559 = vsel %vm426, %v4558, %v4557
    %v4560 = vrot.slane %v4433, 6
    %v4561 = vsel %vm430, %v4560, %v4559
    %v4562 = vrot.slane %v4434, 5
    %v4563 = vsel %vm1254, %v4562, %v4561
    %v4564 = vrot.slane %v4435, 4
    %v4565 = vsel %vm1257, %v4564, %v4563
    %v4566 = vrot.slane %v4436, 3
    %v4567 = vsel %vm1260, %v4566, %v4565
    %v4568 = vrot.slane %v4437, 2
    %v4569 = vsel %vm1263, %v4568, %v4567
    %v4570 = vrot.slane %v4438, 1
    %v4571 = vsel %vm422, %v4439, %v4570
    %v4572 = vrot.slane %v4440, 7
    %v4573 = vsel %vm426, %v4572, %v4571
    %v4574 = vrot.slane %v4441, 6
    %v4575 = vsel %vm430, %v4574, %v4573
    %v4576 = vrot.slane %v4442, 5
    %v4577 = vsel %vm1254, %v4576, %v4575
    %v4578 = vrot.slane %v4443, 4
    %v4579 = vsel %vm1257, %v4578, %v4577
    %v4580 = vrot.slane %v4444, 3
    %v4581 = vsel %vm1260, %v4580, %v4579
    %v4582 = vrot.slane %v4445, 2
    %v4583 = vsel %vm1263, %v4582, %v4581
    %v4584 = vrot.slane %v4446, 1
    %v4585 = vsel %vm422, %v4447, %v4584
    %v4586 = vrot.slane %v4448, 7
    %v4587 = vsel %vm426, %v4586, %v4585
    %v4588 = vrot.slane %v4449, 6
    %v4589 = vsel %vm430, %v4588, %v4587
    %v4590 = vrot.slane %v4450, 5
    %v4591 = vsel %vm1254, %v4590, %v4589
    %v4592 = vrot.slane %v4451, 4
    %v4593 = vsel %vm1257, %v4592, %v4591
    %v4594 = vrot.slane %v4452, 3
    %v4595 = vsel %vm1260, %v4594, %v4593
    %v4596 = vrot.slane %v4453, 2
    %v4597 = vsel %vm1263, %v4596, %v4595
    %v4598 = vrot.slane %v4454, 1
    %v4599 = vsel %vm422, %v4455, %v4598
    %v4600 = vrot.slane %v4456, 7
    %v4601 = vsel %vm426, %v4600, %v4599
    %v4602 = vrot.slane %v4457, 6
    %v4603 = vsel %vm430, %v4602, %v4601
    %v4604 = vrot.slane %v4458, 5
    %v4605 = vsel %vm1254, %v4604, %v4603
    %v4606 = vrot.slane %v4459, 4
    %v4607 = vsel %vm1257, %v4606, %v4605
    %v4608 = vrot.slane %v4460, 3
    %v4609 = vsel %vm1260, %v4608, %v4607
    %v4610 = vrot.slane %v4461, 2
    %v4611 = vsel %vm1263, %v4610, %v4609
    %v4612 = vrot.slane %v4462, 1
    %v4613 = vsel %vm422, %v4463, %v4612
    %v4614 = vrot.slane %v4464, 7
    %v4615 = vsel %vm426, %v4614, %v4613
    %v4616 = vrot.slane %v4465, 6
    %v4617 = vsel %vm430, %v4616, %v4615
    %v4618 = vrot.slane %v4466, 5
    %v4619 = vsel %vm1254, %v4618, %v4617
    %v4620 = vrot.slane %v4467, 4
    %v4621 = vsel %vm1257, %v4620, %v4619
    %v4622 = vrot.slane %v4468, 3
    %v4623 = vsel %vm1260, %v4622, %v4621
    %v4624 = vrot.slane %v4469, 2
    %v4625 = vsel %vm1263, %v4624, %v4623
    %v4626 = vrot.slane %v4470, 1
    %v4627 = vsel %vm422, %v4471, %v4626
    %v4628 = vrot.slane %v4472, 7
    %v4629 = vsel %vm426, %v4628, %v4627
    %v4630 = vrot.slane %v4473, 6
    %v4631 = vsel %vm430, %v4630, %v4629
    %v4632 = vrot.slane %v4474, 5
    %v4633 = vsel %vm1254, %v4632, %v4631
    %v4634 = vrot.slane %v4475, 4
    %v4635 = vsel %vm1257, %v4634, %v4633
    %v4636 = vrot.slane %v4476, 3
    %v4637 = vsel %vm1260, %v4636, %v4635
    %v4638 = vrot.slane %v4477, 2
    %v4639 = vsel %vm1263, %v4638, %v4637
    %v4640 = vrot.slane %v4478, 1
    %v4641 = vsel %vm422, %v4479, %v4640
    %v4642 = vrot.slane %v4480, 7
    %v4643 = vsel %vm426, %v4642, %v4641
    %v4644 = vrot.slane %v4481, 6
    %v4645 = vsel %vm430, %v4644, %v4643
    %v4646 = vrot.slane %v4482, 5
    %v4647 = vsel %vm1254, %v4646, %v4645
    %v4648 = vrot.slane %v4483, 4
    %v4649 = vsel %vm1257, %v4648, %v4647
    %v4650 = vrot.slane %v4484, 3
    %v4651 = vsel %vm1260, %v4650, %v4649
    %v4652 = vrot.slane %v4485, 2
    %v4653 = vsel %vm1263, %v4652, %v4651
    %v4654 = vpack.c.b16 %v4513, %v4499
    %v4655 = vpack.c.b16 %v4541, %v4527
    %v4656 = vpack.c.b16 %v4569, %v4555
    %v4657 = vpack.c.b16 %v4597, %v4583
    %v4658 = vpack.c.b16 %v4625, %v4611
    %v4659 = vpack.c.b16 %v4653, %v4639
    %v4665 = vunpack.c.l.b16 %v4097
    %v4666 = vunpack.c.l.b16 %v4098
    %v4667 = vunpack.c.l.b16 %v4099
    %v4668 = vunpack.c.l.b16 %v4100
    %v4669 = vunpack.c.l.b16 %v4101
    %v4670 = vpack.c.b16 %v4666, %v4665
    %v4671 = vpack.c.b16 %v4668, %v4667
    %v4672 = vpack.c.b16 %v4669, %v4669
    %v4673 = vrot.slane %v4670, 3
    %v4674 = vrot.slane %v4671, 3
    %v4675 = vsel %vm1438, %v4673, %v4674
    %v4676 = vrot.slane %v4672, 3
    %v4677 = vsel %vm1438, %v4674, %v4676
    %v4680 = vsel %vm1445, %v4654, 0
    %v4683 = vsel %vm1445, %v4655, 0
    %v4686 = vsel %vm1445, %v4656, 0
    %v4689 = vsel %vm1445, %v4657, 0
    %v4692 = vsel %vm1445, %v4658, 0
    %v4695 = vsel %vm1445, %v4659, 0
    %v4698 = vsel %vm1464, %v4677, 0
    %4700 = vmatpush.bf16.msra.mxu0 0
    %4701 = vmatpush.bf16.msra.mxu0 0
    %4702 = vmatpush.bf16.msra.mxu0 0
    %4703 = vmatpush.bf16.msra.mxu0 0
    %4704 = vmatpush.bf16.msra.mxu0 0
    %4705 = vmatpush.bf16.msra.mxu0 0
    %4706 = vmatpush.bf16.msra.mxu0 %v4698
    %4707 = vmatpush.bf16.msra.mxu0 %v4675
    %4708 = vmatmul.bf16.gmra.mxu0 %v4680
    %v4709 = vpop.f32.mrf.mxu0
    %v4710 = vadd.f32 0.0, %v4709
    %v4711 = vpop.f32.mrf.mxu0
    %v4712 = vadd.f32 0.0, %v4711
    %4713 = vmatmul.bf16.gmra.mxu0 %v4683
    %v4714 = vpop.f32.mrf.mxu0
    %v4715 = vadd.f32 0.0, %v4714
    %v4716 = vpop.f32.mrf.mxu0
    %v4717 = vadd.f32 0.0, %v4716
    %4718 = vmatmul.bf16.gmra.mxu0 %v4686
    %v4719 = vpop.f32.mrf.mxu0
    %v4720 = vadd.f32 0.0, %v4719
    %v4721 = vpop.f32.mrf.mxu0
    %v4722 = vadd.f32 0.0, %v4721
    %4723 = vmatmul.bf16.gmra.mxu0 %v4689
    %v4724 = vpop.f32.mrf.mxu0
    %v4725 = vadd.f32 0.0, %v4724
    %v4726 = vpop.f32.mrf.mxu0
    %v4727 = vadd.f32 0.0, %v4726
    %4728 = vmatmul.bf16.gmra.mxu0 %v4692
    %v4729 = vpop.f32.mrf.mxu0
    %v4730 = vadd.f32 0.0, %v4729
    %v4731 = vpop.f32.mrf.mxu0
    %v4732 = vadd.f32 0.0, %v4731
    %4733 = vmatmul.bf16.gmra.mxu0 %v4695
    %v4734 = vpop.f32.mrf.mxu0
    %v4735 = vadd.f32 0.0, %v4734
    %v4736 = vpop.f32.mrf.mxu0
    %v4737 = vadd.f32 0.0, %v4736
    %4738 = vdwg.mxu0
    %v4739 = vadd.f32 %v4085, %v4710
    %v4740 = vadd.f32 %v4086, %v4712
    %v4741 = vadd.f32 %v4087, %v4715
    %v4742 = vadd.f32 %v4088, %v4717
    %v4743 = vadd.f32 %v4089, %v4720
    %v4744 = vadd.f32 %v4090, %v4722
    %v4745 = vadd.f32 %v4091, %v4725
    %v4746 = vadd.f32 %v4092, %v4727
    %v4747 = vadd.f32 %v4093, %v4730
    %v4748 = vadd.f32 %v4094, %v4732
    %v4749 = vadd.f32 %v4095, %v4735
    %v4750 = vadd.f32 %v4096, %v4737
    %v4751 = vld [vmem:[%s4 + $0x58] sm:$0xc]
    %v4752 = vld [vmem:[%s4 + $0x5c] sm:$0xf]
    %v4753 = vld [vmem:[%s4 + $0x60] sm:$0xf]
    %v4754 = vld [vmem:[%s4 + $0x64] sm:$0xf]
    %v4755 = vld [vmem:[%s4 + $0x68] sm:$0x1]
    %4756 = vst [vmem:[#allocation1] ss:$9 sm:$0xff] %v433
    %v4757 = vld [vmem:[#allocation1] sm:$0xff]
    %4759 = vst [vmem:[#allocation1] ss:$9 sm:$0xff] %v436
    %v4760 = vld [vmem:[#allocation1] sm:$0xff]
    %4762 = vst [vmem:[#allocation1] ss:$9 sm:$0xff] %v439
    %v4763 = vld [vmem:[#allocation1] sm:$0xff]
    %4765 = vst [vmem:[#allocation1] ss:$9 sm:$0xff] %v442
    %v4766 = vld [vmem:[#allocation1] sm:$0xff]
    %4768 = vst [vmem:[#allocation1] ss:$9 sm:$0xff] %v445
    %v4769 = vld [vmem:[#allocation1] sm:$0xff]
    %4771 = vst [vmem:[#allocation1] ss:$9 sm:$0xff] %v448
    %v4772 = vld [vmem:[#allocation1] sm:$0xff]
    %4774 = vst [vmem:[#allocation1] ss:$9 sm:$0xff] %v451
    %v4775 = vld [vmem:[#allocation1] sm:$0xff]
    %4777 = vst [vmem:[#allocation1] ss:$9 sm:$0xff] %v454
    %v4778 = vld [vmem:[#allocation1] sm:$0xff]
    %4780 = vst [vmem:[#allocation1] ss:$9 sm:$0xff] %v457
    %v4781 = vld [vmem:[#allocation1] sm:$0xff]
    %4783 = vst [vmem:[#allocation1] ss:$9 sm:$0xff] %v460
    %v4784 = vld [vmem:[#allocation1] sm:$0xff]
    %4786 = vst [vmem:[#allocation1] ss:$9 sm:$0xff] %v463
    %v4787 = vld [vmem:[#allocation1] sm:$0xff]
    %4790 = vst [vmem:[#allocation1] ss:$9 sm:$0xff] %v466
    %v4791 = vld [vmem:[#allocation1] sm:$0xff]
    %4793 = vst [vmem:[#allocation1] ss:$9 sm:$0xff] %v478
    %v4794 = vld [vmem:[#allocation1] sm:$0xff]
    %4796 = vst [vmem:[#allocation1] ss:$9 sm:$0xff] %v481
    %v4797 = vld [vmem:[#allocation1] sm:$0xff]
    %4799 = vst [vmem:[#allocation1] ss:$9 sm:$0xff] %v484
    %v4800 = vld [vmem:[#allocation1] sm:$0xff]
    %4802 = vst [vmem:[#allocation1] ss:$9 sm:$0xff] %v487
    %v4803 = vld [vmem:[#allocation1] sm:$0xff]
    %4805 = vst [vmem:[#allocation1] ss:$9 sm:$0xff] %v490
    %v4806 = vld [vmem:[#allocation1] sm:$0xff]
    %4808 = vst [vmem:[#allocation1] ss:$9 sm:$0xff] %v493
    %v4809 = vld [vmem:[#allocation1] sm:$0xff]
    %4811 = vst [vmem:[#allocation1] ss:$9 sm:$0xff] %v496
    %v4812 = vld [vmem:[#allocation1] sm:$0xff]
    %4814 = vst [vmem:[#allocation1] ss:$9 sm:$0xff] %v499
    %v4815 = vld [vmem:[#allocation1] sm:$0xff]
    %4817 = vst [vmem:[#allocation1] ss:$9 sm:$0xff] %v502
    %v4818 = vld [vmem:[#allocation1] sm:$0xff]
    %4820 = vst [vmem:[#allocation1] ss:$9 sm:$0xff] %v505
    %v4821 = vld [vmem:[#allocation1] sm:$0xff]
    %4823 = vst [vmem:[#allocation1] ss:$9 sm:$0xff] %v508
    %v4824 = vld [vmem:[#allocation1] sm:$0xff]
    %4827 = vst [vmem:[#allocation1] ss:$9 sm:$0xff] %v511
    %v4828 = vld [vmem:[#allocation1] sm:$0xff]
    %4830 = vst [vmem:[#allocation1] ss:$9 sm:$0xff] %v523
    %v4831 = vld [vmem:[#allocation1] sm:$0xff]
    %4833 = vst [vmem:[#allocation1] ss:$9 sm:$0xff] %v526
    %v4834 = vld [vmem:[#allocation1] sm:$0xff]
    %4836 = vst [vmem:[#allocation1] ss:$9 sm:$0xff] %v529
    %v4837 = vld [vmem:[#allocation1] sm:$0xff]
    %4839 = vst [vmem:[#allocation1] ss:$9 sm:$0xff] %v532
    %v4840 = vld [vmem:[#allocation1] sm:$0xff]
    %4842 = vst [vmem:[#allocation1] ss:$9 sm:$0xff] %v535
    %v4843 = vld [vmem:[#allocation1] sm:$0xff]
    %4845 = vst [vmem:[#allocation1] ss:$9 sm:$0xff] %v538
    %v4846 = vld [vmem:[#allocation1] sm:$0xff]
    %4848 = vst [vmem:[#allocation1] ss:$9 sm:$0xff] %v541
    %v4849 = vld [vmem:[#allocation1] sm:$0xff]
    %4851 = vst [vmem:[#allocation1] ss:$9 sm:$0xff] %v544
    %v4852 = vld [vmem:[#allocation1] sm:$0xff]
    %4854 = vst [vmem:[#allocation1] ss:$9 sm:$0xff] %v547
    %v4855 = vld [vmem:[#allocation1] sm:$0xff]
    %4857 = vst [vmem:[#allocation1] ss:$9 sm:$0xff] %v550
    %v4858 = vld [vmem:[#allocation1] sm:$0xff]
    %4860 = vst [vmem:[#allocation1] ss:$9 sm:$0xff] %v553
    %v4861 = vld [vmem:[#allocation1] sm:$0xff]
    %4863 = vst [vmem:[#allocation1] ss:$9 sm:$0xff] %v556
    %v4864 = vld [vmem:[#allocation1] sm:$0xff]
    %4866 = vst [vmem:[#allocation1] ss:$9 sm:$0xff] %v568
    %v4867 = vld [vmem:[#allocation1] sm:$0xff]
    %4869 = vst [vmem:[#allocation1] ss:$9 sm:$0xff] %v571
    %v4870 = vld [vmem:[#allocation1] sm:$0xff]
    %4872 = vst [vmem:[#allocation1] ss:$9 sm:$0xff] %v574
    %v4873 = vld [vmem:[#allocation1] sm:$0xff]
    %4875 = vst [vmem:[#allocation1] ss:$9 sm:$0xff] %v577
    %v4876 = vld [vmem:[#allocation1] sm:$0xff]
    %4878 = vst [vmem:[#allocation1] ss:$9 sm:$0xff] %v580
    %v4879 = vld [vmem:[#allocation1] sm:$0xff]
    %4881 = vst [vmem:[#allocation1] ss:$9 sm:$0xff] %v583
    %v4882 = vld [vmem:[#allocation1] sm:$0xff]
    %4884 = vst [vmem:[#allocation1] ss:$9 sm:$0xff] %v586
    %v4885 = vld [vmem:[#allocation1] sm:$0xff]
    %4887 = vst [vmem:[#allocation1] ss:$9 sm:$0xff] %v589
    %v4888 = vld [vmem:[#allocation1] sm:$0xff]
    %4890 = vst [vmem:[#allocation1] ss:$9 sm:$0xff] %v592
    %v4891 = vld [vmem:[#allocation1] sm:$0xff]
    %4893 = vst [vmem:[#allocation1] ss:$9 sm:$0xff] %v595
    %v4894 = vld [vmem:[#allocation1] sm:$0xff]
    %4896 = vst [vmem:[#allocation1] ss:$9 sm:$0xff] %v598
    %v4897 = vld [vmem:[#allocation1] sm:$0xff]
    %4900 = vst [vmem:[#allocation1] ss:$9 sm:$0xff] %v601
    %v4901 = vld [vmem:[#allocation1] sm:$0xff]
    %4903 = vst [vmem:[#allocation1] ss:$9 sm:$0xff] %v613
    %v4904 = vld [vmem:[#allocation1] sm:$0xff]
    %4906 = vst [vmem:[#allocation1] ss:$9 sm:$0xff] %v616
    %v4907 = vld [vmem:[#allocation1] sm:$0xff]
    %4909 = vst [vmem:[#allocation1] ss:$9 sm:$0xff] %v619
    %v4910 = vld [vmem:[#allocation1] sm:$0xff]
    %4912 = vst [vmem:[#allocation1] ss:$9 sm:$0xff] %v622
    %v4913 = vld [vmem:[#allocation1] sm:$0xff]
    %4915 = vst [vmem:[#allocation1] ss:$9 sm:$0xff] %v625
    %v4916 = vld [vmem:[#allocation1] sm:$0xff]
    %4918 = vst [vmem:[#allocation1] ss:$9 sm:$0xff] %v628
    %v4919 = vld [vmem:[#allocation1] sm:$0xff]
    %4921 = vst [vmem:[#allocation1] ss:$9 sm:$0xff] %v631
    %v4922 = vld [vmem:[#allocation1] sm:$0xff]
    %4924 = vst [vmem:[#allocation1] ss:$9 sm:$0xff] %v634
    %v4925 = vld [vmem:[#allocation1] sm:$0xff]
    %4927 = vst [vmem:[#allocation1] ss:$9 sm:$0xff] %v637
    %v4928 = vld [vmem:[#allocation1] sm:$0xff]
    %4930 = vst [vmem:[#allocation1] ss:$9 sm:$0xff] %v640
    %v4931 = vld [vmem:[#allocation1] sm:$0xff]
    %4933 = vst [vmem:[#allocation1] ss:$9 sm:$0xff] %v643
    %v4934 = vld [vmem:[#allocation1] sm:$0xff]
    %4937 = vst [vmem:[#allocation1] ss:$9 sm:$0xff] %v646
    %v4938 = vld [vmem:[#allocation1] sm:$0xff]
    %4940 = vst [vmem:[#allocation1] ss:$9 sm:$0xff] %v658
    %v4941 = vld [vmem:[#allocation1] sm:$0xff]
    %4943 = vst [vmem:[#allocation1] ss:$9 sm:$0xff] %v661
    %v4944 = vld [vmem:[#allocation1] sm:$0xff]
    %4946 = vst [vmem:[#allocation1] ss:$9 sm:$0xff] %v664
    %v4947 = vld [vmem:[#allocation1] sm:$0xff]
    %4949 = vst [vmem:[#allocation1] ss:$9 sm:$0xff] %v667
    %v4950 = vld [vmem:[#allocation1] sm:$0xff]
    %4952 = vst [vmem:[#allocation1] ss:$9 sm:$0xff] %v670
    %v4953 = vld [vmem:[#allocation1] sm:$0xff]
    %4955 = vst [vmem:[#allocation1] ss:$9 sm:$0xff] %v673
    %v4956 = vld [vmem:[#allocation1] sm:$0xff]
    %4958 = vst [vmem:[#allocation1] ss:$9 sm:$0xff] %v676
    %v4959 = vld [vmem:[#allocation1] sm:$0xff]
    %4961 = vst [vmem:[#allocation1] ss:$9 sm:$0xff] %v679
    %v4962 = vld [vmem:[#allocation1] sm:$0xff]
    %4964 = vst [vmem:[#allocation1] ss:$9 sm:$0xff] %v682
    %v4965 = vld [vmem:[#allocation1] sm:$0xff]
    %4967 = vst [vmem:[#allocation1] ss:$9 sm:$0xff] %v685
    %v4968 = vld [vmem:[#allocation1] sm:$0xff]
    %4970 = vst [vmem:[#allocation1] ss:$9 sm:$0xff] %v688
    %v4971 = vld [vmem:[#allocation1] sm:$0xff]
    %4974 = vst [vmem:[#allocation1] ss:$9 sm:$0xff] %v691
    %v4975 = vld [vmem:[#allocation1] sm:$0xff]
    %4977 = vst [vmem:[#allocation1] ss:$9 sm:$0xff] %v703
    %v4978 = vld [vmem:[#allocation1] sm:$0xff]
    %4980 = vst [vmem:[#allocation1] ss:$9 sm:$0xff] %v706
    %v4981 = vld [vmem:[#allocation1] sm:$0xff]
    %4983 = vst [vmem:[#allocation1] ss:$9 sm:$0xff] %v709
    %v4984 = vld [vmem:[#allocation1] sm:$0xff]
    %4986 = vst [vmem:[#allocation1] ss:$9 sm:$0xff] %v712
    %v4987 = vld [vmem:[#allocation1] sm:$0xff]
    %4989 = vst [vmem:[#allocation1] ss:$9 sm:$0xff] %v715
    %v4990 = vld [vmem:[#allocation1] sm:$0xff]
    %4992 = vst [vmem:[#allocation1] ss:$9 sm:$0xff] %v718
    %v4993 = vld [vmem:[#allocation1] sm:$0xff]
    %4995 = vst [vmem:[#allocation1] ss:$9 sm:$0xff] %v721
    %v4996 = vld [vmem:[#allocation1] sm:$0xff]
    %4998 = vst [vmem:[#allocation1] ss:$9 sm:$0xff] %v724
    %v4999 = vld [vmem:[#allocation1] sm:$0xff]
    %5001 = vst [vmem:[#allocation1] ss:$9 sm:$0xff] %v727
    %v5002 = vld [vmem:[#allocation1] sm:$0xff]
    %5004 = vst [vmem:[#allocation1] ss:$9 sm:$0xff] %v730
    %v5005 = vld [vmem:[#allocation1] sm:$0xff]
    %5007 = vst [vmem:[#allocation1] ss:$9 sm:$0xff] %v733
    %v5008 = vld [vmem:[#allocation1] sm:$0xff]
    %5010 = vst [vmem:[#allocation1] ss:$9 sm:$0xff] %v736
    %v5011 = vld [vmem:[#allocation1] sm:$0xff]
    %5013 = vst [vmem:[#allocation1] ss:$9 sm:$0xff] %v748
    %v5014 = vld [vmem:[#allocation1] sm:$0xff]
    %5016 = vst [vmem:[#allocation1] ss:$9 sm:$0xff] %v751
    %v5017 = vld [vmem:[#allocation1] sm:$0xff]
    %5019 = vst [vmem:[#allocation1] ss:$9 sm:$0xff] %v754
    %v5020 = vld [vmem:[#allocation1] sm:$0xff]
    %5022 = vst [vmem:[#allocation1] ss:$9 sm:$0xff] %v757
    %v5023 = vld [vmem:[#allocation1] sm:$0xff]
    %5025 = vst [vmem:[#allocation1] ss:$9 sm:$0xff] %v760
    %v5026 = vld [vmem:[#allocation1] sm:$0xff]
    %5028 = vst [vmem:[#allocation1] ss:$9 sm:$0xff] %v763
    %v5029 = vld [vmem:[#allocation1] sm:$0xff]
    %5031 = vst [vmem:[#allocation1] ss:$9 sm:$0xff] %v766
    %v5032 = vld [vmem:[#allocation1] sm:$0xff]
    %5034 = vst [vmem:[#allocation1] ss:$9 sm:$0xff] %v769
    %v5035 = vld [vmem:[#allocation1] sm:$0xff]
    %5037 = vst [vmem:[#allocation1] ss:$9 sm:$0xff] %v772
    %v5038 = vld [vmem:[#allocation1] sm:$0xff]
    %5040 = vst [vmem:[#allocation1] ss:$9 sm:$0xff] %v775
    %v5041 = vld [vmem:[#allocation1] sm:$0xff]
    %5043 = vst [vmem:[#allocation1] ss:$9 sm:$0xff] %v778
    %v5044 = vld [vmem:[#allocation1] sm:$0xff]
    %5047 = vst [vmem:[#allocation1] ss:$9 sm:$0xff] %v781
    %v5048 = vld [vmem:[#allocation1] sm:$0xff]
    %v5050 = vunpack.c.l.b16 %v4757
    %v5051 = vunpack.c.l.b16 %v4760
    %v5052 = vunpack.c.l.b16 %v4763
    %v5053 = vunpack.c.l.b16 %v4766
    %v5054 = vunpack.c.l.b16 %v4769
    %v5055 = vunpack.c.l.b16 %v4772
    %v5056 = vunpack.c.l.b16 %v4775
    %v5057 = vunpack.c.l.b16 %v4778
    %v5058 = vunpack.c.l.b16 %v4781
    %v5059 = vunpack.c.l.b16 %v4784
    %v5060 = vunpack.c.l.b16 %v4787
    %v5061 = vunpack.c.l.b16 %v4791
    %v5062 = vunpack.c.l.b16 %v4794
    %v5063 = vunpack.c.l.b16 %v4797
    %v5064 = vunpack.c.l.b16 %v4800
    %v5065 = vunpack.c.l.b16 %v4803
    %v5066 = vunpack.c.l.b16 %v4806
    %v5067 = vunpack.c.l.b16 %v4809
    %v5068 = vunpack.c.l.b16 %v4812
    %v5069 = vunpack.c.l.b16 %v4815
    %v5070 = vunpack.c.l.b16 %v4818
    %v5071 = vunpack.c.l.b16 %v4821
    %v5072 = vunpack.c.l.b16 %v4824
    %v5073 = vunpack.c.l.b16 %v4828
    %v5074 = vunpack.c.l.b16 %v4831
    %v5075 = vunpack.c.l.b16 %v4834
    %v5076 = vunpack.c.l.b16 %v4837
    %v5077 = vunpack.c.l.b16 %v4840
    %v5078 = vunpack.c.l.b16 %v4843
    %v5079 = vunpack.c.l.b16 %v4846
    %v5080 = vunpack.c.l.b16 %v4849
    %v5081 = vunpack.c.l.b16 %v4852
    %v5082 = vunpack.c.l.b16 %v4855
    %v5083 = vunpack.c.l.b16 %v4858
    %v5084 = vunpack.c.l.b16 %v4861
    %v5085 = vunpack.c.l.b16 %v4864
    %v5086 = vunpack.c.l.b16 %v4867
    %v5087 = vunpack.c.l.b16 %v4870
    %v5088 = vunpack.c.l.b16 %v4873
    %v5089 = vunpack.c.l.b16 %v4876
    %v5090 = vunpack.c.l.b16 %v4879
    %v5091 = vunpack.c.l.b16 %v4882
    %v5092 = vunpack.c.l.b16 %v4885
    %v5093 = vunpack.c.l.b16 %v4888
    %v5094 = vunpack.c.l.b16 %v4891
    %v5095 = vunpack.c.l.b16 %v4894
    %v5096 = vunpack.c.l.b16 %v4897
    %v5097 = vunpack.c.l.b16 %v4901
    %v5098 = vunpack.c.l.b16 %v4904
    %v5099 = vunpack.c.l.b16 %v4907
    %v5100 = vunpack.c.l.b16 %v4910
    %v5101 = vunpack.c.l.b16 %v4913
    %v5102 = vunpack.c.l.b16 %v4916
    %v5103 = vunpack.c.l.b16 %v4919
    %v5104 = vunpack.c.l.b16 %v4922
    %v5105 = vunpack.c.l.b16 %v4925
    %v5106 = vunpack.c.l.b16 %v4928
    %v5107 = vunpack.c.l.b16 %v4931
    %v5108 = vunpack.c.l.b16 %v4934
    %v5109 = vunpack.c.l.b16 %v4938
    %v5110 = vunpack.c.l.b16 %v4941
    %v5111 = vunpack.c.l.b16 %v4944
    %v5112 = vunpack.c.l.b16 %v4947
    %v5113 = vunpack.c.l.b16 %v4950
    %v5114 = vunpack.c.l.b16 %v4953
    %v5115 = vunpack.c.l.b16 %v4956
    %v5116 = vunpack.c.l.b16 %v4959
    %v5117 = vunpack.c.l.b16 %v4962
    %v5118 = vunpack.c.l.b16 %v4965
    %v5119 = vunpack.c.l.b16 %v4968
    %v5120 = vunpack.c.l.b16 %v4971
    %v5121 = vunpack.c.l.b16 %v4975
    %v5122 = vunpack.c.l.b16 %v4978
    %v5123 = vunpack.c.l.b16 %v4981
    %v5124 = vunpack.c.l.b16 %v4984
    %v5125 = vunpack.c.l.b16 %v4987
    %v5126 = vunpack.c.l.b16 %v4990
    %v5127 = vunpack.c.l.b16 %v4993
    %v5128 = vunpack.c.l.b16 %v4996
    %v5129 = vunpack.c.l.b16 %v4999
    %v5130 = vunpack.c.l.b16 %v5002
    %v5131 = vunpack.c.l.b16 %v5005
    %v5132 = vunpack.c.l.b16 %v5008
    %v5133 = vunpack.c.l.b16 %v5011
    %v5134 = vunpack.c.l.b16 %v5014
    %v5135 = vunpack.c.l.b16 %v5017
    %v5136 = vunpack.c.l.b16 %v5020
    %v5137 = vunpack.c.l.b16 %v5023
    %v5138 = vunpack.c.l.b16 %v5026
    %v5139 = vunpack.c.l.b16 %v5029
    %v5140 = vunpack.c.l.b16 %v5032
    %v5141 = vunpack.c.l.b16 %v5035
    %v5142 = vunpack.c.l.b16 %v5038
    %v5143 = vunpack.c.l.b16 %v5041
    %v5144 = vunpack.c.l.b16 %v5044
    %v5145 = vunpack.c.l.b16 %v5048
    %v5146 = vrot.slane %v5051, 7
    %v5147 = vsel %vm422, %v5146, %v5050
    %v5148 = vrot.slane %v5052, 6
    %v5149 = vsel %vm426, %v5148, %v5147
    %v5150 = vrot.slane %v5053, 5
    %v5151 = vsel %vm430, %v5150, %v5149
    %v5152 = vrot.slane %v5054, 4
    %v5153 = vsel %vm1254, %v5152, %v5151
    %v5154 = vrot.slane %v5055, 3
    %v5155 = vsel %vm1257, %v5154, %v5153
    %v5156 = vrot.slane %v5056, 2
    %v5157 = vsel %vm1260, %v5156, %v5155
    %v5158 = vrot.slane %v5057, 1
    %v5159 = vsel %vm1263, %v5158, %v5157
    %v5160 = vrot.slane %v5059, 7
    %v5161 = vsel %vm422, %v5160, %v5058
    %v5162 = vrot.slane %v5060, 6
    %v5163 = vsel %vm426, %v5162, %v5161
    %v5164 = vrot.slane %v5061, 5
    %v5165 = vsel %vm430, %v5164, %v5163
    %v5166 = vrot.slane %v5062, 4
    %v5167 = vsel %vm1254, %v5166, %v5165
    %v5168 = vrot.slane %v5063, 3
    %v5169 = vsel %vm1257, %v5168, %v5167
    %v5170 = vrot.slane %v5064, 2
    %v5171 = vsel %vm1260, %v5170, %v5169
    %v5172 = vrot.slane %v5065, 1
    %v5173 = vsel %vm1263, %v5172, %v5171
    %v5174 = vrot.slane %v5067, 7
    %v5175 = vsel %vm422, %v5174, %v5066
    %v5176 = vrot.slane %v5068, 6
    %v5177 = vsel %vm426, %v5176, %v5175
    %v5178 = vrot.slane %v5069, 5
    %v5179 = vsel %vm430, %v5178, %v5177
    %v5180 = vrot.slane %v5070, 4
    %v5181 = vsel %vm1254, %v5180, %v5179
    %v5182 = vrot.slane %v5071, 3
    %v5183 = vsel %vm1257, %v5182, %v5181
    %v5184 = vrot.slane %v5072, 2
    %v5185 = vsel %vm1260, %v5184, %v5183
    %v5186 = vrot.slane %v5073, 1
    %v5187 = vsel %vm1263, %v5186, %v5185
    %v5188 = vrot.slane %v5075, 7
    %v5189 = vsel %vm422, %v5188, %v5074
    %v5190 = vrot.slane %v5076, 6
    %v5191 = vsel %vm426, %v5190, %v5189
    %v5192 = vrot.slane %v5077, 5
    %v5193 = vsel %vm430, %v5192, %v5191
    %v5194 = vrot.slane %v5078, 4
    %v5195 = vsel %vm1254, %v5194, %v5193
    %v5196 = vrot.slane %v5079, 3
    %v5197 = vsel %vm1257, %v5196, %v5195
    %v5198 = vrot.slane %v5080, 2
    %v5199 = vsel %vm1260, %v5198, %v5197
    %v5200 = vrot.slane %v5081, 1
    %v5201 = vsel %vm1263, %v5200, %v5199
    %v5202 = vrot.slane %v5083, 7
    %v5203 = vsel %vm422, %v5202, %v5082
    %v5204 = vrot.slane %v5084, 6
    %v5205 = vsel %vm426, %v5204, %v5203
    %v5206 = vrot.slane %v5085, 5
    %v5207 = vsel %vm430, %v5206, %v5205
    %v5208 = vrot.slane %v5086, 4
    %v5209 = vsel %vm1254, %v5208, %v5207
    %v5210 = vrot.slane %v5087, 3
    %v5211 = vsel %vm1257, %v5210, %v5209
    %v5212 = vrot.slane %v5088, 2
    %v5213 = vsel %vm1260, %v5212, %v5211
    %v5214 = vrot.slane %v5089, 1
    %v5215 = vsel %vm1263, %v5214, %v5213
    %v5216 = vrot.slane %v5091, 7
    %v5217 = vsel %vm422, %v5216, %v5090
    %v5218 = vrot.slane %v5092, 6
    %v5219 = vsel %vm426, %v5218, %v5217
    %v5220 = vrot.slane %v5093, 5
    %v5221 = vsel %vm430, %v5220, %v5219
    %v5222 = vrot.slane %v5094, 4
    %v5223 = vsel %vm1254, %v5222, %v5221
    %v5224 = vrot.slane %v5095, 3
    %v5225 = vsel %vm1257, %v5224, %v5223
    %v5226 = vrot.slane %v5096, 2
    %v5227 = vsel %vm1260, %v5226, %v5225
    %v5228 = vrot.slane %v5097, 1
    %v5229 = vsel %vm1263, %v5228, %v5227
    %v5230 = vrot.slane %v5099, 7
    %v5231 = vsel %vm422, %v5230, %v5098
    %v5232 = vrot.slane %v5100, 6
    %v5233 = vsel %vm426, %v5232, %v5231
    %v5234 = vrot.slane %v5101, 5
    %v5235 = vsel %vm430, %v5234, %v5233
    %v5236 = vrot.slane %v5102, 4
    %v5237 = vsel %vm1254, %v5236, %v5235
    %v5238 = vrot.slane %v5103, 3
    %v5239 = vsel %vm1257, %v5238, %v5237
    %v5240 = vrot.slane %v5104, 2
    %v5241 = vsel %vm1260, %v5240, %v5239
    %v5242 = vrot.slane %v5105, 1
    %v5243 = vsel %vm1263, %v5242, %v5241
    %v5244 = vrot.slane %v5107, 7
    %v5245 = vsel %vm422, %v5244, %v5106
    %v5246 = vrot.slane %v5108, 6
    %v5247 = vsel %vm426, %v5246, %v5245
    %v5248 = vrot.slane %v5109, 5
    %v5249 = vsel %vm430, %v5248, %v5247
    %v5250 = vrot.slane %v5110, 4
    %v5251 = vsel %vm1254, %v5250, %v5249
    %v5252 = vrot.slane %v5111, 3
    %v5253 = vsel %vm1257, %v5252, %v5251
    %v5254 = vrot.slane %v5112, 2
    %v5255 = vsel %vm1260, %v5254, %v5253
    %v5256 = vrot.slane %v5113, 1
    %v5257 = vsel %vm1263, %v5256, %v5255
    %v5258 = vrot.slane %v5115, 7
    %v5259 = vsel %vm422, %v5258, %v5114
    %v5260 = vrot.slane %v5116, 6
    %v5261 = vsel %vm426, %v5260, %v5259
    %v5262 = vrot.slane %v5117, 5
    %v5263 = vsel %vm430, %v5262, %v5261
    %v5264 = vrot.slane %v5118, 4
    %v5265 = vsel %vm1254, %v5264, %v5263
    %v5266 = vrot.slane %v5119, 3
    %v5267 = vsel %vm1257, %v5266, %v5265
    %v5268 = vrot.slane %v5120, 2
    %v5269 = vsel %vm1260, %v5268, %v5267
    %v5270 = vrot.slane %v5121, 1
    %v5271 = vsel %vm1263, %v5270, %v5269
    %v5272 = vrot.slane %v5123, 7
    %v5273 = vsel %vm422, %v5272, %v5122
    %v5274 = vrot.slane %v5124, 6
    %v5275 = vsel %vm426, %v5274, %v5273
    %v5276 = vrot.slane %v5125, 5
    %v5277 = vsel %vm430, %v5276, %v5275
    %v5278 = vrot.slane %v5126, 4
    %v5279 = vsel %vm1254, %v5278, %v5277
    %v5280 = vrot.slane %v5127, 3
    %v5281 = vsel %vm1257, %v5280, %v5279
    %v5282 = vrot.slane %v5128, 2
    %v5283 = vsel %vm1260, %v5282, %v5281
    %v5284 = vrot.slane %v5129, 1
    %v5285 = vsel %vm1263, %v5284, %v5283
    %v5286 = vrot.slane %v5131, 7
    %v5287 = vsel %vm422, %v5286, %v5130
    %v5288 = vrot.slane %v5132, 6
    %v5289 = vsel %vm426, %v5288, %v5287
    %v5290 = vrot.slane %v5133, 5
    %v5291 = vsel %vm430, %v5290, %v5289
    %v5292 = vrot.slane %v5134, 4
    %v5293 = vsel %vm1254, %v5292, %v5291
    %v5294 = vrot.slane %v5135, 3
    %v5295 = vsel %vm1257, %v5294, %v5293
    %v5296 = vrot.slane %v5136, 2
    %v5297 = vsel %vm1260, %v5296, %v5295
    %v5298 = vrot.slane %v5137, 1
    %v5299 = vsel %vm1263, %v5298, %v5297
    %v5300 = vrot.slane %v5139, 7
    %v5301 = vsel %vm422, %v5300, %v5138
    %v5302 = vrot.slane %v5140, 6
    %v5303 = vsel %vm426, %v5302, %v5301
    %v5304 = vrot.slane %v5141, 5
    %v5305 = vsel %vm430, %v5304, %v5303
    %v5306 = vrot.slane %v5142, 4
    %v5307 = vsel %vm1254, %v5306, %v5305
    %v5308 = vrot.slane %v5143, 3
    %v5309 = vsel %vm1257, %v5308, %v5307
    %v5310 = vrot.slane %v5144, 2
    %v5311 = vsel %vm1260, %v5310, %v5309
    %v5312 = vrot.slane %v5145, 1
    %v5313 = vsel %vm1263, %v5312, %v5311
    %v5314 = vpack.c.b16 %v5173, %v5159
    %v5315 = vpack.c.b16 %v5201, %v5187
    %v5316 = vpack.c.b16 %v5229, %v5215
    %v5317 = vpack.c.b16 %v5257, %v5243
    %v5318 = vpack.c.b16 %v5285, %v5271
    %v5319 = vpack.c.b16 %v5313, %v5299
    %v5325 = vunpack.c.l.b16 %v4751
    %v5326 = vunpack.c.l.b16 %v4752
    %v5327 = vunpack.c.l.b16 %v4753
    %v5328 = vunpack.c.l.b16 %v4754
    %v5329 = vunpack.c.l.b16 %v4755
    %v5330 = vpack.c.b16 %v5326, %v5325
    %v5331 = vpack.c.b16 %v5328, %v5327
    %v5332 = vpack.c.b16 %v5329, %v5329
    %v5333 = vrot.slane %v5330, 2
    %v5334 = vrot.slane %v5331, 2
    %v5335 = vsel %vm2718, %v5333, %v5334
    %v5336 = vrot.slane %v5332, 2
    %v5337 = vsel %vm2718, %v5334, %v5336
    %v5340 = vsel %vm1445, %v5314, 0
    %v5343 = vsel %vm1445, %v5315, 0
    %v5346 = vsel %vm1445, %v5316, 0
    %v5349 = vsel %vm1445, %v5317, 0
    %v5352 = vsel %vm1445, %v5318, 0
    %v5355 = vsel %vm1445, %v5319, 0
    %v5358 = vsel %vm1464, %v5337, 0
    %5360 = vmatpush.bf16.msra.mxu0 0
    %5361 = vmatpush.bf16.msra.mxu0 0
    %5362 = vmatpush.bf16.msra.mxu0 0
    %5363 = vmatpush.bf16.msra.mxu0 0
    %5364 = vmatpush.bf16.msra.mxu0 0
    %5365 = vmatpush.bf16.msra.mxu0 0
    %5366 = vmatpush.bf16.msra.mxu0 %v5358
    %5367 = vmatpush.bf16.msra.mxu0 %v5335
    %5368 = vmatmul.bf16.gmra.mxu0 %v5340
    %v5369 = vpop.f32.mrf.mxu0
    %v5370 = vadd.f32 0.0, %v5369
    %v5371 = vpop.f32.mrf.mxu0
    %v5372 = vadd.f32 0.0, %v5371
    %5373 = vmatmul.bf16.gmra.mxu0 %v5343
    %v5374 = vpop.f32.mrf.mxu0
    %v5375 = vadd.f32 0.0, %v5374
    %v5376 = vpop.f32.mrf.mxu0
    %v5377 = vadd.f32 0.0, %v5376
    %5378 = vmatmul.bf16.gmra.mxu0 %v5346
    %v5379 = vpop.f32.mrf.mxu0
    %v5380 = vadd.f32 0.0, %v5379
    %v5381 = vpop.f32.mrf.mxu0
    %v5382 = vadd.f32 0.0, %v5381
    %5383 = vmatmul.bf16.gmra.mxu0 %v5349
    %v5384 = vpop.f32.mrf.mxu0
    %v5385 = vadd.f32 0.0, %v5384
    %v5386 = vpop.f32.mrf.mxu0
    %v5387 = vadd.f32 0.0, %v5386
    %5388 = vmatmul.bf16.gmra.mxu0 %v5352
    %v5389 = vpop.f32.mrf.mxu0
    %v5390 = vadd.f32 0.0, %v5389
    %v5391 = vpop.f32.mrf.mxu0
    %v5392 = vadd.f32 0.0, %v5391
    %5393 = vmatmul.bf16.gmra.mxu0 %v5355
    %v5394 = vpop.f32.mrf.mxu0
    %v5395 = vadd.f32 0.0, %v5394
    %v5396 = vpop.f32.mrf.mxu0
    %v5397 = vadd.f32 0.0, %v5396
    %5398 = vdwg.mxu0
    %v5399 = vadd.f32 %v4739, %v5370
    %v5400 = vadd.f32 %v4740, %v5372
    %v5401 = vadd.f32 %v4741, %v5375
    %v5402 = vadd.f32 %v4742, %v5377
    %v5403 = vadd.f32 %v4743, %v5380
    %v5404 = vadd.f32 %v4744, %v5382
    %v5405 = vadd.f32 %v4745, %v5385
    %v5406 = vadd.f32 %v4746, %v5387
    %v5407 = vadd.f32 %v4747, %v5390
    %v5408 = vadd.f32 %v4748, %v5392
    %v5409 = vadd.f32 %v4749, %v5395
    %v5410 = vadd.f32 %v4750, %v5397
    %v5411 = vld [vmem:[%s5] sm:$0x1]
    %v5413 = vperm.slane %v5411, 0
    %v5415 = vadd.f32 %v5399, %v5413
    %v5416 = vadd.f32 %v5400, %v5413
    %v5417 = vadd.f32 %v5401, %v5413
    %v5418 = vadd.f32 %v5402, %v5413
    %v5419 = vadd.f32 %v5403, %v5413
    %v5420 = vadd.f32 %v5404, %v5413
    %v5421 = vadd.f32 %v5405, %v5413
    %v5422 = vadd.f32 %v5406, %v5413
    %v5423 = vadd.f32 %v5407, %v5413
    %v5424 = vadd.f32 %v5408, %v5413
    %v5425 = vadd.f32 %v5409, %v5413
    %v5426 = vadd.f32 %v5410, %v5413
    %v5427 = vmax.f32 %v5415, 0.0
    %v5428 = vmax.f32 %v5416, 0.0
    %v5429 = vmax.f32 %v5417, 0.0
    %v5430 = vmax.f32 %v5418, 0.0
    %v5431 = vmax.f32 %v5419, 0.0
    %v5432 = vmax.f32 %v5420, 0.0
    %v5433 = vmax.f32 %v5421, 0.0
    %v5434 = vmax.f32 %v5422, 0.0
    %v5435 = vmax.f32 %v5423, 0.0
    %v5436 = vmax.f32 %v5424, 0.0
    %v5437 = vmax.f32 %v5425, 0.0
    %v5438 = vmax.f32 %v5426, 0.0
    %v5439 = vpack.c.bf16 %v5427, %v5427
    %v5440 = vpack.c.bf16 %v5428, %v5428
    %v5441 = vpack.c.bf16 %v5429, %v5429
    %v5442 = vpack.c.bf16 %v5430, %v5430
    %v5443 = vpack.c.bf16 %v5431, %v5431
    %v5444 = vpack.c.bf16 %v5432, %v5432
    %v5445 = vpack.c.bf16 %v5433, %v5433
    %v5446 = vpack.c.bf16 %v5434, %v5434
    %v5447 = vpack.c.bf16 %v5435, %v5435
    %v5448 = vpack.c.bf16 %v5436, %v5436
    %v5449 = vpack.c.bf16 %v5437, %v5437
    %v5450 = vpack.c.bf16 %v5438, %v5438
    %v5463 = vrot.slane %v5439, 3
    %v5464 = vrot.slane %v5440, 3
    %v5465 = vrot.slane %v5441, 3
    %v5466 = vrot.slane %v5442, 3
    %v5467 = vrot.slane %v5443, 3
    %v5468 = vrot.slane %v5444, 3
    %v5469 = vrot.slane %v5445, 3
    %v5470 = vrot.slane %v5446, 3
    %v5471 = vrot.slane %v5447, 3
    %v5472 = vrot.slane %v5448, 3
    %v5473 = vrot.slane %v5449, 3
    %v5474 = vrot.slane %v5450, 3
    %v5477 = vsel %vm418, %v5439, %v5463
    %v5478 = vsel %vm422, %v5439, %v5463
    %v5480 = vrot.slane %v5478, 1
    %v5481 = vsel %vm426, %v5439, %v5463
    %v5483 = vrot.slane %v5481, 2
    %v5484 = vsel %vm430, %v5439, %v5463
    %v5486 = vrot.slane %v5484, 3
    %v5489 = vsel %vm418, %v5440, %v5464
    %v5490 = vsel %vm422, %v5440, %v5464
    %v5492 = vrot.slane %v5490, 1
    %v5493 = vsel %vm426, %v5440, %v5464
    %v5495 = vrot.slane %v5493, 2
    %v5496 = vsel %vm430, %v5440, %v5464
    %v5498 = vrot.slane %v5496, 3
    %v5501 = vsel %vm418, %v5441, %v5465
    %v5502 = vsel %vm422, %v5441, %v5465
    %v5504 = vrot.slane %v5502, 1
    %v5505 = vsel %vm426, %v5441, %v5465
    %v5507 = vrot.slane %v5505, 2
    %v5508 = vsel %vm430, %v5441, %v5465
    %v5510 = vrot.slane %v5508, 3
    %v5513 = vsel %vm418, %v5442, %v5466
    %v5514 = vsel %vm422, %v5442, %v5466
    %v5516 = vrot.slane %v5514, 1
    %v5517 = vsel %vm426, %v5442, %v5466
    %v5519 = vrot.slane %v5517, 2
    %v5520 = vsel %vm430, %v5442, %v5466
    %v5522 = vrot.slane %v5520, 3
    %v5525 = vsel %vm418, %v5443, %v5467
    %v5526 = vsel %vm422, %v5443, %v5467
    %v5528 = vrot.slane %v5526, 1
    %v5529 = vsel %vm426, %v5443, %v5467
    %v5531 = vrot.slane %v5529, 2
    %v5532 = vsel %vm430, %v5443, %v5467
    %v5534 = vrot.slane %v5532, 3
    %v5537 = vsel %vm418, %v5444, %v5468
    %v5538 = vsel %vm422, %v5444, %v5468
    %v5540 = vrot.slane %v5538, 1
    %v5541 = vsel %vm426, %v5444, %v5468
    %v5543 = vrot.slane %v5541, 2
    %v5544 = vsel %vm430, %v5444, %v5468
    %v5546 = vrot.slane %v5544, 3
    %v5549 = vsel %vm418, %v5445, %v5469
    %v5550 = vsel %vm422, %v5445, %v5469
    %v5552 = vrot.slane %v5550, 1
    %v5553 = vsel %vm426, %v5445, %v5469
    %v5555 = vrot.slane %v5553, 2
    %v5556 = vsel %vm430, %v5445, %v5469
    %v5558 = vrot.slane %v5556, 3
    %v5561 = vsel %vm418, %v5446, %v5470
    %v5562 = vsel %vm422, %v5446, %v5470
    %v5564 = vrot.slane %v5562, 1
    %v5565 = vsel %vm426, %v5446, %v5470
    %v5567 = vrot.slane %v5565, 2
    %v5568 = vsel %vm430, %v5446, %v5470
    %v5570 = vrot.slane %v5568, 3
    %v5573 = vsel %vm418, %v5447, %v5471
    %v5574 = vsel %vm422, %v5447, %v5471
    %v5576 = vrot.slane %v5574, 1
    %v5577 = vsel %vm426, %v5447, %v5471
    %v5579 = vrot.slane %v5577, 2
    %v5580 = vsel %vm430, %v5447, %v5471
    %v5582 = vrot.slane %v5580, 3
    %v5585 = vsel %vm418, %v5448, %v5472
    %v5586 = vsel %vm422, %v5448, %v5472
    %v5588 = vrot.slane %v5586, 1
    %v5589 = vsel %vm426, %v5448, %v5472
    %v5591 = vrot.slane %v5589, 2
    %v5592 = vsel %vm430, %v5448, %v5472
    %v5594 = vrot.slane %v5592, 3
    %v5597 = vsel %vm418, %v5449, %v5473
    %v5598 = vsel %vm422, %v5449, %v5473
    %v5600 = vrot.slane %v5598, 1
    %v5601 = vsel %vm426, %v5449, %v5473
    %v5603 = vrot.slane %v5601, 2
    %v5604 = vsel %vm430, %v5449, %v5473
    %v5606 = vrot.slane %v5604, 3
    %v5609 = vsel %vm418, %v5450, %v5474
    %v5610 = vsel %vm422, %v5450, %v5474
    %v5612 = vrot.slane %v5610, 1
    %v5613 = vsel %vm426, %v5450, %v5474
    %v5615 = vrot.slane %v5613, 2
    %v5616 = vsel %vm430, %v5450, %v5474
    %v5618 = vrot.slane %v5616, 3
    %v5619 = vld [vmem:[%s6] sm:$0xf]
    %v5620 = vld [vmem:[%s6 + $0x4] sm:$0xf]
    %v5621 = vld [vmem:[%s6 + $0x8] sm:$0xf]
    %v5622 = vld [vmem:[%s6 + $0xc] sm:$0x7]
    %v5623 = vld [vmem:[%s6 + $0xc] sm:$0x8]
    %v5624 = vld [vmem:[%s6 + $0x10] sm:$0xf]
    %v5625 = vld [vmem:[%s6 + $0x14] sm:$0xf]
    %v5626 = vld [vmem:[%s6 + $0x18] sm:$0xf]
    %v5627 = vld [vmem:[%s6 + $0x1c] sm:$0x3]
    %5628 = vst [vmem:[#allocation1] ss:$9 sm:$0xff] %v5477
    %v5629 = vld [vmem:[#allocation1] sm:$0xff]
    %5632 = vst [vmem:[#allocation1] ss:$9 sm:$0xff] %v5495
    %v5633 = vld [vmem:[#allocation1] sm:$0xff]
    %5635 = vst [vmem:[#allocation1] ss:$9 sm:$0xff] %v5513
    %v5636 = vld [vmem:[#allocation1] sm:$0xff]
    %5639 = vst [vmem:[#allocation1] ss:$9 sm:$0xff] %v5531
    %v5640 = vld [vmem:[#allocation1] sm:$0xff]
    %5642 = vst [vmem:[#allocation1] ss:$9 sm:$0xff] %v5549
    %v5643 = vld [vmem:[#allocation1] sm:$0xff]
    %5646 = vst [vmem:[#allocation1] ss:$9 sm:$0xff] %v5567
    %v5647 = vld [vmem:[#allocation1] sm:$0xff]
    %5649 = vst [vmem:[#allocation1] ss:$9 sm:$0xff] %v5585
    %v5650 = vld [vmem:[#allocation1] sm:$0xff]
    %5653 = vst [vmem:[#allocation1] ss:$9 sm:$0xff] %v5603
    %v5654 = vld [vmem:[#allocation1] sm:$0xff]
    %v5656 = vunpack.c.l.b16 %v5629
    %v5657 = vunpack.c.l.b16 %v5633
    %v5658 = vunpack.c.l.b16 %v5636
    %v5659 = vunpack.c.l.b16 %v5640
    %v5660 = vunpack.c.l.b16 %v5643
    %v5661 = vunpack.c.l.b16 %v5647
    %v5662 = vunpack.c.l.b16 %v5650
    %v5663 = vunpack.c.l.b16 %v5654
    %v5664 = vrot.slane %v5656, 1
    %v5665 = vsel %vm422, %v5657, %v5664
    %v5666 = vrot.slane %v5658, 7
    %v5667 = vsel %vm426, %v5666, %v5665
    %v5668 = vrot.slane %v5659, 6
    %v5669 = vsel %vm430, %v5668, %v5667
    %v5670 = vrot.slane %v5660, 5
    %v5671 = vsel %vm1254, %v5670, %v5669
    %v5672 = vrot.slane %v5661, 4
    %v5673 = vsel %vm1257, %v5672, %v5671
    %v5674 = vrot.slane %v5662, 3
    %v5675 = vsel %vm1260, %v5674, %v5673
    %v5676 = vrot.slane %v5663, 2
    %v5677 = vsel %vm1263, %v5676, %v5675
    %v5678 = vpack.c.b16 %v5677, %v5677
    %v5684 = vunpack.c.l.b16 %v5623
    %v5685 = vunpack.c.l.b16 %v5624
    %v5686 = vunpack.c.l.b16 %v5625
    %v5687 = vunpack.c.l.b16 %v5626
    %v5688 = vunpack.c.l.b16 %v5627
    %v5689 = vpack.c.b16 %v5685, %v5684
    %v5690 = vpack.c.b16 %v5687, %v5686
    %v5691 = vpack.c.b16 %v5688, %v5688
    %v5692 = vrot.slane %v5689, 3
    %v5693 = vrot.slane %v5690, 3
    %v5694 = vsel %vm1438, %v5692, %v5693
    %v5695 = vrot.slane %v5691, 3
    %v5696 = vsel %vm1438, %v5693, %v5695
    %v5699 = vsel %vm1445, %v5678, 0
    %v5702 = vsel %vm1464, %v5696, 0
    %5704 = vmatpush.bf16.msra.mxu0 0
    %5705 = vmatpush.bf16.msra.mxu0 0
    %5706 = vmatpush.bf16.msra.mxu0 0
    %5707 = vmatpush.bf16.msra.mxu0 0
    %5708 = vmatpush.bf16.msra.mxu0 0
    %5709 = vmatpush.bf16.msra.mxu0 0
    %5710 = vmatpush.bf16.msra.mxu0 %v5702
    %5711 = vmatpush.bf16.msra.mxu0 %v5694
    %5712 = vmatmul.bf16.gmra.mxu0 %v5699
    %v5713 = vpop.f32.mrf.mxu0
    %v5714 = vadd.f32 0.0, %v5713
    %v5715 = vpop.f32.mrf.mxu0
    %5716 = vdwg.mxu0
    %5717 = vst [vmem:[#allocation1] ss:$9 sm:$0xff] %v5477
    %v5718 = vld [vmem:[#allocation1] sm:$0xff]
    %5720 = vst [vmem:[#allocation1] ss:$9 sm:$0xff] %v5495
    %v5721 = vld [vmem:[#allocation1] sm:$0xff]
    %5723 = vst [vmem:[#allocation1] ss:$9 sm:$0xff] %v5513
    %v5724 = vld [vmem:[#allocation1] sm:$0xff]
    %5726 = vst [vmem:[#allocation1] ss:$9 sm:$0xff] %v5531
    %v5727 = vld [vmem:[#allocation1] sm:$0xff]
    %5729 = vst [vmem:[#allocation1] ss:$9 sm:$0xff] %v5549
    %v5730 = vld [vmem:[#allocation1] sm:$0xff]
    %5732 = vst [vmem:[#allocation1] ss:$9 sm:$0xff] %v5567
    %v5733 = vld [vmem:[#allocation1] sm:$0xff]
    %5735 = vst [vmem:[#allocation1] ss:$9 sm:$0xff] %v5585
    %v5736 = vld [vmem:[#allocation1] sm:$0xff]
    %5738 = vst [vmem:[#allocation1] ss:$9 sm:$0xff] %v5603
    %v5739 = vld [vmem:[#allocation1] sm:$0xff]
    %v5741 = vunpack.c.l.b16 %v5718
    %v5742 = vunpack.c.l.b16 %v5721
    %v5743 = vunpack.c.l.b16 %v5724
    %v5744 = vunpack.c.l.b16 %v5727
    %v5745 = vunpack.c.l.b16 %v5730
    %v5746 = vunpack.c.l.b16 %v5733
    %v5747 = vunpack.c.l.b16 %v5736
    %v5748 = vunpack.c.l.b16 %v5739
    %v5749 = vrot.slane %v5742, 7
    %v5750 = vsel %vm422, %v5749, %v5741
    %v5751 = vrot.slane %v5743, 6
    %v5752 = vsel %vm426, %v5751, %v5750
    %v5753 = vrot.slane %v5744, 5
    %v5754 = vsel %vm430, %v5753, %v5752
    %v5755 = vrot.slane %v5745, 4
    %v5756 = vsel %vm1254, %v5755, %v5754
    %v5757 = vrot.slane %v5746, 3
    %v5758 = vsel %vm1257, %v5757, %v5756
    %v5759 = vrot.slane %v5747, 2
    %v5760 = vsel %vm1260, %v5759, %v5758
    %v5761 = vrot.slane %v5748, 1
    %v5762 = vsel %vm1263, %v5761, %v5760
    %v5763 = vpack.c.b16 %v5762, %v5762
    %v5768 = vunpack.c.l.b16 %v5619
    %v5769 = vunpack.c.l.b16 %v5620
    %v5770 = vunpack.c.l.b16 %v5621
    %v5771 = vunpack.c.l.b16 %v5622
    %v5772 = vpack.c.b16 %v5769, %v5768
    %v5773 = vpack.c.b16 %v5771, %v5770
    %v5776 = vsel %vm1445, %v5763, 0
    %v5779 = vsel %vm1464, %v5773, 0
    %5781 = vmatpush.bf16.msra.mxu0 0
    %5782 = vmatpush.bf16.msra.mxu0 0
    %5783 = vmatpush.bf16.msra.mxu0 0
    %5784 = vmatpush.bf16.msra.mxu0 0
    %5785 = vmatpush.bf16.msra.mxu0 0
    %5786 = vmatpush.bf16.msra.mxu0 0
    %5787 = vmatpush.bf16.msra.mxu0 %v5779
    %5788 = vmatpush.bf16.msra.mxu0 %v5772
    %5789 = vmatmul.bf16.gmra.mxu0 %v5776
    %v5790 = vpop.f32.mrf.mxu0
    %v5791 = vadd.f32 %v5714, %v5790
    %v5792 = vpop.f32.mrf.mxu0
    %5793 = vdwg.mxu0
    %v5794 = vld [vmem:[%s6 + $0x1c] sm:$0xc]
    %v5795 = vld [vmem:[%s6 + $0x20] sm:$0xf]
    %v5796 = vld [vmem:[%s6 + $0x24] sm:$0xf]
    %v5797 = vld [vmem:[%s6 + $0x28] sm:$0xf]
    %v5798 = vld [vmem:[%s6 + $0x2c] sm:$0x1]
    %5800 = vst [vmem:[#allocation1] ss:$9 sm:$0xff] %v5480
    %v5801 = vld [vmem:[#allocation1] sm:$0xff]
    %5804 = vst [vmem:[#allocation1] ss:$9 sm:$0xff] %v5498
    %v5805 = vld [vmem:[#allocation1] sm:$0xff]
    %5808 = vst [vmem:[#allocation1] ss:$9 sm:$0xff] %v5516
    %v5809 = vld [vmem:[#allocation1] sm:$0xff]
    %5812 = vst [vmem:[#allocation1] ss:$9 sm:$0xff] %v5534
    %v5813 = vld [vmem:[#allocation1] sm:$0xff]
    %5816 = vst [vmem:[#allocation1] ss:$9 sm:$0xff] %v5552
    %v5817 = vld [vmem:[#allocation1] sm:$0xff]
    %5820 = vst [vmem:[#allocation1] ss:$9 sm:$0xff] %v5570
    %v5821 = vld [vmem:[#allocation1] sm:$0xff]
    %5824 = vst [vmem:[#allocation1] ss:$9 sm:$0xff] %v5588
    %v5825 = vld [vmem:[#allocation1] sm:$0xff]
    %5828 = vst [vmem:[#allocation1] ss:$9 sm:$0xff] %v5606
    %v5829 = vld [vmem:[#allocation1] sm:$0xff]
    %v5831 = vunpack.c.l.b16 %v5801
    %v5832 = vunpack.c.l.b16 %v5805
    %v5833 = vunpack.c.l.b16 %v5809
    %v5834 = vunpack.c.l.b16 %v5813
    %v5835 = vunpack.c.l.b16 %v5817
    %v5836 = vunpack.c.l.b16 %v5821
    %v5837 = vunpack.c.l.b16 %v5825
    %v5838 = vunpack.c.l.b16 %v5829
    %v5839 = vrot.slane %v5832, 7
    %v5840 = vsel %vm422, %v5839, %v5831
    %v5841 = vrot.slane %v5833, 6
    %v5842 = vsel %vm426, %v5841, %v5840
    %v5843 = vrot.slane %v5834, 5
    %v5844 = vsel %vm430, %v5843, %v5842
    %v5845 = vrot.slane %v5835, 4
    %v5846 = vsel %vm1254, %v5845, %v5844
    %v5847 = vrot.slane %v5836, 3
    %v5848 = vsel %vm1257, %v5847, %v5846
    %v5849 = vrot.slane %v5837, 2
    %v5850 = vsel %vm1260, %v5849, %v5848
    %v5851 = vrot.slane %v5838, 1
    %v5852 = vsel %vm1263, %v5851, %v5850
    %v5853 = vpack.c.b16 %v5852, %v5852
    %v5859 = vunpack.c.l.b16 %v5794
    %v5860 = vunpack.c.l.b16 %v5795
    %v5861 = vunpack.c.l.b16 %v5796
    %v5862 = vunpack.c.l.b16 %v5797
    %v5863 = vunpack.c.l.b16 %v5798
    %v5864 = vpack.c.b16 %v5860, %v5859
    %v5865 = vpack.c.b16 %v5862, %v5861
    %v5866 = vpack.c.b16 %v5863, %v5863
    %v5867 = vrot.slane %v5864, 2
    %v5868 = vrot.slane %v5865, 2
    %v5869 = vsel %vm2718, %v5867, %v5868
    %v5870 = vrot.slane %v5866, 2
    %v5871 = vsel %vm2718, %v5868, %v5870
    %v5874 = vsel %vm1445, %v5853, 0
    %v5877 = vsel %vm1464, %v5871, 0
    %5879 = vmatpush.bf16.msra.mxu0 0
    %5880 = vmatpush.bf16.msra.mxu0 0
    %5881 = vmatpush.bf16.msra.mxu0 0
    %5882 = vmatpush.bf16.msra.mxu0 0
    %5883 = vmatpush.bf16.msra.mxu0 0
    %5884 = vmatpush.bf16.msra.mxu0 0
    %5885 = vmatpush.bf16.msra.mxu0 %v5877
    %5886 = vmatpush.bf16.msra.mxu0 %v5869
    %5887 = vmatmul.bf16.gmra.mxu0 %v5874
    %v5888 = vpop.f32.mrf.mxu0
    %v5889 = vadd.f32 0.0, %v5888
    %v5890 = vpop.f32.mrf.mxu0
    %5891 = vdwg.mxu0
    %v5892 = vadd.f32 %v5791, %v5889
    %v5893 = vld [vmem:[%s6 + $0x2c] sm:$0xe]
    %v5894 = vld [vmem:[%s6 + $0x30] sm:$0xf]
    %v5895 = vld [vmem:[%s6 + $0x34] sm:$0xf]
    %v5896 = vld [vmem:[%s6 + $0x38] sm:$0xf]
    %5897 = vst [vmem:[#allocation1] ss:$9 sm:$0xff] %v5480
    %v5898 = vld [vmem:[#allocation1] sm:$0xff]
    %5900 = vst [vmem:[#allocation1] ss:$9 sm:$0xff] %v5498
    %v5901 = vld [vmem:[#allocation1] sm:$0xff]
    %5903 = vst [vmem:[#allocation1] ss:$9 sm:$0xff] %v5516
    %v5904 = vld [vmem:[#allocation1] sm:$0xff]
    %5906 = vst [vmem:[#allocation1] ss:$9 sm:$0xff] %v5534
    %v5907 = vld [vmem:[#allocation1] sm:$0xff]
    %5909 = vst [vmem:[#allocation1] ss:$9 sm:$0xff] %v5552
    %v5910 = vld [vmem:[#allocation1] sm:$0xff]
    %5912 = vst [vmem:[#allocation1] ss:$9 sm:$0xff] %v5570
    %v5913 = vld [vmem:[#allocation1] sm:$0xff]
    %5915 = vst [vmem:[#allocation1] ss:$9 sm:$0xff] %v5588
    %v5916 = vld [vmem:[#allocation1] sm:$0xff]
    %5918 = vst [vmem:[#allocation1] ss:$9 sm:$0xff] %v5606
    %v5919 = vld [vmem:[#allocation1] sm:$0xff]
    %v5921 = vunpack.c.l.b16 %v5898
    %v5922 = vunpack.c.l.b16 %v5901
    %v5923 = vunpack.c.l.b16 %v5904
    %v5924 = vunpack.c.l.b16 %v5907
    %v5925 = vunpack.c.l.b16 %v5910
    %v5926 = vunpack.c.l.b16 %v5913
    %v5927 = vunpack.c.l.b16 %v5916
    %v5928 = vunpack.c.l.b16 %v5919
    %v5929 = vrot.slane %v5921, 1
    %v5930 = vsel %vm422, %v5922, %v5929
    %v5931 = vrot.slane %v5923, 7
    %v5932 = vsel %vm426, %v5931, %v5930
    %v5933 = vrot.slane %v5924, 6
    %v5934 = vsel %vm430, %v5933, %v5932
    %v5935 = vrot.slane %v5925, 5
    %v5936 = vsel %vm1254, %v5935, %v5934
    %v5937 = vrot.slane %v5926, 4
    %v5938 = vsel %vm1257, %v5937, %v5936
    %v5939 = vrot.slane %v5927, 3
    %v5940 = vsel %vm1260, %v5939, %v5938
    %v5941 = vrot.slane %v5928, 2
    %v5942 = vsel %vm1263, %v5941, %v5940
    %v5943 = vpack.c.b16 %v5942, %v5942
    %v5948 = vunpack.c.l.b16 %v5893
    %v5949 = vunpack.c.l.b16 %v5894
    %v5950 = vunpack.c.l.b16 %v5895
    %v5951 = vunpack.c.l.b16 %v5896
    %v5952 = vpack.c.b16 %v5949, %v5948
    %v5953 = vpack.c.b16 %v5951, %v5950
    %v5954 = vrot.slane %v5952, 1
    %v5955 = vrot.slane %v5953, 1
    %v5956 = vsel %vm3369, %v5954, %v5955
    %v5959 = vsel %vm1445, %v5943, 0
    %v5962 = vsel %vm1464, %v5955, 0
    %5964 = vmatpush.bf16.msra.mxu0 0
    %5965 = vmatpush.bf16.msra.mxu0 0
    %5966 = vmatpush.bf16.msra.mxu0 0
    %5967 = vmatpush.bf16.msra.mxu0 0
    %5968 = vmatpush.bf16.msra.mxu0 0
    %5969 = vmatpush.bf16.msra.mxu0 0
    %5970 = vmatpush.bf16.msra.mxu0 %v5962
    %5971 = vmatpush.bf16.msra.mxu0 %v5956
    %5972 = vmatmul.bf16.gmra.mxu0 %v5959
    %v5973 = vpop.f32.mrf.mxu0
    %v5974 = vadd.f32 0.0, %v5973
    %v5975 = vpop.f32.mrf.mxu0
    %5976 = vdwg.mxu0
    %v5977 = vadd.f32 %v5892, %v5974
    %v5978 = vld [vmem:[%s6 + $0x3c] sm:$0xf]
    %v5979 = vld [vmem:[%s6 + $0x40] sm:$0xf]
    %v5980 = vld [vmem:[%s6 + $0x44] sm:$0xf]
    %v5981 = vld [vmem:[%s6 + $0x48] sm:$0x7]
    %5983 = vst [vmem:[#allocation1] ss:$9 sm:$0xff] %v5483
    %v5984 = vld [vmem:[#allocation1] sm:$0xff]
    %5986 = vst [vmem:[#allocation1] ss:$9 sm:$0xff] %v5501
    %v5987 = vld [vmem:[#allocation1] sm:$0xff]
    %5990 = vst [vmem:[#allocation1] ss:$9 sm:$0xff] %v5519
    %v5991 = vld [vmem:[#allocation1] sm:$0xff]
    %5993 = vst [vmem:[#allocation1] ss:$9 sm:$0xff] %v5537
    %v5994 = vld [vmem:[#allocation1] sm:$0xff]
    %5997 = vst [vmem:[#allocation1] ss:$9 sm:$0xff] %v5555
    %v5998 = vld [vmem:[#allocation1] sm:$0xff]
    %6000 = vst [vmem:[#allocation1] ss:$9 sm:$0xff] %v5573
    %v6001 = vld [vmem:[#allocation1] sm:$0xff]
    %6004 = vst [vmem:[#allocation1] ss:$9 sm:$0xff] %v5591
    %v6005 = vld [vmem:[#allocation1] sm:$0xff]
    %6007 = vst [vmem:[#allocation1] ss:$9 sm:$0xff] %v5609
    %v6008 = vld [vmem:[#allocation1] sm:$0xff]
    %v6010 = vunpack.c.l.b16 %v5984
    %v6011 = vunpack.c.l.b16 %v5987
    %v6012 = vunpack.c.l.b16 %v5991
    %v6013 = vunpack.c.l.b16 %v5994
    %v6014 = vunpack.c.l.b16 %v5998
    %v6015 = vunpack.c.l.b16 %v6001
    %v6016 = vunpack.c.l.b16 %v6005
    %v6017 = vunpack.c.l.b16 %v6008
    %v6018 = vrot.slane %v6011, 7
    %v6019 = vsel %vm422, %v6018, %v6010
    %v6020 = vrot.slane %v6012, 6
    %v6021 = vsel %vm426, %v6020, %v6019
    %v6022 = vrot.slane %v6013, 5
    %v6023 = vsel %vm430, %v6022, %v6021
    %v6024 = vrot.slane %v6014, 4
    %v6025 = vsel %vm1254, %v6024, %v6023
    %v6026 = vrot.slane %v6015, 3
    %v6027 = vsel %vm1257, %v6026, %v6025
    %v6028 = vrot.slane %v6016, 2
    %v6029 = vsel %vm1260, %v6028, %v6027
    %v6030 = vrot.slane %v6017, 1
    %v6031 = vsel %vm1263, %v6030, %v6029
    %v6032 = vpack.c.b16 %v6031, %v6031
    %v6037 = vunpack.c.l.b16 %v5978
    %v6038 = vunpack.c.l.b16 %v5979
    %v6039 = vunpack.c.l.b16 %v5980
    %v6040 = vunpack.c.l.b16 %v5981
    %v6041 = vpack.c.b16 %v6038, %v6037
    %v6042 = vpack.c.b16 %v6040, %v6039
    %v6045 = vsel %vm1445, %v6032, 0
    %v6048 = vsel %vm1464, %v6042, 0
    %6050 = vmatpush.bf16.msra.mxu0 0
    %6051 = vmatpush.bf16.msra.mxu0 0
    %6052 = vmatpush.bf16.msra.mxu0 0
    %6053 = vmatpush.bf16.msra.mxu0 0
    %6054 = vmatpush.bf16.msra.mxu0 0
    %6055 = vmatpush.bf16.msra.mxu0 0
    %6056 = vmatpush.bf16.msra.mxu0 %v6048
    %6057 = vmatpush.bf16.msra.mxu0 %v6041
    %6058 = vmatmul.bf16.gmra.mxu0 %v6045
    %v6059 = vpop.f32.mrf.mxu0
    %v6060 = vadd.f32 0.0, %v6059
    %v6061 = vpop.f32.mrf.mxu0
    %6062 = vdwg.mxu0
    %v6063 = vadd.f32 %v5977, %v6060
    %v6064 = vld [vmem:[%s6 + $0x48] sm:$0x8]
    %v6065 = vld [vmem:[%s6 + $0x4c] sm:$0xf]
    %v6066 = vld [vmem:[%s6 + $0x50] sm:$0xf]
    %v6067 = vld [vmem:[%s6 + $0x54] sm:$0xf]
    %v6068 = vld [vmem:[%s6 + $0x58] sm:$0x3]
    %6069 = vst [vmem:[#allocation1] ss:$9 sm:$0xff] %v5483
    %v6070 = vld [vmem:[#allocation1] sm:$0xff]
    %6072 = vst [vmem:[#allocation1] ss:$9 sm:$0xff] %v5501
    %v6073 = vld [vmem:[#allocation1] sm:$0xff]
    %6075 = vst [vmem:[#allocation1] ss:$9 sm:$0xff] %v5519
    %v6076 = vld [vmem:[#allocation1] sm:$0xff]
    %6078 = vst [vmem:[#allocation1] ss:$9 sm:$0xff] %v5537
    %v6079 = vld [vmem:[#allocation1] sm:$0xff]
    %6081 = vst [vmem:[#allocation1] ss:$9 sm:$0xff] %v5555
    %v6082 = vld [vmem:[#allocation1] sm:$0xff]
    %6084 = vst [vmem:[#allocation1] ss:$9 sm:$0xff] %v5573
    %v6085 = vld [vmem:[#allocation1] sm:$0xff]
    %6087 = vst [vmem:[#allocation1] ss:$9 sm:$0xff] %v5591
    %v6088 = vld [vmem:[#allocation1] sm:$0xff]
    %6090 = vst [vmem:[#allocation1] ss:$9 sm:$0xff] %v5609
    %v6091 = vld [vmem:[#allocation1] sm:$0xff]
    %v6093 = vunpack.c.l.b16 %v6070
    %v6094 = vunpack.c.l.b16 %v6073
    %v6095 = vunpack.c.l.b16 %v6076
    %v6096 = vunpack.c.l.b16 %v6079
    %v6097 = vunpack.c.l.b16 %v6082
    %v6098 = vunpack.c.l.b16 %v6085
    %v6099 = vunpack.c.l.b16 %v6088
    %v6100 = vunpack.c.l.b16 %v6091
    %v6101 = vrot.slane %v6093, 1
    %v6102 = vsel %vm422, %v6094, %v6101
    %v6103 = vrot.slane %v6095, 7
    %v6104 = vsel %vm426, %v6103, %v6102
    %v6105 = vrot.slane %v6096, 6
    %v6106 = vsel %vm430, %v6105, %v6104
    %v6107 = vrot.slane %v6097, 5
    %v6108 = vsel %vm1254, %v6107, %v6106
    %v6109 = vrot.slane %v6098, 4
    %v6110 = vsel %vm1257, %v6109, %v6108
    %v6111 = vrot.slane %v6099, 3
    %v6112 = vsel %vm1260, %v6111, %v6110
    %v6113 = vrot.slane %v6100, 2
    %v6114 = vsel %vm1263, %v6113, %v6112
    %v6115 = vpack.c.b16 %v6114, %v6114
    %v6121 = vunpack.c.l.b16 %v6064
    %v6122 = vunpack.c.l.b16 %v6065
    %v6123 = vunpack.c.l.b16 %v6066
    %v6124 = vunpack.c.l.b16 %v6067
    %v6125 = vunpack.c.l.b16 %v6068
    %v6126 = vpack.c.b16 %v6122, %v6121
    %v6127 = vpack.c.b16 %v6124, %v6123
    %v6128 = vpack.c.b16 %v6125, %v6125
    %v6129 = vrot.slane %v6126, 3
    %v6130 = vrot.slane %v6127, 3
    %v6131 = vsel %vm1438, %v6129, %v6130
    %v6132 = vrot.slane %v6128, 3
    %v6133 = vsel %vm1438, %v6130, %v6132
    %v6136 = vsel %vm1445, %v6115, 0
    %v6139 = vsel %vm1464, %v6133, 0
    %6141 = vmatpush.bf16.msra.mxu0 0
    %6142 = vmatpush.bf16.msra.mxu0 0
    %6143 = vmatpush.bf16.msra.mxu0 0
    %6144 = vmatpush.bf16.msra.mxu0 0
    %6145 = vmatpush.bf16.msra.mxu0 0
    %6146 = vmatpush.bf16.msra.mxu0 0
    %6147 = vmatpush.bf16.msra.mxu0 %v6139
    %6148 = vmatpush.bf16.msra.mxu0 %v6131
    %6149 = vmatmul.bf16.gmra.mxu0 %v6136
    %v6150 = vpop.f32.mrf.mxu0
    %v6151 = vadd.f32 0.0, %v6150
    %v6152 = vpop.f32.mrf.mxu0
    %6153 = vdwg.mxu0
    %v6154 = vadd.f32 %v6063, %v6151
    %v6155 = vld [vmem:[%s6 + $0x58] sm:$0xc]
    %v6156 = vld [vmem:[%s6 + $0x5c] sm:$0xf]
    %v6157 = vld [vmem:[%s6 + $0x60] sm:$0xf]
    %v6158 = vld [vmem:[%s6 + $0x64] sm:$0xf]
    %v6159 = vld [vmem:[%s6 + $0x68] sm:$0x1]
    %6161 = vst [vmem:[#allocation1] ss:$9 sm:$0xff] %v5486
    %v6162 = vld [vmem:[#allocation1] sm:$0xff]
    %6165 = vst [vmem:[#allocation1] ss:$9 sm:$0xff] %v5504
    %v6166 = vld [vmem:[#allocation1] sm:$0xff]
    %6169 = vst [vmem:[#allocation1] ss:$9 sm:$0xff] %v5522
    %v6170 = vld [vmem:[#allocation1] sm:$0xff]
    %6173 = vst [vmem:[#allocation1] ss:$9 sm:$0xff] %v5540
    %v6174 = vld [vmem:[#allocation1] sm:$0xff]
    %6177 = vst [vmem:[#allocation1] ss:$9 sm:$0xff] %v5558
    %v6178 = vld [vmem:[#allocation1] sm:$0xff]
    %6181 = vst [vmem:[#allocation1] ss:$9 sm:$0xff] %v5576
    %v6182 = vld [vmem:[#allocation1] sm:$0xff]
    %6185 = vst [vmem:[#allocation1] ss:$9 sm:$0xff] %v5594
    %v6186 = vld [vmem:[#allocation1] sm:$0xff]
    %6189 = vst [vmem:[#allocation1] ss:$9 sm:$0xff] %v5612
    %v6190 = vld [vmem:[#allocation1] sm:$0xff]
    %v6192 = vunpack.c.l.b16 %v6162
    %v6193 = vunpack.c.l.b16 %v6166
    %v6194 = vunpack.c.l.b16 %v6170
    %v6195 = vunpack.c.l.b16 %v6174
    %v6196 = vunpack.c.l.b16 %v6178
    %v6197 = vunpack.c.l.b16 %v6182
    %v6198 = vunpack.c.l.b16 %v6186
    %v6199 = vunpack.c.l.b16 %v6190
    %v6200 = vrot.slane %v6193, 7
    %v6201 = vsel %vm422, %v6200, %v6192
    %v6202 = vrot.slane %v6194, 6
    %v6203 = vsel %vm426, %v6202, %v6201
    %v6204 = vrot.slane %v6195, 5
    %v6205 = vsel %vm430, %v6204, %v6203
    %v6206 = vrot.slane %v6196, 4
    %v6207 = vsel %vm1254, %v6206, %v6205
    %v6208 = vrot.slane %v6197, 3
    %v6209 = vsel %vm1257, %v6208, %v6207
    %v6210 = vrot.slane %v6198, 2
    %v6211 = vsel %vm1260, %v6210, %v6209
    %v6212 = vrot.slane %v6199, 1
    %v6213 = vsel %vm1263, %v6212, %v6211
    %v6214 = vpack.c.b16 %v6213, %v6213
    %v6220 = vunpack.c.l.b16 %v6155
    %v6221 = vunpack.c.l.b16 %v6156
    %v6222 = vunpack.c.l.b16 %v6157
    %v6223 = vunpack.c.l.b16 %v6158
    %v6224 = vunpack.c.l.b16 %v6159
    %v6225 = vpack.c.b16 %v6221, %v6220
    %v6226 = vpack.c.b16 %v6223, %v6222
    %v6227 = vpack.c.b16 %v6224, %v6224
    %v6228 = vrot.slane %v6225, 2
    %v6229 = vrot.slane %v6226, 2
    %v6230 = vsel %vm2718, %v6228, %v6229
    %v6231 = vrot.slane %v6227, 2
    %v6232 = vsel %vm2718, %v6229, %v6231
    %v6235 = vsel %vm1445, %v6214, 0
    %v6238 = vsel %vm1464, %v6232, 0
    %6240 = vmatpush.bf16.msra.mxu0 0
    %6241 = vmatpush.bf16.msra.mxu0 0
    %6242 = vmatpush.bf16.msra.mxu0 0
    %6243 = vmatpush.bf16.msra.mxu0 0
    %6244 = vmatpush.bf16.msra.mxu0 0
    %6245 = vmatpush.bf16.msra.mxu0 0
    %6246 = vmatpush.bf16.msra.mxu0 %v6238
    %6247 = vmatpush.bf16.msra.mxu0 %v6230
    %6248 = vmatmul.bf16.gmra.mxu0 %v6235
    %v6249 = vpop.f32.mrf.mxu0
    %v6250 = vadd.f32 0.0, %v6249
    %v6251 = vpop.f32.mrf.mxu0
    %6252 = vdwg.mxu0
    %v6253 = vadd.f32 %v6154, %v6250
    %v6254 = vld [vmem:[%s7] sm:$0x1]
    %v6256 = vperm.slane %v6254, 0
    %v6258 = vadd.f32 %v6253, %v6256
    %v6259 = vmax.f32 %v6258, 0.0
    %v6260 = vpack.c.bf16 %v6259, %v6259
    %v6261 = vld [vmem:[%s8] sm:$0xf]
    %v6262 = vld [vmem:[%s8 + $0x4] sm:$0x1]
    %6263 = vst [vmem:[#allocation1] ss:$9 sm:$0xff] %v5480
    %v6264 = vld [vmem:[#allocation1] sm:$0xff]
    %6266 = vst [vmem:[#allocation1] ss:$9 sm:$0xff] %v5498
    %v6267 = vld [vmem:[#allocation1] sm:$0xff]
    %6269 = vst [vmem:[#allocation1] ss:$9 sm:$0xff] %v5516
    %v6270 = vld [vmem:[#allocation1] sm:$0xff]
    %6272 = vst [vmem:[#allocation1] ss:$9 sm:$0xff] %v5534
    %v6273 = vld [vmem:[#allocation1] sm:$0xff]
    %6275 = vst [vmem:[#allocation1] ss:$9 sm:$0xff] %v5552
    %v6276 = vld [vmem:[#allocation1] sm:$0xff]
    %6278 = vst [vmem:[#allocation1] ss:$9 sm:$0xff] %v5570
    %v6279 = vld [vmem:[#allocation1] sm:$0xff]
    %6281 = vst [vmem:[#allocation1] ss:$9 sm:$0xff] %v5588
    %v6282 = vld [vmem:[#allocation1] sm:$0xff]
    %6284 = vst [vmem:[#allocation1] ss:$9 sm:$0xff] %v5606
    %v6285 = vld [vmem:[#allocation1] sm:$0xff]
    %v6287 = vunpack.c.l.b16 %v6264
    %v6288 = vunpack.c.l.b16 %v6267
    %v6289 = vunpack.c.l.b16 %v6270
    %v6290 = vunpack.c.l.b16 %v6273
    %v6291 = vunpack.c.l.b16 %v6276
    %v6292 = vunpack.c.l.b16 %v6279
    %v6293 = vunpack.c.l.b16 %v6282
    %v6294 = vunpack.c.l.b16 %v6285
    %v6295 = vrot.slane %v6287, 1
    %v6296 = vsel %vm422, %v6288, %v6295
    %v6297 = vrot.slane %v6289, 7
    %v6298 = vsel %vm426, %v6297, %v6296
    %v6299 = vrot.slane %v6290, 6
    %v6300 = vsel %vm430, %v6299, %v6298
    %v6301 = vrot.slane %v6291, 5
    %v6302 = vsel %vm1254, %v6301, %v6300
    %v6303 = vrot.slane %v6292, 4
    %v6304 = vsel %vm1257, %v6303, %v6302
    %v6305 = vrot.slane %v6293, 3
    %v6306 = vsel %vm1260, %v6305, %v6304
    %v6307 = vrot.slane %v6294, 2
    %v6308 = vsel %vm1263, %v6307, %v6306
    %v6309 = vpack.c.b16 %v6308, %v6308
    %v6311 = vsel %vm1445, %v6309, 0
    %6313 = vmatpush.bf16.msra.mxu0 0
    %6314 = vmatpush.bf16.msra.mxu0 0
    %6315 = vmatpush.bf16.msra.mxu0 0
    %6316 = vmatpush.bf16.msra.mxu0 0
    %6317 = vmatpush.bf16.msra.mxu0 0
    %6318 = vmatpush.bf16.msra.mxu0 0
    %6319 = vmatpush.bf16.msra.mxu0 %v5702
    %6320 = vmatpush.bf16.msra.mxu0 %v5694
    %6321 = vmatmul.bf16.gmra.mxu0 %v6311
    %v6322 = vpop.f32.mrf.mxu0
    %v6323 = vadd.f32 0.0, %v6322
    %v6324 = vpop.f32.mrf.mxu0
    %6325 = vdwg.mxu0
    %6326 = vst [vmem:[#allocation1] ss:$9 sm:$0xff] %v5480
    %v6327 = vld [vmem:[#allocation1] sm:$0xff]
    %6329 = vst [vmem:[#allocation1] ss:$9 sm:$0xff] %v5498
    %v6330 = vld [vmem:[#allocation1] sm:$0xff]
    %6332 = vst [vmem:[#allocation1] ss:$9 sm:$0xff] %v5516
    %v6333 = vld [vmem:[#allocation1] sm:$0xff]
    %6335 = vst [vmem:[#allocation1] ss:$9 sm:$0xff] %v5534
    %v6336 = vld [vmem:[#allocation1] sm:$0xff]
    %6338 = vst [vmem:[#allocation1] ss:$9 sm:$0xff] %v5552
    %v6339 = vld [vmem:[#allocation1] sm:$0xff]
    %6341 = vst [vmem:[#allocation1] ss:$9 sm:$0xff] %v5570
    %v6342 = vld [vmem:[#allocation1] sm:$0xff]
    %6344 = vst [vmem:[#allocation1] ss:$9 sm:$0xff] %v5588
    %v6345 = vld [vmem:[#allocation1] sm:$0xff]
    %6347 = vst [vmem:[#allocation1] ss:$9 sm:$0xff] %v5606
    %v6348 = vld [vmem:[#allocation1] sm:$0xff]
    %v6350 = vunpack.c.l.b16 %v6327
    %v6351 = vunpack.c.l.b16 %v6330
    %v6352 = vunpack.c.l.b16 %v6333
    %v6353 = vunpack.c.l.b16 %v6336
    %v6354 = vunpack.c.l.b16 %v6339
    %v6355 = vunpack.c.l.b16 %v6342
    %v6356 = vunpack.c.l.b16 %v6345
    %v6357 = vunpack.c.l.b16 %v6348
    %v6358 = vrot.slane %v6351, 7
    %v6359 = vsel %vm422, %v6358, %v6350
    %v6360 = vrot.slane %v6352, 6
    %v6361 = vsel %vm426, %v6360, %v6359
    %v6362 = vrot.slane %v6353, 5
    %v6363 = vsel %vm430, %v6362, %v6361
    %v6364 = vrot.slane %v6354, 4
    %v6365 = vsel %vm1254, %v6364, %v6363
    %v6366 = vrot.slane %v6355, 3
    %v6367 = vsel %vm1257, %v6366, %v6365
    %v6368 = vrot.slane %v6356, 2
    %v6369 = vsel %vm1260, %v6368, %v6367
    %v6370 = vrot.slane %v6357, 1
    %v6371 = vsel %vm1263, %v6370, %v6369
    %v6372 = vpack.c.b16 %v6371, %v6371
    %v6374 = vsel %vm1445, %v6372, 0
    %6376 = vmatpush.bf16.msra.mxu0 0
    %6377 = vmatpush.bf16.msra.mxu0 0
    %6378 = vmatpush.bf16.msra.mxu0 0
    %6379 = vmatpush.bf16.msra.mxu0 0
    %6380 = vmatpush.bf16.msra.mxu0 0
    %6381 = vmatpush.bf16.msra.mxu0 0
    %6382 = vmatpush.bf16.msra.mxu0 %v5779
    %6383 = vmatpush.bf16.msra.mxu0 %v5772
    %6384 = vmatmul.bf16.gmra.mxu0 %v6374
    %v6385 = vpop.f32.mrf.mxu0
    %v6386 = vadd.f32 %v6323, %v6385
    %v6387 = vpop.f32.mrf.mxu0
    %6388 = vdwg.mxu0
    %6389 = vst [vmem:[#allocation1] ss:$9 sm:$0xff] %v5483
    %v6390 = vld [vmem:[#allocation1] sm:$0xff]
    %6392 = vst [vmem:[#allocation1] ss:$9 sm:$0xff] %v5501
    %v6393 = vld [vmem:[#allocation1] sm:$0xff]
    %6395 = vst [vmem:[#allocation1] ss:$9 sm:$0xff] %v5519
    %v6396 = vld [vmem:[#allocation1] sm:$0xff]
    %6398 = vst [vmem:[#allocation1] ss:$9 sm:$0xff] %v5537
    %v6399 = vld [vmem:[#allocation1] sm:$0xff]
    %6401 = vst [vmem:[#allocation1] ss:$9 sm:$0xff] %v5555
    %v6402 = vld [vmem:[#allocation1] sm:$0xff]
    %6404 = vst [vmem:[#allocation1] ss:$9 sm:$0xff] %v5573
    %v6405 = vld [vmem:[#allocation1] sm:$0xff]
    %6407 = vst [vmem:[#allocation1] ss:$9 sm:$0xff] %v5591
    %v6408 = vld [vmem:[#allocation1] sm:$0xff]
    %6410 = vst [vmem:[#allocation1] ss:$9 sm:$0xff] %v5609
    %v6411 = vld [vmem:[#allocation1] sm:$0xff]
    %v6413 = vunpack.c.l.b16 %v6390
    %v6414 = vunpack.c.l.b16 %v6393
    %v6415 = vunpack.c.l.b16 %v6396
    %v6416 = vunpack.c.l.b16 %v6399
    %v6417 = vunpack.c.l.b16 %v6402
    %v6418 = vunpack.c.l.b16 %v6405
    %v6419 = vunpack.c.l.b16 %v6408
    %v6420 = vunpack.c.l.b16 %v6411
    %v6421 = vrot.slane %v6414, 7
    %v6422 = vsel %vm422, %v6421, %v6413
    %v6423 = vrot.slane %v6415, 6
    %v6424 = vsel %vm426, %v6423, %v6422
    %v6425 = vrot.slane %v6416, 5
    %v6426 = vsel %vm430, %v6425, %v6424
    %v6427 = vrot.slane %v6417, 4
    %v6428 = vsel %vm1254, %v6427, %v6426
    %v6429 = vrot.slane %v6418, 3
    %v6430 = vsel %vm1257, %v6429, %v6428
    %v6431 = vrot.slane %v6419, 2
    %v6432 = vsel %vm1260, %v6431, %v6430
    %v6433 = vrot.slane %v6420, 1
    %v6434 = vsel %vm1263, %v6433, %v6432
    %v6435 = vpack.c.b16 %v6434, %v6434
    %v6437 = vsel %vm1445, %v6435, 0
    %6439 = vmatpush.bf16.msra.mxu0 0
    %6440 = vmatpush.bf16.msra.mxu0 0
    %6441 = vmatpush.bf16.msra.mxu0 0
    %6442 = vmatpush.bf16.msra.mxu0 0
    %6443 = vmatpush.bf16.msra.mxu0 0
    %6444 = vmatpush.bf16.msra.mxu0 0
    %6445 = vmatpush.bf16.msra.mxu0 %v5877
    %6446 = vmatpush.bf16.msra.mxu0 %v5869
    %6447 = vmatmul.bf16.gmra.mxu0 %v6437
    %v6448 = vpop.f32.mrf.mxu0
    %v6449 = vadd.f32 0.0, %v6448
    %v6450 = vpop.f32.mrf.mxu0
    %6451 = vdwg.mxu0
    %v6452 = vadd.f32 %v6386, %v6449
    %6453 = vst [vmem:[#allocation1] ss:$9 sm:$0xff] %v5483
    %v6454 = vld [vmem:[#allocation1] sm:$0xff]
    %6456 = vst [vmem:[#allocation1] ss:$9 sm:$0xff] %v5501
    %v6457 = vld [vmem:[#allocation1] sm:$0xff]
    %6459 = vst [vmem:[#allocation1] ss:$9 sm:$0xff] %v5519
    %v6460 = vld [vmem:[#allocation1] sm:$0xff]
    %6462 = vst [vmem:[#allocation1] ss:$9 sm:$0xff] %v5537
    %v6463 = vld [vmem:[#allocation1] sm:$0xff]
    %6465 = vst [vmem:[#allocation1] ss:$9 sm:$0xff] %v5555
    %v6466 = vld [vmem:[#allocation1] sm:$0xff]
    %6468 = vst [vmem:[#allocation1] ss:$9 sm:$0xff] %v5573
    %v6469 = vld [vmem:[#allocation1] sm:$0xff]
    %6471 = vst [vmem:[#allocation1] ss:$9 sm:$0xff] %v5591
    %v6472 = vld [vmem:[#allocation1] sm:$0xff]
    %6474 = vst [vmem:[#allocation1] ss:$9 sm:$0xff] %v5609
    %v6475 = vld [vmem:[#allocation1] sm:$0xff]
    %v6477 = vunpack.c.l.b16 %v6454
    %v6478 = vunpack.c.l.b16 %v6457
    %v6479 = vunpack.c.l.b16 %v6460
    %v6480 = vunpack.c.l.b16 %v6463
    %v6481 = vunpack.c.l.b16 %v6466
    %v6482 = vunpack.c.l.b16 %v6469
    %v6483 = vunpack.c.l.b16 %v6472
    %v6484 = vunpack.c.l.b16 %v6475
    %v6485 = vrot.slane %v6477, 1
    %v6486 = vsel %vm422, %v6478, %v6485
    %v6487 = vrot.slane %v6479, 7
    %v6488 = vsel %vm426, %v6487, %v6486
    %v6489 = vrot.slane %v6480, 6
    %v6490 = vsel %vm430, %v6489, %v6488
    %v6491 = vrot.slane %v6481, 5
    %v6492 = vsel %vm1254, %v6491, %v6490
    %v6493 = vrot.slane %v6482, 4
    %v6494 = vsel %vm1257, %v6493, %v6492
    %v6495 = vrot.slane %v6483, 3
    %v6496 = vsel %vm1260, %v6495, %v6494
    %v6497 = vrot.slane %v6484, 2
    %v6498 = vsel %vm1263, %v6497, %v6496
    %v6499 = vpack.c.b16 %v6498, %v6498
    %v6501 = vsel %vm1445, %v6499, 0
    %6503 = vmatpush.bf16.msra.mxu0 0
    %6504 = vmatpush.bf16.msra.mxu0 0
    %6505 = vmatpush.bf16.msra.mxu0 0
    %6506 = vmatpush.bf16.msra.mxu0 0
    %6507 = vmatpush.bf16.msra.mxu0 0
    %6508 = vmatpush.bf16.msra.mxu0 0
    %6509 = vmatpush.bf16.msra.mxu0 %v5962
    %6510 = vmatpush.bf16.msra.mxu0 %v5956
    %6511 = vmatmul.bf16.gmra.mxu0 %v6501
    %v6512 = vpop.f32.mrf.mxu0
    %v6513 = vadd.f32 0.0, %v6512
    %v6514 = vpop.f32.mrf.mxu0
    %6515 = vdwg.mxu0
    %v6516 = vadd.f32 %v6452, %v6513
    %6517 = vst [vmem:[#allocation1] ss:$9 sm:$0xff] %v5486
    %v6518 = vld [vmem:[#allocation1] sm:$0xff]
    %6520 = vst [vmem:[#allocation1] ss:$9 sm:$0xff] %v5504
    %v6521 = vld [vmem:[#allocation1] sm:$0xff]
    %6523 = vst [vmem:[#allocation1] ss:$9 sm:$0xff] %v5522
    %v6524 = vld [vmem:[#allocation1] sm:$0xff]
    %6526 = vst [vmem:[#allocation1] ss:$9 sm:$0xff] %v5540
    %v6527 = vld [vmem:[#allocation1] sm:$0xff]
    %6529 = vst [vmem:[#allocation1] ss:$9 sm:$0xff] %v5558
    %v6530 = vld [vmem:[#allocation1] sm:$0xff]
    %6532 = vst [vmem:[#allocation1] ss:$9 sm:$0xff] %v5576
    %v6533 = vld [vmem:[#allocation1] sm:$0xff]
    %6535 = vst [vmem:[#allocation1] ss:$9 sm:$0xff] %v5594
    %v6536 = vld [vmem:[#allocation1] sm:$0xff]
    %6538 = vst [vmem:[#allocation1] ss:$9 sm:$0xff] %v5612
    %v6539 = vld [vmem:[#allocation1] sm:$0xff]
    %v6541 = vunpack.c.l.b16 %v6518
    %v6542 = vunpack.c.l.b16 %v6521
    %v6543 = vunpack.c.l.b16 %v6524
    %v6544 = vunpack.c.l.b16 %v6527
    %v6545 = vunpack.c.l.b16 %v6530
    %v6546 = vunpack.c.l.b16 %v6533
    %v6547 = vunpack.c.l.b16 %v6536
    %v6548 = vunpack.c.l.b16 %v6539
    %v6549 = vrot.slane %v6542, 7
    %v6550 = vsel %vm422, %v6549, %v6541
    %v6551 = vrot.slane %v6543, 6
    %v6552 = vsel %vm426, %v6551, %v6550
    %v6553 = vrot.slane %v6544, 5
    %v6554 = vsel %vm430, %v6553, %v6552
    %v6555 = vrot.slane %v6545, 4
    %v6556 = vsel %vm1254, %v6555, %v6554
    %v6557 = vrot.slane %v6546, 3
    %v6558 = vsel %vm1257, %v6557, %v6556
    %v6559 = vrot.slane %v6547, 2
    %v6560 = vsel %vm1260, %v6559, %v6558
    %v6561 = vrot.slane %v6548, 1
    %v6562 = vsel %vm1263, %v6561, %v6560
    %v6563 = vpack.c.b16 %v6562, %v6562
    %v6565 = vsel %vm1445, %v6563, 0
    %6567 = vmatpush.bf16.msra.mxu0 0
    %6568 = vmatpush.bf16.msra.mxu0 0
    %6569 = vmatpush.bf16.msra.mxu0 0
    %6570 = vmatpush.bf16.msra.mxu0 0
    %6571 = vmatpush.bf16.msra.mxu0 0
    %6572 = vmatpush.bf16.msra.mxu0 0
    %6573 = vmatpush.bf16.msra.mxu0 %v6048
    %6574 = vmatpush.bf16.msra.mxu0 %v6041
    %6575 = vmatmul.bf16.gmra.mxu0 %v6565
    %v6576 = vpop.f32.mrf.mxu0
    %v6577 = vadd.f32 0.0, %v6576
    %v6578 = vpop.f32.mrf.mxu0
    %6579 = vdwg.mxu0
    %v6580 = vadd.f32 %v6516, %v6577
    %6581 = vst [vmem:[#allocation1] ss:$9 sm:$0xff] %v5486
    %v6582 = vld [vmem:[#allocation1] sm:$0xff]
    %6584 = vst [vmem:[#allocation1] ss:$9 sm:$0xff] %v5504
    %v6585 = vld [vmem:[#allocation1] sm:$0xff]
    %6587 = vst [vmem:[#allocation1] ss:$9 sm:$0xff] %v5522
    %v6588 = vld [vmem:[#allocation1] sm:$0xff]
    %6590 = vst [vmem:[#allocation1] ss:$9 sm:$0xff] %v5540
    %v6591 = vld [vmem:[#allocation1] sm:$0xff]
    %6593 = vst [vmem:[#allocation1] ss:$9 sm:$0xff] %v5558
    %v6594 = vld [vmem:[#allocation1] sm:$0xff]
    %6596 = vst [vmem:[#allocation1] ss:$9 sm:$0xff] %v5576
    %v6597 = vld [vmem:[#allocation1] sm:$0xff]
    %6599 = vst [vmem:[#allocation1] ss:$9 sm:$0xff] %v5594
    %v6600 = vld [vmem:[#allocation1] sm:$0xff]
    %6602 = vst [vmem:[#allocation1] ss:$9 sm:$0xff] %v5612
    %v6603 = vld [vmem:[#allocation1] sm:$0xff]
    %v6605 = vunpack.c.l.b16 %v6582
    %v6606 = vunpack.c.l.b16 %v6585
    %v6607 = vunpack.c.l.b16 %v6588
    %v6608 = vunpack.c.l.b16 %v6591
    %v6609 = vunpack.c.l.b16 %v6594
    %v6610 = vunpack.c.l.b16 %v6597
    %v6611 = vunpack.c.l.b16 %v6600
    %v6612 = vunpack.c.l.b16 %v6603
    %v6613 = vrot.slane %v6605, 1
    %v6614 = vsel %vm422, %v6606, %v6613
    %v6615 = vrot.slane %v6607, 7
    %v6616 = vsel %vm426, %v6615, %v6614
    %v6617 = vrot.slane %v6608, 6
    %v6618 = vsel %vm430, %v6617, %v6616
    %v6619 = vrot.slane %v6609, 5
    %v6620 = vsel %vm1254, %v6619, %v6618
    %v6621 = vrot.slane %v6610, 4
    %v6622 = vsel %vm1257, %v6621, %v6620
    %v6623 = vrot.slane %v6611, 3
    %v6624 = vsel %vm1260, %v6623, %v6622
    %v6625 = vrot.slane %v6612, 2
    %v6626 = vsel %vm1263, %v6625, %v6624
    %v6627 = vpack.c.b16 %v6626, %v6626
    %v6629 = vsel %vm1445, %v6627, 0
    %6631 = vmatpush.bf16.msra.mxu0 0
    %6632 = vmatpush.bf16.msra.mxu0 0
    %6633 = vmatpush.bf16.msra.mxu0 0
    %6634 = vmatpush.bf16.msra.mxu0 0
    %6635 = vmatpush.bf16.msra.mxu0 0
    %6636 = vmatpush.bf16.msra.mxu0 0
    %6637 = vmatpush.bf16.msra.mxu0 %v6139
    %6638 = vmatpush.bf16.msra.mxu0 %v6131
    %6639 = vmatmul.bf16.gmra.mxu0 %v6629
    %v6640 = vpop.f32.mrf.mxu0
    %v6641 = vadd.f32 0.0, %v6640
    %v6642 = vpop.f32.mrf.mxu0
    %6643 = vdwg.mxu0
    %v6644 = vadd.f32 %v6580, %v6641
    %6645 = vst [vmem:[#allocation1] ss:$9 sm:$0xff] %v5489
    %v6646 = vld [vmem:[#allocation1] sm:$0xff]
    %6649 = vst [vmem:[#allocation1] ss:$9 sm:$0xff] %v5507
    %v6650 = vld [vmem:[#allocation1] sm:$0xff]
    %6652 = vst [vmem:[#allocation1] ss:$9 sm:$0xff] %v5525
    %v6653 = vld [vmem:[#allocation1] sm:$0xff]
    %6656 = vst [vmem:[#allocation1] ss:$9 sm:$0xff] %v5543
    %v6657 = vld [vmem:[#allocation1] sm:$0xff]
    %6659 = vst [vmem:[#allocation1] ss:$9 sm:$0xff] %v5561
    %v6660 = vld [vmem:[#allocation1] sm:$0xff]
    %6663 = vst [vmem:[#allocation1] ss:$9 sm:$0xff] %v5579
    %v6664 = vld [vmem:[#allocation1] sm:$0xff]
    %6666 = vst [vmem:[#allocation1] ss:$9 sm:$0xff] %v5597
    %v6667 = vld [vmem:[#allocation1] sm:$0xff]
    %6670 = vst [vmem:[#allocation1] ss:$9 sm:$0xff] %v5615
    %v6671 = vld [vmem:[#allocation1] sm:$0xff]
    %v6673 = vunpack.c.l.b16 %v6646
    %v6674 = vunpack.c.l.b16 %v6650
    %v6675 = vunpack.c.l.b16 %v6653
    %v6676 = vunpack.c.l.b16 %v6657
    %v6677 = vunpack.c.l.b16 %v6660
    %v6678 = vunpack.c.l.b16 %v6664
    %v6679 = vunpack.c.l.b16 %v6667
    %v6680 = vunpack.c.l.b16 %v6671
    %v6681 = vrot.slane %v6674, 7
    %v6682 = vsel %vm422, %v6681, %v6673
    %v6683 = vrot.slane %v6675, 6
    %v6684 = vsel %vm426, %v6683, %v6682
    %v6685 = vrot.slane %v6676, 5
    %v6686 = vsel %vm430, %v6685, %v6684
    %v6687 = vrot.slane %v6677, 4
    %v6688 = vsel %vm1254, %v6687, %v6686
    %v6689 = vrot.slane %v6678, 3
    %v6690 = vsel %vm1257, %v6689, %v6688
    %v6691 = vrot.slane %v6679, 2
    %v6692 = vsel %vm1260, %v6691, %v6690
    %v6693 = vrot.slane %v6680, 1
    %v6694 = vsel %vm1263, %v6693, %v6692
    %v6695 = vpack.c.b16 %v6694, %v6694
    %v6697 = vsel %vm1445, %v6695, 0
    %6699 = vmatpush.bf16.msra.mxu0 0
    %6700 = vmatpush.bf16.msra.mxu0 0
    %6701 = vmatpush.bf16.msra.mxu0 0
    %6702 = vmatpush.bf16.msra.mxu0 0
    %6703 = vmatpush.bf16.msra.mxu0 0
    %6704 = vmatpush.bf16.msra.mxu0 0
    %6705 = vmatpush.bf16.msra.mxu0 %v6238
    %6706 = vmatpush.bf16.msra.mxu0 %v6230
    %6707 = vmatmul.bf16.gmra.mxu0 %v6697
    %v6708 = vpop.f32.mrf.mxu0
    %v6709 = vadd.f32 0.0, %v6708
    %v6710 = vpop.f32.mrf.mxu0
    %6711 = vdwg.mxu0
    %v6712 = vadd.f32 %v6644, %v6709
    %v6713 = vadd.f32 %v6712, %v6256
    %v6714 = vmax.f32 %v6713, 0.0
    %v6715 = vpack.c.bf16 %v6714, %v6714
    %v6716 = vld [vmem:[%s8 + $0x4] sm:$0xe]
    %v6717 = vld [vmem:[%s8 + $0x8] sm:$0x3]
    %v6720 = vunpack.c.l.b16 %v6716
    %v6721 = vunpack.c.l.b16 %v6717
    %v6722 = vpack.c.b16 %v6721, %v6720
    %v6723 = vrot.slane %v6722, 1
    %vm6724 = vcmask 80896
    %v6726 = vsel %vm6724, %v6715, 0
    %vm6728 = vcmask 1044480
    %v6730 = vsel %vm6728, %v6723, 0
    %6732 = vmatpush.bf16.msra.mxu0 0
    %6733 = vmatpush.bf16.msra.mxu0 0
    %6734 = vmatpush.bf16.msra.mxu0 0
    %6735 = vmatpush.bf16.msra.mxu0 0
    %6736 = vmatpush.bf16.msra.mxu0 0
    %6737 = vmatpush.bf16.msra.mxu0 0
    %6738 = vmatpush.bf16.msra.mxu0 0
    %6739 = vmatpush.bf16.msra.mxu0 %v6730
    %6740 = vmatmul.bf16.gmra.mxu0 %v6726
    %v6741 = vpop.f32.mrf.mxu0
    %v6742 = vadd.f32 0.0, %v6741
    %v6743 = vpop.f32.mrf.mxu0
    %6744 = vdwg.mxu0
    %v6747 = vunpack.c.l.b16 %v6261
    %v6748 = vunpack.c.l.b16 %v6262
    %v6749 = vpack.c.b16 %v6748, %v6747
    %v6751 = vsel %vm6724, %v6260, 0
    %v6754 = vsel %vm6728, %v6749, 0
    %6756 = vmatpush.bf16.msra.mxu0 0
    %6757 = vmatpush.bf16.msra.mxu0 0
    %6758 = vmatpush.bf16.msra.mxu0 0
    %6759 = vmatpush.bf16.msra.mxu0 0
    %6760 = vmatpush.bf16.msra.mxu0 0
    %6761 = vmatpush.bf16.msra.mxu0 0
    %6762 = vmatpush.bf16.msra.mxu0 0
    %6763 = vmatpush.bf16.msra.mxu0 %v6754
    %6764 = vmatmul.bf16.gmra.mxu0 %v6751
    %v6765 = vpop.f32.mrf.mxu0
    %v6766 = vadd.f32 %v6742, %v6765
    %v6767 = vpop.f32.mrf.mxu0
    %6768 = vdwg.mxu0
    %6769 = vst [vmem:[#allocation1] ss:$9 sm:$0xff] %v5483
    %v6770 = vld [vmem:[#allocation1] sm:$0xff]
    %6772 = vst [vmem:[#allocation1] ss:$9 sm:$0xff] %v5501
    %v6773 = vld [vmem:[#allocation1] sm:$0xff]
    %6775 = vst [vmem:[#allocation1] ss:$9 sm:$0xff] %v5519
    %v6776 = vld [vmem:[#allocation1] sm:$0xff]
    %6778 = vst [vmem:[#allocation1] ss:$9 sm:$0xff] %v5537
    %v6779 = vld [vmem:[#allocation1] sm:$0xff]
    %6781 = vst [vmem:[#allocation1] ss:$9 sm:$0xff] %v5555
    %v6782 = vld [vmem:[#allocation1] sm:$0xff]
    %6784 = vst [vmem:[#allocation1] ss:$9 sm:$0xff] %v5573
    %v6785 = vld [vmem:[#allocation1] sm:$0xff]
    %6787 = vst [vmem:[#allocation1] ss:$9 sm:$0xff] %v5591
    %v6788 = vld [vmem:[#allocation1] sm:$0xff]
    %6790 = vst [vmem:[#allocation1] ss:$9 sm:$0xff] %v5609
    %v6791 = vld [vmem:[#allocation1] sm:$0xff]
    %v6793 = vunpack.c.l.b16 %v6770
    %v6794 = vunpack.c.l.b16 %v6773
    %v6795 = vunpack.c.l.b16 %v6776
    %v6796 = vunpack.c.l.b16 %v6779
    %v6797 = vunpack.c.l.b16 %v6782
    %v6798 = vunpack.c.l.b16 %v6785
    %v6799 = vunpack.c.l.b16 %v6788
    %v6800 = vunpack.c.l.b16 %v6791
    %v6801 = vrot.slane %v6793, 1
    %v6802 = vsel %vm422, %v6794, %v6801
    %v6803 = vrot.slane %v6795, 7
    %v6804 = vsel %vm426, %v6803, %v6802
    %v6805 = vrot.slane %v6796, 6
    %v6806 = vsel %vm430, %v6805, %v6804
    %v6807 = vrot.slane %v6797, 5
    %v6808 = vsel %vm1254, %v6807, %v6806
    %v6809 = vrot.slane %v6798, 4
    %v6810 = vsel %vm1257, %v6809, %v6808
    %v6811 = vrot.slane %v6799, 3
    %v6812 = vsel %vm1260, %v6811, %v6810
    %v6813 = vrot.slane %v6800, 2
    %v6814 = vsel %vm1263, %v6813, %v6812
    %v6815 = vpack.c.b16 %v6814, %v6814
    %v6817 = vsel %vm1445, %v6815, 0
    %6819 = vmatpush.bf16.msra.mxu0 0
    %6820 = vmatpush.bf16.msra.mxu0 0
    %6821 = vmatpush.bf16.msra.mxu0 0
    %6822 = vmatpush.bf16.msra.mxu0 0
    %6823 = vmatpush.bf16.msra.mxu0 0
    %6824 = vmatpush.bf16.msra.mxu0 0
    %6825 = vmatpush.bf16.msra.mxu0 %v5702
    %6826 = vmatpush.bf16.msra.mxu0 %v5694
    %6827 = vmatmul.bf16.gmra.mxu0 %v6817
    %v6828 = vpop.f32.mrf.mxu0
    %v6829 = vadd.f32 0.0, %v6828
    %v6830 = vpop.f32.mrf.mxu0
    %6831 = vdwg.mxu0
    %6832 = vst [vmem:[#allocation1] ss:$9 sm:$0xff] %v5483
    %v6833 = vld [vmem:[#allocation1] sm:$0xff]
    %6835 = vst [vmem:[#allocation1] ss:$9 sm:$0xff] %v5501
    %v6836 = vld [vmem:[#allocation1] sm:$0xff]
    %6838 = vst [vmem:[#allocation1] ss:$9 sm:$0xff] %v5519
    %v6839 = vld [vmem:[#allocation1] sm:$0xff]
    %6841 = vst [vmem:[#allocation1] ss:$9 sm:$0xff] %v5537
    %v6842 = vld [vmem:[#allocation1] sm:$0xff]
    %6844 = vst [vmem:[#allocation1] ss:$9 sm:$0xff] %v5555
    %v6845 = vld [vmem:[#allocation1] sm:$0xff]
    %6847 = vst [vmem:[#allocation1] ss:$9 sm:$0xff] %v5573
    %v6848 = vld [vmem:[#allocation1] sm:$0xff]
    %6850 = vst [vmem:[#allocation1] ss:$9 sm:$0xff] %v5591
    %v6851 = vld [vmem:[#allocation1] sm:$0xff]
    %6853 = vst [vmem:[#allocation1] ss:$9 sm:$0xff] %v5609
    %v6854 = vld [vmem:[#allocation1] sm:$0xff]
    %v6856 = vunpack.c.l.b16 %v6833
    %v6857 = vunpack.c.l.b16 %v6836
    %v6858 = vunpack.c.l.b16 %v6839
    %v6859 = vunpack.c.l.b16 %v6842
    %v6860 = vunpack.c.l.b16 %v6845
    %v6861 = vunpack.c.l.b16 %v6848
    %v6862 = vunpack.c.l.b16 %v6851
    %v6863 = vunpack.c.l.b16 %v6854
    %v6864 = vrot.slane %v6857, 7
    %v6865 = vsel %vm422, %v6864, %v6856
    %v6866 = vrot.slane %v6858, 6
    %v6867 = vsel %vm426, %v6866, %v6865
    %v6868 = vrot.slane %v6859, 5
    %v6869 = vsel %vm430, %v6868, %v6867
    %v6870 = vrot.slane %v6860, 4
    %v6871 = vsel %vm1254, %v6870, %v6869
    %v6872 = vrot.slane %v6861, 3
    %v6873 = vsel %vm1257, %v6872, %v6871
    %v6874 = vrot.slane %v6862, 2
    %v6875 = vsel %vm1260, %v6874, %v6873
    %v6876 = vrot.slane %v6863, 1
    %v6877 = vsel %vm1263, %v6876, %v6875
    %v6878 = vpack.c.b16 %v6877, %v6877
    %v6880 = vsel %vm1445, %v6878, 0
    %6882 = vmatpush.bf16.msra.mxu0 0
    %6883 = vmatpush.bf16.msra.mxu0 0
    %6884 = vmatpush.bf16.msra.mxu0 0
    %6885 = vmatpush.bf16.msra.mxu0 0
    %6886 = vmatpush.bf16.msra.mxu0 0
    %6887 = vmatpush.bf16.msra.mxu0 0
    %6888 = vmatpush.bf16.msra.mxu0 %v5779
    %6889 = vmatpush.bf16.msra.mxu0 %v5772
    %6890 = vmatmul.bf16.gmra.mxu0 %v6880
    %v6891 = vpop.f32.mrf.mxu0
    %v6892 = vadd.f32 %v6829, %v6891
    %v6893 = vpop.f32.mrf.mxu0
    %6894 = vdwg.mxu0
    %6895 = vst [vmem:[#allocation1] ss:$9 sm:$0xff] %v5486
    %v6896 = vld [vmem:[#allocation1] sm:$0xff]
    %6898 = vst [vmem:[#allocation1] ss:$9 sm:$0xff] %v5504
    %v6899 = vld [vmem:[#allocation1] sm:$0xff]
    %6901 = vst [vmem:[#allocation1] ss:$9 sm:$0xff] %v5522
    %v6902 = vld [vmem:[#allocation1] sm:$0xff]
    %6904 = vst [vmem:[#allocation1] ss:$9 sm:$0xff] %v5540
    %v6905 = vld [vmem:[#allocation1] sm:$0xff]
    %6907 = vst [vmem:[#allocation1] ss:$9 sm:$0xff] %v5558
    %v6908 = vld [vmem:[#allocation1] sm:$0xff]
    %6910 = vst [vmem:[#allocation1] ss:$9 sm:$0xff] %v5576
    %v6911 = vld [vmem:[#allocation1] sm:$0xff]
    %6913 = vst [vmem:[#allocation1] ss:$9 sm:$0xff] %v5594
    %v6914 = vld [vmem:[#allocation1] sm:$0xff]
    %6916 = vst [vmem:[#allocation1] ss:$9 sm:$0xff] %v5612
    %v6917 = vld [vmem:[#allocation1] sm:$0xff]
    %v6919 = vunpack.c.l.b16 %v6896
    %v6920 = vunpack.c.l.b16 %v6899
    %v6921 = vunpack.c.l.b16 %v6902
    %v6922 = vunpack.c.l.b16 %v6905
    %v6923 = vunpack.c.l.b16 %v6908
    %v6924 = vunpack.c.l.b16 %v6911
    %v6925 = vunpack.c.l.b16 %v6914
    %v6926 = vunpack.c.l.b16 %v6917
    %v6927 = vrot.slane %v6920, 7
    %v6928 = vsel %vm422, %v6927, %v6919
    %v6929 = vrot.slane %v6921, 6
    %v6930 = vsel %vm426, %v6929, %v6928
    %v6931 = vrot.slane %v6922, 5
    %v6932 = vsel %vm430, %v6931, %v6930
    %v6933 = vrot.slane %v6923, 4
    %v6934 = vsel %vm1254, %v6933, %v6932
    %v6935 = vrot.slane %v6924, 3
    %v6936 = vsel %vm1257, %v6935, %v6934
    %v6937 = vrot.slane %v6925, 2
    %v6938 = vsel %vm1260, %v6937, %v6936
    %v6939 = vrot.slane %v6926, 1
    %v6940 = vsel %vm1263, %v6939, %v6938
    %v6941 = vpack.c.b16 %v6940, %v6940
    %v6943 = vsel %vm1445, %v6941, 0
    %6945 = vmatpush.bf16.msra.mxu0 0
    %6946 = vmatpush.bf16.msra.mxu0 0
    %6947 = vmatpush.bf16.msra.mxu0 0
    %6948 = vmatpush.bf16.msra.mxu0 0
    %6949 = vmatpush.bf16.msra.mxu0 0
    %6950 = vmatpush.bf16.msra.mxu0 0
    %6951 = vmatpush.bf16.msra.mxu0 %v5877
    %6952 = vmatpush.bf16.msra.mxu0 %v5869
    %6953 = vmatmul.bf16.gmra.mxu0 %v6943
    %v6954 = vpop.f32.mrf.mxu0
    %v6955 = vadd.f32 0.0, %v6954
    %v6956 = vpop.f32.mrf.mxu0
    %6957 = vdwg.mxu0
    %v6958 = vadd.f32 %v6892, %v6955
    %6959 = vst [vmem:[#allocation1] ss:$9 sm:$0xff] %v5486
    %v6960 = vld [vmem:[#allocation1] sm:$0xff]
    %6962 = vst [vmem:[#allocation1] ss:$9 sm:$0xff] %v5504
    %v6963 = vld [vmem:[#allocation1] sm:$0xff]
    %6965 = vst [vmem:[#allocation1] ss:$9 sm:$0xff] %v5522
    %v6966 = vld [vmem:[#allocation1] sm:$0xff]
    %6968 = vst [vmem:[#allocation1] ss:$9 sm:$0xff] %v5540
    %v6969 = vld [vmem:[#allocation1] sm:$0xff]
    %6971 = vst [vmem:[#allocation1] ss:$9 sm:$0xff] %v5558
    %v6972 = vld [vmem:[#allocation1] sm:$0xff]
    %6974 = vst [vmem:[#allocation1] ss:$9 sm:$0xff] %v5576
    %v6975 = vld [vmem:[#allocation1] sm:$0xff]
    %6977 = vst [vmem:[#allocation1] ss:$9 sm:$0xff] %v5594
    %v6978 = vld [vmem:[#allocation1] sm:$0xff]
    %6980 = vst [vmem:[#allocation1] ss:$9 sm:$0xff] %v5612
    %v6981 = vld [vmem:[#allocation1] sm:$0xff]
    %v6983 = vunpack.c.l.b16 %v6960
    %v6984 = vunpack.c.l.b16 %v6963
    %v6985 = vunpack.c.l.b16 %v6966
    %v6986 = vunpack.c.l.b16 %v6969
    %v6987 = vunpack.c.l.b16 %v6972
    %v6988 = vunpack.c.l.b16 %v6975
    %v6989 = vunpack.c.l.b16 %v6978
    %v6990 = vunpack.c.l.b16 %v6981
    %v6991 = vrot.slane %v6983, 1
    %v6992 = vsel %vm422, %v6984, %v6991
    %v6993 = vrot.slane %v6985, 7
    %v6994 = vsel %vm426, %v6993, %v6992
    %v6995 = vrot.slane %v6986, 6
    %v6996 = vsel %vm430, %v6995, %v6994
    %v6997 = vrot.slane %v6987, 5
    %v6998 = vsel %vm1254, %v6997, %v6996
    %v6999 = vrot.slane %v6988, 4
    %v7000 = vsel %vm1257, %v6999, %v6998
    %v7001 = vrot.slane %v6989, 3
    %v7002 = vsel %vm1260, %v7001, %v7000
    %v7003 = vrot.slane %v6990, 2
    %v7004 = vsel %vm1263, %v7003, %v7002
    %v7005 = vpack.c.b16 %v7004, %v7004
    %v7007 = vsel %vm1445, %v7005, 0
    %7009 = vmatpush.bf16.msra.mxu0 0
    %7010 = vmatpush.bf16.msra.mxu0 0
    %7011 = vmatpush.bf16.msra.mxu0 0
    %7012 = vmatpush.bf16.msra.mxu0 0
    %7013 = vmatpush.bf16.msra.mxu0 0
    %7014 = vmatpush.bf16.msra.mxu0 0
    %7015 = vmatpush.bf16.msra.mxu0 %v5962
    %7016 = vmatpush.bf16.msra.mxu0 %v5956
    %7017 = vmatmul.bf16.gmra.mxu0 %v7007
    %v7018 = vpop.f32.mrf.mxu0
    %v7019 = vadd.f32 0.0, %v7018
    %v7020 = vpop.f32.mrf.mxu0
    %7021 = vdwg.mxu0
    %v7022 = vadd.f32 %v6958, %v7019
    %7023 = vst [vmem:[#allocation1] ss:$9 sm:$0xff] %v5489
    %v7024 = vld [vmem:[#allocation1] sm:$0xff]
    %7026 = vst [vmem:[#allocation1] ss:$9 sm:$0xff] %v5507
    %v7027 = vld [vmem:[#allocation1] sm:$0xff]
    %7029 = vst [vmem:[#allocation1] ss:$9 sm:$0xff] %v5525
    %v7030 = vld [vmem:[#allocation1] sm:$0xff]
    %7032 = vst [vmem:[#allocation1] ss:$9 sm:$0xff] %v5543
    %v7033 = vld [vmem:[#allocation1] sm:$0xff]
    %7035 = vst [vmem:[#allocation1] ss:$9 sm:$0xff] %v5561
    %v7036 = vld [vmem:[#allocation1] sm:$0xff]
    %7038 = vst [vmem:[#allocation1] ss:$9 sm:$0xff] %v5579
    %v7039 = vld [vmem:[#allocation1] sm:$0xff]
    %7041 = vst [vmem:[#allocation1] ss:$9 sm:$0xff] %v5597
    %v7042 = vld [vmem:[#allocation1] sm:$0xff]
    %7044 = vst [vmem:[#allocation1] ss:$9 sm:$0xff] %v5615
    %v7045 = vld [vmem:[#allocation1] sm:$0xff]
    %v7047 = vunpack.c.l.b16 %v7024
    %v7048 = vunpack.c.l.b16 %v7027
    %v7049 = vunpack.c.l.b16 %v7030
    %v7050 = vunpack.c.l.b16 %v7033
    %v7051 = vunpack.c.l.b16 %v7036
    %v7052 = vunpack.c.l.b16 %v7039
    %v7053 = vunpack.c.l.b16 %v7042
    %v7054 = vunpack.c.l.b16 %v7045
    %v7055 = vrot.slane %v7048, 7
    %v7056 = vsel %vm422, %v7055, %v7047
    %v7057 = vrot.slane %v7049, 6
    %v7058 = vsel %vm426, %v7057, %v7056
    %v7059 = vrot.slane %v7050, 5
    %v7060 = vsel %vm430, %v7059, %v7058
    %v7061 = vrot.slane %v7051, 4
    %v7062 = vsel %vm1254, %v7061, %v7060
    %v7063 = vrot.slane %v7052, 3
    %v7064 = vsel %vm1257, %v7063, %v7062
    %v7065 = vrot.slane %v7053, 2
    %v7066 = vsel %vm1260, %v7065, %v7064
    %v7067 = vrot.slane %v7054, 1
    %v7068 = vsel %vm1263, %v7067, %v7066
    %v7069 = vpack.c.b16 %v7068, %v7068
    %v7071 = vsel %vm1445, %v7069, 0
    %7073 = vmatpush.bf16.msra.mxu0 0
    %7074 = vmatpush.bf16.msra.mxu0 0
    %7075 = vmatpush.bf16.msra.mxu0 0
    %7076 = vmatpush.bf16.msra.mxu0 0
    %7077 = vmatpush.bf16.msra.mxu0 0
    %7078 = vmatpush.bf16.msra.mxu0 0
    %7079 = vmatpush.bf16.msra.mxu0 %v6048
    %7080 = vmatpush.bf16.msra.mxu0 %v6041
    %7081 = vmatmul.bf16.gmra.mxu0 %v7071
    %v7082 = vpop.f32.mrf.mxu0
    %v7083 = vadd.f32 0.0, %v7082
    %v7084 = vpop.f32.mrf.mxu0
    %7085 = vdwg.mxu0
    %v7086 = vadd.f32 %v7022, %v7083
    %7087 = vst [vmem:[#allocation1] ss:$9 sm:$0xff] %v5489
    %v7088 = vld [vmem:[#allocation1] sm:$0xff]
    %7090 = vst [vmem:[#allocation1] ss:$9 sm:$0xff] %v5507
    %v7091 = vld [vmem:[#allocation1] sm:$0xff]
    %7093 = vst [vmem:[#allocation1] ss:$9 sm:$0xff] %v5525
    %v7094 = vld [vmem:[#allocation1] sm:$0xff]
    %7096 = vst [vmem:[#allocation1] ss:$9 sm:$0xff] %v5543
    %v7097 = vld [vmem:[#allocation1] sm:$0xff]
    %7099 = vst [vmem:[#allocation1] ss:$9 sm:$0xff] %v5561
    %v7100 = vld [vmem:[#allocation1] sm:$0xff]
    %7102 = vst [vmem:[#allocation1] ss:$9 sm:$0xff] %v5579
    %v7103 = vld [vmem:[#allocation1] sm:$0xff]
    %7105 = vst [vmem:[#allocation1] ss:$9 sm:$0xff] %v5597
    %v7106 = vld [vmem:[#allocation1] sm:$0xff]
    %7108 = vst [vmem:[#allocation1] ss:$9 sm:$0xff] %v5615
    %v7109 = vld [vmem:[#allocation1] sm:$0xff]
    %v7111 = vunpack.c.l.b16 %v7088
    %v7112 = vunpack.c.l.b16 %v7091
    %v7113 = vunpack.c.l.b16 %v7094
    %v7114 = vunpack.c.l.b16 %v7097
    %v7115 = vunpack.c.l.b16 %v7100
    %v7116 = vunpack.c.l.b16 %v7103
    %v7117 = vunpack.c.l.b16 %v7106
    %v7118 = vunpack.c.l.b16 %v7109
    %v7119 = vrot.slane %v7111, 1
    %v7120 = vsel %vm422, %v7112, %v7119
    %v7121 = vrot.slane %v7113, 7
    %v7122 = vsel %vm426, %v7121, %v7120
    %v7123 = vrot.slane %v7114, 6
    %v7124 = vsel %vm430, %v7123, %v7122
    %v7125 = vrot.slane %v7115, 5
    %v7126 = vsel %vm1254, %v7125, %v7124
    %v7127 = vrot.slane %v7116, 4
    %v7128 = vsel %vm1257, %v7127, %v7126
    %v7129 = vrot.slane %v7117, 3
    %v7130 = vsel %vm1260, %v7129, %v7128
    %v7131 = vrot.slane %v7118, 2
    %v7132 = vsel %vm1263, %v7131, %v7130
    %v7133 = vpack.c.b16 %v7132, %v7132
    %v7135 = vsel %vm1445, %v7133, 0
    %7137 = vmatpush.bf16.msra.mxu0 0
    %7138 = vmatpush.bf16.msra.mxu0 0
    %7139 = vmatpush.bf16.msra.mxu0 0
    %7140 = vmatpush.bf16.msra.mxu0 0
    %7141 = vmatpush.bf16.msra.mxu0 0
    %7142 = vmatpush.bf16.msra.mxu0 0
    %7143 = vmatpush.bf16.msra.mxu0 %v6139
    %7144 = vmatpush.bf16.msra.mxu0 %v6131
    %7145 = vmatmul.bf16.gmra.mxu0 %v7135
    %v7146 = vpop.f32.mrf.mxu0
    %v7147 = vadd.f32 0.0, %v7146
    %v7148 = vpop.f32.mrf.mxu0
    %7149 = vdwg.mxu0
    %v7150 = vadd.f32 %v7086, %v7147
    %7152 = vst [vmem:[#allocation1] ss:$9 sm:$0xff] %v5492
    %v7153 = vld [vmem:[#allocation1] sm:$0xff]
    %7156 = vst [vmem:[#allocation1] ss:$9 sm:$0xff] %v5510
    %v7157 = vld [vmem:[#allocation1] sm:$0xff]
    %7160 = vst [vmem:[#allocation1] ss:$9 sm:$0xff] %v5528
    %v7161 = vld [vmem:[#allocation1] sm:$0xff]
    %7164 = vst [vmem:[#allocation1] ss:$9 sm:$0xff] %v5546
    %v7165 = vld [vmem:[#allocation1] sm:$0xff]
    %7168 = vst [vmem:[#allocation1] ss:$9 sm:$0xff] %v5564
    %v7169 = vld [vmem:[#allocation1] sm:$0xff]
    %7172 = vst [vmem:[#allocation1] ss:$9 sm:$0xff] %v5582
    %v7173 = vld [vmem:[#allocation1] sm:$0xff]
    %7176 = vst [vmem:[#allocation1] ss:$9 sm:$0xff] %v5600
    %v7177 = vld [vmem:[#allocation1] sm:$0xff]
    %7180 = vst [vmem:[#allocation1] ss:$9 sm:$0xff] %v5618
    %v7181 = vld [vmem:[#allocation1] sm:$0xff]
    %v7183 = vunpack.c.l.b16 %v7153
    %v7184 = vunpack.c.l.b16 %v7157
    %v7185 = vunpack.c.l.b16 %v7161
    %v7186 = vunpack.c.l.b16 %v7165
    %v7187 = vunpack.c.l.b16 %v7169
    %v7188 = vunpack.c.l.b16 %v7173
    %v7189 = vunpack.c.l.b16 %v7177
    %v7190 = vunpack.c.l.b16 %v7181
    %v7191 = vrot.slane %v7184, 7
    %v7192 = vsel %vm422, %v7191, %v7183
    %v7193 = vrot.slane %v7185, 6
    %v7194 = vsel %vm426, %v7193, %v7192
    %v7195 = vrot.slane %v7186, 5
    %v7196 = vsel %vm430, %v7195, %v7194
    %v7197 = vrot.slane %v7187, 4
    %v7198 = vsel %vm1254, %v7197, %v7196
    %v7199 = vrot.slane %v7188, 3
    %v7200 = vsel %vm1257, %v7199, %v7198
    %v7201 = vrot.slane %v7189, 2
    %v7202 = vsel %vm1260, %v7201, %v7200
    %v7203 = vrot.slane %v7190, 1
    %v7204 = vsel %vm1263, %v7203, %v7202
    %v7205 = vpack.c.b16 %v7204, %v7204
    %v7207 = vsel %vm1445, %v7205, 0
    %7209 = vmatpush.bf16.msra.mxu0 0
    %7210 = vmatpush.bf16.msra.mxu0 0
    %7211 = vmatpush.bf16.msra.mxu0 0
    %7212 = vmatpush.bf16.msra.mxu0 0
    %7213 = vmatpush.bf16.msra.mxu0 0
    %7214 = vmatpush.bf16.msra.mxu0 0
    %7215 = vmatpush.bf16.msra.mxu0 %v6238
    %7216 = vmatpush.bf16.msra.mxu0 %v6230
    %7217 = vmatmul.bf16.gmra.mxu0 %v7207
    %v7218 = vpop.f32.mrf.mxu0
    %v7219 = vadd.f32 0.0, %v7218
    %v7220 = vpop.f32.mrf.mxu0
    %7221 = vdwg.mxu0
    %v7222 = vadd.f32 %v7150, %v7219
    %v7223 = vadd.f32 %v7222, %v6256
    %v7224 = vmax.f32 %v7223, 0.0
    %v7225 = vpack.c.bf16 %v7224, %v7224
    %v7226 = vld [vmem:[%s8 + $0x8] sm:$0xc]
    %v7227 = vld [vmem:[%s8 + $0xc] sm:$0x7]
    %v7230 = vunpack.c.l.b16 %v7226
    %v7231 = vunpack.c.l.b16 %v7227
    %v7232 = vpack.c.b16 %v7231, %v7230
    %v7233 = vrot.slane %v7232, 2
    %v7235 = vsel %vm6724, %v7225, 0
    %v7238 = vsel %vm6728, %v7233, 0
    %7240 = vmatpush.bf16.msra.mxu0 0
    %7241 = vmatpush.bf16.msra.mxu0 0
    %7242 = vmatpush.bf16.msra.mxu0 0
    %7243 = vmatpush.bf16.msra.mxu0 0
    %7244 = vmatpush.bf16.msra.mxu0 0
    %7245 = vmatpush.bf16.msra.mxu0 0
    %7246 = vmatpush.bf16.msra.mxu0 0
    %7247 = vmatpush.bf16.msra.mxu0 %v7238
    %7248 = vmatmul.bf16.gmra.mxu0 %v7235
    %v7249 = vpop.f32.mrf.mxu0
    %v7250 = vadd.f32 0.0, %v7249
    %v7251 = vpop.f32.mrf.mxu0
    %7252 = vdwg.mxu0
    %v7253 = vadd.f32 %v6766, %v7250
    %v7254 = vld [vmem:[%s9] sm:$0x1]
    %v7256 = vperm.slane %v7254, 0
    %v7258 = vadd.f32 %v7253, %v7256
    %v7259 = vmax.f32 %v7258, 0.0
    %v7260 = vpack.c.bf16 %v7259, %v7259
    %v7261 = vld [vmem:[%s10] sm:$0xf]
    %v7262 = vld [vmem:[%s10 + $0x4] sm:$0xf]
    %v7263 = vld [vmem:[%s10 + $0x8] sm:$0xf]
    %v7264 = vld [vmem:[%s10 + $0xc] sm:$0xf]
    %v7265 = vld [vmem:[%s10 + $0x10] sm:$0xf]
    %v7266 = vld [vmem:[%s10 + $0x14] sm:$0xf]
    %v7267 = vld [vmem:[%s10 + $0x18] sm:$0xf]
    %v7268 = vld [vmem:[%s10 + $0x1c] sm:$0xf]
    %v7269 = vld [vmem:[%s10 + $0x20] sm:$0xf]
    %v7270 = vld [vmem:[%s10 + $0x24] sm:$0xf]
    %v7271 = vld [vmem:[%s10 + $0x28] sm:$0xf]
    %v7272 = vld [vmem:[%s10 + $0x2c] sm:$0xf]
    %v7273 = vld [vmem:[%s10 + $0x30] sm:$0xf]
    %v7274 = vld [vmem:[%s10 + $0x34] sm:$0xf]
    %v7275 = vld [vmem:[%s10 + $0x38] sm:$0xf]
    %v7276 = vld [vmem:[%s10 + $0x3c] sm:$0xf]
    %v7277 = vld [vmem:[%s11] sm:$0x1]
    %v7279 = vperm.slane %v7277, 0
    %v7297 = vunpack.c.l.b16 %v7261
    %v7298 = vunpack.c.l.b16 %v7262
    %v7299 = vunpack.c.l.b16 %v7263
    %v7300 = vunpack.c.l.b16 %v7264
    %v7301 = vunpack.c.l.b16 %v7265
    %v7302 = vunpack.c.l.b16 %v7266
    %v7303 = vunpack.c.l.b16 %v7267
    %v7304 = vunpack.c.l.b16 %v7268
    %v7305 = vunpack.c.l.b16 %v7269
    %v7306 = vunpack.c.l.b16 %v7270
    %v7307 = vunpack.c.l.b16 %v7271
    %v7308 = vunpack.c.l.b16 %v7272
    %v7309 = vunpack.c.l.b16 %v7273
    %v7310 = vunpack.c.l.b16 %v7274
    %v7311 = vunpack.c.l.b16 %v7275
    %v7312 = vunpack.c.l.b16 %v7276
    %v7313 = vpack.c.b16 %v7298, %v7297
    %v7314 = vpack.c.b16 %v7300, %v7299
    %v7315 = vpack.c.b16 %v7302, %v7301
    %v7316 = vpack.c.b16 %v7304, %v7303
    %v7317 = vpack.c.b16 %v7306, %v7305
    %v7318 = vpack.c.b16 %v7308, %v7307
    %v7319 = vpack.c.b16 %v7310, %v7309
    %v7320 = vpack.c.b16 %v7312, %v7311
    %7329 = vmatpush.bf16.msra.mxu0 %v7320
    %7330 = vmatpush.bf16.msra.mxu0 %v7319
    %7331 = vmatpush.bf16.msra.mxu0 %v7318
    %7332 = vmatpush.bf16.msra.mxu0 %v7317
    %7333 = vmatpush.bf16.msra.mxu0 %v7316
    %7334 = vmatpush.bf16.msra.mxu0 %v7315
    %7335 = vmatpush.bf16.msra.mxu0 %v7314
    %7336 = vmatpush.bf16.msra.mxu0 %v7313
    %7337 = vmatmul.bf16.gmra.mxu0 %v7260
    %v7338 = vpop.f32.mrf.mxu0
    %v7339 = vadd.f32 %v7279, %v7338
    %v7340 = vpop.f32.mrf.mxu0
    %7341 = vdwg.mxu0
    %v7342 = vmax.f32 %v7339, 0.0
    %v7343 = vld [vmem:[%s12] sm:$0x1]
    %v7345 = vperm.slane %v7343, 0
    %v7347 = vmul.f32 %v7342, %v7345
    %vm7348 = vcmask 523264
    %v7349 = vsel %vm7348, %v7347, 0.0
    %7350 = vadd.xlane.f32.xlu0 %v7349
    %v7351 = vpop.xlane.xlu0 %7350
    %v7352 = vld [vmem:[#allocation2] sm:$0x1]
    %v7354 = vperm.slane %v7352, 0
    %v7356 = vadd.f32 %v7351, %v7354
    %v7357 = vmax.f32 %v7356, 0.0
    %v7359 = vrot.slane %v7357, 4
    %v7361 = vrot.slane %v7357, 5
    %v7362 = vrot.slane %v7361, 4
    %v7363 = vrot.slane %v7359, 5
    %v7364 = vrot.slane %v7363, 4
    %v7367 = vmax.f32 %v7357, %v7362
    %v7368 = vmax.f32 %v7359, %v7364
    %v7369 = vrot.slane %v7357, 6
    %v7370 = vrot.slane %v7369, 4
    %v7371 = vrot.slane %v7359, 6
    %v7372 = vrot.slane %v7371, 4
    %v7375 = vmax.f32 %v7367, %v7370
    %v7376 = vmax.f32 %v7368, %v7372
    %v7377 = vrot.slane %v7357, 7
    %v7378 = vrot.slane %v7377, 4
    %v7379 = vrot.slane %v7359, 7
    %v7380 = vrot.slane %v7379, 4
    %v7383 = vmax.f32 %v7375, %v7378
    %v7384 = vmax.f32 %v7376, %v7380
    %v7385 = vsub.f32 %v7357, %v7383
    %v7386 = vsub.f32 %v7359, %v7384
    %v7387 = vmul.f32 %v7385, 1.442695
    %v7388 = vpow.pop %v7387
    %v7389 = vmul.f32 %v7386, 1.442695
    %v7390 = vpow.pop %v7389
    %v7393 = vrot.slane %v7383, 7
    %v7394 = vrot.slane %v7384, 7
    %v7397 = vsub.f32 %v7357, %v7393
    %v7398 = vsub.f32 %v7359, %v7394
    %v7399 = vmul.f32 %v7397, 1.442695
    %v7400 = vpow.pop %v7399
    %v7401 = vmul.f32 %v7398, 1.442695
    %v7402 = vpow.pop %v7401
    %v7403 = vrot.slane %v7383, 6
    %v7404 = vrot.slane %v7384, 6
    %v7407 = vsub.f32 %v7357, %v7403
    %v7408 = vsub.f32 %v7359, %v7404
    %v7409 = vmul.f32 %v7407, 1.442695
    %v7410 = vpow.pop %v7409
    %v7411 = vmul.f32 %v7408, 1.442695
    %v7412 = vpow.pop %v7411
    %v7413 = vrot.slane %v7383, 5
    %v7414 = vrot.slane %v7384, 5
    %v7417 = vsub.f32 %v7357, %v7413
    %v7418 = vsub.f32 %v7359, %v7414
    %v7419 = vmul.f32 %v7417, 1.442695
    %v7420 = vpow.pop %v7419
    %v7421 = vmul.f32 %v7418, 1.442695
    %v7422 = vpow.pop %v7421
    %v7425 = vrot.slane %v7400, 5
    %v7426 = vrot.slane %v7425, 4
    %v7427 = vrot.slane %v7402, 5
    %v7428 = vrot.slane %v7427, 4
    %v7431 = vadd.f32 %v7388, %v7426
    %v7432 = vadd.f32 %v7390, %v7428
    %v7435 = vrot.slane %v7410, 6
    %v7436 = vrot.slane %v7435, 4
    %v7437 = vrot.slane %v7412, 6
    %v7438 = vrot.slane %v7437, 4
    %v7441 = vadd.f32 %v7431, %v7436
    %v7442 = vadd.f32 %v7432, %v7438
    %v7445 = vrot.slane %v7420, 7
    %v7446 = vrot.slane %v7445, 4
    %v7447 = vrot.slane %v7422, 7
    %v7448 = vrot.slane %v7447, 4
    %v7451 = vadd.f32 %v7441, %v7446
    %v7452 = vadd.f32 %v7442, %v7448
    %v7453 = vrcp.pop %v7451
    %v7454 = vmul.f32 %v7451, %v7453
    %v7455 = vsub.f32 1.0, %v7454
    %v7456 = vmul.f32 %v7453, %v7455
    %v7457 = vadd.f32 %v7453, %v7456
    %vm7458 = vweird.f32 %v7451
    %vm7459 = vweird.f32 %v7453
    %vm7460 = vmor %vm7458, %vm7459
    %v7461 = vsel %vm7460, %v7453, %v7457
    %v7462 = vand.u32 2147483647, %v7451
    %vm7463 = vcmp.eq.f32.partialorder %v7462, 8.507059e+37
    %v7464 = vand.u32 %v7451, 2147483648
    %v7465 = vor.u32 1.1754944e-38, %v7464
    %v7466 = vsel %vm7463, %v7465, %v7461
    %v7467 = vrcp.pop %v7452
    %v7468 = vmul.f32 %v7452, %v7467
    %v7469 = vsub.f32 1.0, %v7468
    %v7470 = vmul.f32 %v7467, %v7469
    %v7471 = vadd.f32 %v7467, %v7470
    %vm7472 = vweird.f32 %v7452
    %vm7473 = vweird.f32 %v7467
    %vm7474 = vmor %vm7472, %vm7473
    %v7475 = vsel %vm7474, %v7467, %v7471
    %v7476 = vand.u32 2147483647, %v7452
    %vm7477 = vcmp.eq.f32.partialorder %v7476, 8.507059e+37
    %v7478 = vand.u32 %v7452, 2147483648
    %v7479 = vor.u32 1.1754944e-38, %v7478
    %v7480 = vsel %vm7477, %v7479, %v7475
    %v7481 = vld [vmem:[%s1] sm:$0xff]
    %v7483 = vrot.slane %v7481, 4
    %v7485 = vmul.f32 %v7388, %v7466
    %v7486 = vmul.f32 %v7390, %v7480
    %7488 = vset.pattern.permute.xlu0 0
    %7489 = vperm.xlu0 %7488, %v7485
    %v7490 = vpop.permute.xlu0 %7489
    %v7493 = vunpack.c.l.s4 839922192
    %v7494 = vunpack.c.0.s8 %v7493
    %v7495 = vperm.slane %v7490, %v7494
    %7497 = vset.pattern.permute.xlu0 0
    %7498 = vperm.xlu0 %7497, %v7486
    %v7499 = vpop.permute.xlu0 %7498
    %v7502 = vunpack.c.l.s4 839922192
    %v7503 = vunpack.c.0.s8 %v7502
    %v7504 = vperm.slane %v7499, %v7503
    %v7505 = vmul.f32 %v7495, %v7481
    %v7506 = vmul.f32 %v7504, %v7483
    %v7509 = vrot.slane %v7466, 7
    %v7510 = vrot.slane %v7480, 7
    %v7513 = vmul.f32 %v7400, %v7509
    %v7514 = vmul.f32 %v7402, %v7510
    %7516 = vset.pattern.permute.xlu0 0
    %7517 = vperm.xlu0 %7516, %v7513
    %v7518 = vpop.permute.xlu0 %7517
    %v7521 = vunpack.c.l.s4 839922192
    %v7522 = vunpack.c.0.s8 %v7521
    %v7523 = vperm.slane %v7518, %v7522
    %7525 = vset.pattern.permute.xlu0 0
    %7526 = vperm.xlu0 %7525, %v7514
    %v7527 = vpop.permute.xlu0 %7526
    %v7530 = vunpack.c.l.s4 839922192
    %v7531 = vunpack.c.0.s8 %v7530
    %v7532 = vperm.slane %v7527, %v7531
    %v7533 = vmul.f32 %v7523, %v7481
    %v7534 = vmul.f32 %v7532, %v7483
    %v7537 = vrot.slane %v7533, 5
    %v7538 = vrot.slane %v7537, 4
    %v7539 = vrot.slane %v7534, 5
    %v7540 = vrot.slane %v7539, 4
    %v7543 = vadd.f32 %v7505, %v7538
    %v7544 = vadd.f32 %v7506, %v7540
    %v7545 = vrot.slane %v7466, 6
    %v7546 = vrot.slane %v7480, 6
    %v7549 = vmul.f32 %v7410, %v7545
    %v7550 = vmul.f32 %v7412, %v7546
    %7552 = vset.pattern.permute.xlu0 0
    %7553 = vperm.xlu0 %7552, %v7549
    %v7554 = vpop.permute.xlu0 %7553
    %v7557 = vunpack.c.l.s4 839922192
    %v7558 = vunpack.c.0.s8 %v7557
    %v7559 = vperm.slane %v7554, %v7558
    %7561 = vset.pattern.permute.xlu0 0
    %7562 = vperm.xlu0 %7561, %v7550
    %v7563 = vpop.permute.xlu0 %7562
    %v7566 = vunpack.c.l.s4 839922192
    %v7567 = vunpack.c.0.s8 %v7566
    %v7568 = vperm.slane %v7563, %v7567
    %v7569 = vmul.f32 %v7559, %v7481
    %v7570 = vmul.f32 %v7568, %v7483
    %v7573 = vrot.slane %v7569, 6
    %v7574 = vrot.slane %v7573, 4
    %v7575 = vrot.slane %v7570, 6
    %v7576 = vrot.slane %v7575, 4
    %v7579 = vadd.f32 %v7543, %v7574
    %v7580 = vadd.f32 %v7544, %v7576
    %v7581 = vrot.slane %v7466, 5
    %v7582 = vrot.slane %v7480, 5
    %v7585 = vmul.f32 %v7420, %v7581
    %v7586 = vmul.f32 %v7422, %v7582
    %7588 = vset.pattern.permute.xlu0 0
    %7589 = vperm.xlu0 %7588, %v7585
    %v7590 = vpop.permute.xlu0 %7589
    %v7593 = vunpack.c.l.s4 839922192
    %v7594 = vunpack.c.0.s8 %v7593
    %v7595 = vperm.slane %v7590, %v7594
    %7597 = vset.pattern.permute.xlu0 0
    %7598 = vperm.xlu0 %7597, %v7586
    %v7599 = vpop.permute.xlu0 %7598
    %v7602 = vunpack.c.l.s4 839922192
    %v7603 = vunpack.c.0.s8 %v7602
    %v7604 = vperm.slane %v7599, %v7603
    %v7605 = vmul.f32 %v7595, %v7481
    %v7606 = vmul.f32 %v7604, %v7483
    %v7609 = vrot.slane %v7605, 7
    %v7610 = vrot.slane %v7609, 4
    %v7611 = vrot.slane %v7606, 7
    %v7612 = vrot.slane %v7611, 4
    %v7615 = vadd.f32 %v7579, %v7610
    %v7616 = vadd.f32 %v7580, %v7612
    %v7619 = vperm.slane %v7615, 0
    %v7620 = vperm.slane %v7616, 0
    %v7621 = vsel %vm422, %v7620, %v7619
    %7623 = vst [vmem:[#allocation3] sm:$0x3] %v7621
    // Predicated region
    $region58: #{de_layer_forward.1} parent=1 // pred_check
      _
    $region59: #{de_layer_forward.1} parent=1 // pred_check_branch
      %7625 = sbr.rel (0) target = $region61
    $region60: #{de_layer_forward.1} parent=1 // pred_region
      %7627 = vsyncadd [#allocation4], 0
      %s7629 = sshll.u32 [#allocation3], 4
      %s7630 = int_to_ptr.vmem [resolvable:$true] %s7629
      %s7631 = sshll.u32 %s14, 4
      %s7632 = int_to_ptr.hbm [resolvable:$true] %s7631
      %7634 = dma.vmem_to_hbm [thread:$0]  %s7630, 32, %s7632, [#allocation4]
    $region61: #{de_layer_forward.1} parent=1 // pred_fallthru
      _
    // Predicated region
    $region62: #{de_layer_forward.1} parent=1 // pred_check
      _
    $region63: #{de_layer_forward.1} parent=1 // pred_check_branch
      %7636 = sbr.rel (0) target = $region65
    $region64: #{de_layer_forward.1} parent=1 // pred_region
      %7638 = dma.done [#allocation4], 32
    $region65: #{de_layer_forward.1} parent=1 // pred_fallthru
      _
    %7639 = vsyncpa [#allocation4], 1

</llo_original>
